<compile_context>
chip_gen: v7x
topology: tpu7x:2x2x1
jax: 0.10.0
libtpu: 0.0.40
codegen_flags: <defaults>
</compile_context>

<pallas_src>
import functools

import jax
import jax.numpy as jnp
from jax.experimental import pallas as pl
from jax.experimental.pallas import tpu as pltpu

LATENT_DIM = 32

# Set to jnp.bfloat16 on v6e/v7x for ~2x MXU rate + half the VMEM/DMA bytes
# (accumulation stays f32 via preferred_element_type). f32 keeps the strict
# 5e-3 check against the pure-JAX reference.
MATMUL_DTYPE = jnp.float32


def _round_up(n, m):
    return -(-n // m) * m


# ------------------------------ Pallas kernel -------------------------------

def _matmul_bias_act_kernel(x_ref, w_ref, b_ref, o_ref, *, act):
    y = jnp.dot(x_ref[...], w_ref[...], preferred_element_type=jnp.float32)
    o_ref[...] = act(y + b_ref[...])


def matmul_bias_act(x, w, b2d, act, *, tm_cap=1024, min_split_m=512):
    """act(x @ w + b). x: (M, K), w: (K, N), b2d: (1, N) -> (M, N) f32.

    M < min_split_m: single whole-array block (one MXU matmul, no padding).
    Otherwise: M is padded to a multiple of 8 only, split into
    max(cdiv(M8, tm_cap), 2) equal 8-aligned row tiles over a 'parallel' grid
    axis (unmasked sublane stores; >=2 tiles shard across v7x's two TCs; no
    up-to-2047-row zero-padding waste).
    """
    M, K = x.shape
    N = w.shape[1]
    x = x.astype(MATMUL_DTYPE)
    w = w.astype(MATMUL_DTYPE)

    if M < min_split_m:
        tm, Mp = M, M
    else:
        M8 = _round_up(M, 8)
        ntiles = max(-(-M8 // tm_cap), 2)
        tm = _round_up(-(-M8 // ntiles), 8)
        Mp = ntiles * tm
        if Mp != M:
            x = jnp.pad(x, ((0, Mp - M), (0, 0)))

    out = pl.pallas_call(
        functools.partial(_matmul_bias_act_kernel, act=act),
        out_shape=jax.ShapeDtypeStruct((Mp, N), jnp.float32),
        grid=(Mp // tm,),
        in_specs=[
            pl.BlockSpec((tm, K), lambda i: (i, 0)),
            pl.BlockSpec((K, N), lambda i: (0, 0)),
            pl.BlockSpec((1, N), lambda i: (0, 0)),
        ],
        out_specs=pl.BlockSpec((tm, N), lambda i: (i, 0)),
        compiler_params=pltpu.CompilerParams(
            dimension_semantics=("parallel",)),
    )(x, w, b2d)
    return out if Mp == M else out[:M]


# ------------------------------ glue helpers --------------------------------

def polyphase_ct_patches(x):
    """x: (B,H,W,Cin) NHWC -> patch matrix (B*(H+1)*(W+1), 4*Cin) shared by all
    four stride-2 transposed-conv output phases (channel order (a, b, ci))."""
    B, H, W, Cin = x.shape
    xp = jnp.pad(x, ((0, 0), (1, 1), (1, 1), (0, 0)))
    Ho, Wo = H + 1, W + 1
    cols = [xp[:, a:a + Ho, b:b + Wo, :] for a in range(2) for b in range(2)]
    patches = jnp.concatenate(cols, axis=-1)          # (B, Ho, Wo, 4*Cin)
    return patches.reshape(B * Ho * Wo, 4 * Cin), (B, Ho, Wo)


def interleave_phases(y, B, Ho, Wo, cout):
    """y: (B*Ho*Wo, 4*cout) with columns ordered (rh, rw, co) -> NHWC
    (B, 2*Ho, 2*Wo, cout), out[b, 2m+rh, 2n+rw, c] = y_phase."""
    y = y.reshape(B, Ho, Wo, 2, 2, cout)
    y = y.transpose(0, 1, 3, 2, 4, 5)
    return y.reshape(B, 2 * Ho, 2 * Wo, cout)


def conv_valid_patches(x, kh, kw):
    """x: (B,H,W,Cin) NHWC -> fused im2col (B*Ho*Wo, kh*kw*Cin), VALID conv."""
    B, H, W, Cin = x.shape
    Ho, Wo = H - kh + 1, W - kw + 1
    cols = [x[:, i:i + Ho, j:j + Wo, :] for i in range(kh) for j in range(kw)]
    patches = jnp.concatenate(cols, axis=-1)          # (B, Ho, Wo, kh*kw*Cin)
    return patches.reshape(B * Ho * Wo, kh * kw * Cin), (B, Ho, Wo)


# ------------------------------ weight prep ---------------------------------

def ct_weight_polyphase(w_ct):
    """torch ConvTranspose2d weight (Cin, Cout, 4, 4), stride 2 ->
    phase-packed matmul weight (4*Cin, 4*Cout):
      W[(a*2+b)*Cin + ci, (rh*2+rw)*Cout + co] = w_ct[ci, co, rh+2*(1-a), rw+2*(1-b)]
    """
    Cin, Cout, KH, KW = w_ct.shape
    assert KH == 4 and KW == 4
    w6 = w_ct.reshape(Cin, Cout, 2, 2, 2, 2)    # (ci, co, khh, rh, kwh, rw)
    w6 = jnp.flip(w6, axis=(2, 4))              # (ci, co, a, rh, b, rw)
    wp = jnp.transpose(w6, (2, 4, 0, 3, 5, 1))  # (a, b, ci, rh, rw, co)
    return wp.reshape(4 * Cin, 4 * Cout)


def conv_weight_to_mat(w):
    """torch Conv2d weight (Cout, Cin, KH, KW) -> (KH*KW*Cin, Cout),
    rows ordered (kh, kw, ci) to match conv_valid_patches."""
    Cout, Cin, KH, KW = w.shape
    return jnp.transpose(w, (2, 3, 1, 0)).reshape(KH * KW * Cin, Cout)


def init_params(key, latent_dim):
    ks = jax.random.split(key, 8)

    def n(k, shape):
        return jax.random.normal(k, shape, jnp.float32) * 0.05

    raw = {
        "lin1_w": n(ks[0], (7 * 7 * 64, latent_dim)),  # torch (out, in)
        "lin1_b": n(ks[1], (7 * 7 * 64,)),
        "ct1_w": n(ks[2], (64, 32, 4, 4)),             # (Cin, Cout, k, k)
        "ct1_b": n(ks[3], (32,)),
        "ct2_w": n(ks[4], (32, 16, 4, 4)),
        "ct2_b": n(ks[5], (16,)),
        "conv_w": n(ks[6], (1, 16, 7, 7)),             # (Cout, Cin, k, k)
        "conv_b": n(ks[7], (1,)),
    }

    # lin1: transpose + permute columns CHW -> HWC so the linear output is
    # already NHWC when reshaped (drops a transpose between lin1 and ct1).
    lin_wt = raw["lin1_w"].T                                        # (L, 3136)
    lin_w = lin_wt.reshape(latent_dim, 64, 7, 7).transpose(0, 2, 3, 1)
    lin_w = lin_w.reshape(latent_dim, 7 * 7 * 64)
    lin_b = raw["lin1_b"].reshape(64, 7, 7).transpose(1, 2, 0).reshape(1, -1)

    # ct2: Cout=4*16=64 -> zero-pad to 128 output lanes for unmasked (lane-dense)
    # stores (identical MXU cost); real 64 channels sliced out in the wrapper.
    ct2_w = jnp.pad(ct_weight_polyphase(raw["ct2_w"]), ((0, 0), (0, 64)))
    ct2_b = jnp.pad(jnp.tile(raw["ct2_b"], 4).reshape(1, -1), ((0, 0), (0, 64)))

    # Final conv: Cout=1 -> zero-pad to 128 output lanes for dense stores
    # (identical MXU cost); real channel sliced out in the wrapper.
    conv_w = jnp.pad(conv_weight_to_mat(raw["conv_w"]), ((0, 0), (0, 127)))
    conv_b = jnp.pad(raw["conv_b"].reshape(1, 1), ((0, 0), (0, 127)))

    params = {
        # Weights pre-cast once to the matmul dtype (no-op for f32, halves
        # DMA/VMEM bytes for bf16 on v6e/v7x); biases stay f32 (added post-MXU).
        "lin1_w": lin_w.astype(MATMUL_DTYPE), "lin1_b": lin_b,
        "ct1_w": ct_weight_polyphase(raw["ct1_w"]).astype(MATMUL_DTYPE),
        "ct1_b": jnp.tile(raw["ct1_b"], 4).reshape(1, -1),
        "ct2_w": ct2_w.astype(MATMUL_DTYPE), "ct2_b": ct2_b,
        "conv_w": conv_w.astype(MATMUL_DTYPE), "conv_b": conv_b,
    }
    return raw, params


# ------------------------------ forward pass --------------------------------

def generator_forward(z, p):
    B = z.shape[0]
    relu = lambda t: jnp.maximum(t, 0.0)

    # lin1 + relu -> directly NHWC (B, 7, 7, 64)
    h = matmul_bias_act(z, p["lin1_w"], p["lin1_b"], relu)
    h = h.reshape(B, 7, 7, 64)

    # ct1: ConvTranspose2d(64, 32, 4, stride=2), polyphase -> (B, 16, 16, 32)
    patches, (_, Ho, Wo) = polyphase_ct_patches(h.astype(MATMUL_DTYPE))  # (B*64, 256)
    y = matmul_bias_act(patches, p["ct1_w"], p["ct1_b"], relu)           # (B*64, 128)
    h = interleave_phases(y, B, Ho, Wo, 32)

    # ct2: ConvTranspose2d(32, 16, 4, stride=2), polyphase -> (B, 34, 34, 16)
    patches, (_, Ho, Wo) = polyphase_ct_patches(h.astype(MATMUL_DTYPE))  # (B*289, 128)
    y = matmul_bias_act(patches, p["ct2_w"], p["ct2_b"], relu)           # (B*289, 128)
    h = interleave_phases(y[:, :64], B, Ho, Wo, 16)

    # conv: Conv2d(16, 1, 7) + tanh -> (B, 28, 28, 1)
    patches, (_, Ho, Wo) = conv_valid_patches(h.astype(MATMUL_DTYPE), 7, 7)  # (B*784, 784)
    y = matmul_bias_act(patches, p["conv_w"], p["conv_b"], jnp.tanh)         # (B*784, 128)
    h = y[:, :1].reshape(B, Ho, Wo, 1)

    return h.transpose(0, 3, 1, 2)                          # NCHW (B, 1, 28, 28)


# ---------------------------- pure-JAX reference ----------------------------

def reference_forward(z, raw):
    B = z.shape[0]
    h = jnp.maximum(z @ raw["lin1_w"].T + raw["lin1_b"], 0.0)
    h = h.reshape(B, 64, 7, 7)

    w = jnp.flip(raw["ct1_w"], (2, 3)).transpose(1, 0, 2, 3)  # OIHW
    h = jax.lax.conv_general_dilated(
        h, w, window_strides=(1, 1), padding=[(3, 3), (3, 3)],
        lhs_dilation=(2, 2), dimension_numbers=("NCHW", "OIHW", "NCHW"))
    h = jnp.maximum(h + raw["ct1_b"][None, :, None, None], 0.0)

    w = jnp.flip(raw["ct2_w"], (2, 3)).transpose(1, 0, 2, 3)
    h = jax.lax.conv_general_dilated(
        h, w, window_strides=(1, 1), padding=[(3, 3), (3, 3)],
        lhs_dilation=(2, 2), dimension_numbers=("NCHW", "OIHW", "NCHW"))
    h = jnp.maximum(h + raw["ct2_b"][None, :, None, None], 0.0)

    h = jax.lax.conv_general_dilated(
        h, raw["conv_w"], window_strides=(1, 1), padding="VALID",
        dimension_numbers=("NCHW", "OIHW", "NCHW"))
    return jnp.tanh(h + raw["conv_b"][None, :, None, None])


# ---------------------------------- main ------------------------------------

if __name__ == "__main__":
    key = jax.random.PRNGKey(0)
    kz, kp = jax.random.split(key)
    raw, params = init_params(kp, LATENT_DIM)
    z = jax.random.normal(kz, (2, LATENT_DIM), jnp.float32)

    fwd = jax.jit(generator_forward)
    out = jax.block_until_ready(fwd(z, params))
    assert out.shape == (2, 1, 28, 28), out.shape

    ref = jax.block_until_ready(reference_forward(z, raw))
    err = float(jnp.max(jnp.abs(out - ref)))
    tol = 5e-3 if MATMUL_DTYPE == jnp.float32 else 3e-2
    assert err < tol, f"max abs err {err}"

    print("KERNEL_OK")
</pallas_src>

<mosaic_0001>
module attributes {stable_mosaic.version = 11 : i64} {
  func.func @_matmul_bias_act_kernel(%arg0: i32, %arg1: memref<2x32xf32, #tpu.memory_space<vmem>>, %arg2: memref<32x3136xf32, #tpu.memory_space<vmem>>, %arg3: memref<1x3136xf32, #tpu.memory_space<vmem>>, %arg4: memref<2x3136xf32, #tpu.memory_space<vmem>>) attributes {dimension_semantics = [#tpu.dimension_semantics<parallel>], iteration_bounds = array<i64: 1>, scalar_prefetch = 0 : i64, scratch_operands = 0 : i64, tpu.core_type = #tpu.core_type<tc>, window_params = [{transform_indices = @transform_0, window_bounds = array<i64: 2, 32>}, {pipeline_mode = #tpu.pipeline_mode<synchronous>, transform_indices = @transform_1, window_bounds = array<i64: 32, 3136>}, {pipeline_mode = #tpu.pipeline_mode<synchronous>, transform_indices = @transform_2, window_bounds = array<i64: 1, 3136>}, {transform_indices = @transform_3, window_bounds = array<i64: 2, 3136>}]} {
    %c0 = arith.constant 0 : index
    %c0_0 = arith.constant 0 : index
    %0 = vector.load %arg1[%c0, %c0_0] : memref<2x32xf32, #tpu.memory_space<vmem>>, vector<2x32xf32>
    %c0_1 = arith.constant 0 : index
    %c0_2 = arith.constant 0 : index
    %1 = vector.load %arg2[%c0_1, %c0_2] : memref<32x3136xf32, #tpu.memory_space<vmem>>, vector<32x3136xf32>
    %cst = arith.constant dense<0.000000e+00> : vector<2x3136xf32>
    %2 = tpu.matmul %0, %1, %cst {dimension_numbers = #tpu.dot_dimension_numbers<[1], [0], [0], [1], [0, 0, 1, 1], [], []>} : vector<2x32xf32>, vector<32x3136xf32>, vector<2x3136xf32> -> vector<2x3136xf32>
    %c0_3 = arith.constant 0 : index
    %c0_4 = arith.constant 0 : index
    %3 = vector.load %arg3[%c0_3, %c0_4] : memref<1x3136xf32, #tpu.memory_space<vmem>>, vector<1x3136xf32>
    %4 = vector.broadcast %3 : vector<1x3136xf32> to vector<2x3136xf32>
    %5 = arith.addf %2, %4 : vector<2x3136xf32>
    %cst_5 = arith.constant 0.000000e+00 : f32
    %6 = vector.broadcast %cst_5 : f32 to vector<2x3136xf32>
    %7 = arith.maximumf %5, %6 : vector<2x3136xf32>
    %c0_6 = arith.constant 0 : index
    %c0_7 = arith.constant 0 : index
    %8 = vector.load %arg4[%c0_6, %c0_7] : memref<2x3136xf32, #tpu.memory_space<vmem>>, vector<2x3136xf32>
    tpu.vector_store %arg4[%c0_6, %c0_7], %7 {strides = array<i32>} : memref<2x3136xf32, #tpu.memory_space<vmem>>, vector<2x3136xf32>,
    return
  }
  func.func @transform_0(%arg0: i32) -> (i32, i32) {
    %c0_i32 = arith.constant 0 : i32
    %c0_i32_0 = arith.constant 0 : i32
    return %arg0, %c0_i32 : i32, i32
  }
  func.func @transform_1(%arg0: i32) -> (i32, i32) {
    %c0_i32 = arith.constant 0 : i32
    %c0_i32_0 = arith.constant 0 : i32
    %c0_i32_1 = arith.constant 0 : i32
    return %c0_i32, %c0_i32_0 : i32, i32
  }
  func.func @transform_2(%arg0: i32) -> (i32, i32) {
    %c0_i32 = arith.constant 0 : i32
    %c0_i32_0 = arith.constant 0 : i32
    %c0_i32_1 = arith.constant 0 : i32
    return %c0_i32, %c0_i32_0 : i32, i32
  }
  func.func @transform_3(%arg0: i32) -> (i32, i32) {
    %c0_i32 = arith.constant 0 : i32
    %c0_i32_0 = arith.constant 0 : i32
    return %arg0, %c0_i32 : i32, i32
  }
}

module attributes {stable_mosaic.version = 11 : i64} {
  func.func @_matmul_bias_act_kernel(%arg0: i32, %arg1: memref<128x256xf32, #tpu.memory_space<vmem>>, %arg2: memref<256x128xf32, #tpu.memory_space<vmem>>, %arg3: memref<1x128xf32, #tpu.memory_space<vmem>>, %arg4: memref<128x128xf32, #tpu.memory_space<vmem>>) attributes {dimension_semantics = [#tpu.dimension_semantics<parallel>], iteration_bounds = array<i64: 1>, scalar_prefetch = 0 : i64, scratch_operands = 0 : i64, tpu.core_type = #tpu.core_type<tc>, window_params = [{transform_indices = @transform_0, window_bounds = array<i64: 128, 256>}, {pipeline_mode = #tpu.pipeline_mode<synchronous>, transform_indices = @transform_1, window_bounds = array<i64: 256, 128>}, {pipeline_mode = #tpu.pipeline_mode<synchronous>, transform_indices = @transform_2, window_bounds = array<i64: 1, 128>}, {transform_indices = @transform_3, window_bounds = array<i64: 128, 128>}]} {
    %c0 = arith.constant 0 : index
    %c0_0 = arith.constant 0 : index
    %0 = vector.load %arg1[%c0, %c0_0] : memref<128x256xf32, #tpu.memory_space<vmem>>, vector<128x256xf32>
    %c0_1 = arith.constant 0 : index
    %c0_2 = arith.constant 0 : index
    %1 = vector.load %arg2[%c0_1, %c0_2] : memref<256x128xf32, #tpu.memory_space<vmem>>, vector<256x128xf32>
    %cst = arith.constant dense<0.000000e+00> : vector<128x128xf32>
    %2 = tpu.matmul %0, %1, %cst {dimension_numbers = #tpu.dot_dimension_numbers<[1], [0], [0], [1], [0, 0, 1, 1], [], []>} : vector<128x256xf32>, vector<256x128xf32>, vector<128x128xf32> -> vector<128x128xf32>
    %c0_3 = arith.constant 0 : index
    %c0_4 = arith.constant 0 : index
    %3 = vector.load %arg3[%c0_3, %c0_4] : memref<1x128xf32, #tpu.memory_space<vmem>>, vector<1x128xf32>
    %4 = vector.broadcast %3 : vector<1x128xf32> to vector<128x128xf32>
    %5 = arith.addf %2, %4 : vector<128x128xf32>
    %cst_5 = arith.constant 0.000000e+00 : f32
    %6 = vector.broadcast %cst_5 : f32 to vector<128x128xf32>
    %7 = arith.maximumf %5, %6 : vector<128x128xf32>
    %c0_6 = arith.constant 0 : index
    %c0_7 = arith.constant 0 : index
    %8 = vector.load %arg4[%c0_6, %c0_7] : memref<128x128xf32, #tpu.memory_space<vmem>>, vector<128x128xf32>
    tpu.vector_store %arg4[%c0_6, %c0_7], %7 {strides = array<i32>} : memref<128x128xf32, #tpu.memory_space<vmem>>, vector<128x128xf32>,
    return
  }
  func.func @transform_0(%arg0: i32) -> (i32, i32) {
    %c0_i32 = arith.constant 0 : i32
    %c0_i32_0 = arith.constant 0 : i32
    return %arg0, %c0_i32 : i32, i32
  }
  func.func @transform_1(%arg0: i32) -> (i32, i32) {
    %c0_i32 = arith.constant 0 : i32
    %c0_i32_0 = arith.constant 0 : i32
    %c0_i32_1 = arith.constant 0 : i32
    return %c0_i32, %c0_i32_0 : i32, i32
  }
  func.func @transform_2(%arg0: i32) -> (i32, i32) {
    %c0_i32 = arith.constant 0 : i32
    %c0_i32_0 = arith.constant 0 : i32
    %c0_i32_1 = arith.constant 0 : i32
    return %c0_i32, %c0_i32_0 : i32, i32
  }
  func.func @transform_3(%arg0: i32) -> (i32, i32) {
    %c0_i32 = arith.constant 0 : i32
    %c0_i32_0 = arith.constant 0 : i32
    return %arg0, %c0_i32 : i32, i32
  }
}

module attributes {stable_mosaic.version = 11 : i64} {
  func.func @_matmul_bias_act_kernel(%arg0: i32, %arg1: memref<296x128xf32, #tpu.memory_space<vmem>>, %arg2: memref<128x128xf32, #tpu.memory_space<vmem>>, %arg3: memref<1x128xf32, #tpu.memory_space<vmem>>, %arg4: memref<296x128xf32, #tpu.memory_space<vmem>>) attributes {dimension_semantics = [#tpu.dimension_semantics<parallel>], iteration_bounds = array<i64: 2>, scalar_prefetch = 0 : i64, scratch_operands = 0 : i64, tpu.core_type = #tpu.core_type<tc>, window_params = [{transform_indices = @transform_0, window_bounds = array<i64: 296, 128>}, {pipeline_mode = #tpu.pipeline_mode<synchronous>, transform_indices = @transform_1, window_bounds = array<i64: 128, 128>}, {pipeline_mode = #tpu.pipeline_mode<synchronous>, transform_indices = @transform_2, window_bounds = array<i64: 1, 128>}, {transform_indices = @transform_3, window_bounds = array<i64: 296, 128>}]} {
    %c0 = arith.constant 0 : index
    %c0_0 = arith.constant 0 : index
    %0 = vector.load %arg1[%c0, %c0_0] : memref<296x128xf32, #tpu.memory_space<vmem>>, vector<296x128xf32>
    %c0_1 = arith.constant 0 : index
    %c0_2 = arith.constant 0 : index
    %1 = vector.load %arg2[%c0_1, %c0_2] : memref<128x128xf32, #tpu.memory_space<vmem>>, vector<128x128xf32>
    %cst = arith.constant dense<0.000000e+00> : vector<296x128xf32>
    %2 = tpu.matmul %0, %1, %cst {dimension_numbers = #tpu.dot_dimension_numbers<[1], [0], [0], [1], [0, 0, 1, 1], [], []>} : vector<296x128xf32>, vector<128x128xf32>, vector<296x128xf32> -> vector<296x128xf32>
    %c0_3 = arith.constant 0 : index
    %c0_4 = arith.constant 0 : index
    %3 = vector.load %arg3[%c0_3, %c0_4] : memref<1x128xf32, #tpu.memory_space<vmem>>, vector<1x128xf32>
    %4 = vector.broadcast %3 : vector<1x128xf32> to vector<296x128xf32>
    %5 = arith.addf %2, %4 : vector<296x128xf32>
    %cst_5 = arith.constant 0.000000e+00 : f32
    %6 = vector.broadcast %cst_5 : f32 to vector<296x128xf32>
    %7 = arith.maximumf %5, %6 : vector<296x128xf32>
    %c0_6 = arith.constant 0 : index
    %c0_7 = arith.constant 0 : index
    %8 = vector.load %arg4[%c0_6, %c0_7] : memref<296x128xf32, #tpu.memory_space<vmem>>, vector<296x128xf32>
    tpu.vector_store %arg4[%c0_6, %c0_7], %7 {strides = array<i32>} : memref<296x128xf32, #tpu.memory_space<vmem>>, vector<296x128xf32>,
    return
  }
  func.func @transform_0(%arg0: i32) -> (i32, i32) {
    %c0_i32 = arith.constant 0 : i32
    %c0_i32_0 = arith.constant 0 : i32
    return %arg0, %c0_i32 : i32, i32
  }
  func.func @transform_1(%arg0: i32) -> (i32, i32) {
    %c0_i32 = arith.constant 0 : i32
    %c0_i32_0 = arith.constant 0 : i32
    %c0_i32_1 = arith.constant 0 : i32
    return %c0_i32, %c0_i32_0 : i32, i32
  }
  func.func @transform_2(%arg0: i32) -> (i32, i32) {
    %c0_i32 = arith.constant 0 : i32
    %c0_i32_0 = arith.constant 0 : i32
    %c0_i32_1 = arith.constant 0 : i32
    return %c0_i32, %c0_i32_0 : i32, i32
  }
  func.func @transform_3(%arg0: i32) -> (i32, i32) {
    %c0_i32 = arith.constant 0 : i32
    %c0_i32_0 = arith.constant 0 : i32
    return %arg0, %c0_i32 : i32, i32
  }
}

module attributes {stable_mosaic.version = 11 : i64} {
  func.func @_matmul_bias_act_kernel(%arg0: i32, %arg1: memref<784x784xf32, #tpu.memory_space<vmem>>, %arg2: memref<784x128xf32, #tpu.memory_space<vmem>>, %arg3: memref<1x128xf32, #tpu.memory_space<vmem>>, %arg4: memref<784x128xf32, #tpu.memory_space<vmem>>) attributes {dimension_semantics = [#tpu.dimension_semantics<parallel>], iteration_bounds = array<i64: 2>, scalar_prefetch = 0 : i64, scratch_operands = 0 : i64, tpu.core_type = #tpu.core_type<tc>, window_params = [{transform_indices = @transform_0, window_bounds = array<i64: 784, 784>}, {pipeline_mode = #tpu.pipeline_mode<synchronous>, transform_indices = @transform_1, window_bounds = array<i64: 784, 128>}, {pipeline_mode = #tpu.pipeline_mode<synchronous>, transform_indices = @transform_2, window_bounds = array<i64: 1, 128>}, {transform_indices = @transform_3, window_bounds = array<i64: 784, 128>}]} {
    %c0 = arith.constant 0 : index
    %c0_0 = arith.constant 0 : index
    %0 = vector.load %arg1[%c0, %c0_0] : memref<784x784xf32, #tpu.memory_space<vmem>>, vector<784x784xf32>
    %c0_1 = arith.constant 0 : index
    %c0_2 = arith.constant 0 : index
    %1 = vector.load %arg2[%c0_1, %c0_2] : memref<784x128xf32, #tpu.memory_space<vmem>>, vector<784x128xf32>
    %cst = arith.constant dense<0.000000e+00> : vector<784x128xf32>
    %2 = tpu.matmul %0, %1, %cst {dimension_numbers = #tpu.dot_dimension_numbers<[1], [0], [0], [1], [0, 0, 1, 1], [], []>} : vector<784x784xf32>, vector<784x128xf32>, vector<784x128xf32> -> vector<784x128xf32>
    %c0_3 = arith.constant 0 : index
    %c0_4 = arith.constant 0 : index
    %3 = vector.load %arg3[%c0_3, %c0_4] : memref<1x128xf32, #tpu.memory_space<vmem>>, vector<1x128xf32>
    %4 = vector.broadcast %3 : vector<1x128xf32> to vector<784x128xf32>
    %5 = arith.addf %2, %4 : vector<784x128xf32>
    %6 = math.tanh %5 : vector<784x128xf32>
    %c0_5 = arith.constant 0 : index
    %c0_6 = arith.constant 0 : index
    %7 = vector.load %arg4[%c0_5, %c0_6] : memref<784x128xf32, #tpu.memory_space<vmem>>, vector<784x128xf32>
    tpu.vector_store %arg4[%c0_5, %c0_6], %6 {strides = array<i32>} : memref<784x128xf32, #tpu.memory_space<vmem>>, vector<784x128xf32>,
    return
  }
  func.func @transform_0(%arg0: i32) -> (i32, i32) {
    %c0_i32 = arith.constant 0 : i32
    %c0_i32_0 = arith.constant 0 : i32
    return %arg0, %c0_i32 : i32, i32
  }
  func.func @transform_1(%arg0: i32) -> (i32, i32) {
    %c0_i32 = arith.constant 0 : i32
    %c0_i32_0 = arith.constant 0 : i32
    %c0_i32_1 = arith.constant 0 : i32
    return %c0_i32, %c0_i32_0 : i32, i32
  }
  func.func @transform_2(%arg0: i32) -> (i32, i32) {
    %c0_i32 = arith.constant 0 : i32
    %c0_i32_0 = arith.constant 0 : i32
    %c0_i32_1 = arith.constant 0 : i32
    return %c0_i32, %c0_i32_0 : i32, i32
  }
  func.func @transform_3(%arg0: i32) -> (i32, i32) {
    %c0_i32 = arith.constant 0 : i32
    %c0_i32_0 = arith.constant 0 : i32
    return %arg0, %c0_i32 : i32, i32
  }
}

</mosaic_0001>

<llo_original>
// kernel: generator_forward.5
$region0: #{generator_forward.5}
  #allocation0 [shape = 'u32[]', space=smem, size = 0x4, offset = 0x4, fixed_abs, tag = 'smem constant byte address 0x4 - core index']
  #allocation1 [shape = 'u32[144,128]{1,0:T(1,128)}', space=vmem, size = 0x12000, scoped, tag = 'internal scratch']
  %s0 = inlined_call_operand.vmem [shape: f32[128,256], index: 0, kind: input, shape index: {}]
  %s1 = inlined_call_operand.vmem [shape: f32[256,128], index: 1, kind: input, shape index: {}]
  %s2 = inlined_call_operand.vmem [shape: f32[1,128], index: 2, kind: input, shape index: {}]
  %s3 = inlined_call_operand.vmem [shape: f32[128,128], index: 3, kind: output, shape index: {}]
  %s4 = sld [smem:[#allocation0]]
  $region22: #{generator_forward.5} parent=0
    _
  %s6 = ssub.s32 1, %s4
  %s7 = scalar_select 0, %s6, %s4
  // Predicated region
  $region2: #{generator_forward.5} parent=0 // pred_check
    _
  $region3: #{generator_forward.5} parent=0 // pred_check_branch
    %9 = sbr.rel (0) target = $region5
  $region4: #{generator_forward.5} parent=0 // pred_region
    _
  $region5: #{generator_forward.5} parent=0 // pred_fallthru
    _
  // Predicated region
  $region6: #{generator_forward.5} parent=0 // pred_check
    _
  $region7: #{generator_forward.5} parent=0 // pred_check_branch
    %11 = sbr.rel (0) target = $region9
  $region8: #{generator_forward.5} parent=0 // pred_region
    _
  $region9: #{generator_forward.5} parent=0 // pred_fallthru
    _
  // Predicated region
  $region10: #{generator_forward.5} parent=0 // pred_check
    _
  $region11: #{generator_forward.5} parent=0 // pred_check_branch
    %13 = sbr.rel (0) target = $region13
  $region12: #{generator_forward.5} parent=0 // pred_region
    _
  $region13: #{generator_forward.5} parent=0 // pred_fallthru
    _
  %v14 = vld [vmem:[%s0] sm:$0xff]
  %v15 = vld [vmem:[%s0 + $0x8] sm:$0xff]
  %v16 = vld [vmem:[%s0 + $0x10] sm:$0xff]
  %v17 = vld [vmem:[%s0 + $0x18] sm:$0xff]
  %v18 = vld [vmem:[%s0 + $0x20] sm:$0xff]
  %v19 = vld [vmem:[%s0 + $0x28] sm:$0xff]
  %v20 = vld [vmem:[%s0 + $0x30] sm:$0xff]
  %v21 = vld [vmem:[%s0 + $0x38] sm:$0xff]
  %v22 = vld [vmem:[%s0 + $0x40] sm:$0xff]
  %v23 = vld [vmem:[%s0 + $0x48] sm:$0xff]
  %v24 = vld [vmem:[%s0 + $0x50] sm:$0xff]
  %v25 = vld [vmem:[%s0 + $0x58] sm:$0xff]
  %v26 = vld [vmem:[%s0 + $0x60] sm:$0xff]
  %v27 = vld [vmem:[%s0 + $0x68] sm:$0xff]
  %v28 = vld [vmem:[%s0 + $0x70] sm:$0xff]
  %v29 = vld [vmem:[%s0 + $0x78] sm:$0xff]
  %v30 = vld [vmem:[%s0 + $0x80] sm:$0xff]
  %v31 = vld [vmem:[%s0 + $0x88] sm:$0xff]
  %v32 = vld [vmem:[%s0 + $0x90] sm:$0xff]
  %v33 = vld [vmem:[%s0 + $0x98] sm:$0xff]
  %v34 = vld [vmem:[%s0 + $0xa0] sm:$0xff]
  %v35 = vld [vmem:[%s0 + $0xa8] sm:$0xff]
  %v36 = vld [vmem:[%s0 + $0xb0] sm:$0xff]
  %v37 = vld [vmem:[%s0 + $0xb8] sm:$0xff]
  %v38 = vld [vmem:[%s0 + $0xc0] sm:$0xff]
  %v39 = vld [vmem:[%s0 + $0xc8] sm:$0xff]
  %v40 = vld [vmem:[%s0 + $0xd0] sm:$0xff]
  %v41 = vld [vmem:[%s0 + $0xd8] sm:$0xff]
  %v42 = vld [vmem:[%s0 + $0xe0] sm:$0xff]
  %v43 = vld [vmem:[%s0 + $0xe8] sm:$0xff]
  %v44 = vld [vmem:[%s0 + $0xf0] sm:$0xff]
  %v45 = vld [vmem:[%s0 + $0xf8] sm:$0xff]
  %v46 = vld [vmem:[%s1] sm:$0xff]
  %v47 = vld [vmem:[%s1 + $0x8] sm:$0xff]
  %v48 = vld [vmem:[%s1 + $0x10] sm:$0xff]
  %v49 = vld [vmem:[%s1 + $0x18] sm:$0xff]
  %v50 = vld [vmem:[%s1 + $0x20] sm:$0xff]
  %v51 = vld [vmem:[%s1 + $0x28] sm:$0xff]
  %v52 = vld [vmem:[%s1 + $0x30] sm:$0xff]
  %v53 = vld [vmem:[%s1 + $0x38] sm:$0xff]
  %v54 = vld [vmem:[%s1 + $0x40] sm:$0xff]
  %v55 = vld [vmem:[%s1 + $0x48] sm:$0xff]
  %v56 = vld [vmem:[%s1 + $0x50] sm:$0xff]
  %v57 = vld [vmem:[%s1 + $0x58] sm:$0xff]
  %v58 = vld [vmem:[%s1 + $0x60] sm:$0xff]
  %v59 = vld [vmem:[%s1 + $0x68] sm:$0xff]
  %v60 = vld [vmem:[%s1 + $0x70] sm:$0xff]
  %v61 = vld [vmem:[%s1 + $0x78] sm:$0xff]
  %v62 = vld [vmem:[%s1 + $0x80] sm:$0xff]
  %v63 = vld [vmem:[%s1 + $0x88] sm:$0xff]
  %v64 = vld [vmem:[%s1 + $0x90] sm:$0xff]
  %v65 = vld [vmem:[%s1 + $0x98] sm:$0xff]
  %v66 = vld [vmem:[%s1 + $0xa0] sm:$0xff]
  %v67 = vld [vmem:[%s1 + $0xa8] sm:$0xff]
  %v68 = vld [vmem:[%s1 + $0xb0] sm:$0xff]
  %v69 = vld [vmem:[%s1 + $0xb8] sm:$0xff]
  %v70 = vld [vmem:[%s1 + $0xc0] sm:$0xff]
  %v71 = vld [vmem:[%s1 + $0xc8] sm:$0xff]
  %v72 = vld [vmem:[%s1 + $0xd0] sm:$0xff]
  %v73 = vld [vmem:[%s1 + $0xd8] sm:$0xff]
  %v74 = vld [vmem:[%s1 + $0xe0] sm:$0xff]
  %v75 = vld [vmem:[%s1 + $0xe8] sm:$0xff]
  %v76 = vld [vmem:[%s1 + $0xf0] sm:$0xff]
  %v77 = vld [vmem:[%s1 + $0xf8] sm:$0xff]
  %v78 = vld [vmem:[%s2] sm:$0x1]
  %v80 = vlaneseq
  %v81 = vshrl.u32 %v80, 7
  %v82 = vsub.s32 0, %v81
  %v83 = vrot.slane %v78, %v82
  %85 = vmatprep.subr.mxu0 0.0
  %86 = vmatpush1.msra.mxu0 %v46
  %87 = vmatprep.subr.mxu0 0.0
  %88 = vmatpush1.msra.mxu0 %v47
  %89 = vmatprep.subr.mxu0 0.0
  %90 = vmatpush1.msra.mxu0 %v48
  %91 = vmatprep.subr.mxu0 0.0
  %92 = vmatpush1.msra.mxu0 %v49
  %93 = vmatprep.subr.mxu0 0.0
  %94 = vmatpush1.msra.mxu0 %v50
  %95 = vmatprep.subr.mxu0 0.0
  %96 = vmatpush1.msra.mxu0 %v51
  %97 = vmatprep.subr.mxu0 0.0
  %98 = vmatpush1.msra.mxu0 %v52
  %99 = vmatprep.subr.mxu0 0.0
  %100 = vmatpush1.msra.mxu0 %v53
  %101 = vmatprep.subr.mxu0 0.0
  %102 = vmatpush1.msra.mxu0 %v54
  %103 = vmatprep.subr.mxu0 0.0
  %104 = vmatpush1.msra.mxu0 %v55
  %105 = vmatprep.subr.mxu0 0.0
  %106 = vmatpush1.msra.mxu0 %v56
  %107 = vmatprep.subr.mxu0 0.0
  %108 = vmatpush1.msra.mxu0 %v57
  %109 = vmatprep.subr.mxu0 0.0
  %110 = vmatpush1.msra.mxu0 %v58
  %111 = vmatprep.subr.mxu0 0.0
  %112 = vmatpush1.msra.mxu0 %v59
  %113 = vmatprep.subr.mxu0 0.0
  %114 = vmatpush1.msra.mxu0 %v60
  %115 = vmatprep.subr.mxu0 0.0
  %116 = vmatpush1.msra.mxu0 %v61
  %117 = vmatprep.subr.mxu0 0.0
  %118 = vmatpush1.msra.mxu0 %v62
  %119 = vmatprep.subr.mxu0 0.0
  %120 = vmatpush1.msra.mxu0 %v63
  %121 = vmatprep.subr.mxu0 0.0
  %122 = vmatpush1.msra.mxu0 %v64
  %123 = vmatprep.subr.mxu0 0.0
  %124 = vmatpush1.msra.mxu0 %v65
  %125 = vmatprep.subr.mxu0 0.0
  %126 = vmatpush1.msra.mxu0 %v66
  %127 = vmatprep.subr.mxu0 0.0
  %128 = vmatpush1.msra.mxu0 %v67
  %129 = vmatprep.subr.mxu0 0.0
  %130 = vmatpush1.msra.mxu0 %v68
  %131 = vmatprep.subr.mxu0 0.0
  %132 = vmatpush1.msra.mxu0 %v69
  %133 = vmatprep.subr.mxu0 0.0
  %134 = vmatpush1.msra.mxu0 %v70
  %135 = vmatprep.subr.mxu0 0.0
  %136 = vmatpush1.msra.mxu0 %v71
  %137 = vmatprep.subr.mxu0 0.0
  %138 = vmatpush1.msra.mxu0 %v72
  %139 = vmatprep.subr.mxu0 0.0
  %140 = vmatpush1.msra.mxu0 %v73
  %141 = vmatprep.subr.mxu0 0.0
  %142 = vmatpush1.msra.mxu0 %v74
  %143 = vmatprep.subr.mxu0 0.0
  %144 = vmatpush1.msra.mxu0 %v75
  %145 = vmatprep.subr.mxu0 0.0
  %146 = vmatpush1.msra.mxu0 %v76
  %147 = vmatprep.subr.mxu0 0.0
  %148 = vmatpush1.msra.mxu0 %v77
  %149 = vmatprep.mubr.f32.mxu0 %v15
  %150 = vmatmul.mubr.f32.gmra.mrb[0].mxu0 %v14
  %v151 = vpop.f32.mrb[0].mxu0
  %v152 = vadd.f32 %v83, %v151
  %v153 = vpop.f32.mrb[0].mxu0
  %154 = vmatprep.mubr.f32.mxu0 %v17
  %155 = vmatmul.mubr.f32.gmra.mrb[0].mxu0 %v16
  %v156 = vpop.f32.mrb[0].mxu0
  %v157 = vadd.f32 %v83, %v156
  %v158 = vpop.f32.mrb[0].mxu0
  %159 = vmatprep.mubr.f32.mxu0 %v19
  %160 = vmatmul.mubr.f32.gmra.mrb[0].mxu0 %v18
  %v161 = vpop.f32.mrb[0].mxu0
  %v162 = vadd.f32 %v83, %v161
  %v163 = vpop.f32.mrb[0].mxu0
  %164 = vmatprep.mubr.f32.mxu0 %v21
  %165 = vmatmul.mubr.f32.gmra.mrb[0].mxu0 %v20
  %v166 = vpop.f32.mrb[0].mxu0
  %v167 = vadd.f32 %v83, %v166
  %v168 = vpop.f32.mrb[0].mxu0
  %169 = vmatprep.mubr.f32.mxu0 %v23
  %170 = vmatmul.mubr.f32.gmra.mrb[0].mxu0 %v22
  %v171 = vpop.f32.mrb[0].mxu0
  %v172 = vadd.f32 %v83, %v171
  %v173 = vpop.f32.mrb[0].mxu0
  %174 = vmatprep.mubr.f32.mxu0 %v25
  %175 = vmatmul.mubr.f32.gmra.mrb[0].mxu0 %v24
  %v176 = vpop.f32.mrb[0].mxu0
  %v177 = vadd.f32 %v83, %v176
  %v178 = vpop.f32.mrb[0].mxu0
  %179 = vmatprep.mubr.f32.mxu0 %v27
  %180 = vmatmul.mubr.f32.gmra.mrb[0].mxu0 %v26
  %v181 = vpop.f32.mrb[0].mxu0
  %v182 = vadd.f32 %v83, %v181
  %v183 = vpop.f32.mrb[0].mxu0
  %184 = vmatprep.mubr.f32.mxu0 %v29
  %185 = vmatmul.mubr.f32.gmra.mrb[0].mxu0 %v28
  %v186 = vpop.f32.mrb[0].mxu0
  %v187 = vadd.f32 %v83, %v186
  %v188 = vpop.f32.mrb[0].mxu0
  %189 = vmatprep.mubr.f32.mxu0 %v31
  %190 = vmatmul.mubr.f32.gmra.mrb[0].mxu0 %v30
  %v191 = vpop.f32.mrb[0].mxu0
  %v192 = vadd.f32 %v83, %v191
  %v193 = vpop.f32.mrb[0].mxu0
  %194 = vmatprep.mubr.f32.mxu0 %v33
  %195 = vmatmul.mubr.f32.gmra.mrb[0].mxu0 %v32
  %v196 = vpop.f32.mrb[0].mxu0
  %v197 = vadd.f32 %v83, %v196
  %v198 = vpop.f32.mrb[0].mxu0
  %199 = vmatprep.mubr.f32.mxu0 %v35
  %200 = vmatmul.mubr.f32.gmra.mrb[0].mxu0 %v34
  %v201 = vpop.f32.mrb[0].mxu0
  %v202 = vadd.f32 %v83, %v201
  %v203 = vpop.f32.mrb[0].mxu0
  %204 = vmatprep.mubr.f32.mxu0 %v37
  %205 = vmatmul.mubr.f32.gmra.mrb[0].mxu0 %v36
  %v206 = vpop.f32.mrb[0].mxu0
  %v207 = vadd.f32 %v83, %v206
  %v208 = vpop.f32.mrb[0].mxu0
  %209 = vmatprep.mubr.f32.mxu0 %v39
  %210 = vmatmul.mubr.f32.gmra.mrb[0].mxu0 %v38
  %v211 = vpop.f32.mrb[0].mxu0
  %v212 = vadd.f32 %v83, %v211
  %v213 = vpop.f32.mrb[0].mxu0
  %214 = vmatprep.mubr.f32.mxu0 %v41
  %215 = vmatmul.mubr.f32.gmra.mrb[0].mxu0 %v40
  %v216 = vpop.f32.mrb[0].mxu0
  %v217 = vadd.f32 %v83, %v216
  %v218 = vpop.f32.mrb[0].mxu0
  %219 = vmatprep.mubr.f32.mxu0 %v43
  %220 = vmatmul.mubr.f32.gmra.mrb[0].mxu0 %v42
  %v221 = vpop.f32.mrb[0].mxu0
  %v222 = vadd.f32 %v83, %v221
  %v223 = vpop.f32.mrb[0].mxu0
  %224 = vmatprep.mubr.f32.mxu0 %v45
  %225 = vmatmul.mubr.f32.gmra.mrb[0].mxu0 %v44
  %v226 = vpop.f32.mrb[0].mxu0
  %v227 = vadd.f32 %v83, %v226
  %v228 = vpop.f32.mrb[0].mxu0
  %229 = vdwg.mxu0
  %v230 = vmax.f32 %v152, 0.0
  %v231 = vmax.f32 %v157, 0.0
  %v232 = vmax.f32 %v162, 0.0
  %v233 = vmax.f32 %v167, 0.0
  %v234 = vmax.f32 %v172, 0.0
  %v235 = vmax.f32 %v177, 0.0
  %v236 = vmax.f32 %v182, 0.0
  %v237 = vmax.f32 %v187, 0.0
  %v238 = vmax.f32 %v192, 0.0
  %v239 = vmax.f32 %v197, 0.0
  %v240 = vmax.f32 %v202, 0.0
  %v241 = vmax.f32 %v207, 0.0
  %v242 = vmax.f32 %v212, 0.0
  %v243 = vmax.f32 %v217, 0.0
  %v244 = vmax.f32 %v222, 0.0
  %v245 = vmax.f32 %v227, 0.0
  %246 = vst [vmem:[%s3] sm:$0xff] %v230
  %247 = vst [vmem:[%s3 + $0x8] sm:$0xff] %v231
  %248 = vst [vmem:[%s3 + $0x10] sm:$0xff] %v232
  %249 = vst [vmem:[%s3 + $0x18] sm:$0xff] %v233
  %250 = vst [vmem:[%s3 + $0x20] sm:$0xff] %v234
  %251 = vst [vmem:[%s3 + $0x28] sm:$0xff] %v235
  %252 = vst [vmem:[%s3 + $0x30] sm:$0xff] %v236
  %253 = vst [vmem:[%s3 + $0x38] sm:$0xff] %v237
  %254 = vst [vmem:[%s3 + $0x40] sm:$0xff] %v238
  %255 = vst [vmem:[%s3 + $0x48] sm:$0xff] %v239
  %256 = vst [vmem:[%s3 + $0x50] sm:$0xff] %v240
  %257 = vst [vmem:[%s3 + $0x58] sm:$0xff] %v241
  %258 = vst [vmem:[%s3 + $0x60] sm:$0xff] %v242
  %259 = vst [vmem:[%s3 + $0x68] sm:$0xff] %v243
  %260 = vst [vmem:[%s3 + $0x70] sm:$0xff] %v244
  %261 = vst [vmem:[%s3 + $0x78] sm:$0xff] %v245
  // Predicated region
  $region14: #{generator_forward.5} parent=0 // pred_check
    _
  $region15: #{generator_forward.5} parent=0 // pred_check_branch
    %263 = sbr.rel (0) target = $region17
  $region16: #{generator_forward.5} parent=0 // pred_region
    _
  $region17: #{generator_forward.5} parent=0 // pred_fallthru
    _
  // Predicated region
  $region18: #{generator_forward.5} parent=0 // pred_check
    _
  $region19: #{generator_forward.5} parent=0 // pred_check_branch
    %265 = sbr.rel (0) target = $region21
  $region20: #{generator_forward.5} parent=0 // pred_region
    _
  $region21: #{generator_forward.5} parent=0 // pred_fallthru
    _

// kernel: generator_forward.4
$region0: #{generator_forward.4}
  #allocation0 [shape = 'u32[]', space=smem, size = 0x4, offset = 0x4, fixed_abs, tag = 'smem constant byte address 0x4 - core index']
  #allocation1 [shape = 'u32[144,128]{1,0:T(1,128)}', space=vmem, size = 0x12000, scoped, tag = 'internal scratch']
  %s0 = inlined_call_operand.hbm [shape: f32[2,32], index: 0, kind: input, shape index: {}]
  %s1 = inlined_call_operand.hbm [shape: f32[32,3136], index: 1, kind: input, shape index: {}]
  %s2 = inlined_call_operand.hbm [shape: f32[1,3136], index: 2, kind: input, shape index: {}]
  %s3 = inlined_call_operand.vmem [shape: f32[2,3136], index: 3, kind: output, shape index: {}]
  %s4 = sld [smem:[#allocation0]]
  $region34: #{generator_forward.4} parent=0
    _
  %s6 = ssub.s32 1, %s4
  %s7 = scalar_select 0, %s6, %s4
  $region1: #{generator_forward.4} parent=0
    #allocation2 [shape = 'u8[1024]{0}', space=vmem, size = 0x400, scoped, tag = 'input window, operand 0, single buffered']
    #allocation3 [shape = 's32[1]{0}', space=sflag, size = 0x4, scoped, tag = 'scoped memory for generator_forward.4']
    #allocation4 [shape = 'u8[409600]{0}', space=vmem, size = 0x64000, scoped, tag = 'input window, operand 1, single buffered']
    #allocation5 [shape = 's32[1]{0}', space=sflag, size = 0x4, scoped, tag = 'scoped memory for generator_forward.4']
    #allocation6 [shape = 'u8[12800]{0}', space=vmem, size = 0x3400, scoped, tag = 'input window, operand 2, single buffered']
    %8 = vsyncpa [#allocation3], 0
    %9 = vsyncpa [#allocation5], 0
    // Predicated region
    $region2: #{generator_forward.4} parent=1 // pred_check
      _
    $region3: #{generator_forward.4} parent=1 // pred_check_branch
      %11 = sbr.rel (0) target = $region5
    $region4: #{generator_forward.4} parent=1 // pred_region
      %s13 = ssub.s32 32, 32
      %14 = vsyncadd [#allocation3], %s13
      %s16 = sshll.u32 [#allocation2], 4
      %s17 = int_to_ptr.vmem [resolvable:$true] %s16
      %19 = dma.hbm_to_vmem [thread:$0]  %s0, 32, %s17, [#allocation3]
    $region5: #{generator_forward.4} parent=1 // pred_fallthru
      _
    // Predicated region
    $region6: #{generator_forward.4} parent=1 // pred_check
      _
    $region7: #{generator_forward.4} parent=1 // pred_check_branch
      %21 = sbr.rel (0) target = $region9
    $region8: #{generator_forward.4} parent=1 // pred_region
      %s23 = ssub.s32 12800, 12800
      %24 = vsyncadd [#allocation5], %s23
      %s25 = sshll.u32 [#allocation4], 4
      %s26 = int_to_ptr.vmem [resolvable:$true] %s25
      %31 = dma.hbm_to_vmem [thread:$0]  %s1, 12800, %s26, [#allocation5], 3200, 3200, 200
    $region9: #{generator_forward.4} parent=1 // pred_fallthru
      _
    // Predicated region
    $region10: #{generator_forward.4} parent=1 // pred_check
      _
    $region11: #{generator_forward.4} parent=1 // pred_check_branch
      %33 = sbr.rel (0) target = $region13
    $region12: #{generator_forward.4} parent=1 // pred_region
      %s35 = ssub.s32 400, 400
      %36 = vsyncadd [#allocation5], %s35
      %s38 = sshll.u32 [#allocation6], 4
      %s39 = int_to_ptr.vmem [resolvable:$true] %s38
      %41 = dma.hbm_to_vmem [thread:$0]  %s2, 400, %s39, [#allocation5]
    $region13: #{generator_forward.4} parent=1 // pred_fallthru
      _
    // Predicated region
    $region14: #{generator_forward.4} parent=1 // pred_check
      _
    $region15: #{generator_forward.4} parent=1 // pred_check_branch
      %43 = sbr.rel (0) target = $region17
    $region16: #{generator_forward.4} parent=1 // pred_region
      %44 = dma.done [#allocation3], 32
    $region17: #{generator_forward.4} parent=1 // pred_fallthru
      _
    // Predicated region
    $region18: #{generator_forward.4} parent=1 // pred_check
      _
    $region19: #{generator_forward.4} parent=1 // pred_check_branch
      %46 = sbr.rel (0) target = $region21
    $region20: #{generator_forward.4} parent=1 // pred_region
      %47 = dma.done [#allocation5], 12800
    $region21: #{generator_forward.4} parent=1 // pred_fallthru
      _
    // Predicated region
    $region22: #{generator_forward.4} parent=1 // pred_check
      _
    $region23: #{generator_forward.4} parent=1 // pred_check_branch
      %49 = sbr.rel (0) target = $region25
    $region24: #{generator_forward.4} parent=1 // pred_region
      %50 = dma.done [#allocation5], 400
    $region25: #{generator_forward.4} parent=1 // pred_fallthru
      _
    %v51 = vld [vmem:[#allocation2] sm:$0x3]
    %v52 = vld [vmem:[#allocation4] sm:$0xff]
    %v53 = vld [vmem:[#allocation4 + $0x8] sm:$0xff]
    %v54 = vld [vmem:[#allocation4 + $0x10] sm:$0xff]
    %v55 = vld [vmem:[#allocation4 + $0x18] sm:$0xff]
    %v56 = vld [vmem:[#allocation4 + $0x20] sm:$0xff]
    %v57 = vld [vmem:[#allocation4 + $0x28] sm:$0xff]
    %v58 = vld [vmem:[#allocation4 + $0x30] sm:$0xff]
    %v59 = vld [vmem:[#allocation4 + $0x38] sm:$0xff]
    %v60 = vld [vmem:[#allocation4 + $0x40] sm:$0xff]
    %v61 = vld [vmem:[#allocation4 + $0x48] sm:$0xff]
    %v62 = vld [vmem:[#allocation4 + $0x50] sm:$0xff]
    %v63 = vld [vmem:[#allocation4 + $0x58] sm:$0xff]
    %v64 = vld [vmem:[#allocation4 + $0x60] sm:$0xff]
    %v65 = vld [vmem:[#allocation4 + $0x68] sm:$0xff]
    %v66 = vld [vmem:[#allocation4 + $0x70] sm:$0xff]
    %v67 = vld [vmem:[#allocation4 + $0x78] sm:$0xff]
    %v68 = vld [vmem:[#allocation4 + $0x80] sm:$0xff]
    %v69 = vld [vmem:[#allocation4 + $0x88] sm:$0xff]
    %v70 = vld [vmem:[#allocation4 + $0x90] sm:$0xff]
    %v71 = vld [vmem:[#allocation4 + $0x98] sm:$0xff]
    %v72 = vld [vmem:[#allocation4 + $0xa0] sm:$0xff]
    %v73 = vld [vmem:[#allocation4 + $0xa8] sm:$0xff]
    %v74 = vld [vmem:[#allocation4 + $0xb0] sm:$0xff]
    %v75 = vld [vmem:[#allocation4 + $0xb8] sm:$0xff]
    %v76 = vld [vmem:[#allocation4 + $0xc0] sm:$0xff]
    %v77 = vld [vmem:[#allocation4 + $0xc8] sm:$0xff]
    %v78 = vld [vmem:[#allocation4 + $0xd0] sm:$0xff]
    %v79 = vld [vmem:[#allocation4 + $0xd8] sm:$0xff]
    %v80 = vld [vmem:[#allocation4 + $0xe0] sm:$0xff]
    %v81 = vld [vmem:[#allocation4 + $0xe8] sm:$0xff]
    %v82 = vld [vmem:[#allocation4 + $0xf0] sm:$0xff]
    %v83 = vld [vmem:[#allocation4 + $0xf8] sm:$0xff]
    %v84 = vld [vmem:[#allocation4 + $0x100] sm:$0xff]
    %v85 = vld [vmem:[#allocation4 + $0x108] sm:$0xff]
    %v86 = vld [vmem:[#allocation4 + $0x110] sm:$0xff]
    %v87 = vld [vmem:[#allocation4 + $0x118] sm:$0xff]
    %v88 = vld [vmem:[#allocation4 + $0x120] sm:$0xff]
    %v89 = vld [vmem:[#allocation4 + $0x128] sm:$0xff]
    %v90 = vld [vmem:[#allocation4 + $0x130] sm:$0xff]
    %v91 = vld [vmem:[#allocation4 + $0x138] sm:$0xff]
    %v92 = vld [vmem:[#allocation4 + $0x140] sm:$0xff]
    %v93 = vld [vmem:[#allocation4 + $0x148] sm:$0xff]
    %v94 = vld [vmem:[#allocation4 + $0x150] sm:$0xff]
    %v95 = vld [vmem:[#allocation4 + $0x158] sm:$0xff]
    %v96 = vld [vmem:[#allocation4 + $0x160] sm:$0xff]
    %v97 = vld [vmem:[#allocation4 + $0x168] sm:$0xff]
    %v98 = vld [vmem:[#allocation4 + $0x170] sm:$0xff]
    %v99 = vld [vmem:[#allocation4 + $0x178] sm:$0xff]
    %v100 = vld [vmem:[#allocation4 + $0x180] sm:$0xff]
    %v101 = vld [vmem:[#allocation4 + $0x188] sm:$0xff]
    %v102 = vld [vmem:[#allocation4 + $0x190] sm:$0xff]
    %v103 = vld [vmem:[#allocation4 + $0x198] sm:$0xff]
    %v104 = vld [vmem:[#allocation4 + $0x1a0] sm:$0xff]
    %v105 = vld [vmem:[#allocation4 + $0x1a8] sm:$0xff]
    %v106 = vld [vmem:[#allocation4 + $0x1b0] sm:$0xff]
    %v107 = vld [vmem:[#allocation4 + $0x1b8] sm:$0xff]
    %v108 = vld [vmem:[#allocation4 + $0x1c0] sm:$0xff]
    %v109 = vld [vmem:[#allocation4 + $0x1c8] sm:$0xff]
    %v110 = vld [vmem:[#allocation4 + $0x1d0] sm:$0xff]
    %v111 = vld [vmem:[#allocation4 + $0x1d8] sm:$0xff]
    %v112 = vld [vmem:[#allocation4 + $0x1e0] sm:$0xff]
    %v113 = vld [vmem:[#allocation4 + $0x1e8] sm:$0xff]
    %v114 = vld [vmem:[#allocation4 + $0x1f0] sm:$0xff]
    %v115 = vld [vmem:[#allocation4 + $0x1f8] sm:$0xff]
    %v116 = vld [vmem:[#allocation4 + $0x200] sm:$0xff]
    %v117 = vld [vmem:[#allocation4 + $0x208] sm:$0xff]
    %v118 = vld [vmem:[#allocation4 + $0x210] sm:$0xff]
    %v119 = vld [vmem:[#allocation4 + $0x218] sm:$0xff]
    %v120 = vld [vmem:[#allocation4 + $0x220] sm:$0xff]
    %v121 = vld [vmem:[#allocation4 + $0x228] sm:$0xff]
    %v122 = vld [vmem:[#allocation4 + $0x230] sm:$0xff]
    %v123 = vld [vmem:[#allocation4 + $0x238] sm:$0xff]
    %v124 = vld [vmem:[#allocation4 + $0x240] sm:$0xff]
    %v125 = vld [vmem:[#allocation4 + $0x248] sm:$0xff]
    %v126 = vld [vmem:[#allocation4 + $0x250] sm:$0xff]
    %v127 = vld [vmem:[#allocation4 + $0x258] sm:$0xff]
    %v128 = vld [vmem:[#allocation4 + $0x260] sm:$0xff]
    %v129 = vld [vmem:[#allocation4 + $0x268] sm:$0xff]
    %v130 = vld [vmem:[#allocation4 + $0x270] sm:$0xff]
    %v131 = vld [vmem:[#allocation4 + $0x278] sm:$0xff]
    %v132 = vld [vmem:[#allocation4 + $0x280] sm:$0xff]
    %v133 = vld [vmem:[#allocation4 + $0x288] sm:$0xff]
    %v134 = vld [vmem:[#allocation4 + $0x290] sm:$0xff]
    %v135 = vld [vmem:[#allocation4 + $0x298] sm:$0xff]
    %v136 = vld [vmem:[#allocation4 + $0x2a0] sm:$0xff]
    %v137 = vld [vmem:[#allocation4 + $0x2a8] sm:$0xff]
    %v138 = vld [vmem:[#allocation4 + $0x2b0] sm:$0xff]
    %v139 = vld [vmem:[#allocation4 + $0x2b8] sm:$0xff]
    %v140 = vld [vmem:[#allocation4 + $0x2c0] sm:$0xff]
    %v141 = vld [vmem:[#allocation4 + $0x2c8] sm:$0xff]
    %v142 = vld [vmem:[#allocation4 + $0x2d0] sm:$0xff]
    %v143 = vld [vmem:[#allocation4 + $0x2d8] sm:$0xff]
    %v144 = vld [vmem:[#allocation4 + $0x2e0] sm:$0xff]
    %v145 = vld [vmem:[#allocation4 + $0x2e8] sm:$0xff]
    %v146 = vld [vmem:[#allocation4 + $0x2f0] sm:$0xff]
    %v147 = vld [vmem:[#allocation4 + $0x2f8] sm:$0xff]
    %v148 = vld [vmem:[#allocation4 + $0x300] sm:$0xff]
    %v149 = vld [vmem:[#allocation4 + $0x308] sm:$0xff]
    %v150 = vld [vmem:[#allocation4 + $0x310] sm:$0xff]
    %v151 = vld [vmem:[#allocation4 + $0x318] sm:$0xff]
    %v152 = vld [vmem:[#allocation6] sm:$0xff]
    %v153 = vld [vmem:[#allocation6 + $0x8] sm:$0xff]
    %v154 = vld [vmem:[#allocation6 + $0x10] sm:$0xff]
    %v155 = vld [vmem:[#allocation6 + $0x18] sm:$0x1]
    %v160 = vlaneseq
    %v161 = vshrl.u32 %v160, 7
    %v162 = vsub.s32 0, %v161
    %v163 = vrot.slane %v152, %v162
    %v164 = vlaneseq
    %v165 = vshrl.u32 %v164, 7
    %v166 = vsub.s32 1, %v165
    %v167 = vrot.slane %v152, %v166
    %v168 = vlaneseq
    %v169 = vshrl.u32 %v168, 7
    %v170 = vsub.s32 2, %v169
    %v171 = vrot.slane %v152, %v170
    %v172 = vlaneseq
    %v173 = vshrl.u32 %v172, 7
    %v174 = vsub.s32 3, %v173
    %v175 = vrot.slane %v152, %v174
    %v176 = vlaneseq
    %v177 = vshrl.u32 %v176, 7
    %v178 = vsub.s32 4, %v177
    %v179 = vrot.slane %v152, %v178
    %v180 = vlaneseq
    %v181 = vshrl.u32 %v180, 7
    %v182 = vsub.s32 5, %v181
    %v183 = vrot.slane %v152, %v182
    %v184 = vlaneseq
    %v185 = vshrl.u32 %v184, 7
    %v186 = vsub.s32 6, %v185
    %v187 = vrot.slane %v152, %v186
    %v188 = vlaneseq
    %v189 = vshrl.u32 %v188, 7
    %v190 = vsub.s32 7, %v189
    %v191 = vrot.slane %v152, %v190
    %v192 = vlaneseq
    %v193 = vshrl.u32 %v192, 7
    %v194 = vsub.s32 0, %v193
    %v195 = vrot.slane %v153, %v194
    %v196 = vlaneseq
    %v197 = vshrl.u32 %v196, 7
    %v198 = vsub.s32 1, %v197
    %v199 = vrot.slane %v153, %v198
    %v200 = vlaneseq
    %v201 = vshrl.u32 %v200, 7
    %v202 = vsub.s32 2, %v201
    %v203 = vrot.slane %v153, %v202
    %v204 = vlaneseq
    %v205 = vshrl.u32 %v204, 7
    %v206 = vsub.s32 3, %v205
    %v207 = vrot.slane %v153, %v206
    %v208 = vlaneseq
    %v209 = vshrl.u32 %v208, 7
    %v210 = vsub.s32 4, %v209
    %v211 = vrot.slane %v153, %v210
    %v212 = vlaneseq
    %v213 = vshrl.u32 %v212, 7
    %v214 = vsub.s32 5, %v213
    %v215 = vrot.slane %v153, %v214
    %v216 = vlaneseq
    %v217 = vshrl.u32 %v216, 7
    %v218 = vsub.s32 6, %v217
    %v219 = vrot.slane %v153, %v218
    %v220 = vlaneseq
    %v221 = vshrl.u32 %v220, 7
    %v222 = vsub.s32 7, %v221
    %v223 = vrot.slane %v153, %v222
    %v224 = vlaneseq
    %v225 = vshrl.u32 %v224, 7
    %v226 = vsub.s32 0, %v225
    %v227 = vrot.slane %v154, %v226
    %v228 = vlaneseq
    %v229 = vshrl.u32 %v228, 7
    %v230 = vsub.s32 1, %v229
    %v231 = vrot.slane %v154, %v230
    %v232 = vlaneseq
    %v233 = vshrl.u32 %v232, 7
    %v234 = vsub.s32 2, %v233
    %v235 = vrot.slane %v154, %v234
    %v236 = vlaneseq
    %v237 = vshrl.u32 %v236, 7
    %v238 = vsub.s32 3, %v237
    %v239 = vrot.slane %v154, %v238
    %v240 = vlaneseq
    %v241 = vshrl.u32 %v240, 7
    %v242 = vsub.s32 4, %v241
    %v243 = vrot.slane %v154, %v242
    %v244 = vlaneseq
    %v245 = vshrl.u32 %v244, 7
    %v246 = vsub.s32 5, %v245
    %v247 = vrot.slane %v154, %v246
    %v248 = vlaneseq
    %v249 = vshrl.u32 %v248, 7
    %v250 = vsub.s32 6, %v249
    %v251 = vrot.slane %v154, %v250
    %v252 = vlaneseq
    %v253 = vshrl.u32 %v252, 7
    %v254 = vsub.s32 7, %v253
    %v255 = vrot.slane %v154, %v254
    %v256 = vlaneseq
    %v257 = vshrl.u32 %v256, 7
    %v258 = vsub.s32 0, %v257
    %v259 = vrot.slane %v155, %v258
    %vm285 = vcmask 261120
    %v287 = vsel %vm285, %v51, 0
    %289 = vmatprep.subr.mxu0 %v53
    %290 = vmatpush1.msra.mxu0 %v52
    %291 = vmatprep.subr.mxu0 %v78
    %292 = vmatpush1.msra.mxu0 %v77
    %293 = vmatprep.subr.mxu0 %v103
    %294 = vmatpush1.msra.mxu0 %v102
    %295 = vmatprep.subr.mxu0 %v128
    %296 = vmatpush1.msra.mxu0 %v127
    %297 = vmatprep.subr.mxu0 0.0
    %298 = vmatpush1.msra.mxu0 0.0
    %299 = vmatprep.subr.mxu0 0.0
    %300 = vmatpush1.msra.mxu0 0.0
    %301 = vmatprep.subr.mxu0 0.0
    %302 = vmatpush1.msra.mxu0 0.0
    %303 = vmatprep.subr.mxu0 0.0
    %304 = vmatpush1.msra.mxu0 0.0
    %305 = vmatprep.subr.mxu0 0.0
    %306 = vmatpush1.msra.mxu0 0.0
    %307 = vmatprep.subr.mxu0 0.0
    %308 = vmatpush1.msra.mxu0 0.0
    %309 = vmatprep.subr.mxu0 0.0
    %310 = vmatpush1.msra.mxu0 0.0
    %311 = vmatprep.subr.mxu0 0.0
    %312 = vmatpush1.msra.mxu0 0.0
    %313 = vmatprep.subr.mxu0 0.0
    %314 = vmatpush1.msra.mxu0 0.0
    %315 = vmatprep.subr.mxu0 0.0
    %316 = vmatpush1.msra.mxu0 0.0
    %317 = vmatprep.subr.mxu0 0.0
    %318 = vmatpush1.msra.mxu0 0.0
    %319 = vmatprep.subr.mxu0 0.0
    %320 = vmatpush1.msra.mxu0 0.0
    %321 = vmatprep.subr.mxu0 0.0
    %322 = vmatpush1.msra.mxu0 0.0
    %323 = vmatprep.subr.mxu0 0.0
    %324 = vmatpush1.msra.mxu0 0.0
    %325 = vmatprep.subr.mxu0 0.0
    %326 = vmatpush1.msra.mxu0 0.0
    %327 = vmatprep.subr.mxu0 0.0
    %328 = vmatpush1.msra.mxu0 0.0
    %329 = vmatprep.subr.mxu0 0.0
    %330 = vmatpush1.msra.mxu0 0.0
    %331 = vmatprep.subr.mxu0 0.0
    %332 = vmatpush1.msra.mxu0 0.0
    %333 = vmatprep.subr.mxu0 0.0
    %334 = vmatpush1.msra.mxu0 0.0
    %335 = vmatprep.subr.mxu0 0.0
    %336 = vmatpush1.msra.mxu0 0.0
    %337 = vmatprep.subr.mxu0 0.0
    %338 = vmatpush1.msra.mxu0 0.0
    %339 = vmatprep.subr.mxu0 0.0
    %340 = vmatpush1.msra.mxu0 0.0
    %341 = vmatprep.subr.mxu0 0.0
    %342 = vmatpush1.msra.mxu0 0.0
    %343 = vmatprep.subr.mxu0 0.0
    %344 = vmatpush1.msra.mxu0 0.0
    %345 = vmatprep.subr.mxu0 0.0
    %346 = vmatpush1.msra.mxu0 0.0
    %347 = vmatprep.subr.mxu0 0.0
    %348 = vmatpush1.msra.mxu0 0.0
    %349 = vmatprep.subr.mxu0 0.0
    %350 = vmatpush1.msra.mxu0 0.0
    %351 = vmatprep.subr.mxu0 0.0
    %352 = vmatpush1.msra.mxu0 0.0
    %353 = vmatprep.mubr.f32.mxu0 0.0
    %354 = vmatmul.mubr.f32.gmra.mrb[0].mxu0 %v287
    %v355 = vpop.f32.mrb[0].mxu0
    %v356 = vadd.f32 %v163, %v355
    %v357 = vpop.f32.mrb[0].mxu0
    %v358 = vadd.f32 %v167, %v357
    %359 = vdwg.mxu0
    %360 = vmatprep.subr.mxu0 %v55
    %361 = vmatpush1.msra.mxu0 %v54
    %362 = vmatprep.subr.mxu0 %v80
    %363 = vmatpush1.msra.mxu0 %v79
    %364 = vmatprep.subr.mxu0 %v105
    %365 = vmatpush1.msra.mxu0 %v104
    %366 = vmatprep.subr.mxu0 %v130
    %367 = vmatpush1.msra.mxu0 %v129
    %368 = vmatprep.subr.mxu0 0.0
    %369 = vmatpush1.msra.mxu0 0.0
    %370 = vmatprep.subr.mxu0 0.0
    %371 = vmatpush1.msra.mxu0 0.0
    %372 = vmatprep.subr.mxu0 0.0
    %373 = vmatpush1.msra.mxu0 0.0
    %374 = vmatprep.subr.mxu0 0.0
    %375 = vmatpush1.msra.mxu0 0.0
    %376 = vmatprep.subr.mxu0 0.0
    %377 = vmatpush1.msra.mxu0 0.0
    %378 = vmatprep.subr.mxu0 0.0
    %379 = vmatpush1.msra.mxu0 0.0
    %380 = vmatprep.subr.mxu0 0.0
    %381 = vmatpush1.msra.mxu0 0.0
    %382 = vmatprep.subr.mxu0 0.0
    %383 = vmatpush1.msra.mxu0 0.0
    %384 = vmatprep.subr.mxu0 0.0
    %385 = vmatpush1.msra.mxu0 0.0
    %386 = vmatprep.subr.mxu0 0.0
    %387 = vmatpush1.msra.mxu0 0.0
    %388 = vmatprep.subr.mxu0 0.0
    %389 = vmatpush1.msra.mxu0 0.0
    %390 = vmatprep.subr.mxu0 0.0
    %391 = vmatpush1.msra.mxu0 0.0
    %392 = vmatprep.subr.mxu0 0.0
    %393 = vmatpush1.msra.mxu0 0.0
    %394 = vmatprep.subr.mxu0 0.0
    %395 = vmatpush1.msra.mxu0 0.0
    %396 = vmatprep.subr.mxu0 0.0
    %397 = vmatpush1.msra.mxu0 0.0
    %398 = vmatprep.subr.mxu0 0.0
    %399 = vmatpush1.msra.mxu0 0.0
    %400 = vmatprep.subr.mxu0 0.0
    %401 = vmatpush1.msra.mxu0 0.0
    %402 = vmatprep.subr.mxu0 0.0
    %403 = vmatpush1.msra.mxu0 0.0
    %404 = vmatprep.subr.mxu0 0.0
    %405 = vmatpush1.msra.mxu0 0.0
    %406 = vmatprep.subr.mxu0 0.0
    %407 = vmatpush1.msra.mxu0 0.0
    %408 = vmatprep.subr.mxu0 0.0
    %409 = vmatpush1.msra.mxu0 0.0
    %410 = vmatprep.subr.mxu0 0.0
    %411 = vmatpush1.msra.mxu0 0.0
    %412 = vmatprep.subr.mxu0 0.0
    %413 = vmatpush1.msra.mxu0 0.0
    %414 = vmatprep.subr.mxu0 0.0
    %415 = vmatpush1.msra.mxu0 0.0
    %416 = vmatprep.subr.mxu0 0.0
    %417 = vmatpush1.msra.mxu0 0.0
    %418 = vmatprep.subr.mxu0 0.0
    %419 = vmatpush1.msra.mxu0 0.0
    %420 = vmatprep.subr.mxu0 0.0
    %421 = vmatpush1.msra.mxu0 0.0
    %422 = vmatprep.subr.mxu0 0.0
    %423 = vmatpush1.msra.mxu0 0.0
    %424 = vmatprep.mubr.f32.mxu0 0.0
    %425 = vmatmul.mubr.f32.gmra.mrb[0].mxu0 %v287
    %v426 = vpop.f32.mrb[0].mxu0
    %v427 = vadd.f32 %v171, %v426
    %v428 = vpop.f32.mrb[0].mxu0
    %v429 = vadd.f32 %v175, %v428
    %430 = vdwg.mxu0
    %431 = vmatprep.subr.mxu0 %v57
    %432 = vmatpush1.msra.mxu0 %v56
    %433 = vmatprep.subr.mxu0 %v82
    %434 = vmatpush1.msra.mxu0 %v81
    %435 = vmatprep.subr.mxu0 %v107
    %436 = vmatpush1.msra.mxu0 %v106
    %437 = vmatprep.subr.mxu0 %v132
    %438 = vmatpush1.msra.mxu0 %v131
    %439 = vmatprep.subr.mxu0 0.0
    %440 = vmatpush1.msra.mxu0 0.0
    %441 = vmatprep.subr.mxu0 0.0
    %442 = vmatpush1.msra.mxu0 0.0
    %443 = vmatprep.subr.mxu0 0.0
    %444 = vmatpush1.msra.mxu0 0.0
    %445 = vmatprep.subr.mxu0 0.0
    %446 = vmatpush1.msra.mxu0 0.0
    %447 = vmatprep.subr.mxu0 0.0
    %448 = vmatpush1.msra.mxu0 0.0
    %449 = vmatprep.subr.mxu0 0.0
    %450 = vmatpush1.msra.mxu0 0.0
    %451 = vmatprep.subr.mxu0 0.0
    %452 = vmatpush1.msra.mxu0 0.0
    %453 = vmatprep.subr.mxu0 0.0
    %454 = vmatpush1.msra.mxu0 0.0
    %455 = vmatprep.subr.mxu0 0.0
    %456 = vmatpush1.msra.mxu0 0.0
    %457 = vmatprep.subr.mxu0 0.0
    %458 = vmatpush1.msra.mxu0 0.0
    %459 = vmatprep.subr.mxu0 0.0
    %460 = vmatpush1.msra.mxu0 0.0
    %461 = vmatprep.subr.mxu0 0.0
    %462 = vmatpush1.msra.mxu0 0.0
    %463 = vmatprep.subr.mxu0 0.0
    %464 = vmatpush1.msra.mxu0 0.0
    %465 = vmatprep.subr.mxu0 0.0
    %466 = vmatpush1.msra.mxu0 0.0
    %467 = vmatprep.subr.mxu0 0.0
    %468 = vmatpush1.msra.mxu0 0.0
    %469 = vmatprep.subr.mxu0 0.0
    %470 = vmatpush1.msra.mxu0 0.0
    %471 = vmatprep.subr.mxu0 0.0
    %472 = vmatpush1.msra.mxu0 0.0
    %473 = vmatprep.subr.mxu0 0.0
    %474 = vmatpush1.msra.mxu0 0.0
    %475 = vmatprep.subr.mxu0 0.0
    %476 = vmatpush1.msra.mxu0 0.0
    %477 = vmatprep.subr.mxu0 0.0
    %478 = vmatpush1.msra.mxu0 0.0
    %479 = vmatprep.subr.mxu0 0.0
    %480 = vmatpush1.msra.mxu0 0.0
    %481 = vmatprep.subr.mxu0 0.0
    %482 = vmatpush1.msra.mxu0 0.0
    %483 = vmatprep.subr.mxu0 0.0
    %484 = vmatpush1.msra.mxu0 0.0
    %485 = vmatprep.subr.mxu0 0.0
    %486 = vmatpush1.msra.mxu0 0.0
    %487 = vmatprep.subr.mxu0 0.0
    %488 = vmatpush1.msra.mxu0 0.0
    %489 = vmatprep.subr.mxu0 0.0
    %490 = vmatpush1.msra.mxu0 0.0
    %491 = vmatprep.subr.mxu0 0.0
    %492 = vmatpush1.msra.mxu0 0.0
    %493 = vmatprep.subr.mxu0 0.0
    %494 = vmatpush1.msra.mxu0 0.0
    %495 = vmatprep.mubr.f32.mxu0 0.0
    %496 = vmatmul.mubr.f32.gmra.mrb[0].mxu0 %v287
    %v497 = vpop.f32.mrb[0].mxu0
    %v498 = vadd.f32 %v179, %v497
    %v499 = vpop.f32.mrb[0].mxu0
    %v500 = vadd.f32 %v183, %v499
    %501 = vdwg.mxu0
    %502 = vmatprep.subr.mxu0 %v59
    %503 = vmatpush1.msra.mxu0 %v58
    %504 = vmatprep.subr.mxu0 %v84
    %505 = vmatpush1.msra.mxu0 %v83
    %506 = vmatprep.subr.mxu0 %v109
    %507 = vmatpush1.msra.mxu0 %v108
    %508 = vmatprep.subr.mxu0 %v134
    %509 = vmatpush1.msra.mxu0 %v133
    %510 = vmatprep.subr.mxu0 0.0
    %511 = vmatpush1.msra.mxu0 0.0
    %512 = vmatprep.subr.mxu0 0.0
    %513 = vmatpush1.msra.mxu0 0.0
    %514 = vmatprep.subr.mxu0 0.0
    %515 = vmatpush1.msra.mxu0 0.0
    %516 = vmatprep.subr.mxu0 0.0
    %517 = vmatpush1.msra.mxu0 0.0
    %518 = vmatprep.subr.mxu0 0.0
    %519 = vmatpush1.msra.mxu0 0.0
    %520 = vmatprep.subr.mxu0 0.0
    %521 = vmatpush1.msra.mxu0 0.0
    %522 = vmatprep.subr.mxu0 0.0
    %523 = vmatpush1.msra.mxu0 0.0
    %524 = vmatprep.subr.mxu0 0.0
    %525 = vmatpush1.msra.mxu0 0.0
    %526 = vmatprep.subr.mxu0 0.0
    %527 = vmatpush1.msra.mxu0 0.0
    %528 = vmatprep.subr.mxu0 0.0
    %529 = vmatpush1.msra.mxu0 0.0
    %530 = vmatprep.subr.mxu0 0.0
    %531 = vmatpush1.msra.mxu0 0.0
    %532 = vmatprep.subr.mxu0 0.0
    %533 = vmatpush1.msra.mxu0 0.0
    %534 = vmatprep.subr.mxu0 0.0
    %535 = vmatpush1.msra.mxu0 0.0
    %536 = vmatprep.subr.mxu0 0.0
    %537 = vmatpush1.msra.mxu0 0.0
    %538 = vmatprep.subr.mxu0 0.0
    %539 = vmatpush1.msra.mxu0 0.0
    %540 = vmatprep.subr.mxu0 0.0
    %541 = vmatpush1.msra.mxu0 0.0
    %542 = vmatprep.subr.mxu0 0.0
    %543 = vmatpush1.msra.mxu0 0.0
    %544 = vmatprep.subr.mxu0 0.0
    %545 = vmatpush1.msra.mxu0 0.0
    %546 = vmatprep.subr.mxu0 0.0
    %547 = vmatpush1.msra.mxu0 0.0
    %548 = vmatprep.subr.mxu0 0.0
    %549 = vmatpush1.msra.mxu0 0.0
    %550 = vmatprep.subr.mxu0 0.0
    %551 = vmatpush1.msra.mxu0 0.0
    %552 = vmatprep.subr.mxu0 0.0
    %553 = vmatpush1.msra.mxu0 0.0
    %554 = vmatprep.subr.mxu0 0.0
    %555 = vmatpush1.msra.mxu0 0.0
    %556 = vmatprep.subr.mxu0 0.0
    %557 = vmatpush1.msra.mxu0 0.0
    %558 = vmatprep.subr.mxu0 0.0
    %559 = vmatpush1.msra.mxu0 0.0
    %560 = vmatprep.subr.mxu0 0.0
    %561 = vmatpush1.msra.mxu0 0.0
    %562 = vmatprep.subr.mxu0 0.0
    %563 = vmatpush1.msra.mxu0 0.0
    %564 = vmatprep.subr.mxu0 0.0
    %565 = vmatpush1.msra.mxu0 0.0
    %566 = vmatprep.mubr.f32.mxu0 0.0
    %567 = vmatmul.mubr.f32.gmra.mrb[0].mxu0 %v287
    %v568 = vpop.f32.mrb[0].mxu0
    %v569 = vadd.f32 %v187, %v568
    %v570 = vpop.f32.mrb[0].mxu0
    %v571 = vadd.f32 %v191, %v570
    %572 = vdwg.mxu0
    %573 = vmatprep.subr.mxu0 %v61
    %574 = vmatpush1.msra.mxu0 %v60
    %575 = vmatprep.subr.mxu0 %v86
    %576 = vmatpush1.msra.mxu0 %v85
    %577 = vmatprep.subr.mxu0 %v111
    %578 = vmatpush1.msra.mxu0 %v110
    %579 = vmatprep.subr.mxu0 %v136
    %580 = vmatpush1.msra.mxu0 %v135
    %581 = vmatprep.subr.mxu0 0.0
    %582 = vmatpush1.msra.mxu0 0.0
    %583 = vmatprep.subr.mxu0 0.0
    %584 = vmatpush1.msra.mxu0 0.0
    %585 = vmatprep.subr.mxu0 0.0
    %586 = vmatpush1.msra.mxu0 0.0
    %587 = vmatprep.subr.mxu0 0.0
    %588 = vmatpush1.msra.mxu0 0.0
    %589 = vmatprep.subr.mxu0 0.0
    %590 = vmatpush1.msra.mxu0 0.0
    %591 = vmatprep.subr.mxu0 0.0
    %592 = vmatpush1.msra.mxu0 0.0
    %593 = vmatprep.subr.mxu0 0.0
    %594 = vmatpush1.msra.mxu0 0.0
    %595 = vmatprep.subr.mxu0 0.0
    %596 = vmatpush1.msra.mxu0 0.0
    %597 = vmatprep.subr.mxu0 0.0
    %598 = vmatpush1.msra.mxu0 0.0
    %599 = vmatprep.subr.mxu0 0.0
    %600 = vmatpush1.msra.mxu0 0.0
    %601 = vmatprep.subr.mxu0 0.0
    %602 = vmatpush1.msra.mxu0 0.0
    %603 = vmatprep.subr.mxu0 0.0
    %604 = vmatpush1.msra.mxu0 0.0
    %605 = vmatprep.subr.mxu0 0.0
    %606 = vmatpush1.msra.mxu0 0.0
    %607 = vmatprep.subr.mxu0 0.0
    %608 = vmatpush1.msra.mxu0 0.0
    %609 = vmatprep.subr.mxu0 0.0
    %610 = vmatpush1.msra.mxu0 0.0
    %611 = vmatprep.subr.mxu0 0.0
    %612 = vmatpush1.msra.mxu0 0.0
    %613 = vmatprep.subr.mxu0 0.0
    %614 = vmatpush1.msra.mxu0 0.0
    %615 = vmatprep.subr.mxu0 0.0
    %616 = vmatpush1.msra.mxu0 0.0
    %617 = vmatprep.subr.mxu0 0.0
    %618 = vmatpush1.msra.mxu0 0.0
    %619 = vmatprep.subr.mxu0 0.0
    %620 = vmatpush1.msra.mxu0 0.0
    %621 = vmatprep.subr.mxu0 0.0
    %622 = vmatpush1.msra.mxu0 0.0
    %623 = vmatprep.subr.mxu0 0.0
    %624 = vmatpush1.msra.mxu0 0.0
    %625 = vmatprep.subr.mxu0 0.0
    %626 = vmatpush1.msra.mxu0 0.0
    %627 = vmatprep.subr.mxu0 0.0
    %628 = vmatpush1.msra.mxu0 0.0
    %629 = vmatprep.subr.mxu0 0.0
    %630 = vmatpush1.msra.mxu0 0.0
    %631 = vmatprep.subr.mxu0 0.0
    %632 = vmatpush1.msra.mxu0 0.0
    %633 = vmatprep.subr.mxu0 0.0
    %634 = vmatpush1.msra.mxu0 0.0
    %635 = vmatprep.subr.mxu0 0.0
    %636 = vmatpush1.msra.mxu0 0.0
    %637 = vmatprep.mubr.f32.mxu0 0.0
    %638 = vmatmul.mubr.f32.gmra.mrb[0].mxu0 %v287
    %v639 = vpop.f32.mrb[0].mxu0
    %v640 = vadd.f32 %v195, %v639
    %v641 = vpop.f32.mrb[0].mxu0
    %v642 = vadd.f32 %v199, %v641
    %643 = vdwg.mxu0
    %644 = vmatprep.subr.mxu0 %v63
    %645 = vmatpush1.msra.mxu0 %v62
    %646 = vmatprep.subr.mxu0 %v88
    %647 = vmatpush1.msra.mxu0 %v87
    %648 = vmatprep.subr.mxu0 %v113
    %649 = vmatpush1.msra.mxu0 %v112
    %650 = vmatprep.subr.mxu0 %v138
    %651 = vmatpush1.msra.mxu0 %v137
    %652 = vmatprep.subr.mxu0 0.0
    %653 = vmatpush1.msra.mxu0 0.0
    %654 = vmatprep.subr.mxu0 0.0
    %655 = vmatpush1.msra.mxu0 0.0
    %656 = vmatprep.subr.mxu0 0.0
    %657 = vmatpush1.msra.mxu0 0.0
    %658 = vmatprep.subr.mxu0 0.0
    %659 = vmatpush1.msra.mxu0 0.0
    %660 = vmatprep.subr.mxu0 0.0
    %661 = vmatpush1.msra.mxu0 0.0
    %662 = vmatprep.subr.mxu0 0.0
    %663 = vmatpush1.msra.mxu0 0.0
    %664 = vmatprep.subr.mxu0 0.0
    %665 = vmatpush1.msra.mxu0 0.0
    %666 = vmatprep.subr.mxu0 0.0
    %667 = vmatpush1.msra.mxu0 0.0
    %668 = vmatprep.subr.mxu0 0.0
    %669 = vmatpush1.msra.mxu0 0.0
    %670 = vmatprep.subr.mxu0 0.0
    %671 = vmatpush1.msra.mxu0 0.0
    %672 = vmatprep.subr.mxu0 0.0
    %673 = vmatpush1.msra.mxu0 0.0
    %674 = vmatprep.subr.mxu0 0.0
    %675 = vmatpush1.msra.mxu0 0.0
    %676 = vmatprep.subr.mxu0 0.0
    %677 = vmatpush1.msra.mxu0 0.0
    %678 = vmatprep.subr.mxu0 0.0
    %679 = vmatpush1.msra.mxu0 0.0
    %680 = vmatprep.subr.mxu0 0.0
    %681 = vmatpush1.msra.mxu0 0.0
    %682 = vmatprep.subr.mxu0 0.0
    %683 = vmatpush1.msra.mxu0 0.0
    %684 = vmatprep.subr.mxu0 0.0
    %685 = vmatpush1.msra.mxu0 0.0
    %686 = vmatprep.subr.mxu0 0.0
    %687 = vmatpush1.msra.mxu0 0.0
    %688 = vmatprep.subr.mxu0 0.0
    %689 = vmatpush1.msra.mxu0 0.0
    %690 = vmatprep.subr.mxu0 0.0
    %691 = vmatpush1.msra.mxu0 0.0
    %692 = vmatprep.subr.mxu0 0.0
    %693 = vmatpush1.msra.mxu0 0.0
    %694 = vmatprep.subr.mxu0 0.0
    %695 = vmatpush1.msra.mxu0 0.0
    %696 = vmatprep.subr.mxu0 0.0
    %697 = vmatpush1.msra.mxu0 0.0
    %698 = vmatprep.subr.mxu0 0.0
    %699 = vmatpush1.msra.mxu0 0.0
    %700 = vmatprep.subr.mxu0 0.0
    %701 = vmatpush1.msra.mxu0 0.0
    %702 = vmatprep.subr.mxu0 0.0
    %703 = vmatpush1.msra.mxu0 0.0
    %704 = vmatprep.subr.mxu0 0.0
    %705 = vmatpush1.msra.mxu0 0.0
    %706 = vmatprep.subr.mxu0 0.0
    %707 = vmatpush1.msra.mxu0 0.0
    %708 = vmatprep.mubr.f32.mxu0 0.0
    %709 = vmatmul.mubr.f32.gmra.mrb[0].mxu0 %v287
    %v710 = vpop.f32.mrb[0].mxu0
    %v711 = vadd.f32 %v203, %v710
    %v712 = vpop.f32.mrb[0].mxu0
    %v713 = vadd.f32 %v207, %v712
    %714 = vdwg.mxu0
    %715 = vmatprep.subr.mxu0 %v65
    %716 = vmatpush1.msra.mxu0 %v64
    %717 = vmatprep.subr.mxu0 %v90
    %718 = vmatpush1.msra.mxu0 %v89
    %719 = vmatprep.subr.mxu0 %v115
    %720 = vmatpush1.msra.mxu0 %v114
    %721 = vmatprep.subr.mxu0 %v140
    %722 = vmatpush1.msra.mxu0 %v139
    %723 = vmatprep.subr.mxu0 0.0
    %724 = vmatpush1.msra.mxu0 0.0
    %725 = vmatprep.subr.mxu0 0.0
    %726 = vmatpush1.msra.mxu0 0.0
    %727 = vmatprep.subr.mxu0 0.0
    %728 = vmatpush1.msra.mxu0 0.0
    %729 = vmatprep.subr.mxu0 0.0
    %730 = vmatpush1.msra.mxu0 0.0
    %731 = vmatprep.subr.mxu0 0.0
    %732 = vmatpush1.msra.mxu0 0.0
    %733 = vmatprep.subr.mxu0 0.0
    %734 = vmatpush1.msra.mxu0 0.0
    %735 = vmatprep.subr.mxu0 0.0
    %736 = vmatpush1.msra.mxu0 0.0
    %737 = vmatprep.subr.mxu0 0.0
    %738 = vmatpush1.msra.mxu0 0.0
    %739 = vmatprep.subr.mxu0 0.0
    %740 = vmatpush1.msra.mxu0 0.0
    %741 = vmatprep.subr.mxu0 0.0
    %742 = vmatpush1.msra.mxu0 0.0
    %743 = vmatprep.subr.mxu0 0.0
    %744 = vmatpush1.msra.mxu0 0.0
    %745 = vmatprep.subr.mxu0 0.0
    %746 = vmatpush1.msra.mxu0 0.0
    %747 = vmatprep.subr.mxu0 0.0
    %748 = vmatpush1.msra.mxu0 0.0
    %749 = vmatprep.subr.mxu0 0.0
    %750 = vmatpush1.msra.mxu0 0.0
    %751 = vmatprep.subr.mxu0 0.0
    %752 = vmatpush1.msra.mxu0 0.0
    %753 = vmatprep.subr.mxu0 0.0
    %754 = vmatpush1.msra.mxu0 0.0
    %755 = vmatprep.subr.mxu0 0.0
    %756 = vmatpush1.msra.mxu0 0.0
    %757 = vmatprep.subr.mxu0 0.0
    %758 = vmatpush1.msra.mxu0 0.0
    %759 = vmatprep.subr.mxu0 0.0
    %760 = vmatpush1.msra.mxu0 0.0
    %761 = vmatprep.subr.mxu0 0.0
    %762 = vmatpush1.msra.mxu0 0.0
    %763 = vmatprep.subr.mxu0 0.0
    %764 = vmatpush1.msra.mxu0 0.0
    %765 = vmatprep.subr.mxu0 0.0
    %766 = vmatpush1.msra.mxu0 0.0
    %767 = vmatprep.subr.mxu0 0.0
    %768 = vmatpush1.msra.mxu0 0.0
    %769 = vmatprep.subr.mxu0 0.0
    %770 = vmatpush1.msra.mxu0 0.0
    %771 = vmatprep.subr.mxu0 0.0
    %772 = vmatpush1.msra.mxu0 0.0
    %773 = vmatprep.subr.mxu0 0.0
    %774 = vmatpush1.msra.mxu0 0.0
    %775 = vmatprep.subr.mxu0 0.0
    %776 = vmatpush1.msra.mxu0 0.0
    %777 = vmatprep.subr.mxu0 0.0
    %778 = vmatpush1.msra.mxu0 0.0
    %779 = vmatprep.mubr.f32.mxu0 0.0
    %780 = vmatmul.mubr.f32.gmra.mrb[0].mxu0 %v287
    %v781 = vpop.f32.mrb[0].mxu0
    %v782 = vadd.f32 %v211, %v781
    %v783 = vpop.f32.mrb[0].mxu0
    %v784 = vadd.f32 %v215, %v783
    %785 = vdwg.mxu0
    %786 = vmatprep.subr.mxu0 %v67
    %787 = vmatpush1.msra.mxu0 %v66
    %788 = vmatprep.subr.mxu0 %v92
    %789 = vmatpush1.msra.mxu0 %v91
    %790 = vmatprep.subr.mxu0 %v117
    %791 = vmatpush1.msra.mxu0 %v116
    %792 = vmatprep.subr.mxu0 %v142
    %793 = vmatpush1.msra.mxu0 %v141
    %794 = vmatprep.subr.mxu0 0.0
    %795 = vmatpush1.msra.mxu0 0.0
    %796 = vmatprep.subr.mxu0 0.0
    %797 = vmatpush1.msra.mxu0 0.0
    %798 = vmatprep.subr.mxu0 0.0
    %799 = vmatpush1.msra.mxu0 0.0
    %800 = vmatprep.subr.mxu0 0.0
    %801 = vmatpush1.msra.mxu0 0.0
    %802 = vmatprep.subr.mxu0 0.0
    %803 = vmatpush1.msra.mxu0 0.0
    %804 = vmatprep.subr.mxu0 0.0
    %805 = vmatpush1.msra.mxu0 0.0
    %806 = vmatprep.subr.mxu0 0.0
    %807 = vmatpush1.msra.mxu0 0.0
    %808 = vmatprep.subr.mxu0 0.0
    %809 = vmatpush1.msra.mxu0 0.0
    %810 = vmatprep.subr.mxu0 0.0
    %811 = vmatpush1.msra.mxu0 0.0
    %812 = vmatprep.subr.mxu0 0.0
    %813 = vmatpush1.msra.mxu0 0.0
    %814 = vmatprep.subr.mxu0 0.0
    %815 = vmatpush1.msra.mxu0 0.0
    %816 = vmatprep.subr.mxu0 0.0
    %817 = vmatpush1.msra.mxu0 0.0
    %818 = vmatprep.subr.mxu0 0.0
    %819 = vmatpush1.msra.mxu0 0.0
    %820 = vmatprep.subr.mxu0 0.0
    %821 = vmatpush1.msra.mxu0 0.0
    %822 = vmatprep.subr.mxu0 0.0
    %823 = vmatpush1.msra.mxu0 0.0
    %824 = vmatprep.subr.mxu0 0.0
    %825 = vmatpush1.msra.mxu0 0.0
    %826 = vmatprep.subr.mxu0 0.0
    %827 = vmatpush1.msra.mxu0 0.0
    %828 = vmatprep.subr.mxu0 0.0
    %829 = vmatpush1.msra.mxu0 0.0
    %830 = vmatprep.subr.mxu0 0.0
    %831 = vmatpush1.msra.mxu0 0.0
    %832 = vmatprep.subr.mxu0 0.0
    %833 = vmatpush1.msra.mxu0 0.0
    %834 = vmatprep.subr.mxu0 0.0
    %835 = vmatpush1.msra.mxu0 0.0
    %836 = vmatprep.subr.mxu0 0.0
    %837 = vmatpush1.msra.mxu0 0.0
    %838 = vmatprep.subr.mxu0 0.0
    %839 = vmatpush1.msra.mxu0 0.0
    %840 = vmatprep.subr.mxu0 0.0
    %841 = vmatpush1.msra.mxu0 0.0
    %842 = vmatprep.subr.mxu0 0.0
    %843 = vmatpush1.msra.mxu0 0.0
    %844 = vmatprep.subr.mxu0 0.0
    %845 = vmatpush1.msra.mxu0 0.0
    %846 = vmatprep.subr.mxu0 0.0
    %847 = vmatpush1.msra.mxu0 0.0
    %848 = vmatprep.subr.mxu0 0.0
    %849 = vmatpush1.msra.mxu0 0.0
    %850 = vmatprep.mubr.f32.mxu0 0.0
    %851 = vmatmul.mubr.f32.gmra.mrb[0].mxu0 %v287
    %v852 = vpop.f32.mrb[0].mxu0
    %v853 = vadd.f32 %v219, %v852
    %v854 = vpop.f32.mrb[0].mxu0
    %v855 = vadd.f32 %v223, %v854
    %856 = vdwg.mxu0
    %857 = vmatprep.subr.mxu0 %v69
    %858 = vmatpush1.msra.mxu0 %v68
    %859 = vmatprep.subr.mxu0 %v94
    %860 = vmatpush1.msra.mxu0 %v93
    %861 = vmatprep.subr.mxu0 %v119
    %862 = vmatpush1.msra.mxu0 %v118
    %863 = vmatprep.subr.mxu0 %v144
    %864 = vmatpush1.msra.mxu0 %v143
    %865 = vmatprep.subr.mxu0 0.0
    %866 = vmatpush1.msra.mxu0 0.0
    %867 = vmatprep.subr.mxu0 0.0
    %868 = vmatpush1.msra.mxu0 0.0
    %869 = vmatprep.subr.mxu0 0.0
    %870 = vmatpush1.msra.mxu0 0.0
    %871 = vmatprep.subr.mxu0 0.0
    %872 = vmatpush1.msra.mxu0 0.0
    %873 = vmatprep.subr.mxu0 0.0
    %874 = vmatpush1.msra.mxu0 0.0
    %875 = vmatprep.subr.mxu0 0.0
    %876 = vmatpush1.msra.mxu0 0.0
    %877 = vmatprep.subr.mxu0 0.0
    %878 = vmatpush1.msra.mxu0 0.0
    %879 = vmatprep.subr.mxu0 0.0
    %880 = vmatpush1.msra.mxu0 0.0
    %881 = vmatprep.subr.mxu0 0.0
    %882 = vmatpush1.msra.mxu0 0.0
    %883 = vmatprep.subr.mxu0 0.0
    %884 = vmatpush1.msra.mxu0 0.0
    %885 = vmatprep.subr.mxu0 0.0
    %886 = vmatpush1.msra.mxu0 0.0
    %887 = vmatprep.subr.mxu0 0.0
    %888 = vmatpush1.msra.mxu0 0.0
    %889 = vmatprep.subr.mxu0 0.0
    %890 = vmatpush1.msra.mxu0 0.0
    %891 = vmatprep.subr.mxu0 0.0
    %892 = vmatpush1.msra.mxu0 0.0
    %893 = vmatprep.subr.mxu0 0.0
    %894 = vmatpush1.msra.mxu0 0.0
    %895 = vmatprep.subr.mxu0 0.0
    %896 = vmatpush1.msra.mxu0 0.0
    %897 = vmatprep.subr.mxu0 0.0
    %898 = vmatpush1.msra.mxu0 0.0
    %899 = vmatprep.subr.mxu0 0.0
    %900 = vmatpush1.msra.mxu0 0.0
    %901 = vmatprep.subr.mxu0 0.0
    %902 = vmatpush1.msra.mxu0 0.0
    %903 = vmatprep.subr.mxu0 0.0
    %904 = vmatpush1.msra.mxu0 0.0
    %905 = vmatprep.subr.mxu0 0.0
    %906 = vmatpush1.msra.mxu0 0.0
    %907 = vmatprep.subr.mxu0 0.0
    %908 = vmatpush1.msra.mxu0 0.0
    %909 = vmatprep.subr.mxu0 0.0
    %910 = vmatpush1.msra.mxu0 0.0
    %911 = vmatprep.subr.mxu0 0.0
    %912 = vmatpush1.msra.mxu0 0.0
    %913 = vmatprep.subr.mxu0 0.0
    %914 = vmatpush1.msra.mxu0 0.0
    %915 = vmatprep.subr.mxu0 0.0
    %916 = vmatpush1.msra.mxu0 0.0
    %917 = vmatprep.subr.mxu0 0.0
    %918 = vmatpush1.msra.mxu0 0.0
    %919 = vmatprep.subr.mxu0 0.0
    %920 = vmatpush1.msra.mxu0 0.0
    %921 = vmatprep.mubr.f32.mxu0 0.0
    %922 = vmatmul.mubr.f32.gmra.mrb[0].mxu0 %v287
    %v923 = vpop.f32.mrb[0].mxu0
    %v924 = vadd.f32 %v227, %v923
    %v925 = vpop.f32.mrb[0].mxu0
    %v926 = vadd.f32 %v231, %v925
    %927 = vdwg.mxu0
    %928 = vmatprep.subr.mxu0 %v71
    %929 = vmatpush1.msra.mxu0 %v70
    %930 = vmatprep.subr.mxu0 %v96
    %931 = vmatpush1.msra.mxu0 %v95
    %932 = vmatprep.subr.mxu0 %v121
    %933 = vmatpush1.msra.mxu0 %v120
    %934 = vmatprep.subr.mxu0 %v146
    %935 = vmatpush1.msra.mxu0 %v145
    %936 = vmatprep.subr.mxu0 0.0
    %937 = vmatpush1.msra.mxu0 0.0
    %938 = vmatprep.subr.mxu0 0.0
    %939 = vmatpush1.msra.mxu0 0.0
    %940 = vmatprep.subr.mxu0 0.0
    %941 = vmatpush1.msra.mxu0 0.0
    %942 = vmatprep.subr.mxu0 0.0
    %943 = vmatpush1.msra.mxu0 0.0
    %944 = vmatprep.subr.mxu0 0.0
    %945 = vmatpush1.msra.mxu0 0.0
    %946 = vmatprep.subr.mxu0 0.0
    %947 = vmatpush1.msra.mxu0 0.0
    %948 = vmatprep.subr.mxu0 0.0
    %949 = vmatpush1.msra.mxu0 0.0
    %950 = vmatprep.subr.mxu0 0.0
    %951 = vmatpush1.msra.mxu0 0.0
    %952 = vmatprep.subr.mxu0 0.0
    %953 = vmatpush1.msra.mxu0 0.0
    %954 = vmatprep.subr.mxu0 0.0
    %955 = vmatpush1.msra.mxu0 0.0
    %956 = vmatprep.subr.mxu0 0.0
    %957 = vmatpush1.msra.mxu0 0.0
    %958 = vmatprep.subr.mxu0 0.0
    %959 = vmatpush1.msra.mxu0 0.0
    %960 = vmatprep.subr.mxu0 0.0
    %961 = vmatpush1.msra.mxu0 0.0
    %962 = vmatprep.subr.mxu0 0.0
    %963 = vmatpush1.msra.mxu0 0.0
    %964 = vmatprep.subr.mxu0 0.0
    %965 = vmatpush1.msra.mxu0 0.0
    %966 = vmatprep.subr.mxu0 0.0
    %967 = vmatpush1.msra.mxu0 0.0
    %968 = vmatprep.subr.mxu0 0.0
    %969 = vmatpush1.msra.mxu0 0.0
    %970 = vmatprep.subr.mxu0 0.0
    %971 = vmatpush1.msra.mxu0 0.0
    %972 = vmatprep.subr.mxu0 0.0
    %973 = vmatpush1.msra.mxu0 0.0
    %974 = vmatprep.subr.mxu0 0.0
    %975 = vmatpush1.msra.mxu0 0.0
    %976 = vmatprep.subr.mxu0 0.0
    %977 = vmatpush1.msra.mxu0 0.0
    %978 = vmatprep.subr.mxu0 0.0
    %979 = vmatpush1.msra.mxu0 0.0
    %980 = vmatprep.subr.mxu0 0.0
    %981 = vmatpush1.msra.mxu0 0.0
    %982 = vmatprep.subr.mxu0 0.0
    %983 = vmatpush1.msra.mxu0 0.0
    %984 = vmatprep.subr.mxu0 0.0
    %985 = vmatpush1.msra.mxu0 0.0
    %986 = vmatprep.subr.mxu0 0.0
    %987 = vmatpush1.msra.mxu0 0.0
    %988 = vmatprep.subr.mxu0 0.0
    %989 = vmatpush1.msra.mxu0 0.0
    %990 = vmatprep.subr.mxu0 0.0
    %991 = vmatpush1.msra.mxu0 0.0
    %992 = vmatprep.mubr.f32.mxu0 0.0
    %993 = vmatmul.mubr.f32.gmra.mrb[0].mxu0 %v287
    %v994 = vpop.f32.mrb[0].mxu0
    %v995 = vadd.f32 %v235, %v994
    %v996 = vpop.f32.mrb[0].mxu0
    %v997 = vadd.f32 %v239, %v996
    %998 = vdwg.mxu0
    %999 = vmatprep.subr.mxu0 %v73
    %1000 = vmatpush1.msra.mxu0 %v72
    %1001 = vmatprep.subr.mxu0 %v98
    %1002 = vmatpush1.msra.mxu0 %v97
    %1003 = vmatprep.subr.mxu0 %v123
    %1004 = vmatpush1.msra.mxu0 %v122
    %1005 = vmatprep.subr.mxu0 %v148
    %1006 = vmatpush1.msra.mxu0 %v147
    %1007 = vmatprep.subr.mxu0 0.0
    %1008 = vmatpush1.msra.mxu0 0.0
    %1009 = vmatprep.subr.mxu0 0.0
    %1010 = vmatpush1.msra.mxu0 0.0
    %1011 = vmatprep.subr.mxu0 0.0
    %1012 = vmatpush1.msra.mxu0 0.0
    %1013 = vmatprep.subr.mxu0 0.0
    %1014 = vmatpush1.msra.mxu0 0.0
    %1015 = vmatprep.subr.mxu0 0.0
    %1016 = vmatpush1.msra.mxu0 0.0
    %1017 = vmatprep.subr.mxu0 0.0
    %1018 = vmatpush1.msra.mxu0 0.0
    %1019 = vmatprep.subr.mxu0 0.0
    %1020 = vmatpush1.msra.mxu0 0.0
    %1021 = vmatprep.subr.mxu0 0.0
    %1022 = vmatpush1.msra.mxu0 0.0
    %1023 = vmatprep.subr.mxu0 0.0
    %1024 = vmatpush1.msra.mxu0 0.0
    %1025 = vmatprep.subr.mxu0 0.0
    %1026 = vmatpush1.msra.mxu0 0.0
    %1027 = vmatprep.subr.mxu0 0.0
    %1028 = vmatpush1.msra.mxu0 0.0
    %1029 = vmatprep.subr.mxu0 0.0
    %1030 = vmatpush1.msra.mxu0 0.0
    %1031 = vmatprep.subr.mxu0 0.0
    %1032 = vmatpush1.msra.mxu0 0.0
    %1033 = vmatprep.subr.mxu0 0.0
    %1034 = vmatpush1.msra.mxu0 0.0
    %1035 = vmatprep.subr.mxu0 0.0
    %1036 = vmatpush1.msra.mxu0 0.0
    %1037 = vmatprep.subr.mxu0 0.0
    %1038 = vmatpush1.msra.mxu0 0.0
    %1039 = vmatprep.subr.mxu0 0.0
    %1040 = vmatpush1.msra.mxu0 0.0
    %1041 = vmatprep.subr.mxu0 0.0
    %1042 = vmatpush1.msra.mxu0 0.0
    %1043 = vmatprep.subr.mxu0 0.0
    %1044 = vmatpush1.msra.mxu0 0.0
    %1045 = vmatprep.subr.mxu0 0.0
    %1046 = vmatpush1.msra.mxu0 0.0
    %1047 = vmatprep.subr.mxu0 0.0
    %1048 = vmatpush1.msra.mxu0 0.0
    %1049 = vmatprep.subr.mxu0 0.0
    %1050 = vmatpush1.msra.mxu0 0.0
    %1051 = vmatprep.subr.mxu0 0.0
    %1052 = vmatpush1.msra.mxu0 0.0
    %1053 = vmatprep.subr.mxu0 0.0
    %1054 = vmatpush1.msra.mxu0 0.0
    %1055 = vmatprep.subr.mxu0 0.0
    %1056 = vmatpush1.msra.mxu0 0.0
    %1057 = vmatprep.subr.mxu0 0.0
    %1058 = vmatpush1.msra.mxu0 0.0
    %1059 = vmatprep.subr.mxu0 0.0
    %1060 = vmatpush1.msra.mxu0 0.0
    %1061 = vmatprep.subr.mxu0 0.0
    %1062 = vmatpush1.msra.mxu0 0.0
    %1063 = vmatprep.mubr.f32.mxu0 0.0
    %1064 = vmatmul.mubr.f32.gmra.mrb[0].mxu0 %v287
    %v1065 = vpop.f32.mrb[0].mxu0
    %v1066 = vadd.f32 %v243, %v1065
    %v1067 = vpop.f32.mrb[0].mxu0
    %v1068 = vadd.f32 %v247, %v1067
    %1069 = vdwg.mxu0
    %1070 = vmatprep.subr.mxu0 %v75
    %1071 = vmatpush1.msra.mxu0 %v74
    %1072 = vmatprep.subr.mxu0 %v100
    %1073 = vmatpush1.msra.mxu0 %v99
    %1074 = vmatprep.subr.mxu0 %v125
    %1075 = vmatpush1.msra.mxu0 %v124
    %1076 = vmatprep.subr.mxu0 %v150
    %1077 = vmatpush1.msra.mxu0 %v149
    %1078 = vmatprep.subr.mxu0 0.0
    %1079 = vmatpush1.msra.mxu0 0.0
    %1080 = vmatprep.subr.mxu0 0.0
    %1081 = vmatpush1.msra.mxu0 0.0
    %1082 = vmatprep.subr.mxu0 0.0
    %1083 = vmatpush1.msra.mxu0 0.0
    %1084 = vmatprep.subr.mxu0 0.0
    %1085 = vmatpush1.msra.mxu0 0.0
    %1086 = vmatprep.subr.mxu0 0.0
    %1087 = vmatpush1.msra.mxu0 0.0
    %1088 = vmatprep.subr.mxu0 0.0
    %1089 = vmatpush1.msra.mxu0 0.0
    %1090 = vmatprep.subr.mxu0 0.0
    %1091 = vmatpush1.msra.mxu0 0.0
    %1092 = vmatprep.subr.mxu0 0.0
    %1093 = vmatpush1.msra.mxu0 0.0
    %1094 = vmatprep.subr.mxu0 0.0
    %1095 = vmatpush1.msra.mxu0 0.0
    %1096 = vmatprep.subr.mxu0 0.0
    %1097 = vmatpush1.msra.mxu0 0.0
    %1098 = vmatprep.subr.mxu0 0.0
    %1099 = vmatpush1.msra.mxu0 0.0
    %1100 = vmatprep.subr.mxu0 0.0
    %1101 = vmatpush1.msra.mxu0 0.0
    %1102 = vmatprep.subr.mxu0 0.0
    %1103 = vmatpush1.msra.mxu0 0.0
    %1104 = vmatprep.subr.mxu0 0.0
    %1105 = vmatpush1.msra.mxu0 0.0
    %1106 = vmatprep.subr.mxu0 0.0
    %1107 = vmatpush1.msra.mxu0 0.0
    %1108 = vmatprep.subr.mxu0 0.0
    %1109 = vmatpush1.msra.mxu0 0.0
    %1110 = vmatprep.subr.mxu0 0.0
    %1111 = vmatpush1.msra.mxu0 0.0
    %1112 = vmatprep.subr.mxu0 0.0
    %1113 = vmatpush1.msra.mxu0 0.0
    %1114 = vmatprep.subr.mxu0 0.0
    %1115 = vmatpush1.msra.mxu0 0.0
    %1116 = vmatprep.subr.mxu0 0.0
    %1117 = vmatpush1.msra.mxu0 0.0
    %1118 = vmatprep.subr.mxu0 0.0
    %1119 = vmatpush1.msra.mxu0 0.0
    %1120 = vmatprep.subr.mxu0 0.0
    %1121 = vmatpush1.msra.mxu0 0.0
    %1122 = vmatprep.subr.mxu0 0.0
    %1123 = vmatpush1.msra.mxu0 0.0
    %1124 = vmatprep.subr.mxu0 0.0
    %1125 = vmatpush1.msra.mxu0 0.0
    %1126 = vmatprep.subr.mxu0 0.0
    %1127 = vmatpush1.msra.mxu0 0.0
    %1128 = vmatprep.subr.mxu0 0.0
    %1129 = vmatpush1.msra.mxu0 0.0
    %1130 = vmatprep.subr.mxu0 0.0
    %1131 = vmatpush1.msra.mxu0 0.0
    %1132 = vmatprep.subr.mxu0 0.0
    %1133 = vmatpush1.msra.mxu0 0.0
    %1134 = vmatprep.mubr.f32.mxu0 0.0
    %1135 = vmatmul.mubr.f32.gmra.mrb[0].mxu0 %v287
    %v1136 = vpop.f32.mrb[0].mxu0
    %v1137 = vadd.f32 %v251, %v1136
    %v1138 = vpop.f32.mrb[0].mxu0
    %v1139 = vadd.f32 %v255, %v1138
    %1140 = vdwg.mxu0
    %1141 = vmatprep.subr.mxu0 0.0
    %1142 = vmatpush1.msra.mxu0 %v76
    %1143 = vmatprep.subr.mxu0 0.0
    %1144 = vmatpush1.msra.mxu0 %v101
    %1145 = vmatprep.subr.mxu0 0.0
    %1146 = vmatpush1.msra.mxu0 %v126
    %1147 = vmatprep.subr.mxu0 0.0
    %1148 = vmatpush1.msra.mxu0 %v151
    %1149 = vmatprep.subr.mxu0 0.0
    %1150 = vmatpush1.msra.mxu0 0.0
    %1151 = vmatprep.subr.mxu0 0.0
    %1152 = vmatpush1.msra.mxu0 0.0
    %1153 = vmatprep.subr.mxu0 0.0
    %1154 = vmatpush1.msra.mxu0 0.0
    %1155 = vmatprep.subr.mxu0 0.0
    %1156 = vmatpush1.msra.mxu0 0.0
    %1157 = vmatprep.subr.mxu0 0.0
    %1158 = vmatpush1.msra.mxu0 0.0
    %1159 = vmatprep.subr.mxu0 0.0
    %1160 = vmatpush1.msra.mxu0 0.0
    %1161 = vmatprep.subr.mxu0 0.0
    %1162 = vmatpush1.msra.mxu0 0.0
    %1163 = vmatprep.subr.mxu0 0.0
    %1164 = vmatpush1.msra.mxu0 0.0
    %1165 = vmatprep.subr.mxu0 0.0
    %1166 = vmatpush1.msra.mxu0 0.0
    %1167 = vmatprep.subr.mxu0 0.0
    %1168 = vmatpush1.msra.mxu0 0.0
    %1169 = vmatprep.subr.mxu0 0.0
    %1170 = vmatpush1.msra.mxu0 0.0
    %1171 = vmatprep.subr.mxu0 0.0
    %1172 = vmatpush1.msra.mxu0 0.0
    %1173 = vmatprep.subr.mxu0 0.0
    %1174 = vmatpush1.msra.mxu0 0.0
    %1175 = vmatprep.subr.mxu0 0.0
    %1176 = vmatpush1.msra.mxu0 0.0
    %1177 = vmatprep.subr.mxu0 0.0
    %1178 = vmatpush1.msra.mxu0 0.0
    %1179 = vmatprep.subr.mxu0 0.0
    %1180 = vmatpush1.msra.mxu0 0.0
    %1181 = vmatprep.subr.mxu0 0.0
    %1182 = vmatpush1.msra.mxu0 0.0
    %1183 = vmatprep.subr.mxu0 0.0
    %1184 = vmatpush1.msra.mxu0 0.0
    %1185 = vmatprep.subr.mxu0 0.0
    %1186 = vmatpush1.msra.mxu0 0.0
    %1187 = vmatprep.subr.mxu0 0.0
    %1188 = vmatpush1.msra.mxu0 0.0
    %1189 = vmatprep.subr.mxu0 0.0
    %1190 = vmatpush1.msra.mxu0 0.0
    %1191 = vmatprep.subr.mxu0 0.0
    %1192 = vmatpush1.msra.mxu0 0.0
    %1193 = vmatprep.subr.mxu0 0.0
    %1194 = vmatpush1.msra.mxu0 0.0
    %1195 = vmatprep.subr.mxu0 0.0
    %1196 = vmatpush1.msra.mxu0 0.0
    %1197 = vmatprep.subr.mxu0 0.0
    %1198 = vmatpush1.msra.mxu0 0.0
    %1199 = vmatprep.subr.mxu0 0.0
    %1200 = vmatpush1.msra.mxu0 0.0
    %1201 = vmatprep.subr.mxu0 0.0
    %1202 = vmatpush1.msra.mxu0 0.0
    %1203 = vmatprep.subr.mxu0 0.0
    %1204 = vmatpush1.msra.mxu0 0.0
    %1205 = vmatprep.mubr.f32.mxu0 0.0
    %1206 = vmatmul.mubr.f32.gmra.mrb[0].mxu0 %v287
    %v1207 = vpop.f32.mrb[0].mxu0
    %v1208 = vadd.f32 %v259, %v1207
    %v1209 = vpop.f32.mrb[0].mxu0
    %1210 = vdwg.mxu0
    %v1211 = vmax.f32 %v356, 0.0
    %v1212 = vmax.f32 %v358, 0.0
    %v1213 = vmax.f32 %v427, 0.0
    %v1214 = vmax.f32 %v429, 0.0
    %v1215 = vmax.f32 %v498, 0.0
    %v1216 = vmax.f32 %v500, 0.0
    %v1217 = vmax.f32 %v569, 0.0
    %v1218 = vmax.f32 %v571, 0.0
    %v1219 = vmax.f32 %v640, 0.0
    %v1220 = vmax.f32 %v642, 0.0
    %v1221 = vmax.f32 %v711, 0.0
    %v1222 = vmax.f32 %v713, 0.0
    %v1223 = vmax.f32 %v782, 0.0
    %v1224 = vmax.f32 %v784, 0.0
    %v1225 = vmax.f32 %v853, 0.0
    %v1226 = vmax.f32 %v855, 0.0
    %v1227 = vmax.f32 %v924, 0.0
    %v1228 = vmax.f32 %v926, 0.0
    %v1229 = vmax.f32 %v995, 0.0
    %v1230 = vmax.f32 %v997, 0.0
    %v1231 = vmax.f32 %v1066, 0.0
    %v1232 = vmax.f32 %v1068, 0.0
    %v1233 = vmax.f32 %v1137, 0.0
    %v1234 = vmax.f32 %v1139, 0.0
    %v1235 = vmax.f32 %v1208, 0.0
    %v1261 = vcombine.low %v1211, %v1212
    %v1262 = vcombine.low %v1213, %v1214
    %v1264 = vunpack.c.l.s4 1983009808
    %v1265 = vunpack.c.0.s8 %v1264
    %v1266 = vlaneseq
    %v1267 = vshrl.u32 %v1266, 7
    %v1268 = vsub.s32 %v1265, %v1267
    %v1269 = vrot.slane %v1261, %v1268
    %v1271 = vunpack.c.l.s4 1983009808
    %v1272 = vunpack.c.0.s8 %v1271
    %v1273 = vlaneseq
    %v1274 = vshrl.u32 %v1273, 7
    %v1275 = vsub.s32 %v1272, %v1274
    %v1276 = vrot.slane %v1262, %v1275
    %v1277 = vcombine.low %v1269, %v1276
    %v1278 = vcombine.low %v1215, %v1216
    %v1279 = vcombine.low %v1217, %v1218
    %v1281 = vunpack.c.l.s4 1983009808
    %v1282 = vunpack.c.0.s8 %v1281
    %v1283 = vlaneseq
    %v1284 = vshrl.u32 %v1283, 7
    %v1285 = vsub.s32 %v1282, %v1284
    %v1286 = vrot.slane %v1278, %v1285
    %v1288 = vunpack.c.l.s4 1983009808
    %v1289 = vunpack.c.0.s8 %v1288
    %v1290 = vlaneseq
    %v1291 = vshrl.u32 %v1290, 7
    %v1292 = vsub.s32 %v1289, %v1291
    %v1293 = vrot.slane %v1279, %v1292
    %v1294 = vcombine.low %v1286, %v1293
    %v1295 = vcombine.low %v1219, %v1220
    %v1296 = vcombine.low %v1221, %v1222
    %v1298 = vunpack.c.l.s4 1983009808
    %v1299 = vunpack.c.0.s8 %v1298
    %v1300 = vlaneseq
    %v1301 = vshrl.u32 %v1300, 7
    %v1302 = vsub.s32 %v1299, %v1301
    %v1303 = vrot.slane %v1295, %v1302
    %v1305 = vunpack.c.l.s4 1983009808
    %v1306 = vunpack.c.0.s8 %v1305
    %v1307 = vlaneseq
    %v1308 = vshrl.u32 %v1307, 7
    %v1309 = vsub.s32 %v1306, %v1308
    %v1310 = vrot.slane %v1296, %v1309
    %v1311 = vcombine.low %v1303, %v1310
    %v1312 = vcombine.low %v1223, %v1224
    %v1313 = vcombine.low %v1225, %v1226
    %v1315 = vunpack.c.l.s4 1983009808
    %v1316 = vunpack.c.0.s8 %v1315
    %v1317 = vlaneseq
    %v1318 = vshrl.u32 %v1317, 7
    %v1319 = vsub.s32 %v1316, %v1318
    %v1320 = vrot.slane %v1312, %v1319
    %v1322 = vunpack.c.l.s4 1983009808
    %v1323 = vunpack.c.0.s8 %v1322
    %v1324 = vlaneseq
    %v1325 = vshrl.u32 %v1324, 7
    %v1326 = vsub.s32 %v1323, %v1325
    %v1327 = vrot.slane %v1313, %v1326
    %v1328 = vcombine.low %v1320, %v1327
    %v1329 = vcombine.low %v1227, %v1228
    %v1330 = vcombine.low %v1229, %v1230
    %v1332 = vunpack.c.l.s4 1983009808
    %v1333 = vunpack.c.0.s8 %v1332
    %v1334 = vlaneseq
    %v1335 = vshrl.u32 %v1334, 7
    %v1336 = vsub.s32 %v1333, %v1335
    %v1337 = vrot.slane %v1329, %v1336
    %v1339 = vunpack.c.l.s4 1983009808
    %v1340 = vunpack.c.0.s8 %v1339
    %v1341 = vlaneseq
    %v1342 = vshrl.u32 %v1341, 7
    %v1343 = vsub.s32 %v1340, %v1342
    %v1344 = vrot.slane %v1330, %v1343
    %v1345 = vcombine.low %v1337, %v1344
    %v1346 = vcombine.low %v1231, %v1232
    %v1347 = vcombine.low %v1233, %v1234
    %v1349 = vunpack.c.l.s4 1983009808
    %v1350 = vunpack.c.0.s8 %v1349
    %v1351 = vlaneseq
    %v1352 = vshrl.u32 %v1351, 7
    %v1353 = vsub.s32 %v1350, %v1352
    %v1354 = vrot.slane %v1346, %v1353
    %v1356 = vunpack.c.l.s4 1983009808
    %v1357 = vunpack.c.0.s8 %v1356
    %v1358 = vlaneseq
    %v1359 = vshrl.u32 %v1358, 7
    %v1360 = vsub.s32 %v1357, %v1359
    %v1361 = vrot.slane %v1347, %v1360
    %v1362 = vcombine.low %v1354, %v1361
    %v1364 = vunpack.c.l.s4 1983009808
    %v1365 = vunpack.c.0.s8 %v1364
    %v1366 = vlaneseq
    %v1367 = vshrl.u32 %v1366, 7
    %v1368 = vsub.s32 %v1365, %v1367
    %v1369 = vrot.slane %v1235, %v1368
    %1377 = vst [vmem:[%s3] sm:$0xff] %v1277
    %1378 = vst [vmem:[%s3 + $0x8] sm:$0xff] %v1294
    %1379 = vst [vmem:[%s3 + $0x10] sm:$0xff] %v1311
    %1380 = vst [vmem:[%s3 + $0x18] sm:$0xff] %v1328
    %1381 = vst [vmem:[%s3 + $0x20] sm:$0xff] %v1345
    %1382 = vst [vmem:[%s3 + $0x28] sm:$0xff] %v1362
    %vm1383 = vcmask 517120
    %1384 = vst.msk [vmem:[%s3 + $0x30] sm:$0x3] %vm1383, %v1369
    // Predicated region
    $region26: #{generator_forward.4} parent=1 // pred_check
      _
    $region27: #{generator_forward.4} parent=1 // pred_check_branch
      %1386 = sbr.rel (0) target = $region29
    $region28: #{generator_forward.4} parent=1 // pred_region
      _
    $region29: #{generator_forward.4} parent=1 // pred_fallthru
      _
    // Predicated region
    $region30: #{generator_forward.4} parent=1 // pred_check
      _
    $region31: #{generator_forward.4} parent=1 // pred_check_branch
      %1388 = sbr.rel (0) target = $region33
    $region32: #{generator_forward.4} parent=1 // pred_region
      _
    $region33: #{generator_forward.4} parent=1 // pred_fallthru
      _
    %1389 = vsyncpa [#allocation3], 1
    %1390 = vsyncpa [#allocation5], 1

// kernel: generator_forward.6
$region0: #{generator_forward.6}
  #allocation0 [shape = 'u32[]', space=smem, size = 0x4, offset = 0x4, fixed_abs, tag = 'smem constant byte address 0x4 - core index']
  #allocation1 [shape = 'u32[144,128]{1,0:T(1,128)}', space=vmem, size = 0x12000, scoped, tag = 'internal scratch']
  %s0 = inlined_call_operand.vmem [shape: f32[592,128], index: 0, kind: input, shape index: {}]
  %s1 = inlined_call_operand.vmem [shape: f32[128,128], index: 1, kind: input, shape index: {}]
  %s2 = inlined_call_operand.vmem [shape: f32[1,128], index: 2, kind: input, shape index: {}]
  %s3 = inlined_call_operand.vmem [shape: f32[592,128], index: 3, kind: output, shape index: {}]
  %s4 = sld [smem:[#allocation0]]
  $region45: #{generator_forward.6} parent=0
    _
  %s6 = ssub.s32 1, %s4
  %s7 = scalar_select 0, %s6, %s4
  loop: start=0, step=1, limit=4
  $region2: #{generator_forward.6} parent=0 // loop_pre_header
    _
  $region3: #{generator_forward.6} parent=0 // loop_header
    %s9 = sphi 0, %s13
    %p10 = scmp.ge.s32.totalorder %s9, 4
    %s19 = sphi 0, %s21
    %s22 = sphi 0, %s19
    %s23 = sphi 0, %s22
    %s39 = sphi 0, %s23
    %s43 = sphi 0, %s43
    %s45 = sphi 0, %s43
    %s46 = sphi 0, %s45
    %s60 = sphi 0, %s46
    %s64 = sphi 0, %s64
    %s66 = sphi 0, %s64
    %s67 = sphi 0, %s66
    %s81 = sphi 0, %s67
    %s87 = sphi 0, %s89
    %s90 = sphi 0, %s87
    %s91 = sphi 0, %s90
    %s107 = sphi 0, %s91
  $region4: #{generator_forward.6} parent=0 // loop_header_branch
    %12 = sbr.rel (%p10) target = $region8
  $region5: #{generator_forward.6} parent=0 // loop_body
    %s14 = ssub.s32 %s9, 1
    %s15 = ssub.s32 %s9, 2
    %s16 = sadd.s32 %s9, 1
    %s17 = ssub.s32 %s9, %s16
    %p18 = scmp.eq.s32.totalorder %s17, 0
    %s20 = sadd.s32 %s19, 1
    %s21 = scalar_select %p18, %s19, %s20
    %p24 = pneg %p18
    %p25 = scmp.eq.s32.totalorder %s9, 1
    %p26 = por %p24, %p25
    %p27 = scmp.ne.s32.totalorder %s19, %s22
    %p28 = scmp.eq.s32.totalorder %s9, 0
    %p29 = por %p27, %p28
    %p30 = scmp.ne.s32.totalorder %s19, %s22
    %p31 = scmp.eq.s32.totalorder %s14, 1
    %p32 = por %p30, %p31
    %p33 = scmp.ne.s32.totalorder %s22, %s23
    %p34 = scmp.eq.s32.totalorder %s14, 0
    %p35 = por %p33, %p34
    %p36 = scmp.ne.s32.totalorder %s22, %s23
    %p37 = scmp.eq.s32.totalorder %s15, 1
    %p38 = por %p36, %p37
    %p40 = scmp.ne.s32.totalorder %s23, %s39
    %p41 = scmp.eq.s32.totalorder %s15, 0
    %p42 = por %p40, %p41
    %s44 = sadd.s32 %s43, 1
    %p47 = scmp.eq.s32.totalorder %s9, 1
    %p48 = scmp.ne.s32.totalorder %s43, %s45
    %p49 = scmp.eq.s32.totalorder %s9, 0
    %p50 = por %p48, %p49
    %p51 = scmp.ne.s32.totalorder %s43, %s45
    %p52 = scmp.eq.s32.totalorder %s14, 1
    %p53 = por %p51, %p52
    %p54 = scmp.ne.s32.totalorder %s45, %s46
    %p55 = scmp.eq.s32.totalorder %s14, 0
    %p56 = por %p54, %p55
    %p57 = scmp.ne.s32.totalorder %s45, %s46
    %p58 = scmp.eq.s32.totalorder %s15, 1
    %p59 = por %p57, %p58
    %p61 = scmp.ne.s32.totalorder %s46, %s60
    %p62 = scmp.eq.s32.totalorder %s15, 0
    %p63 = por %p61, %p62
    %s65 = sadd.s32 %s64, 1
    %p68 = scmp.eq.s32.totalorder %s9, 1
    %p69 = scmp.ne.s32.totalorder %s64, %s66
    %p70 = scmp.eq.s32.totalorder %s9, 0
    %p71 = por %p69, %p70
    %p72 = scmp.ne.s32.totalorder %s64, %s66
    %p73 = scmp.eq.s32.totalorder %s14, 1
    %p74 = por %p72, %p73
    %p75 = scmp.ne.s32.totalorder %s66, %s67
    %p76 = scmp.eq.s32.totalorder %s14, 0
    %p77 = por %p75, %p76
    %p78 = scmp.ne.s32.totalorder %s66, %s67
    %p79 = scmp.eq.s32.totalorder %s15, 1
    %p80 = por %p78, %p79
    %p82 = scmp.ne.s32.totalorder %s67, %s81
    %p83 = scmp.eq.s32.totalorder %s15, 0
    %p84 = por %p82, %p83
    %s85 = ssub.s32 %s9, %s16
    %p86 = scmp.eq.s32.totalorder %s85, 0
    %s88 = sadd.s32 %s87, 1
    %s89 = scalar_select %p86, %s87, %s88
    %p92 = pneg %p86
    %p93 = scmp.eq.s32.totalorder %s9, 1
    %p94 = por %p92, %p93
    %p95 = scmp.ne.s32.totalorder %s87, %s90
    %p96 = scmp.eq.s32.totalorder %s9, 0
    %p97 = por %p95, %p96
    %p98 = scmp.ne.s32.totalorder %s87, %s90
    %p99 = scmp.eq.s32.totalorder %s14, 1
    %p100 = por %p98, %p99
    %p101 = scmp.ne.s32.totalorder %s90, %s91
    %p102 = scmp.eq.s32.totalorder %s14, 0
    %p103 = por %p101, %p102
    %p104 = scmp.ne.s32.totalorder %s90, %s91
    %p105 = scmp.eq.s32.totalorder %s15, 1
    %p106 = por %p104, %p105
    %p108 = scmp.ne.s32.totalorder %s91, %s107
    %p109 = scmp.eq.s32.totalorder %s15, 0
    %p110 = por %p108, %p109
    %p111 = scmp.le.s32.totalorder 1, %s9
    %p112 = scmp.lt.s32.totalorder %s9, 3
    %p113 = pnand %p111, %p112
    %p114 = pneg %p113
    // Predicated region
    $region9: #{generator_forward.6} parent=5 // pred_check
      _
    $region10: #{generator_forward.6} parent=5 // pred_check_branch
      %116 = sbr.rel (%p113) target = $region12
    $region11: #{generator_forward.6} parent=5 // pred_region
      %s117 = ssub.s32 %s9, 1
      // Predicated region
      $region13: #{generator_forward.6} parent=11 // pred_check
        %p118 = pneg %p56
      $region14: #{generator_forward.6} parent=11 // pred_check_branch
        %120 = sbr.rel (%p118) target = $region16
      $region15: #{generator_forward.6} parent=11 // pred_region
        _
      $region16: #{generator_forward.6} parent=11 // pred_fallthru
        _
      // Predicated region
      $region17: #{generator_forward.6} parent=11 // pred_check
        %p121 = pneg %p77
      $region18: #{generator_forward.6} parent=11 // pred_check_branch
        %123 = sbr.rel (%p121) target = $region20
      $region19: #{generator_forward.6} parent=11 // pred_region
        _
      $region20: #{generator_forward.6} parent=11 // pred_fallthru
        _
    $region12: #{generator_forward.6} parent=5 // pred_fallthru
      _
    %p124 = scmp.lt.s32.totalorder %s9, 2
    // Predicated region
    $region21: #{generator_forward.6} parent=5 // pred_check
      %p125 = pneg %p124
    $region22: #{generator_forward.6} parent=5 // pred_check_branch
      %127 = sbr.rel (%p125) target = $region24
    $region23: #{generator_forward.6} parent=5 // pred_region
      // Predicated region
      $region25: #{generator_forward.6} parent=23 // pred_check
        %p128 = pneg %p29
      $region26: #{generator_forward.6} parent=23 // pred_check_branch
        %130 = sbr.rel (%p128) target = $region28
      $region27: #{generator_forward.6} parent=23 // pred_region
        %s131 = smul.u32 37, %s9
        %p132 = scmp.lt.s32.totalorder %s131, 73
        %s133 = scalar_select %p132, %s131, 73
        %s134 = smul.addr %s133, 8
        %s135 = scalar_lea.vmem %s0, %s134
        %s136 = smul.u32 37, %s9
      $region28: #{generator_forward.6} parent=23 // pred_fallthru
        _
    $region24: #{generator_forward.6} parent=5 // pred_fallthru
      _
    %p137 = scmp.le.s32.totalorder 1, %s9
    %p138 = scmp.lt.s32.totalorder %s9, 3
    %p139 = pnand %p137, %p138
    %p140 = pneg %p139
    // Predicated region
    $region29: #{generator_forward.6} parent=5 // pred_check
      _
    $region30: #{generator_forward.6} parent=5 // pred_check_branch
      %142 = sbr.rel (%p139) target = $region32
    $region31: #{generator_forward.6} parent=5 // pred_region
      %s143 = ssub.s32 %s9, 1
      %s144 = smul.u32 37, %s14
      %p145 = scmp.lt.s32.totalorder %s144, 73
      %s146 = scalar_select %p145, %s144, 73
      %s147 = smul.addr %s146, 8
      %s148 = scalar_lea.vmem %s0, %s147
      %p149 = pneg %p35
      %p150 = pneg %p32
      %p151 = pneg %p56
      %p152 = pneg %p53
      %p153 = pneg %p77
      %p154 = pneg %p74
      %p155 = pneg %p103
      %p156 = pneg %p100
      %s157 = smul.u32 37, %s14
      %p158 = scmp.lt.s32.totalorder %s157, 73
      %s159 = scalar_select %p158, %s157, 73
      %s160 = smul.addr %s159, 8
      %s161 = scalar_lea.vmem %s3, %s160
      %s162 = smul.u32 37, %s14
      %p163 = scmp.lt.s32.totalorder %s162, 73
      %s164 = scalar_select %p163, %s162, 73
      %s165 = smul.addr %s164, 8
      %s166 = scalar_lea.vmem %s0, %s165
      %s167 = smul.u32 37, %s14
      %s168 = smul.u32 37, %s14
      %p169 = scmp.lt.s32.totalorder %s168, 73
      %s170 = scalar_select %p169, %s168, 73
      %s171 = smul.addr %s170, 8
      %s172 = scalar_lea.vmem %s3, %s171
      %s173 = smul.u32 37, %s14
      %v174 = vld [vmem:[%s166] sm:$0xff]
      %v175 = vld [vmem:[%s166 + $0x8] sm:$0xff]
      %v176 = vld [vmem:[%s166 + $0x10] sm:$0xff]
      %v177 = vld [vmem:[%s166 + $0x18] sm:$0xff]
      %v178 = vld [vmem:[%s166 + $0x20] sm:$0xff]
      %v179 = vld [vmem:[%s166 + $0x28] sm:$0xff]
      %v180 = vld [vmem:[%s166 + $0x30] sm:$0xff]
      %v181 = vld [vmem:[%s166 + $0x38] sm:$0xff]
      %v182 = vld [vmem:[%s166 + $0x40] sm:$0xff]
      %v183 = vld [vmem:[%s166 + $0x48] sm:$0xff]
      %v184 = vld [vmem:[%s166 + $0x50] sm:$0xff]
      %v185 = vld [vmem:[%s166 + $0x58] sm:$0xff]
      %v186 = vld [vmem:[%s166 + $0x60] sm:$0xff]
      %v187 = vld [vmem:[%s166 + $0x68] sm:$0xff]
      %v188 = vld [vmem:[%s166 + $0x70] sm:$0xff]
      %v189 = vld [vmem:[%s166 + $0x78] sm:$0xff]
      %v190 = vld [vmem:[%s166 + $0x80] sm:$0xff]
      %v191 = vld [vmem:[%s166 + $0x88] sm:$0xff]
      %v192 = vld [vmem:[%s166 + $0x90] sm:$0xff]
      %v193 = vld [vmem:[%s166 + $0x98] sm:$0xff]
      %v194 = vld [vmem:[%s166 + $0xa0] sm:$0xff]
      %v195 = vld [vmem:[%s166 + $0xa8] sm:$0xff]
      %v196 = vld [vmem:[%s166 + $0xb0] sm:$0xff]
      %v197 = vld [vmem:[%s166 + $0xb8] sm:$0xff]
      %v198 = vld [vmem:[%s166 + $0xc0] sm:$0xff]
      %v199 = vld [vmem:[%s166 + $0xc8] sm:$0xff]
      %v200 = vld [vmem:[%s166 + $0xd0] sm:$0xff]
      %v201 = vld [vmem:[%s166 + $0xd8] sm:$0xff]
      %v202 = vld [vmem:[%s166 + $0xe0] sm:$0xff]
      %v203 = vld [vmem:[%s166 + $0xe8] sm:$0xff]
      %v204 = vld [vmem:[%s166 + $0xf0] sm:$0xff]
      %v205 = vld [vmem:[%s166 + $0xf8] sm:$0xff]
      %v206 = vld [vmem:[%s166 + $0x100] sm:$0xff]
      %v207 = vld [vmem:[%s166 + $0x108] sm:$0xff]
      %v208 = vld [vmem:[%s166 + $0x110] sm:$0xff]
      %v209 = vld [vmem:[%s166 + $0x118] sm:$0xff]
      %v210 = vld [vmem:[%s166 + $0x120] sm:$0xff]
      %v211 = vld [vmem:[%s1] sm:$0xff]
      %v212 = vld [vmem:[%s1 + $0x8] sm:$0xff]
      %v213 = vld [vmem:[%s1 + $0x10] sm:$0xff]
      %v214 = vld [vmem:[%s1 + $0x18] sm:$0xff]
      %v215 = vld [vmem:[%s1 + $0x20] sm:$0xff]
      %v216 = vld [vmem:[%s1 + $0x28] sm:$0xff]
      %v217 = vld [vmem:[%s1 + $0x30] sm:$0xff]
      %v218 = vld [vmem:[%s1 + $0x38] sm:$0xff]
      %v219 = vld [vmem:[%s1 + $0x40] sm:$0xff]
      %v220 = vld [vmem:[%s1 + $0x48] sm:$0xff]
      %v221 = vld [vmem:[%s1 + $0x50] sm:$0xff]
      %v222 = vld [vmem:[%s1 + $0x58] sm:$0xff]
      %v223 = vld [vmem:[%s1 + $0x60] sm:$0xff]
      %v224 = vld [vmem:[%s1 + $0x68] sm:$0xff]
      %v225 = vld [vmem:[%s1 + $0x70] sm:$0xff]
      %v226 = vld [vmem:[%s1 + $0x78] sm:$0xff]
      %v227 = vld [vmem:[%s2] sm:$0x1]
      %v229 = vlaneseq
      %v230 = vshrl.u32 %v229, 7
      %v231 = vsub.s32 0, %v230
      %v232 = vrot.slane %v227, %v231
      %234 = vmatprep.subr.mxu0 0.0
      %235 = vmatpush1.msra.mxu0 %v211
      %236 = vmatprep.subr.mxu0 0.0
      %237 = vmatpush1.msra.mxu0 %v212
      %238 = vmatprep.subr.mxu0 0.0
      %239 = vmatpush1.msra.mxu0 %v213
      %240 = vmatprep.subr.mxu0 0.0
      %241 = vmatpush1.msra.mxu0 %v214
      %242 = vmatprep.subr.mxu0 0.0
      %243 = vmatpush1.msra.mxu0 %v215
      %244 = vmatprep.subr.mxu0 0.0
      %245 = vmatpush1.msra.mxu0 %v216
      %246 = vmatprep.subr.mxu0 0.0
      %247 = vmatpush1.msra.mxu0 %v217
      %248 = vmatprep.subr.mxu0 0.0
      %249 = vmatpush1.msra.mxu0 %v218
      %250 = vmatprep.subr.mxu0 0.0
      %251 = vmatpush1.msra.mxu0 %v219
      %252 = vmatprep.subr.mxu0 0.0
      %253 = vmatpush1.msra.mxu0 %v220
      %254 = vmatprep.subr.mxu0 0.0
      %255 = vmatpush1.msra.mxu0 %v221
      %256 = vmatprep.subr.mxu0 0.0
      %257 = vmatpush1.msra.mxu0 %v222
      %258 = vmatprep.subr.mxu0 0.0
      %259 = vmatpush1.msra.mxu0 %v223
      %260 = vmatprep.subr.mxu0 0.0
      %261 = vmatpush1.msra.mxu0 %v224
      %262 = vmatprep.subr.mxu0 0.0
      %263 = vmatpush1.msra.mxu0 %v225
      %264 = vmatprep.subr.mxu0 0.0
      %265 = vmatpush1.msra.mxu0 %v226
      %266 = vmatprep.subr.mxu0 0.0
      %267 = vmatpush1.msra.mxu0 0.0
      %268 = vmatprep.subr.mxu0 0.0
      %269 = vmatpush1.msra.mxu0 0.0
      %270 = vmatprep.subr.mxu0 0.0
      %271 = vmatpush1.msra.mxu0 0.0
      %272 = vmatprep.subr.mxu0 0.0
      %273 = vmatpush1.msra.mxu0 0.0
      %274 = vmatprep.subr.mxu0 0.0
      %275 = vmatpush1.msra.mxu0 0.0
      %276 = vmatprep.subr.mxu0 0.0
      %277 = vmatpush1.msra.mxu0 0.0
      %278 = vmatprep.subr.mxu0 0.0
      %279 = vmatpush1.msra.mxu0 0.0
      %280 = vmatprep.subr.mxu0 0.0
      %281 = vmatpush1.msra.mxu0 0.0
      %282 = vmatprep.subr.mxu0 0.0
      %283 = vmatpush1.msra.mxu0 0.0
      %284 = vmatprep.subr.mxu0 0.0
      %285 = vmatpush1.msra.mxu0 0.0
      %286 = vmatprep.subr.mxu0 0.0
      %287 = vmatpush1.msra.mxu0 0.0
      %288 = vmatprep.subr.mxu0 0.0
      %289 = vmatpush1.msra.mxu0 0.0
      %290 = vmatprep.subr.mxu0 0.0
      %291 = vmatpush1.msra.mxu0 0.0
      %292 = vmatprep.subr.mxu0 0.0
      %293 = vmatpush1.msra.mxu0 0.0
      %294 = vmatprep.subr.mxu0 0.0
      %295 = vmatpush1.msra.mxu0 0.0
      %296 = vmatprep.subr.mxu0 0.0
      %297 = vmatpush1.msra.mxu0 0.0
      %298 = vmatprep.mubr.f32.mxu0 0.0
      %299 = vmatmul.mubr.f32.gmra.mrb[0].mxu0 %v174
      %v300 = vpop.f32.mrb[0].mxu0
      %v301 = vadd.f32 %v232, %v300
      %v302 = vpop.f32.mrb[0].mxu0
      %303 = vmatprep.mubr.f32.mxu0 0.0
      %304 = vmatmul.mubr.f32.gmra.mrb[0].mxu0 %v175
      %v305 = vpop.f32.mrb[0].mxu0
      %v306 = vadd.f32 %v232, %v305
      %v307 = vpop.f32.mrb[0].mxu0
      %308 = vmatprep.mubr.f32.mxu0 0.0
      %309 = vmatmul.mubr.f32.gmra.mrb[0].mxu0 %v176
      %v310 = vpop.f32.mrb[0].mxu0
      %v311 = vadd.f32 %v232, %v310
      %v312 = vpop.f32.mrb[0].mxu0
      %313 = vmatprep.mubr.f32.mxu0 0.0
      %314 = vmatmul.mubr.f32.gmra.mrb[0].mxu0 %v177
      %v315 = vpop.f32.mrb[0].mxu0
      %v316 = vadd.f32 %v232, %v315
      %v317 = vpop.f32.mrb[0].mxu0
      %318 = vmatprep.mubr.f32.mxu0 0.0
      %319 = vmatmul.mubr.f32.gmra.mrb[0].mxu0 %v178
      %v320 = vpop.f32.mrb[0].mxu0
      %v321 = vadd.f32 %v232, %v320
      %v322 = vpop.f32.mrb[0].mxu0
      %323 = vmatprep.mubr.f32.mxu0 0.0
      %324 = vmatmul.mubr.f32.gmra.mrb[0].mxu0 %v179
      %v325 = vpop.f32.mrb[0].mxu0
      %v326 = vadd.f32 %v232, %v325
      %v327 = vpop.f32.mrb[0].mxu0
      %328 = vmatprep.mubr.f32.mxu0 0.0
      %329 = vmatmul.mubr.f32.gmra.mrb[0].mxu0 %v180
      %v330 = vpop.f32.mrb[0].mxu0
      %v331 = vadd.f32 %v232, %v330
      %v332 = vpop.f32.mrb[0].mxu0
      %333 = vmatprep.mubr.f32.mxu0 0.0
      %334 = vmatmul.mubr.f32.gmra.mrb[0].mxu0 %v181
      %v335 = vpop.f32.mrb[0].mxu0
      %v336 = vadd.f32 %v232, %v335
      %v337 = vpop.f32.mrb[0].mxu0
      %338 = vmatprep.mubr.f32.mxu0 0.0
      %339 = vmatmul.mubr.f32.gmra.mrb[0].mxu0 %v182
      %v340 = vpop.f32.mrb[0].mxu0
      %v341 = vadd.f32 %v232, %v340
      %v342 = vpop.f32.mrb[0].mxu0
      %343 = vmatprep.mubr.f32.mxu0 0.0
      %344 = vmatmul.mubr.f32.gmra.mrb[0].mxu0 %v183
      %v345 = vpop.f32.mrb[0].mxu0
      %v346 = vadd.f32 %v232, %v345
      %v347 = vpop.f32.mrb[0].mxu0
      %348 = vmatprep.mubr.f32.mxu0 0.0
      %349 = vmatmul.mubr.f32.gmra.mrb[0].mxu0 %v184
      %v350 = vpop.f32.mrb[0].mxu0
      %v351 = vadd.f32 %v232, %v350
      %v352 = vpop.f32.mrb[0].mxu0
      %353 = vmatprep.mubr.f32.mxu0 0.0
      %354 = vmatmul.mubr.f32.gmra.mrb[0].mxu0 %v185
      %v355 = vpop.f32.mrb[0].mxu0
      %v356 = vadd.f32 %v232, %v355
      %v357 = vpop.f32.mrb[0].mxu0
      %358 = vmatprep.mubr.f32.mxu0 0.0
      %359 = vmatmul.mubr.f32.gmra.mrb[0].mxu0 %v186
      %v360 = vpop.f32.mrb[0].mxu0
      %v361 = vadd.f32 %v232, %v360
      %v362 = vpop.f32.mrb[0].mxu0
      %363 = vmatprep.mubr.f32.mxu0 0.0
      %364 = vmatmul.mubr.f32.gmra.mrb[0].mxu0 %v187
      %v365 = vpop.f32.mrb[0].mxu0
      %v366 = vadd.f32 %v232, %v365
      %v367 = vpop.f32.mrb[0].mxu0
      %368 = vmatprep.mubr.f32.mxu0 0.0
      %369 = vmatmul.mubr.f32.gmra.mrb[0].mxu0 %v188
      %v370 = vpop.f32.mrb[0].mxu0
      %v371 = vadd.f32 %v232, %v370
      %v372 = vpop.f32.mrb[0].mxu0
      %373 = vmatprep.mubr.f32.mxu0 0.0
      %374 = vmatmul.mubr.f32.gmra.mrb[0].mxu0 %v189
      %v375 = vpop.f32.mrb[0].mxu0
      %v376 = vadd.f32 %v232, %v375
      %v377 = vpop.f32.mrb[0].mxu0
      %378 = vmatprep.mubr.f32.mxu0 0.0
      %379 = vmatmul.mubr.f32.gmra.mrb[0].mxu0 %v190
      %v380 = vpop.f32.mrb[0].mxu0
      %v381 = vadd.f32 %v232, %v380
      %v382 = vpop.f32.mrb[0].mxu0
      %383 = vmatprep.mubr.f32.mxu0 0.0
      %384 = vmatmul.mubr.f32.gmra.mrb[0].mxu0 %v191
      %v385 = vpop.f32.mrb[0].mxu0
      %v386 = vadd.f32 %v232, %v385
      %v387 = vpop.f32.mrb[0].mxu0
      %388 = vmatprep.mubr.f32.mxu0 0.0
      %389 = vmatmul.mubr.f32.gmra.mrb[0].mxu0 %v192
      %v390 = vpop.f32.mrb[0].mxu0
      %v391 = vadd.f32 %v232, %v390
      %v392 = vpop.f32.mrb[0].mxu0
      %393 = vmatprep.mubr.f32.mxu0 0.0
      %394 = vmatmul.mubr.f32.gmra.mrb[0].mxu0 %v193
      %v395 = vpop.f32.mrb[0].mxu0
      %v396 = vadd.f32 %v232, %v395
      %v397 = vpop.f32.mrb[0].mxu0
      %398 = vmatprep.mubr.f32.mxu0 0.0
      %399 = vmatmul.mubr.f32.gmra.mrb[0].mxu0 %v194
      %v400 = vpop.f32.mrb[0].mxu0
      %v401 = vadd.f32 %v232, %v400
      %v402 = vpop.f32.mrb[0].mxu0
      %403 = vmatprep.mubr.f32.mxu0 0.0
      %404 = vmatmul.mubr.f32.gmra.mrb[0].mxu0 %v195
      %v405 = vpop.f32.mrb[0].mxu0
      %v406 = vadd.f32 %v232, %v405
      %v407 = vpop.f32.mrb[0].mxu0
      %408 = vmatprep.mubr.f32.mxu0 0.0
      %409 = vmatmul.mubr.f32.gmra.mrb[0].mxu0 %v196
      %v410 = vpop.f32.mrb[0].mxu0
      %v411 = vadd.f32 %v232, %v410
      %v412 = vpop.f32.mrb[0].mxu0
      %413 = vmatprep.mubr.f32.mxu0 0.0
      %414 = vmatmul.mubr.f32.gmra.mrb[0].mxu0 %v197
      %v415 = vpop.f32.mrb[0].mxu0
      %v416 = vadd.f32 %v232, %v415
      %v417 = vpop.f32.mrb[0].mxu0
      %418 = vmatprep.mubr.f32.mxu0 0.0
      %419 = vmatmul.mubr.f32.gmra.mrb[0].mxu0 %v198
      %v420 = vpop.f32.mrb[0].mxu0
      %v421 = vadd.f32 %v232, %v420
      %v422 = vpop.f32.mrb[0].mxu0
      %423 = vmatprep.mubr.f32.mxu0 0.0
      %424 = vmatmul.mubr.f32.gmra.mrb[0].mxu0 %v199
      %v425 = vpop.f32.mrb[0].mxu0
      %v426 = vadd.f32 %v232, %v425
      %v427 = vpop.f32.mrb[0].mxu0
      %428 = vmatprep.mubr.f32.mxu0 0.0
      %429 = vmatmul.mubr.f32.gmra.mrb[0].mxu0 %v200
      %v430 = vpop.f32.mrb[0].mxu0
      %v431 = vadd.f32 %v232, %v430
      %v432 = vpop.f32.mrb[0].mxu0
      %433 = vmatprep.mubr.f32.mxu0 0.0
      %434 = vmatmul.mubr.f32.gmra.mrb[0].mxu0 %v201
      %v435 = vpop.f32.mrb[0].mxu0
      %v436 = vadd.f32 %v232, %v435
      %v437 = vpop.f32.mrb[0].mxu0
      %438 = vmatprep.mubr.f32.mxu0 0.0
      %439 = vmatmul.mubr.f32.gmra.mrb[0].mxu0 %v202
      %v440 = vpop.f32.mrb[0].mxu0
      %v441 = vadd.f32 %v232, %v440
      %v442 = vpop.f32.mrb[0].mxu0
      %443 = vmatprep.mubr.f32.mxu0 0.0
      %444 = vmatmul.mubr.f32.gmra.mrb[0].mxu0 %v203
      %v445 = vpop.f32.mrb[0].mxu0
      %v446 = vadd.f32 %v232, %v445
      %v447 = vpop.f32.mrb[0].mxu0
      %448 = vmatprep.mubr.f32.mxu0 0.0
      %449 = vmatmul.mubr.f32.gmra.mrb[0].mxu0 %v204
      %v450 = vpop.f32.mrb[0].mxu0
      %v451 = vadd.f32 %v232, %v450
      %v452 = vpop.f32.mrb[0].mxu0
      %453 = vmatprep.mubr.f32.mxu0 0.0
      %454 = vmatmul.mubr.f32.gmra.mrb[0].mxu0 %v205
      %v455 = vpop.f32.mrb[0].mxu0
      %v456 = vadd.f32 %v232, %v455
      %v457 = vpop.f32.mrb[0].mxu0
      %458 = vmatprep.mubr.f32.mxu0 0.0
      %459 = vmatmul.mubr.f32.gmra.mrb[0].mxu0 %v206
      %v460 = vpop.f32.mrb[0].mxu0
      %v461 = vadd.f32 %v232, %v460
      %v462 = vpop.f32.mrb[0].mxu0
      %463 = vmatprep.mubr.f32.mxu0 0.0
      %464 = vmatmul.mubr.f32.gmra.mrb[0].mxu0 %v207
      %v465 = vpop.f32.mrb[0].mxu0
      %v466 = vadd.f32 %v232, %v465
      %v467 = vpop.f32.mrb[0].mxu0
      %468 = vmatprep.mubr.f32.mxu0 0.0
      %469 = vmatmul.mubr.f32.gmra.mrb[0].mxu0 %v208
      %v470 = vpop.f32.mrb[0].mxu0
      %v471 = vadd.f32 %v232, %v470
      %v472 = vpop.f32.mrb[0].mxu0
      %473 = vmatprep.mubr.f32.mxu0 0.0
      %474 = vmatmul.mubr.f32.gmra.mrb[0].mxu0 %v209
      %v475 = vpop.f32.mrb[0].mxu0
      %v476 = vadd.f32 %v232, %v475
      %v477 = vpop.f32.mrb[0].mxu0
      %478 = vmatprep.mubr.f32.mxu0 0.0
      %479 = vmatmul.mubr.f32.gmra.mrb[0].mxu0 %v210
      %v480 = vpop.f32.mrb[0].mxu0
      %v481 = vadd.f32 %v232, %v480
      %v482 = vpop.f32.mrb[0].mxu0
      %483 = vdwg.mxu0
      %v484 = vmax.f32 %v301, 0.0
      %v485 = vmax.f32 %v306, 0.0
      %v486 = vmax.f32 %v311, 0.0
      %v487 = vmax.f32 %v316, 0.0
      %v488 = vmax.f32 %v321, 0.0
      %v489 = vmax.f32 %v326, 0.0
      %v490 = vmax.f32 %v331, 0.0
      %v491 = vmax.f32 %v336, 0.0
      %v492 = vmax.f32 %v341, 0.0
      %v493 = vmax.f32 %v346, 0.0
      %v494 = vmax.f32 %v351, 0.0
      %v495 = vmax.f32 %v356, 0.0
      %v496 = vmax.f32 %v361, 0.0
      %v497 = vmax.f32 %v366, 0.0
      %v498 = vmax.f32 %v371, 0.0
      %v499 = vmax.f32 %v376, 0.0
      %v500 = vmax.f32 %v381, 0.0
      %v501 = vmax.f32 %v386, 0.0
      %v502 = vmax.f32 %v391, 0.0
      %v503 = vmax.f32 %v396, 0.0
      %v504 = vmax.f32 %v401, 0.0
      %v505 = vmax.f32 %v406, 0.0
      %v506 = vmax.f32 %v411, 0.0
      %v507 = vmax.f32 %v416, 0.0
      %v508 = vmax.f32 %v421, 0.0
      %v509 = vmax.f32 %v426, 0.0
      %v510 = vmax.f32 %v431, 0.0
      %v511 = vmax.f32 %v436, 0.0
      %v512 = vmax.f32 %v441, 0.0
      %v513 = vmax.f32 %v446, 0.0
      %v514 = vmax.f32 %v451, 0.0
      %v515 = vmax.f32 %v456, 0.0
      %v516 = vmax.f32 %v461, 0.0
      %v517 = vmax.f32 %v466, 0.0
      %v518 = vmax.f32 %v471, 0.0
      %v519 = vmax.f32 %v476, 0.0
      %v520 = vmax.f32 %v481, 0.0
      %521 = vst [vmem:[%s172] sm:$0xff] %v484
      %522 = vst [vmem:[%s172 + $0x8] sm:$0xff] %v485
      %523 = vst [vmem:[%s172 + $0x10] sm:$0xff] %v486
      %524 = vst [vmem:[%s172 + $0x18] sm:$0xff] %v487
      %525 = vst [vmem:[%s172 + $0x20] sm:$0xff] %v488
      %526 = vst [vmem:[%s172 + $0x28] sm:$0xff] %v489
      %527 = vst [vmem:[%s172 + $0x30] sm:$0xff] %v490
      %528 = vst [vmem:[%s172 + $0x38] sm:$0xff] %v491
      %529 = vst [vmem:[%s172 + $0x40] sm:$0xff] %v492
      %530 = vst [vmem:[%s172 + $0x48] sm:$0xff] %v493
      %531 = vst [vmem:[%s172 + $0x50] sm:$0xff] %v494
      %532 = vst [vmem:[%s172 + $0x58] sm:$0xff] %v495
      %533 = vst [vmem:[%s172 + $0x60] sm:$0xff] %v496
      %534 = vst [vmem:[%s172 + $0x68] sm:$0xff] %v497
      %535 = vst [vmem:[%s172 + $0x70] sm:$0xff] %v498
      %536 = vst [vmem:[%s172 + $0x78] sm:$0xff] %v499
      %537 = vst [vmem:[%s172 + $0x80] sm:$0xff] %v500
      %538 = vst [vmem:[%s172 + $0x88] sm:$0xff] %v501
      %539 = vst [vmem:[%s172 + $0x90] sm:$0xff] %v502
      %540 = vst [vmem:[%s172 + $0x98] sm:$0xff] %v503
      %541 = vst [vmem:[%s172 + $0xa0] sm:$0xff] %v504
      %542 = vst [vmem:[%s172 + $0xa8] sm:$0xff] %v505
      %543 = vst [vmem:[%s172 + $0xb0] sm:$0xff] %v506
      %544 = vst [vmem:[%s172 + $0xb8] sm:$0xff] %v507
      %545 = vst [vmem:[%s172 + $0xc0] sm:$0xff] %v508
      %546 = vst [vmem:[%s172 + $0xc8] sm:$0xff] %v509
      %547 = vst [vmem:[%s172 + $0xd0] sm:$0xff] %v510
      %548 = vst [vmem:[%s172 + $0xd8] sm:$0xff] %v511
      %549 = vst [vmem:[%s172 + $0xe0] sm:$0xff] %v512
      %550 = vst [vmem:[%s172 + $0xe8] sm:$0xff] %v513
      %551 = vst [vmem:[%s172 + $0xf0] sm:$0xff] %v514
      %552 = vst [vmem:[%s172 + $0xf8] sm:$0xff] %v515
      %553 = vst [vmem:[%s172 + $0x100] sm:$0xff] %v516
      %554 = vst [vmem:[%s172 + $0x108] sm:$0xff] %v517
      %555 = vst [vmem:[%s172 + $0x110] sm:$0xff] %v518
      %556 = vst [vmem:[%s172 + $0x118] sm:$0xff] %v519
      %557 = vst [vmem:[%s172 + $0x120] sm:$0xff] %v520
      %s558 = smul.u32 37, %s14
      %p559 = scmp.lt.s32.totalorder %s558, 73
      %s560 = scalar_select %p559, %s558, 73
      %s561 = smul.addr %s560, 8
      %s562 = scalar_lea.vmem %s3, %s561
      // Predicated region
      $region33: #{generator_forward.6} parent=31 // pred_check
        %p563 = pneg %p100
      $region34: #{generator_forward.6} parent=31 // pred_check_branch
        %565 = sbr.rel (%p563) target = $region36
      $region35: #{generator_forward.6} parent=31 // pred_region
        %s566 = smul.u32 37, %s14
      $region36: #{generator_forward.6} parent=31 // pred_fallthru
        _
    $region32: #{generator_forward.6} parent=5 // pred_fallthru
      _
    %p567 = scmp.le.s32.totalorder 2, %s9
    // Predicated region
    $region37: #{generator_forward.6} parent=5 // pred_check
      %p568 = pneg %p567
    $region38: #{generator_forward.6} parent=5 // pred_check_branch
      %570 = sbr.rel (%p568) target = $region40
    $region39: #{generator_forward.6} parent=5 // pred_region
      %s571 = ssub.s32 %s9, 2
      // Predicated region
      $region41: #{generator_forward.6} parent=39 // pred_check
        %p572 = pneg %p106
      $region42: #{generator_forward.6} parent=39 // pred_check_branch
        %574 = sbr.rel (%p572) target = $region44
      $region43: #{generator_forward.6} parent=39 // pred_region
        %s575 = smul.u32 37, %s15
        %p576 = scmp.lt.s32.totalorder %s575, 73
        %s577 = scalar_select %p576, %s575, 73
        %s578 = smul.addr %s577, 8
        %s579 = scalar_lea.vmem %s3, %s578
      $region44: #{generator_forward.6} parent=39 // pred_fallthru
        _
    $region40: #{generator_forward.6} parent=5 // pred_fallthru
      _
  $region6: #{generator_forward.6} parent=0 // loop_footer
    %s13 = sadd.s32 1, %s9
  $region7: #{generator_forward.6} parent=0 // loop_footer_branch
    %8 = sbr.rel target = $region3
  $region8: #{generator_forward.6} parent=0 // loop_exit
    _

// kernel: generator_forward.7
$region0: #{generator_forward.7}
  #allocation0 [shape = 'u32[]', space=smem, size = 0x4, offset = 0x4, fixed_abs, tag = 'smem constant byte address 0x4 - core index']
  #allocation1 [shape = 'u32[144,128]{1,0:T(1,128)}', space=vmem, size = 0x12000, scoped, tag = 'internal scratch']
  %s0 = inlined_call_operand.vmem [shape: f32[1568,784], index: 0, kind: input, shape index: {}]
  %s1 = inlined_call_operand.vmem [shape: f32[784,128], index: 1, kind: input, shape index: {}]
  %s2 = inlined_call_operand.vmem [shape: f32[1,128], index: 2, kind: input, shape index: {}]
  %s3 = inlined_call_operand.vmem [shape: f32[1568,128], index: 3, kind: output, shape index: {}]
  %s4 = sld [smem:[#allocation0]]
  $region45: #{generator_forward.7} parent=0
    _
  %s6 = ssub.s32 1, %s4
  %s7 = scalar_select 0, %s6, %s4
  loop: start=0, step=1, limit=4
  $region2: #{generator_forward.7} parent=0 // loop_pre_header
    _
  $region3: #{generator_forward.7} parent=0 // loop_header
    %s9 = sphi 0, %s13
    %p10 = scmp.ge.s32.totalorder %s9, 4
    %s19 = sphi 0, %s21
    %s22 = sphi 0, %s19
    %s23 = sphi 0, %s22
    %s39 = sphi 0, %s23
    %s43 = sphi 0, %s43
    %s45 = sphi 0, %s43
    %s46 = sphi 0, %s45
    %s60 = sphi 0, %s46
    %s64 = sphi 0, %s64
    %s66 = sphi 0, %s64
    %s67 = sphi 0, %s66
    %s81 = sphi 0, %s67
    %s87 = sphi 0, %s89
    %s90 = sphi 0, %s87
    %s91 = sphi 0, %s90
    %s107 = sphi 0, %s91
  $region4: #{generator_forward.7} parent=0 // loop_header_branch
    %12 = sbr.rel (%p10) target = $region8
  $region5: #{generator_forward.7} parent=0 // loop_body
    %s14 = ssub.s32 %s9, 1
    %s15 = ssub.s32 %s9, 2
    %s16 = sadd.s32 %s9, 1
    %s17 = ssub.s32 %s9, %s16
    %p18 = scmp.eq.s32.totalorder %s17, 0
    %s20 = sadd.s32 %s19, 1
    %s21 = scalar_select %p18, %s19, %s20
    %p24 = pneg %p18
    %p25 = scmp.eq.s32.totalorder %s9, 1
    %p26 = por %p24, %p25
    %p27 = scmp.ne.s32.totalorder %s19, %s22
    %p28 = scmp.eq.s32.totalorder %s9, 0
    %p29 = por %p27, %p28
    %p30 = scmp.ne.s32.totalorder %s19, %s22
    %p31 = scmp.eq.s32.totalorder %s14, 1
    %p32 = por %p30, %p31
    %p33 = scmp.ne.s32.totalorder %s22, %s23
    %p34 = scmp.eq.s32.totalorder %s14, 0
    %p35 = por %p33, %p34
    %p36 = scmp.ne.s32.totalorder %s22, %s23
    %p37 = scmp.eq.s32.totalorder %s15, 1
    %p38 = por %p36, %p37
    %p40 = scmp.ne.s32.totalorder %s23, %s39
    %p41 = scmp.eq.s32.totalorder %s15, 0
    %p42 = por %p40, %p41
    %s44 = sadd.s32 %s43, 1
    %p47 = scmp.eq.s32.totalorder %s9, 1
    %p48 = scmp.ne.s32.totalorder %s43, %s45
    %p49 = scmp.eq.s32.totalorder %s9, 0
    %p50 = por %p48, %p49
    %p51 = scmp.ne.s32.totalorder %s43, %s45
    %p52 = scmp.eq.s32.totalorder %s14, 1
    %p53 = por %p51, %p52
    %p54 = scmp.ne.s32.totalorder %s45, %s46
    %p55 = scmp.eq.s32.totalorder %s14, 0
    %p56 = por %p54, %p55
    %p57 = scmp.ne.s32.totalorder %s45, %s46
    %p58 = scmp.eq.s32.totalorder %s15, 1
    %p59 = por %p57, %p58
    %p61 = scmp.ne.s32.totalorder %s46, %s60
    %p62 = scmp.eq.s32.totalorder %s15, 0
    %p63 = por %p61, %p62
    %s65 = sadd.s32 %s64, 1
    %p68 = scmp.eq.s32.totalorder %s9, 1
    %p69 = scmp.ne.s32.totalorder %s64, %s66
    %p70 = scmp.eq.s32.totalorder %s9, 0
    %p71 = por %p69, %p70
    %p72 = scmp.ne.s32.totalorder %s64, %s66
    %p73 = scmp.eq.s32.totalorder %s14, 1
    %p74 = por %p72, %p73
    %p75 = scmp.ne.s32.totalorder %s66, %s67
    %p76 = scmp.eq.s32.totalorder %s14, 0
    %p77 = por %p75, %p76
    %p78 = scmp.ne.s32.totalorder %s66, %s67
    %p79 = scmp.eq.s32.totalorder %s15, 1
    %p80 = por %p78, %p79
    %p82 = scmp.ne.s32.totalorder %s67, %s81
    %p83 = scmp.eq.s32.totalorder %s15, 0
    %p84 = por %p82, %p83
    %s85 = ssub.s32 %s9, %s16
    %p86 = scmp.eq.s32.totalorder %s85, 0
    %s88 = sadd.s32 %s87, 1
    %s89 = scalar_select %p86, %s87, %s88
    %p92 = pneg %p86
    %p93 = scmp.eq.s32.totalorder %s9, 1
    %p94 = por %p92, %p93
    %p95 = scmp.ne.s32.totalorder %s87, %s90
    %p96 = scmp.eq.s32.totalorder %s9, 0
    %p97 = por %p95, %p96
    %p98 = scmp.ne.s32.totalorder %s87, %s90
    %p99 = scmp.eq.s32.totalorder %s14, 1
    %p100 = por %p98, %p99
    %p101 = scmp.ne.s32.totalorder %s90, %s91
    %p102 = scmp.eq.s32.totalorder %s14, 0
    %p103 = por %p101, %p102
    %p104 = scmp.ne.s32.totalorder %s90, %s91
    %p105 = scmp.eq.s32.totalorder %s15, 1
    %p106 = por %p104, %p105
    %p108 = scmp.ne.s32.totalorder %s91, %s107
    %p109 = scmp.eq.s32.totalorder %s15, 0
    %p110 = por %p108, %p109
    %p111 = scmp.le.s32.totalorder 1, %s9
    %p112 = scmp.lt.s32.totalorder %s9, 3
    %p113 = pnand %p111, %p112
    %p114 = pneg %p113
    // Predicated region
    $region9: #{generator_forward.7} parent=5 // pred_check
      _
    $region10: #{generator_forward.7} parent=5 // pred_check_branch
      %116 = sbr.rel (%p113) target = $region12
    $region11: #{generator_forward.7} parent=5 // pred_region
      %s117 = ssub.s32 %s9, 1
      // Predicated region
      $region13: #{generator_forward.7} parent=11 // pred_check
        %p118 = pneg %p56
      $region14: #{generator_forward.7} parent=11 // pred_check_branch
        %120 = sbr.rel (%p118) target = $region16
      $region15: #{generator_forward.7} parent=11 // pred_region
        _
      $region16: #{generator_forward.7} parent=11 // pred_fallthru
        _
      // Predicated region
      $region17: #{generator_forward.7} parent=11 // pred_check
        %p121 = pneg %p77
      $region18: #{generator_forward.7} parent=11 // pred_check_branch
        %123 = sbr.rel (%p121) target = $region20
      $region19: #{generator_forward.7} parent=11 // pred_region
        _
      $region20: #{generator_forward.7} parent=11 // pred_fallthru
        _
    $region12: #{generator_forward.7} parent=5 // pred_fallthru
      _
    %p124 = scmp.lt.s32.totalorder %s9, 2
    // Predicated region
    $region21: #{generator_forward.7} parent=5 // pred_check
      %p125 = pneg %p124
    $region22: #{generator_forward.7} parent=5 // pred_check_branch
      %127 = sbr.rel (%p125) target = $region24
    $region23: #{generator_forward.7} parent=5 // pred_region
      // Predicated region
      $region25: #{generator_forward.7} parent=23 // pred_check
        %p128 = pneg %p29
      $region26: #{generator_forward.7} parent=23 // pred_check_branch
        %130 = sbr.rel (%p128) target = $region28
      $region27: #{generator_forward.7} parent=23 // pred_region
        %s131 = smul.u32 98, %s9
        %p132 = scmp.lt.s32.totalorder %s131, 195
        %s133 = scalar_select %p132, %s131, 195
        %s134 = smul.addr %s133, 7
        %s135 = smul.addr %s134, 8
        %s136 = scalar_lea.vmem %s0, %s135
        %s137 = smul.u32 98, %s9
      $region28: #{generator_forward.7} parent=23 // pred_fallthru
        _
    $region24: #{generator_forward.7} parent=5 // pred_fallthru
      _
    %p138 = scmp.le.s32.totalorder 1, %s9
    %p139 = scmp.lt.s32.totalorder %s9, 3
    %p140 = pnand %p138, %p139
    %p141 = pneg %p140
    // Predicated region
    $region29: #{generator_forward.7} parent=5 // pred_check
      _
    $region30: #{generator_forward.7} parent=5 // pred_check_branch
      %143 = sbr.rel (%p140) target = $region32
    $region31: #{generator_forward.7} parent=5 // pred_region
      %s144 = ssub.s32 %s9, 1
      %s145 = smul.u32 98, %s14
      %p146 = scmp.lt.s32.totalorder %s145, 195
      %s147 = scalar_select %p146, %s145, 195
      %s148 = smul.addr %s147, 7
      %s149 = smul.addr %s148, 8
      %s150 = scalar_lea.vmem %s0, %s149
      %p151 = pneg %p35
      %p152 = pneg %p32
      %p153 = pneg %p56
      %p154 = pneg %p53
      %p155 = pneg %p77
      %p156 = pneg %p74
      %p157 = pneg %p103
      %p158 = pneg %p100
      %s159 = smul.u32 98, %s14
      %p160 = scmp.lt.s32.totalorder %s159, 195
      %s161 = scalar_select %p160, %s159, 195
      %s162 = smul.addr %s161, 8
      %s163 = scalar_lea.vmem %s3, %s162
      %s164 = smul.u32 98, %s14
      %p165 = scmp.lt.s32.totalorder %s164, 195
      %s166 = scalar_select %p165, %s164, 195
      %s167 = smul.addr %s166, 7
      %s168 = smul.addr %s167, 8
      %s169 = scalar_lea.vmem %s0, %s168
      %s170 = smul.u32 98, %s14
      %s171 = smul.u32 98, %s14
      %p172 = scmp.lt.s32.totalorder %s171, 195
      %s173 = scalar_select %p172, %s171, 195
      %s174 = smul.addr %s173, 8
      %s175 = scalar_lea.vmem %s3, %s174
      %s176 = smul.u32 98, %s14
      %v177 = vld [vmem:[%s169] sm:$0xff]
      %v178 = vld [vmem:[%s169 + $0x8] sm:$0xff]
      %v179 = vld [vmem:[%s169 + $0x10] sm:$0xff]
      %v180 = vld [vmem:[%s169 + $0x18] sm:$0xff]
      %v181 = vld [vmem:[%s169 + $0x20] sm:$0xff]
      %v182 = vld [vmem:[%s169 + $0x28] sm:$0xff]
      %v183 = vld [vmem:[%s169 + $0x30] sm:$0xff]
      %v184 = vld [vmem:[%s169 + $0x38] sm:$0xff]
      %v185 = vld [vmem:[%s169 + $0x40] sm:$0xff]
      %v186 = vld [vmem:[%s169 + $0x48] sm:$0xff]
      %v187 = vld [vmem:[%s169 + $0x50] sm:$0xff]
      %v188 = vld [vmem:[%s169 + $0x58] sm:$0xff]
      %v189 = vld [vmem:[%s169 + $0x60] sm:$0xff]
      %v190 = vld [vmem:[%s169 + $0x68] sm:$0xff]
      %v191 = vld [vmem:[%s169 + $0x70] sm:$0xff]
      %v192 = vld [vmem:[%s169 + $0x78] sm:$0xff]
      %v193 = vld [vmem:[%s169 + $0x80] sm:$0xff]
      %v194 = vld [vmem:[%s169 + $0x88] sm:$0xff]
      %v195 = vld [vmem:[%s169 + $0x90] sm:$0xff]
      %v196 = vld [vmem:[%s169 + $0x98] sm:$0xff]
      %v197 = vld [vmem:[%s169 + $0xa0] sm:$0xff]
      %v198 = vld [vmem:[%s169 + $0xa8] sm:$0xff]
      %v199 = vld [vmem:[%s169 + $0xb0] sm:$0xff]
      %v200 = vld [vmem:[%s169 + $0xb8] sm:$0xff]
      %v201 = vld [vmem:[%s169 + $0xc0] sm:$0xff]
      %v202 = vld [vmem:[%s169 + $0xc8] sm:$0xff]
      %v203 = vld [vmem:[%s169 + $0xd0] sm:$0xff]
      %v204 = vld [vmem:[%s169 + $0xd8] sm:$0xff]
      %v205 = vld [vmem:[%s169 + $0xe0] sm:$0xff]
      %v206 = vld [vmem:[%s169 + $0xe8] sm:$0xff]
      %v207 = vld [vmem:[%s169 + $0xf0] sm:$0xff]
      %v208 = vld [vmem:[%s169 + $0xf8] sm:$0xff]
      %v209 = vld [vmem:[%s169 + $0x100] sm:$0xff]
      %v210 = vld [vmem:[%s169 + $0x108] sm:$0xff]
      %v211 = vld [vmem:[%s169 + $0x110] sm:$0xff]
      %v212 = vld [vmem:[%s169 + $0x118] sm:$0xff]
      %v213 = vld [vmem:[%s169 + $0x120] sm:$0xff]
      %v214 = vld [vmem:[%s169 + $0x128] sm:$0xff]
      %v215 = vld [vmem:[%s169 + $0x130] sm:$0xff]
      %v216 = vld [vmem:[%s169 + $0x138] sm:$0xff]
      %v217 = vld [vmem:[%s169 + $0x140] sm:$0xff]
      %v218 = vld [vmem:[%s169 + $0x148] sm:$0xff]
      %v219 = vld [vmem:[%s169 + $0x150] sm:$0xff]
      %v220 = vld [vmem:[%s169 + $0x158] sm:$0xff]
      %v221 = vld [vmem:[%s169 + $0x160] sm:$0xff]
      %v222 = vld [vmem:[%s169 + $0x168] sm:$0xff]
      %v223 = vld [vmem:[%s169 + $0x170] sm:$0xff]
      %v224 = vld [vmem:[%s169 + $0x178] sm:$0xff]
      %v225 = vld [vmem:[%s169 + $0x180] sm:$0xff]
      %v226 = vld [vmem:[%s169 + $0x188] sm:$0xff]
      %v227 = vld [vmem:[%s169 + $0x190] sm:$0xff]
      %v228 = vld [vmem:[%s169 + $0x198] sm:$0xff]
      %v229 = vld [vmem:[%s169 + $0x1a0] sm:$0xff]
      %v230 = vld [vmem:[%s169 + $0x1a8] sm:$0xff]
      %v231 = vld [vmem:[%s169 + $0x1b0] sm:$0xff]
      %v232 = vld [vmem:[%s169 + $0x1b8] sm:$0xff]
      %v233 = vld [vmem:[%s169 + $0x1c0] sm:$0xff]
      %v234 = vld [vmem:[%s169 + $0x1c8] sm:$0xff]
      %v235 = vld [vmem:[%s169 + $0x1d0] sm:$0xff]
      %v236 = vld [vmem:[%s169 + $0x1d8] sm:$0xff]
      %v237 = vld [vmem:[%s169 + $0x1e0] sm:$0xff]
      %v238 = vld [vmem:[%s169 + $0x1e8] sm:$0xff]
      %v239 = vld [vmem:[%s169 + $0x1f0] sm:$0xff]
      %v240 = vld [vmem:[%s169 + $0x1f8] sm:$0xff]
      %v241 = vld [vmem:[%s169 + $0x200] sm:$0xff]
      %v242 = vld [vmem:[%s169 + $0x208] sm:$0xff]
      %v243 = vld [vmem:[%s169 + $0x210] sm:$0xff]
      %v244 = vld [vmem:[%s169 + $0x218] sm:$0xff]
      %v245 = vld [vmem:[%s169 + $0x220] sm:$0xff]
      %v246 = vld [vmem:[%s169 + $0x228] sm:$0xff]
      %v247 = vld [vmem:[%s169 + $0x230] sm:$0xff]
      %v248 = vld [vmem:[%s169 + $0x238] sm:$0xff]
      %v249 = vld [vmem:[%s169 + $0x240] sm:$0xff]
      %v250 = vld [vmem:[%s169 + $0x248] sm:$0xff]
      %v251 = vld [vmem:[%s169 + $0x250] sm:$0xff]
      %v252 = vld [vmem:[%s169 + $0x258] sm:$0xff]
      %v253 = vld [vmem:[%s169 + $0x260] sm:$0xff]
      %v254 = vld [vmem:[%s169 + $0x268] sm:$0xff]
      %v255 = vld [vmem:[%s169 + $0x270] sm:$0xff]
      %v256 = vld [vmem:[%s169 + $0x278] sm:$0xff]
      %v257 = vld [vmem:[%s169 + $0x280] sm:$0xff]
      %v258 = vld [vmem:[%s169 + $0x288] sm:$0xff]
      %v259 = vld [vmem:[%s169 + $0x290] sm:$0xff]
      %v260 = vld [vmem:[%s169 + $0x298] sm:$0xff]
      %v261 = vld [vmem:[%s169 + $0x2a0] sm:$0xff]
      %v262 = vld [vmem:[%s169 + $0x2a8] sm:$0xff]
      %v263 = vld [vmem:[%s169 + $0x2b0] sm:$0xff]
      %v264 = vld [vmem:[%s169 + $0x2b8] sm:$0xff]
      %v265 = vld [vmem:[%s169 + $0x2c0] sm:$0xff]
      %v266 = vld [vmem:[%s169 + $0x2c8] sm:$0xff]
      %v267 = vld [vmem:[%s169 + $0x2d0] sm:$0xff]
      %v268 = vld [vmem:[%s169 + $0x2d8] sm:$0xff]
      %v269 = vld [vmem:[%s169 + $0x2e0] sm:$0xff]
      %v270 = vld [vmem:[%s169 + $0x2e8] sm:$0xff]
      %v271 = vld [vmem:[%s169 + $0x2f0] sm:$0xff]
      %v272 = vld [vmem:[%s169 + $0x2f8] sm:$0xff]
      %v273 = vld [vmem:[%s169 + $0x300] sm:$0xff]
      %v274 = vld [vmem:[%s169 + $0x308] sm:$0xff]
      %v275 = vld [vmem:[%s169 + $0x310] sm:$0xff]
      %v276 = vld [vmem:[%s169 + $0x318] sm:$0xff]
      %v277 = vld [vmem:[%s169 + $0x320] sm:$0xff]
      %v278 = vld [vmem:[%s169 + $0x328] sm:$0xff]
      %v279 = vld [vmem:[%s169 + $0x330] sm:$0xff]
      %v280 = vld [vmem:[%s169 + $0x338] sm:$0xff]
      %v281 = vld [vmem:[%s169 + $0x340] sm:$0xff]
      %v282 = vld [vmem:[%s169 + $0x348] sm:$0xff]
      %v283 = vld [vmem:[%s169 + $0x350] sm:$0xff]
      %v284 = vld [vmem:[%s169 + $0x358] sm:$0xff]
      %v285 = vld [vmem:[%s169 + $0x360] sm:$0xff]
      %v286 = vld [vmem:[%s169 + $0x368] sm:$0xff]
      %v287 = vld [vmem:[%s169 + $0x370] sm:$0xff]
      %v288 = vld [vmem:[%s169 + $0x378] sm:$0xff]
      %v289 = vld [vmem:[%s169 + $0x380] sm:$0xff]
      %v290 = vld [vmem:[%s169 + $0x388] sm:$0xff]
      %v291 = vld [vmem:[%s169 + $0x390] sm:$0xff]
      %v292 = vld [vmem:[%s169 + $0x398] sm:$0xff]
      %v293 = vld [vmem:[%s169 + $0x3a0] sm:$0xff]
      %v294 = vld [vmem:[%s169 + $0x3a8] sm:$0xff]
      %v295 = vld [vmem:[%s169 + $0x3b0] sm:$0xff]
      %v296 = vld [vmem:[%s169 + $0x3b8] sm:$0xff]
      %v297 = vld [vmem:[%s169 + $0x3c0] sm:$0xff]
      %v298 = vld [vmem:[%s169 + $0x3c8] sm:$0xff]
      %v299 = vld [vmem:[%s169 + $0x3d0] sm:$0xff]
      %v300 = vld [vmem:[%s169 + $0x3d8] sm:$0xff]
      %v301 = vld [vmem:[%s169 + $0x3e0] sm:$0xff]
      %v302 = vld [vmem:[%s169 + $0x3e8] sm:$0xff]
      %v303 = vld [vmem:[%s169 + $0x3f0] sm:$0xff]
      %v304 = vld [vmem:[%s169 + $0x3f8] sm:$0xff]
      %v305 = vld [vmem:[%s169 + $0x400] sm:$0xff]
      %v306 = vld [vmem:[%s169 + $0x408] sm:$0xff]
      %v307 = vld [vmem:[%s169 + $0x410] sm:$0xff]
      %v308 = vld [vmem:[%s169 + $0x418] sm:$0xff]
      %v309 = vld [vmem:[%s169 + $0x420] sm:$0xff]
      %v310 = vld [vmem:[%s169 + $0x428] sm:$0xff]
      %v311 = vld [vmem:[%s169 + $0x430] sm:$0xff]
      %v312 = vld [vmem:[%s169 + $0x438] sm:$0xff]
      %v313 = vld [vmem:[%s169 + $0x440] sm:$0xff]
      %v314 = vld [vmem:[%s169 + $0x448] sm:$0xff]
      %v315 = vld [vmem:[%s169 + $0x450] sm:$0xff]
      %v316 = vld [vmem:[%s169 + $0x458] sm:$0xff]
      %v317 = vld [vmem:[%s169 + $0x460] sm:$0xff]
      %v318 = vld [vmem:[%s169 + $0x468] sm:$0xff]
      %v319 = vld [vmem:[%s169 + $0x470] sm:$0xff]
      %v320 = vld [vmem:[%s169 + $0x478] sm:$0xff]
      %v321 = vld [vmem:[%s169 + $0x480] sm:$0xff]
      %v322 = vld [vmem:[%s169 + $0x488] sm:$0xff]
      %v323 = vld [vmem:[%s169 + $0x490] sm:$0xff]
      %v324 = vld [vmem:[%s169 + $0x498] sm:$0xff]
      %v325 = vld [vmem:[%s169 + $0x4a0] sm:$0xff]
      %v326 = vld [vmem:[%s169 + $0x4a8] sm:$0xff]
      %v327 = vld [vmem:[%s169 + $0x4b0] sm:$0xff]
      %v328 = vld [vmem:[%s169 + $0x4b8] sm:$0xff]
      %v329 = vld [vmem:[%s169 + $0x4c0] sm:$0xff]
      %v330 = vld [vmem:[%s169 + $0x4c8] sm:$0xff]
      %v331 = vld [vmem:[%s169 + $0x4d0] sm:$0xff]
      %v332 = vld [vmem:[%s169 + $0x4d8] sm:$0xff]
      %v333 = vld [vmem:[%s169 + $0x4e0] sm:$0xff]
      %v334 = vld [vmem:[%s169 + $0x4e8] sm:$0xff]
      %v335 = vld [vmem:[%s169 + $0x4f0] sm:$0xff]
      %v336 = vld [vmem:[%s169 + $0x4f8] sm:$0xff]
      %v337 = vld [vmem:[%s169 + $0x500] sm:$0xff]
      %v338 = vld [vmem:[%s169 + $0x508] sm:$0xff]
      %v339 = vld [vmem:[%s169 + $0x510] sm:$0xff]
      %v340 = vld [vmem:[%s169 + $0x518] sm:$0xff]
      %v341 = vld [vmem:[%s169 + $0x520] sm:$0xff]
      %v342 = vld [vmem:[%s169 + $0x528] sm:$0xff]
      %v343 = vld [vmem:[%s169 + $0x530] sm:$0xff]
      %v344 = vld [vmem:[%s169 + $0x538] sm:$0xff]
      %v345 = vld [vmem:[%s169 + $0x540] sm:$0xff]
      %v346 = vld [vmem:[%s169 + $0x548] sm:$0xff]
      %v347 = vld [vmem:[%s169 + $0x550] sm:$0xff]
      %v348 = vld [vmem:[%s169 + $0x558] sm:$0xff]
      %v349 = vld [vmem:[%s169 + $0x560] sm:$0xff]
      %v350 = vld [vmem:[%s169 + $0x568] sm:$0xff]
      %v351 = vld [vmem:[%s169 + $0x570] sm:$0xff]
      %v352 = vld [vmem:[%s169 + $0x578] sm:$0xff]
      %v353 = vld [vmem:[%s169 + $0x580] sm:$0xff]
      %v354 = vld [vmem:[%s169 + $0x588] sm:$0xff]
      %v355 = vld [vmem:[%s169 + $0x590] sm:$0xff]
      %v356 = vld [vmem:[%s169 + $0x598] sm:$0xff]
      %v357 = vld [vmem:[%s169 + $0x5a0] sm:$0xff]
      %v358 = vld [vmem:[%s169 + $0x5a8] sm:$0xff]
      %v359 = vld [vmem:[%s169 + $0x5b0] sm:$0xff]
      %v360 = vld [vmem:[%s169 + $0x5b8] sm:$0xff]
      %v361 = vld [vmem:[%s169 + $0x5c0] sm:$0xff]
      %v362 = vld [vmem:[%s169 + $0x5c8] sm:$0xff]
      %v363 = vld [vmem:[%s169 + $0x5d0] sm:$0xff]
      %v364 = vld [vmem:[%s169 + $0x5d8] sm:$0xff]
      %v365 = vld [vmem:[%s169 + $0x5e0] sm:$0xff]
      %v366 = vld [vmem:[%s169 + $0x5e8] sm:$0xff]
      %v367 = vld [vmem:[%s169 + $0x5f0] sm:$0xff]
      %v368 = vld [vmem:[%s169 + $0x5f8] sm:$0xff]
      %v369 = vld [vmem:[%s169 + $0x600] sm:$0xff]
      %v370 = vld [vmem:[%s169 + $0x608] sm:$0xff]
      %v371 = vld [vmem:[%s169 + $0x610] sm:$0xff]
      %v372 = vld [vmem:[%s169 + $0x618] sm:$0xff]
      %v373 = vld [vmem:[%s169 + $0x620] sm:$0xff]
      %v374 = vld [vmem:[%s169 + $0x628] sm:$0xff]
      %v375 = vld [vmem:[%s169 + $0x630] sm:$0xff]
      %v376 = vld [vmem:[%s169 + $0x638] sm:$0xff]
      %v377 = vld [vmem:[%s169 + $0x640] sm:$0xff]
      %v378 = vld [vmem:[%s169 + $0x648] sm:$0xff]
      %v379 = vld [vmem:[%s169 + $0x650] sm:$0xff]
      %v380 = vld [vmem:[%s169 + $0x658] sm:$0xff]
      %v381 = vld [vmem:[%s169 + $0x660] sm:$0xff]
      %v382 = vld [vmem:[%s169 + $0x668] sm:$0xff]
      %v383 = vld [vmem:[%s169 + $0x670] sm:$0xff]
      %v384 = vld [vmem:[%s169 + $0x678] sm:$0xff]
      %v385 = vld [vmem:[%s169 + $0x680] sm:$0xff]
      %v386 = vld [vmem:[%s169 + $0x688] sm:$0xff]
      %v387 = vld [vmem:[%s169 + $0x690] sm:$0xff]
      %v388 = vld [vmem:[%s169 + $0x698] sm:$0xff]
      %v389 = vld [vmem:[%s169 + $0x6a0] sm:$0xff]
      %v390 = vld [vmem:[%s169 + $0x6a8] sm:$0xff]
      %v391 = vld [vmem:[%s169 + $0x6b0] sm:$0xff]
      %v392 = vld [vmem:[%s169 + $0x6b8] sm:$0xff]
      %v393 = vld [vmem:[%s169 + $0x6c0] sm:$0xff]
      %v394 = vld [vmem:[%s169 + $0x6c8] sm:$0xff]
      %v395 = vld [vmem:[%s169 + $0x6d0] sm:$0xff]
      %v396 = vld [vmem:[%s169 + $0x6d8] sm:$0xff]
      %v397 = vld [vmem:[%s169 + $0x6e0] sm:$0xff]
      %v398 = vld [vmem:[%s169 + $0x6e8] sm:$0xff]
      %v399 = vld [vmem:[%s169 + $0x6f0] sm:$0xff]
      %v400 = vld [vmem:[%s169 + $0x6f8] sm:$0xff]
      %v401 = vld [vmem:[%s169 + $0x700] sm:$0xff]
      %v402 = vld [vmem:[%s169 + $0x708] sm:$0xff]
      %v403 = vld [vmem:[%s169 + $0x710] sm:$0xff]
      %v404 = vld [vmem:[%s169 + $0x718] sm:$0xff]
      %v405 = vld [vmem:[%s169 + $0x720] sm:$0xff]
      %v406 = vld [vmem:[%s169 + $0x728] sm:$0xff]
      %v407 = vld [vmem:[%s169 + $0x730] sm:$0xff]
      %v408 = vld [vmem:[%s169 + $0x738] sm:$0xff]
      %v409 = vld [vmem:[%s169 + $0x740] sm:$0xff]
      %v410 = vld [vmem:[%s169 + $0x748] sm:$0xff]
      %v411 = vld [vmem:[%s169 + $0x750] sm:$0xff]
      %v412 = vld [vmem:[%s169 + $0x758] sm:$0xff]
      %v413 = vld [vmem:[%s169 + $0x760] sm:$0xff]
      %v414 = vld [vmem:[%s169 + $0x768] sm:$0xff]
      %v415 = vld [vmem:[%s169 + $0x770] sm:$0xff]
      %v416 = vld [vmem:[%s169 + $0x778] sm:$0xff]
      %v417 = vld [vmem:[%s169 + $0x780] sm:$0xff]
      %v418 = vld [vmem:[%s169 + $0x788] sm:$0xff]
      %v419 = vld [vmem:[%s169 + $0x790] sm:$0xff]
      %v420 = vld [vmem:[%s169 + $0x798] sm:$0xff]
      %v421 = vld [vmem:[%s169 + $0x7a0] sm:$0xff]
      %v422 = vld [vmem:[%s169 + $0x7a8] sm:$0xff]
      %v423 = vld [vmem:[%s169 + $0x7b0] sm:$0xff]
      %v424 = vld [vmem:[%s169 + $0x7b8] sm:$0xff]
      %v425 = vld [vmem:[%s169 + $0x7c0] sm:$0xff]
      %v426 = vld [vmem:[%s169 + $0x7c8] sm:$0xff]
      %v427 = vld [vmem:[%s169 + $0x7d0] sm:$0xff]
      %v428 = vld [vmem:[%s169 + $0x7d8] sm:$0xff]
      %v429 = vld [vmem:[%s169 + $0x7e0] sm:$0xff]
      %v430 = vld [vmem:[%s169 + $0x7e8] sm:$0xff]
      %v431 = vld [vmem:[%s169 + $0x7f0] sm:$0xff]
      %v432 = vld [vmem:[%s169 + $0x7f8] sm:$0xff]
      %v433 = vld [vmem:[%s169 + $0x800] sm:$0xff]
      %v434 = vld [vmem:[%s169 + $0x808] sm:$0xff]
      %v435 = vld [vmem:[%s169 + $0x810] sm:$0xff]
      %v436 = vld [vmem:[%s169 + $0x818] sm:$0xff]
      %v437 = vld [vmem:[%s169 + $0x820] sm:$0xff]
      %v438 = vld [vmem:[%s169 + $0x828] sm:$0xff]
      %v439 = vld [vmem:[%s169 + $0x830] sm:$0xff]
      %v440 = vld [vmem:[%s169 + $0x838] sm:$0xff]
      %v441 = vld [vmem:[%s169 + $0x840] sm:$0xff]
      %v442 = vld [vmem:[%s169 + $0x848] sm:$0xff]
      %v443 = vld [vmem:[%s169 + $0x850] sm:$0xff]
      %v444 = vld [vmem:[%s169 + $0x858] sm:$0xff]
      %v445 = vld [vmem:[%s169 + $0x860] sm:$0xff]
      %v446 = vld [vmem:[%s169 + $0x868] sm:$0xff]
      %v447 = vld [vmem:[%s169 + $0x870] sm:$0xff]
      %v448 = vld [vmem:[%s169 + $0x878] sm:$0xff]
      %v449 = vld [vmem:[%s169 + $0x880] sm:$0xff]
      %v450 = vld [vmem:[%s169 + $0x888] sm:$0xff]
      %v451 = vld [vmem:[%s169 + $0x890] sm:$0xff]
      %v452 = vld [vmem:[%s169 + $0x898] sm:$0xff]
      %v453 = vld [vmem:[%s169 + $0x8a0] sm:$0xff]
      %v454 = vld [vmem:[%s169 + $0x8a8] sm:$0xff]
      %v455 = vld [vmem:[%s169 + $0x8b0] sm:$0xff]
      %v456 = vld [vmem:[%s169 + $0x8b8] sm:$0xff]
      %v457 = vld [vmem:[%s169 + $0x8c0] sm:$0xff]
      %v458 = vld [vmem:[%s169 + $0x8c8] sm:$0xff]
      %v459 = vld [vmem:[%s169 + $0x8d0] sm:$0xff]
      %v460 = vld [vmem:[%s169 + $0x8d8] sm:$0xff]
      %v461 = vld [vmem:[%s169 + $0x8e0] sm:$0xff]
      %v462 = vld [vmem:[%s169 + $0x8e8] sm:$0xff]
      %v463 = vld [vmem:[%s169 + $0x8f0] sm:$0xff]
      %v464 = vld [vmem:[%s169 + $0x8f8] sm:$0xff]
      %v465 = vld [vmem:[%s169 + $0x900] sm:$0xff]
      %v466 = vld [vmem:[%s169 + $0x908] sm:$0xff]
      %v467 = vld [vmem:[%s169 + $0x910] sm:$0xff]
      %v468 = vld [vmem:[%s169 + $0x918] sm:$0xff]
      %v469 = vld [vmem:[%s169 + $0x920] sm:$0xff]
      %v470 = vld [vmem:[%s169 + $0x928] sm:$0xff]
      %v471 = vld [vmem:[%s169 + $0x930] sm:$0xff]
      %v472 = vld [vmem:[%s169 + $0x938] sm:$0xff]
      %v473 = vld [vmem:[%s169 + $0x940] sm:$0xff]
      %v474 = vld [vmem:[%s169 + $0x948] sm:$0xff]
      %v475 = vld [vmem:[%s169 + $0x950] sm:$0xff]
      %v476 = vld [vmem:[%s169 + $0x958] sm:$0xff]
      %v477 = vld [vmem:[%s169 + $0x960] sm:$0xff]
      %v478 = vld [vmem:[%s169 + $0x968] sm:$0xff]
      %v479 = vld [vmem:[%s169 + $0x970] sm:$0xff]
      %v480 = vld [vmem:[%s169 + $0x978] sm:$0xff]
      %v481 = vld [vmem:[%s169 + $0x980] sm:$0xff]
      %v482 = vld [vmem:[%s169 + $0x988] sm:$0xff]
      %v483 = vld [vmem:[%s169 + $0x990] sm:$0xff]
      %v484 = vld [vmem:[%s169 + $0x998] sm:$0xff]
      %v485 = vld [vmem:[%s169 + $0x9a0] sm:$0xff]
      %v486 = vld [vmem:[%s169 + $0x9a8] sm:$0xff]
      %v487 = vld [vmem:[%s169 + $0x9b0] sm:$0xff]
      %v488 = vld [vmem:[%s169 + $0x9b8] sm:$0xff]
      %v489 = vld [vmem:[%s169 + $0x9c0] sm:$0xff]
      %v490 = vld [vmem:[%s169 + $0x9c8] sm:$0xff]
      %v491 = vld [vmem:[%s169 + $0x9d0] sm:$0xff]
      %v492 = vld [vmem:[%s169 + $0x9d8] sm:$0xff]
      %v493 = vld [vmem:[%s169 + $0x9e0] sm:$0xff]
      %v494 = vld [vmem:[%s169 + $0x9e8] sm:$0xff]
      %v495 = vld [vmem:[%s169 + $0x9f0] sm:$0xff]
      %v496 = vld [vmem:[%s169 + $0x9f8] sm:$0xff]
      %v497 = vld [vmem:[%s169 + $0xa00] sm:$0xff]
      %v498 = vld [vmem:[%s169 + $0xa08] sm:$0xff]
      %v499 = vld [vmem:[%s169 + $0xa10] sm:$0xff]
      %v500 = vld [vmem:[%s169 + $0xa18] sm:$0xff]
      %v501 = vld [vmem:[%s169 + $0xa20] sm:$0xff]
      %v502 = vld [vmem:[%s169 + $0xa28] sm:$0xff]
      %v503 = vld [vmem:[%s169 + $0xa30] sm:$0xff]
      %v504 = vld [vmem:[%s169 + $0xa38] sm:$0xff]
      %v505 = vld [vmem:[%s169 + $0xa40] sm:$0xff]
      %v506 = vld [vmem:[%s169 + $0xa48] sm:$0xff]
      %v507 = vld [vmem:[%s169 + $0xa50] sm:$0xff]
      %v508 = vld [vmem:[%s169 + $0xa58] sm:$0xff]
      %v509 = vld [vmem:[%s169 + $0xa60] sm:$0xff]
      %v510 = vld [vmem:[%s169 + $0xa68] sm:$0xff]
      %v511 = vld [vmem:[%s169 + $0xa70] sm:$0xff]
      %v512 = vld [vmem:[%s169 + $0xa78] sm:$0xff]
      %v513 = vld [vmem:[%s169 + $0xa80] sm:$0xff]
      %v514 = vld [vmem:[%s169 + $0xa88] sm:$0xff]
      %v515 = vld [vmem:[%s169 + $0xa90] sm:$0xff]
      %v516 = vld [vmem:[%s169 + $0xa98] sm:$0xff]
      %v517 = vld [vmem:[%s169 + $0xaa0] sm:$0xff]
      %v518 = vld [vmem:[%s169 + $0xaa8] sm:$0xff]
      %v519 = vld [vmem:[%s169 + $0xab0] sm:$0xff]
      %v520 = vld [vmem:[%s169 + $0xab8] sm:$0xff]
      %v521 = vld [vmem:[%s169 + $0xac0] sm:$0xff]
      %v522 = vld [vmem:[%s169 + $0xac8] sm:$0xff]
      %v523 = vld [vmem:[%s169 + $0xad0] sm:$0xff]
      %v524 = vld [vmem:[%s169 + $0xad8] sm:$0xff]
      %v525 = vld [vmem:[%s169 + $0xae0] sm:$0xff]
      %v526 = vld [vmem:[%s169 + $0xae8] sm:$0xff]
      %v527 = vld [vmem:[%s169 + $0xaf0] sm:$0xff]
      %v528 = vld [vmem:[%s169 + $0xaf8] sm:$0xff]
      %v529 = vld [vmem:[%s169 + $0xb00] sm:$0xff]
      %v530 = vld [vmem:[%s169 + $0xb08] sm:$0xff]
      %v531 = vld [vmem:[%s169 + $0xb10] sm:$0xff]
      %v532 = vld [vmem:[%s169 + $0xb18] sm:$0xff]
      %v533 = vld [vmem:[%s169 + $0xb20] sm:$0xff]
      %v534 = vld [vmem:[%s169 + $0xb28] sm:$0xff]
      %v535 = vld [vmem:[%s169 + $0xb30] sm:$0xff]
      %v536 = vld [vmem:[%s169 + $0xb38] sm:$0xff]
      %v537 = vld [vmem:[%s169 + $0xb40] sm:$0xff]
      %v538 = vld [vmem:[%s169 + $0xb48] sm:$0xff]
      %v539 = vld [vmem:[%s169 + $0xb50] sm:$0xff]
      %v540 = vld [vmem:[%s169 + $0xb58] sm:$0xff]
      %v541 = vld [vmem:[%s169 + $0xb60] sm:$0xff]
      %v542 = vld [vmem:[%s169 + $0xb68] sm:$0xff]
      %v543 = vld [vmem:[%s169 + $0xb70] sm:$0xff]
      %v544 = vld [vmem:[%s169 + $0xb78] sm:$0xff]
      %v545 = vld [vmem:[%s169 + $0xb80] sm:$0xff]
      %v546 = vld [vmem:[%s169 + $0xb88] sm:$0xff]
      %v547 = vld [vmem:[%s169 + $0xb90] sm:$0xff]
      %v548 = vld [vmem:[%s169 + $0xb98] sm:$0xff]
      %v549 = vld [vmem:[%s169 + $0xba0] sm:$0xff]
      %v550 = vld [vmem:[%s169 + $0xba8] sm:$0xff]
      %v551 = vld [vmem:[%s169 + $0xbb0] sm:$0xff]
      %v552 = vld [vmem:[%s169 + $0xbb8] sm:$0xff]
      %v553 = vld [vmem:[%s169 + $0xbc0] sm:$0xff]
      %v554 = vld [vmem:[%s169 + $0xbc8] sm:$0xff]
      %v555 = vld [vmem:[%s169 + $0xbd0] sm:$0xff]
      %v556 = vld [vmem:[%s169 + $0xbd8] sm:$0xff]
      %v557 = vld [vmem:[%s169 + $0xbe0] sm:$0xff]
      %v558 = vld [vmem:[%s169 + $0xbe8] sm:$0xff]
      %v559 = vld [vmem:[%s169 + $0xbf0] sm:$0xff]
      %v560 = vld [vmem:[%s169 + $0xbf8] sm:$0xff]
      %v561 = vld [vmem:[%s169 + $0xc00] sm:$0xff]
      %v562 = vld [vmem:[%s169 + $0xc08] sm:$0xff]
      %v563 = vld [vmem:[%s169 + $0xc10] sm:$0xff]
      %v564 = vld [vmem:[%s169 + $0xc18] sm:$0xff]
      %v565 = vld [vmem:[%s169 + $0xc20] sm:$0xff]
      %v566 = vld [vmem:[%s169 + $0xc28] sm:$0xff]
      %v567 = vld [vmem:[%s169 + $0xc30] sm:$0xff]
      %v568 = vld [vmem:[%s169 + $0xc38] sm:$0xff]
      %v569 = vld [vmem:[%s169 + $0xc40] sm:$0xff]
      %v570 = vld [vmem:[%s169 + $0xc48] sm:$0xff]
      %v571 = vld [vmem:[%s169 + $0xc50] sm:$0xff]
      %v572 = vld [vmem:[%s169 + $0xc58] sm:$0xff]
      %v573 = vld [vmem:[%s169 + $0xc60] sm:$0xff]
      %v574 = vld [vmem:[%s169 + $0xc68] sm:$0xff]
      %v575 = vld [vmem:[%s169 + $0xc70] sm:$0xff]
      %v576 = vld [vmem:[%s169 + $0xc78] sm:$0xff]
      %v577 = vld [vmem:[%s169 + $0xc80] sm:$0xff]
      %v578 = vld [vmem:[%s169 + $0xc88] sm:$0xff]
      %v579 = vld [vmem:[%s169 + $0xc90] sm:$0xff]
      %v580 = vld [vmem:[%s169 + $0xc98] sm:$0xff]
      %v581 = vld [vmem:[%s169 + $0xca0] sm:$0xff]
      %v582 = vld [vmem:[%s169 + $0xca8] sm:$0xff]
      %v583 = vld [vmem:[%s169 + $0xcb0] sm:$0xff]
      %v584 = vld [vmem:[%s169 + $0xcb8] sm:$0xff]
      %v585 = vld [vmem:[%s169 + $0xcc0] sm:$0xff]
      %v586 = vld [vmem:[%s169 + $0xcc8] sm:$0xff]
      %v587 = vld [vmem:[%s169 + $0xcd0] sm:$0xff]
      %v588 = vld [vmem:[%s169 + $0xcd8] sm:$0xff]
      %v589 = vld [vmem:[%s169 + $0xce0] sm:$0xff]
      %v590 = vld [vmem:[%s169 + $0xce8] sm:$0xff]
      %v591 = vld [vmem:[%s169 + $0xcf0] sm:$0xff]
      %v592 = vld [vmem:[%s169 + $0xcf8] sm:$0xff]
      %v593 = vld [vmem:[%s169 + $0xd00] sm:$0xff]
      %v594 = vld [vmem:[%s169 + $0xd08] sm:$0xff]
      %v595 = vld [vmem:[%s169 + $0xd10] sm:$0xff]
      %v596 = vld [vmem:[%s169 + $0xd18] sm:$0xff]
      %v597 = vld [vmem:[%s169 + $0xd20] sm:$0xff]
      %v598 = vld [vmem:[%s169 + $0xd28] sm:$0xff]
      %v599 = vld [vmem:[%s169 + $0xd30] sm:$0xff]
      %v600 = vld [vmem:[%s169 + $0xd38] sm:$0xff]
      %v601 = vld [vmem:[%s169 + $0xd40] sm:$0xff]
      %v602 = vld [vmem:[%s169 + $0xd48] sm:$0xff]
      %v603 = vld [vmem:[%s169 + $0xd50] sm:$0xff]
      %v604 = vld [vmem:[%s169 + $0xd58] sm:$0xff]
      %v605 = vld [vmem:[%s169 + $0xd60] sm:$0xff]
      %v606 = vld [vmem:[%s169 + $0xd68] sm:$0xff]
      %v607 = vld [vmem:[%s169 + $0xd70] sm:$0xff]
      %v608 = vld [vmem:[%s169 + $0xd78] sm:$0xff]
      %v609 = vld [vmem:[%s169 + $0xd80] sm:$0xff]
      %v610 = vld [vmem:[%s169 + $0xd88] sm:$0xff]
      %v611 = vld [vmem:[%s169 + $0xd90] sm:$0xff]
      %v612 = vld [vmem:[%s169 + $0xd98] sm:$0xff]
      %v613 = vld [vmem:[%s169 + $0xda0] sm:$0xff]
      %v614 = vld [vmem:[%s169 + $0xda8] sm:$0xff]
      %v615 = vld [vmem:[%s169 + $0xdb0] sm:$0xff]
      %v616 = vld [vmem:[%s169 + $0xdb8] sm:$0xff]
      %v617 = vld [vmem:[%s169 + $0xdc0] sm:$0xff]
      %v618 = vld [vmem:[%s169 + $0xdc8] sm:$0xff]
      %v619 = vld [vmem:[%s169 + $0xdd0] sm:$0xff]
      %v620 = vld [vmem:[%s169 + $0xdd8] sm:$0xff]
      %v621 = vld [vmem:[%s169 + $0xde0] sm:$0xff]
      %v622 = vld [vmem:[%s169 + $0xde8] sm:$0xff]
      %v623 = vld [vmem:[%s169 + $0xdf0] sm:$0xff]
      %v624 = vld [vmem:[%s169 + $0xdf8] sm:$0xff]
      %v625 = vld [vmem:[%s169 + $0xe00] sm:$0xff]
      %v626 = vld [vmem:[%s169 + $0xe08] sm:$0xff]
      %v627 = vld [vmem:[%s169 + $0xe10] sm:$0xff]
      %v628 = vld [vmem:[%s169 + $0xe18] sm:$0xff]
      %v629 = vld [vmem:[%s169 + $0xe20] sm:$0xff]
      %v630 = vld [vmem:[%s169 + $0xe28] sm:$0xff]
      %v631 = vld [vmem:[%s169 + $0xe30] sm:$0xff]
      %v632 = vld [vmem:[%s169 + $0xe38] sm:$0xff]
      %v633 = vld [vmem:[%s169 + $0xe40] sm:$0xff]
      %v634 = vld [vmem:[%s169 + $0xe48] sm:$0xff]
      %v635 = vld [vmem:[%s169 + $0xe50] sm:$0xff]
      %v636 = vld [vmem:[%s169 + $0xe58] sm:$0xff]
      %v637 = vld [vmem:[%s169 + $0xe60] sm:$0xff]
      %v638 = vld [vmem:[%s169 + $0xe68] sm:$0xff]
      %v639 = vld [vmem:[%s169 + $0xe70] sm:$0xff]
      %v640 = vld [vmem:[%s169 + $0xe78] sm:$0xff]
      %v641 = vld [vmem:[%s169 + $0xe80] sm:$0xff]
      %v642 = vld [vmem:[%s169 + $0xe88] sm:$0xff]
      %v643 = vld [vmem:[%s169 + $0xe90] sm:$0xff]
      %v644 = vld [vmem:[%s169 + $0xe98] sm:$0xff]
      %v645 = vld [vmem:[%s169 + $0xea0] sm:$0xff]
      %v646 = vld [vmem:[%s169 + $0xea8] sm:$0xff]
      %v647 = vld [vmem:[%s169 + $0xeb0] sm:$0xff]
      %v648 = vld [vmem:[%s169 + $0xeb8] sm:$0xff]
      %v649 = vld [vmem:[%s169 + $0xec0] sm:$0xff]
      %v650 = vld [vmem:[%s169 + $0xec8] sm:$0xff]
      %v651 = vld [vmem:[%s169 + $0xed0] sm:$0xff]
      %v652 = vld [vmem:[%s169 + $0xed8] sm:$0xff]
      %v653 = vld [vmem:[%s169 + $0xee0] sm:$0xff]
      %v654 = vld [vmem:[%s169 + $0xee8] sm:$0xff]
      %v655 = vld [vmem:[%s169 + $0xef0] sm:$0xff]
      %v656 = vld [vmem:[%s169 + $0xef8] sm:$0xff]
      %v657 = vld [vmem:[%s169 + $0xf00] sm:$0xff]
      %v658 = vld [vmem:[%s169 + $0xf08] sm:$0xff]
      %v659 = vld [vmem:[%s169 + $0xf10] sm:$0xff]
      %v660 = vld [vmem:[%s169 + $0xf18] sm:$0xff]
      %v661 = vld [vmem:[%s169 + $0xf20] sm:$0xff]
      %v662 = vld [vmem:[%s169 + $0xf28] sm:$0xff]
      %v663 = vld [vmem:[%s169 + $0xf30] sm:$0xff]
      %v664 = vld [vmem:[%s169 + $0xf38] sm:$0xff]
      %v665 = vld [vmem:[%s169 + $0xf40] sm:$0xff]
      %v666 = vld [vmem:[%s169 + $0xf48] sm:$0xff]
      %v667 = vld [vmem:[%s169 + $0xf50] sm:$0xff]
      %v668 = vld [vmem:[%s169 + $0xf58] sm:$0xff]
      %v669 = vld [vmem:[%s169 + $0xf60] sm:$0xff]
      %v670 = vld [vmem:[%s169 + $0xf68] sm:$0xff]
      %v671 = vld [vmem:[%s169 + $0xf70] sm:$0xff]
      %v672 = vld [vmem:[%s169 + $0xf78] sm:$0xff]
      %v673 = vld [vmem:[%s169 + $0xf80] sm:$0xff]
      %v674 = vld [vmem:[%s169 + $0xf88] sm:$0xff]
      %v675 = vld [vmem:[%s169 + $0xf90] sm:$0xff]
      %v676 = vld [vmem:[%s169 + $0xf98] sm:$0xff]
      %v677 = vld [vmem:[%s169 + $0xfa0] sm:$0xff]
      %v678 = vld [vmem:[%s169 + $0xfa8] sm:$0xff]
      %v679 = vld [vmem:[%s169 + $0xfb0] sm:$0xff]
      %v680 = vld [vmem:[%s169 + $0xfb8] sm:$0xff]
      %v681 = vld [vmem:[%s169 + $0xfc0] sm:$0xff]
      %v682 = vld [vmem:[%s169 + $0xfc8] sm:$0xff]
      %v683 = vld [vmem:[%s169 + $0xfd0] sm:$0xff]
      %v684 = vld [vmem:[%s169 + $0xfd8] sm:$0xff]
      %v685 = vld [vmem:[%s169 + $0xfe0] sm:$0xff]
      %v686 = vld [vmem:[%s169 + $0xfe8] sm:$0xff]
      %v687 = vld [vmem:[%s169 + $0xff0] sm:$0xff]
      %v688 = vld [vmem:[%s169 + $0xff8] sm:$0xff]
      %v689 = vld [vmem:[%s169 + $0x1000] sm:$0xff]
      %v690 = vld [vmem:[%s169 + $0x1008] sm:$0xff]
      %v691 = vld [vmem:[%s169 + $0x1010] sm:$0xff]
      %v692 = vld [vmem:[%s169 + $0x1018] sm:$0xff]
      %v693 = vld [vmem:[%s169 + $0x1020] sm:$0xff]
      %v694 = vld [vmem:[%s169 + $0x1028] sm:$0xff]
      %v695 = vld [vmem:[%s169 + $0x1030] sm:$0xff]
      %v696 = vld [vmem:[%s169 + $0x1038] sm:$0xff]
      %v697 = vld [vmem:[%s169 + $0x1040] sm:$0xff]
      %v698 = vld [vmem:[%s169 + $0x1048] sm:$0xff]
      %v699 = vld [vmem:[%s169 + $0x1050] sm:$0xff]
      %v700 = vld [vmem:[%s169 + $0x1058] sm:$0xff]
      %v701 = vld [vmem:[%s169 + $0x1060] sm:$0xff]
      %v702 = vld [vmem:[%s169 + $0x1068] sm:$0xff]
      %v703 = vld [vmem:[%s169 + $0x1070] sm:$0xff]
      %v704 = vld [vmem:[%s169 + $0x1078] sm:$0xff]
      %v705 = vld [vmem:[%s169 + $0x1080] sm:$0xff]
      %v706 = vld [vmem:[%s169 + $0x1088] sm:$0xff]
      %v707 = vld [vmem:[%s169 + $0x1090] sm:$0xff]
      %v708 = vld [vmem:[%s169 + $0x1098] sm:$0xff]
      %v709 = vld [vmem:[%s169 + $0x10a0] sm:$0xff]
      %v710 = vld [vmem:[%s169 + $0x10a8] sm:$0xff]
      %v711 = vld [vmem:[%s169 + $0x10b0] sm:$0xff]
      %v712 = vld [vmem:[%s169 + $0x10b8] sm:$0xff]
      %v713 = vld [vmem:[%s169 + $0x10c0] sm:$0xff]
      %v714 = vld [vmem:[%s169 + $0x10c8] sm:$0xff]
      %v715 = vld [vmem:[%s169 + $0x10d0] sm:$0xff]
      %v716 = vld [vmem:[%s169 + $0x10d8] sm:$0xff]
      %v717 = vld [vmem:[%s169 + $0x10e0] sm:$0xff]
      %v718 = vld [vmem:[%s169 + $0x10e8] sm:$0xff]
      %v719 = vld [vmem:[%s169 + $0x10f0] sm:$0xff]
      %v720 = vld [vmem:[%s169 + $0x10f8] sm:$0xff]
      %v721 = vld [vmem:[%s169 + $0x1100] sm:$0xff]
      %v722 = vld [vmem:[%s169 + $0x1108] sm:$0xff]
      %v723 = vld [vmem:[%s169 + $0x1110] sm:$0xff]
      %v724 = vld [vmem:[%s169 + $0x1118] sm:$0xff]
      %v725 = vld [vmem:[%s169 + $0x1120] sm:$0xff]
      %v726 = vld [vmem:[%s169 + $0x1128] sm:$0xff]
      %v727 = vld [vmem:[%s169 + $0x1130] sm:$0xff]
      %v728 = vld [vmem:[%s169 + $0x1138] sm:$0xff]
      %v729 = vld [vmem:[%s169 + $0x1140] sm:$0xff]
      %v730 = vld [vmem:[%s169 + $0x1148] sm:$0xff]
      %v731 = vld [vmem:[%s169 + $0x1150] sm:$0xff]
      %v732 = vld [vmem:[%s169 + $0x1158] sm:$0xff]
      %v733 = vld [vmem:[%s169 + $0x1160] sm:$0xff]
      %v734 = vld [vmem:[%s169 + $0x1168] sm:$0xff]
      %v735 = vld [vmem:[%s169 + $0x1170] sm:$0xff]
      %v736 = vld [vmem:[%s169 + $0x1178] sm:$0xff]
      %v737 = vld [vmem:[%s169 + $0x1180] sm:$0xff]
      %v738 = vld [vmem:[%s169 + $0x1188] sm:$0xff]
      %v739 = vld [vmem:[%s169 + $0x1190] sm:$0xff]
      %v740 = vld [vmem:[%s169 + $0x1198] sm:$0xff]
      %v741 = vld [vmem:[%s169 + $0x11a0] sm:$0xff]
      %v742 = vld [vmem:[%s169 + $0x11a8] sm:$0xff]
      %v743 = vld [vmem:[%s169 + $0x11b0] sm:$0xff]
      %v744 = vld [vmem:[%s169 + $0x11b8] sm:$0xff]
      %v745 = vld [vmem:[%s169 + $0x11c0] sm:$0xff]
      %v746 = vld [vmem:[%s169 + $0x11c8] sm:$0xff]
      %v747 = vld [vmem:[%s169 + $0x11d0] sm:$0xff]
      %v748 = vld [vmem:[%s169 + $0x11d8] sm:$0xff]
      %v749 = vld [vmem:[%s169 + $0x11e0] sm:$0xff]
      %v750 = vld [vmem:[%s169 + $0x11e8] sm:$0xff]
      %v751 = vld [vmem:[%s169 + $0x11f0] sm:$0xff]
      %v752 = vld [vmem:[%s169 + $0x11f8] sm:$0xff]
      %v753 = vld [vmem:[%s169 + $0x1200] sm:$0xff]
      %v754 = vld [vmem:[%s169 + $0x1208] sm:$0xff]
      %v755 = vld [vmem:[%s169 + $0x1210] sm:$0xff]
      %v756 = vld [vmem:[%s169 + $0x1218] sm:$0xff]
      %v757 = vld [vmem:[%s169 + $0x1220] sm:$0xff]
      %v758 = vld [vmem:[%s169 + $0x1228] sm:$0xff]
      %v759 = vld [vmem:[%s169 + $0x1230] sm:$0xff]
      %v760 = vld [vmem:[%s169 + $0x1238] sm:$0xff]
      %v761 = vld [vmem:[%s169 + $0x1240] sm:$0xff]
      %v762 = vld [vmem:[%s169 + $0x1248] sm:$0xff]
      %v763 = vld [vmem:[%s169 + $0x1250] sm:$0xff]
      %v764 = vld [vmem:[%s169 + $0x1258] sm:$0xff]
      %v765 = vld [vmem:[%s169 + $0x1260] sm:$0xff]
      %v766 = vld [vmem:[%s169 + $0x1268] sm:$0xff]
      %v767 = vld [vmem:[%s169 + $0x1270] sm:$0xff]
      %v768 = vld [vmem:[%s169 + $0x1278] sm:$0xff]
      %v769 = vld [vmem:[%s169 + $0x1280] sm:$0xff]
      %v770 = vld [vmem:[%s169 + $0x1288] sm:$0xff]
      %v771 = vld [vmem:[%s169 + $0x1290] sm:$0xff]
      %v772 = vld [vmem:[%s169 + $0x1298] sm:$0xff]
      %v773 = vld [vmem:[%s169 + $0x12a0] sm:$0xff]
      %v774 = vld [vmem:[%s169 + $0x12a8] sm:$0xff]
      %v775 = vld [vmem:[%s169 + $0x12b0] sm:$0xff]
      %v776 = vld [vmem:[%s169 + $0x12b8] sm:$0xff]
      %v777 = vld [vmem:[%s169 + $0x12c0] sm:$0xff]
      %v778 = vld [vmem:[%s169 + $0x12c8] sm:$0xff]
      %v779 = vld [vmem:[%s169 + $0x12d0] sm:$0xff]
      %v780 = vld [vmem:[%s169 + $0x12d8] sm:$0xff]
      %v781 = vld [vmem:[%s169 + $0x12e0] sm:$0xff]
      %v782 = vld [vmem:[%s169 + $0x12e8] sm:$0xff]
      %v783 = vld [vmem:[%s169 + $0x12f0] sm:$0xff]
      %v784 = vld [vmem:[%s169 + $0x12f8] sm:$0xff]
      %v785 = vld [vmem:[%s169 + $0x1300] sm:$0xff]
      %v786 = vld [vmem:[%s169 + $0x1308] sm:$0xff]
      %v787 = vld [vmem:[%s169 + $0x1310] sm:$0xff]
      %v788 = vld [vmem:[%s169 + $0x1318] sm:$0xff]
      %v789 = vld [vmem:[%s169 + $0x1320] sm:$0xff]
      %v790 = vld [vmem:[%s169 + $0x1328] sm:$0xff]
      %v791 = vld [vmem:[%s169 + $0x1330] sm:$0xff]
      %v792 = vld [vmem:[%s169 + $0x1338] sm:$0xff]
      %v793 = vld [vmem:[%s169 + $0x1340] sm:$0xff]
      %v794 = vld [vmem:[%s169 + $0x1348] sm:$0xff]
      %v795 = vld [vmem:[%s169 + $0x1350] sm:$0xff]
      %v796 = vld [vmem:[%s169 + $0x1358] sm:$0xff]
      %v797 = vld [vmem:[%s169 + $0x1360] sm:$0xff]
      %v798 = vld [vmem:[%s169 + $0x1368] sm:$0xff]
      %v799 = vld [vmem:[%s169 + $0x1370] sm:$0xff]
      %v800 = vld [vmem:[%s169 + $0x1378] sm:$0xff]
      %v801 = vld [vmem:[%s169 + $0x1380] sm:$0xff]
      %v802 = vld [vmem:[%s169 + $0x1388] sm:$0xff]
      %v803 = vld [vmem:[%s169 + $0x1390] sm:$0xff]
      %v804 = vld [vmem:[%s169 + $0x1398] sm:$0xff]
      %v805 = vld [vmem:[%s169 + $0x13a0] sm:$0xff]
      %v806 = vld [vmem:[%s169 + $0x13a8] sm:$0xff]
      %v807 = vld [vmem:[%s169 + $0x13b0] sm:$0xff]
      %v808 = vld [vmem:[%s169 + $0x13b8] sm:$0xff]
      %v809 = vld [vmem:[%s169 + $0x13c0] sm:$0xff]
      %v810 = vld [vmem:[%s169 + $0x13c8] sm:$0xff]
      %v811 = vld [vmem:[%s169 + $0x13d0] sm:$0xff]
      %v812 = vld [vmem:[%s169 + $0x13d8] sm:$0xff]
      %v813 = vld [vmem:[%s169 + $0x13e0] sm:$0xff]
      %v814 = vld [vmem:[%s169 + $0x13e8] sm:$0xff]
      %v815 = vld [vmem:[%s169 + $0x13f0] sm:$0xff]
      %v816 = vld [vmem:[%s169 + $0x13f8] sm:$0xff]
      %v817 = vld [vmem:[%s169 + $0x1400] sm:$0xff]
      %v818 = vld [vmem:[%s169 + $0x1408] sm:$0xff]
      %v819 = vld [vmem:[%s169 + $0x1410] sm:$0xff]
      %v820 = vld [vmem:[%s169 + $0x1418] sm:$0xff]
      %v821 = vld [vmem:[%s169 + $0x1420] sm:$0xff]
      %v822 = vld [vmem:[%s169 + $0x1428] sm:$0xff]
      %v823 = vld [vmem:[%s169 + $0x1430] sm:$0xff]
      %v824 = vld [vmem:[%s169 + $0x1438] sm:$0xff]
      %v825 = vld [vmem:[%s169 + $0x1440] sm:$0xff]
      %v826 = vld [vmem:[%s169 + $0x1448] sm:$0xff]
      %v827 = vld [vmem:[%s169 + $0x1450] sm:$0xff]
      %v828 = vld [vmem:[%s169 + $0x1458] sm:$0xff]
      %v829 = vld [vmem:[%s169 + $0x1460] sm:$0xff]
      %v830 = vld [vmem:[%s169 + $0x1468] sm:$0xff]
      %v831 = vld [vmem:[%s169 + $0x1470] sm:$0xff]
      %v832 = vld [vmem:[%s169 + $0x1478] sm:$0xff]
      %v833 = vld [vmem:[%s169 + $0x1480] sm:$0xff]
      %v834 = vld [vmem:[%s169 + $0x1488] sm:$0xff]
      %v835 = vld [vmem:[%s169 + $0x1490] sm:$0xff]
      %v836 = vld [vmem:[%s169 + $0x1498] sm:$0xff]
      %v837 = vld [vmem:[%s169 + $0x14a0] sm:$0xff]
      %v838 = vld [vmem:[%s169 + $0x14a8] sm:$0xff]
      %v839 = vld [vmem:[%s169 + $0x14b0] sm:$0xff]
      %v840 = vld [vmem:[%s169 + $0x14b8] sm:$0xff]
      %v841 = vld [vmem:[%s169 + $0x14c0] sm:$0xff]
      %v842 = vld [vmem:[%s169 + $0x14c8] sm:$0xff]
      %v843 = vld [vmem:[%s169 + $0x14d0] sm:$0xff]
      %v844 = vld [vmem:[%s169 + $0x14d8] sm:$0xff]
      %v845 = vld [vmem:[%s169 + $0x14e0] sm:$0xff]
      %v846 = vld [vmem:[%s169 + $0x14e8] sm:$0xff]
      %v847 = vld [vmem:[%s169 + $0x14f0] sm:$0xff]
      %v848 = vld [vmem:[%s169 + $0x14f8] sm:$0xff]
      %v849 = vld [vmem:[%s169 + $0x1500] sm:$0xff]
      %v850 = vld [vmem:[%s169 + $0x1508] sm:$0xff]
      %v851 = vld [vmem:[%s169 + $0x1510] sm:$0xff]
      %v852 = vld [vmem:[%s169 + $0x1518] sm:$0xff]
      %v853 = vld [vmem:[%s169 + $0x1520] sm:$0xff]
      %v854 = vld [vmem:[%s169 + $0x1528] sm:$0xff]
      %v855 = vld [vmem:[%s169 + $0x1530] sm:$0xff]
      %v856 = vld [vmem:[%s169 + $0x1538] sm:$0xff]
      %v857 = vld [vmem:[%s169 + $0x1540] sm:$0xff]
      %v858 = vld [vmem:[%s169 + $0x1548] sm:$0xff]
      %v859 = vld [vmem:[%s169 + $0x1550] sm:$0xff]
      %v860 = vld [vmem:[%s169 + $0x1558] sm:$0xff]
      %v861 = vld [vmem:[%s169 + $0x1560] sm:$0xff]
      %v862 = vld [vmem:[%s169 + $0x1568] sm:$0xff]
      %v863 = vld [vmem:[%s1] sm:$0xff]
      %v864 = vld [vmem:[%s1 + $0x8] sm:$0xff]
      %v865 = vld [vmem:[%s1 + $0x10] sm:$0xff]
      %v866 = vld [vmem:[%s1 + $0x18] sm:$0xff]
      %v867 = vld [vmem:[%s1 + $0x20] sm:$0xff]
      %v868 = vld [vmem:[%s1 + $0x28] sm:$0xff]
      %v869 = vld [vmem:[%s1 + $0x30] sm:$0xff]
      %v870 = vld [vmem:[%s1 + $0x38] sm:$0xff]
      %v871 = vld [vmem:[%s1 + $0x40] sm:$0xff]
      %v872 = vld [vmem:[%s1 + $0x48] sm:$0xff]
      %v873 = vld [vmem:[%s1 + $0x50] sm:$0xff]
      %v874 = vld [vmem:[%s1 + $0x58] sm:$0xff]
      %v875 = vld [vmem:[%s1 + $0x60] sm:$0xff]
      %v876 = vld [vmem:[%s1 + $0x68] sm:$0xff]
      %v877 = vld [vmem:[%s1 + $0x70] sm:$0xff]
      %v878 = vld [vmem:[%s1 + $0x78] sm:$0xff]
      %v879 = vld [vmem:[%s1 + $0x80] sm:$0xff]
      %v880 = vld [vmem:[%s1 + $0x88] sm:$0xff]
      %v881 = vld [vmem:[%s1 + $0x90] sm:$0xff]
      %v882 = vld [vmem:[%s1 + $0x98] sm:$0xff]
      %v883 = vld [vmem:[%s1 + $0xa0] sm:$0xff]
      %v884 = vld [vmem:[%s1 + $0xa8] sm:$0xff]
      %v885 = vld [vmem:[%s1 + $0xb0] sm:$0xff]
      %v886 = vld [vmem:[%s1 + $0xb8] sm:$0xff]
      %v887 = vld [vmem:[%s1 + $0xc0] sm:$0xff]
      %v888 = vld [vmem:[%s1 + $0xc8] sm:$0xff]
      %v889 = vld [vmem:[%s1 + $0xd0] sm:$0xff]
      %v890 = vld [vmem:[%s1 + $0xd8] sm:$0xff]
      %v891 = vld [vmem:[%s1 + $0xe0] sm:$0xff]
      %v892 = vld [vmem:[%s1 + $0xe8] sm:$0xff]
      %v893 = vld [vmem:[%s1 + $0xf0] sm:$0xff]
      %v894 = vld [vmem:[%s1 + $0xf8] sm:$0xff]
      %v895 = vld [vmem:[%s1 + $0x100] sm:$0xff]
      %v896 = vld [vmem:[%s1 + $0x108] sm:$0xff]
      %v897 = vld [vmem:[%s1 + $0x110] sm:$0xff]
      %v898 = vld [vmem:[%s1 + $0x118] sm:$0xff]
      %v899 = vld [vmem:[%s1 + $0x120] sm:$0xff]
      %v900 = vld [vmem:[%s1 + $0x128] sm:$0xff]
      %v901 = vld [vmem:[%s1 + $0x130] sm:$0xff]
      %v902 = vld [vmem:[%s1 + $0x138] sm:$0xff]
      %v903 = vld [vmem:[%s1 + $0x140] sm:$0xff]
      %v904 = vld [vmem:[%s1 + $0x148] sm:$0xff]
      %v905 = vld [vmem:[%s1 + $0x150] sm:$0xff]
      %v906 = vld [vmem:[%s1 + $0x158] sm:$0xff]
      %v907 = vld [vmem:[%s1 + $0x160] sm:$0xff]
      %v908 = vld [vmem:[%s1 + $0x168] sm:$0xff]
      %v909 = vld [vmem:[%s1 + $0x170] sm:$0xff]
      %v910 = vld [vmem:[%s1 + $0x178] sm:$0xff]
      %v911 = vld [vmem:[%s1 + $0x180] sm:$0xff]
      %v912 = vld [vmem:[%s1 + $0x188] sm:$0xff]
      %v913 = vld [vmem:[%s1 + $0x190] sm:$0xff]
      %v914 = vld [vmem:[%s1 + $0x198] sm:$0xff]
      %v915 = vld [vmem:[%s1 + $0x1a0] sm:$0xff]
      %v916 = vld [vmem:[%s1 + $0x1a8] sm:$0xff]
      %v917 = vld [vmem:[%s1 + $0x1b0] sm:$0xff]
      %v918 = vld [vmem:[%s1 + $0x1b8] sm:$0xff]
      %v919 = vld [vmem:[%s1 + $0x1c0] sm:$0xff]
      %v920 = vld [vmem:[%s1 + $0x1c8] sm:$0xff]
      %v921 = vld [vmem:[%s1 + $0x1d0] sm:$0xff]
      %v922 = vld [vmem:[%s1 + $0x1d8] sm:$0xff]
      %v923 = vld [vmem:[%s1 + $0x1e0] sm:$0xff]
      %v924 = vld [vmem:[%s1 + $0x1e8] sm:$0xff]
      %v925 = vld [vmem:[%s1 + $0x1f0] sm:$0xff]
      %v926 = vld [vmem:[%s1 + $0x1f8] sm:$0xff]
      %v927 = vld [vmem:[%s1 + $0x200] sm:$0xff]
      %v928 = vld [vmem:[%s1 + $0x208] sm:$0xff]
      %v929 = vld [vmem:[%s1 + $0x210] sm:$0xff]
      %v930 = vld [vmem:[%s1 + $0x218] sm:$0xff]
      %v931 = vld [vmem:[%s1 + $0x220] sm:$0xff]
      %v932 = vld [vmem:[%s1 + $0x228] sm:$0xff]
      %v933 = vld [vmem:[%s1 + $0x230] sm:$0xff]
      %v934 = vld [vmem:[%s1 + $0x238] sm:$0xff]
      %v935 = vld [vmem:[%s1 + $0x240] sm:$0xff]
      %v936 = vld [vmem:[%s1 + $0x248] sm:$0xff]
      %v937 = vld [vmem:[%s1 + $0x250] sm:$0xff]
      %v938 = vld [vmem:[%s1 + $0x258] sm:$0xff]
      %v939 = vld [vmem:[%s1 + $0x260] sm:$0xff]
      %v940 = vld [vmem:[%s1 + $0x268] sm:$0xff]
      %v941 = vld [vmem:[%s1 + $0x270] sm:$0xff]
      %v942 = vld [vmem:[%s1 + $0x278] sm:$0xff]
      %v943 = vld [vmem:[%s1 + $0x280] sm:$0xff]
      %v944 = vld [vmem:[%s1 + $0x288] sm:$0xff]
      %v945 = vld [vmem:[%s1 + $0x290] sm:$0xff]
      %v946 = vld [vmem:[%s1 + $0x298] sm:$0xff]
      %v947 = vld [vmem:[%s1 + $0x2a0] sm:$0xff]
      %v948 = vld [vmem:[%s1 + $0x2a8] sm:$0xff]
      %v949 = vld [vmem:[%s1 + $0x2b0] sm:$0xff]
      %v950 = vld [vmem:[%s1 + $0x2b8] sm:$0xff]
      %v951 = vld [vmem:[%s1 + $0x2c0] sm:$0xff]
      %v952 = vld [vmem:[%s1 + $0x2c8] sm:$0xff]
      %v953 = vld [vmem:[%s1 + $0x2d0] sm:$0xff]
      %v954 = vld [vmem:[%s1 + $0x2d8] sm:$0xff]
      %v955 = vld [vmem:[%s1 + $0x2e0] sm:$0xff]
      %v956 = vld [vmem:[%s1 + $0x2e8] sm:$0xff]
      %v957 = vld [vmem:[%s1 + $0x2f0] sm:$0xff]
      %v958 = vld [vmem:[%s1 + $0x2f8] sm:$0xff]
      %v959 = vld [vmem:[%s1 + $0x300] sm:$0xff]
      %v960 = vld [vmem:[%s1 + $0x308] sm:$0xff]
      %v961 = vld [vmem:[%s2] sm:$0x1]
      %v963 = vlaneseq
      %v964 = vshrl.u32 %v963, 7
      %v965 = vsub.s32 0, %v964
      %v966 = vrot.slane %v961, %v965
      %vm968 = vcmask 130048
      %v970 = vsel %vm968, %v183, 0
      %v973 = vsel %vm968, %v190, 0
      %v976 = vsel %vm968, %v197, 0
      %v979 = vsel %vm968, %v204, 0
      %v982 = vsel %vm968, %v211, 0
      %v985 = vsel %vm968, %v218, 0
      %v988 = vsel %vm968, %v225, 0
      %v991 = vsel %vm968, %v232, 0
      %v994 = vsel %vm968, %v239, 0
      %v997 = vsel %vm968, %v246, 0
      %v1000 = vsel %vm968, %v253, 0
      %v1003 = vsel %vm968, %v260, 0
      %v1006 = vsel %vm968, %v267, 0
      %v1009 = vsel %vm968, %v274, 0
      %v1012 = vsel %vm968, %v281, 0
      %v1015 = vsel %vm968, %v288, 0
      %v1018 = vsel %vm968, %v295, 0
      %v1021 = vsel %vm968, %v302, 0
      %v1024 = vsel %vm968, %v309, 0
      %v1027 = vsel %vm968, %v316, 0
      %v1030 = vsel %vm968, %v323, 0
      %v1033 = vsel %vm968, %v330, 0
      %v1036 = vsel %vm968, %v337, 0
      %v1039 = vsel %vm968, %v344, 0
      %v1042 = vsel %vm968, %v351, 0
      %v1045 = vsel %vm968, %v358, 0
      %v1048 = vsel %vm968, %v365, 0
      %v1051 = vsel %vm968, %v372, 0
      %v1054 = vsel %vm968, %v379, 0
      %v1057 = vsel %vm968, %v386, 0
      %v1060 = vsel %vm968, %v393, 0
      %v1063 = vsel %vm968, %v400, 0
      %v1066 = vsel %vm968, %v407, 0
      %v1069 = vsel %vm968, %v414, 0
      %v1072 = vsel %vm968, %v421, 0
      %v1075 = vsel %vm968, %v428, 0
      %v1078 = vsel %vm968, %v435, 0
      %v1081 = vsel %vm968, %v442, 0
      %v1084 = vsel %vm968, %v449, 0
      %v1087 = vsel %vm968, %v456, 0
      %v1090 = vsel %vm968, %v463, 0
      %v1093 = vsel %vm968, %v470, 0
      %v1096 = vsel %vm968, %v477, 0
      %v1099 = vsel %vm968, %v484, 0
      %v1102 = vsel %vm968, %v491, 0
      %v1105 = vsel %vm968, %v498, 0
      %v1108 = vsel %vm968, %v505, 0
      %v1111 = vsel %vm968, %v512, 0
      %v1114 = vsel %vm968, %v519, 0
      %v1117 = vsel %vm968, %v526, 0
      %v1120 = vsel %vm968, %v533, 0
      %v1123 = vsel %vm968, %v540, 0
      %v1126 = vsel %vm968, %v547, 0
      %v1129 = vsel %vm968, %v554, 0
      %v1132 = vsel %vm968, %v561, 0
      %v1135 = vsel %vm968, %v568, 0
      %v1138 = vsel %vm968, %v575, 0
      %v1141 = vsel %vm968, %v582, 0
      %v1144 = vsel %vm968, %v589, 0
      %v1147 = vsel %vm968, %v596, 0
      %v1150 = vsel %vm968, %v603, 0
      %v1153 = vsel %vm968, %v610, 0
      %v1156 = vsel %vm968, %v617, 0
      %v1159 = vsel %vm968, %v624, 0
      %v1162 = vsel %vm968, %v631, 0
      %v1165 = vsel %vm968, %v638, 0
      %v1168 = vsel %vm968, %v645, 0
      %v1171 = vsel %vm968, %v652, 0
      %v1174 = vsel %vm968, %v659, 0
      %v1177 = vsel %vm968, %v666, 0
      %v1180 = vsel %vm968, %v673, 0
      %v1183 = vsel %vm968, %v680, 0
      %v1186 = vsel %vm968, %v687, 0
      %v1189 = vsel %vm968, %v694, 0
      %v1192 = vsel %vm968, %v701, 0
      %v1195 = vsel %vm968, %v708, 0
      %v1198 = vsel %vm968, %v715, 0
      %v1201 = vsel %vm968, %v722, 0
      %v1204 = vsel %vm968, %v729, 0
      %v1207 = vsel %vm968, %v736, 0
      %v1210 = vsel %vm968, %v743, 0
      %v1213 = vsel %vm968, %v750, 0
      %v1216 = vsel %vm968, %v757, 0
      %v1219 = vsel %vm968, %v764, 0
      %v1222 = vsel %vm968, %v771, 0
      %v1225 = vsel %vm968, %v778, 0
      %v1228 = vsel %vm968, %v785, 0
      %v1231 = vsel %vm968, %v792, 0
      %v1234 = vsel %vm968, %v799, 0
      %v1237 = vsel %vm968, %v806, 0
      %v1240 = vsel %vm968, %v813, 0
      %v1243 = vsel %vm968, %v820, 0
      %v1246 = vsel %vm968, %v827, 0
      %v1249 = vsel %vm968, %v834, 0
      %v1252 = vsel %vm968, %v841, 0
      %v1255 = vsel %vm968, %v848, 0
      %v1258 = vsel %vm968, %v855, 0
      %v1261 = vsel %vm968, %v862, 0
      %1263 = vmatprep.subr.mxu0 0.0
      %1264 = vmatpush1.msra.mxu0 %v863
      %1265 = vmatprep.subr.mxu0 0.0
      %1266 = vmatpush1.msra.mxu0 %v864
      %1267 = vmatprep.subr.mxu0 0.0
      %1268 = vmatpush1.msra.mxu0 %v865
      %1269 = vmatprep.subr.mxu0 0.0
      %1270 = vmatpush1.msra.mxu0 %v866
      %1271 = vmatprep.subr.mxu0 0.0
      %1272 = vmatpush1.msra.mxu0 %v867
      %1273 = vmatprep.subr.mxu0 0.0
      %1274 = vmatpush1.msra.mxu0 %v868
      %1275 = vmatprep.subr.mxu0 0.0
      %1276 = vmatpush1.msra.mxu0 %v869
      %1277 = vmatprep.subr.mxu0 0.0
      %1278 = vmatpush1.msra.mxu0 %v870
      %1279 = vmatprep.subr.mxu0 0.0
      %1280 = vmatpush1.msra.mxu0 %v871
      %1281 = vmatprep.subr.mxu0 0.0
      %1282 = vmatpush1.msra.mxu0 %v872
      %1283 = vmatprep.subr.mxu0 0.0
      %1284 = vmatpush1.msra.mxu0 %v873
      %1285 = vmatprep.subr.mxu0 0.0
      %1286 = vmatpush1.msra.mxu0 %v874
      %1287 = vmatprep.subr.mxu0 0.0
      %1288 = vmatpush1.msra.mxu0 %v875
      %1289 = vmatprep.subr.mxu0 0.0
      %1290 = vmatpush1.msra.mxu0 %v876
      %1291 = vmatprep.subr.mxu0 0.0
      %1292 = vmatpush1.msra.mxu0 %v877
      %1293 = vmatprep.subr.mxu0 0.0
      %1294 = vmatpush1.msra.mxu0 %v878
      %1295 = vmatprep.subr.mxu0 0.0
      %1296 = vmatpush1.msra.mxu0 %v879
      %1297 = vmatprep.subr.mxu0 0.0
      %1298 = vmatpush1.msra.mxu0 %v880
      %1299 = vmatprep.subr.mxu0 0.0
      %1300 = vmatpush1.msra.mxu0 %v881
      %1301 = vmatprep.subr.mxu0 0.0
      %1302 = vmatpush1.msra.mxu0 %v882
      %1303 = vmatprep.subr.mxu0 0.0
      %1304 = vmatpush1.msra.mxu0 %v883
      %1305 = vmatprep.subr.mxu0 0.0
      %1306 = vmatpush1.msra.mxu0 %v884
      %1307 = vmatprep.subr.mxu0 0.0
      %1308 = vmatpush1.msra.mxu0 %v885
      %1309 = vmatprep.subr.mxu0 0.0
      %1310 = vmatpush1.msra.mxu0 %v886
      %1311 = vmatprep.subr.mxu0 0.0
      %1312 = vmatpush1.msra.mxu0 %v887
      %1313 = vmatprep.subr.mxu0 0.0
      %1314 = vmatpush1.msra.mxu0 %v888
      %1315 = vmatprep.subr.mxu0 0.0
      %1316 = vmatpush1.msra.mxu0 %v889
      %1317 = vmatprep.subr.mxu0 0.0
      %1318 = vmatpush1.msra.mxu0 %v890
      %1319 = vmatprep.subr.mxu0 0.0
      %1320 = vmatpush1.msra.mxu0 %v891
      %1321 = vmatprep.subr.mxu0 0.0
      %1322 = vmatpush1.msra.mxu0 %v892
      %1323 = vmatprep.subr.mxu0 0.0
      %1324 = vmatpush1.msra.mxu0 %v893
      %1325 = vmatprep.subr.mxu0 0.0
      %1326 = vmatpush1.msra.mxu0 %v894
      %1327 = vmatprep.mubr.f32.mxu0 %v178
      %1328 = vmatmul.mubr.f32.gmra.mrb[0].mxu0 %v177
      %v1329 = vpop.f32.mrb[0].mxu0
      %v1330 = vadd.f32 %v966, %v1329
      %v1331 = vpop.f32.mrb[0].mxu0
      %1332 = vmatprep.mubr.f32.mxu0 %v185
      %1333 = vmatmul.mubr.f32.gmra.mrb[0].mxu0 %v184
      %v1334 = vpop.f32.mrb[0].mxu0
      %v1335 = vadd.f32 %v966, %v1334
      %v1336 = vpop.f32.mrb[0].mxu0
      %1337 = vmatprep.mubr.f32.mxu0 %v192
      %1338 = vmatmul.mubr.f32.gmra.mrb[0].mxu0 %v191
      %v1339 = vpop.f32.mrb[0].mxu0
      %v1340 = vadd.f32 %v966, %v1339
      %v1341 = vpop.f32.mrb[0].mxu0
      %1342 = vmatprep.mubr.f32.mxu0 %v199
      %1343 = vmatmul.mubr.f32.gmra.mrb[0].mxu0 %v198
      %v1344 = vpop.f32.mrb[0].mxu0
      %v1345 = vadd.f32 %v966, %v1344
      %v1346 = vpop.f32.mrb[0].mxu0
      %1347 = vmatprep.mubr.f32.mxu0 %v206
      %1348 = vmatmul.mubr.f32.gmra.mrb[0].mxu0 %v205
      %v1349 = vpop.f32.mrb[0].mxu0
      %v1350 = vadd.f32 %v966, %v1349
      %v1351 = vpop.f32.mrb[0].mxu0
      %1352 = vmatprep.mubr.f32.mxu0 %v213
      %1353 = vmatmul.mubr.f32.gmra.mrb[0].mxu0 %v212
      %v1354 = vpop.f32.mrb[0].mxu0
      %v1355 = vadd.f32 %v966, %v1354
      %v1356 = vpop.f32.mrb[0].mxu0
      %1357 = vmatprep.mubr.f32.mxu0 %v220
      %1358 = vmatmul.mubr.f32.gmra.mrb[0].mxu0 %v219
      %v1359 = vpop.f32.mrb[0].mxu0
      %v1360 = vadd.f32 %v966, %v1359
      %v1361 = vpop.f32.mrb[0].mxu0
      %1362 = vmatprep.mubr.f32.mxu0 %v227
      %1363 = vmatmul.mubr.f32.gmra.mrb[0].mxu0 %v226
      %v1364 = vpop.f32.mrb[0].mxu0
      %v1365 = vadd.f32 %v966, %v1364
      %v1366 = vpop.f32.mrb[0].mxu0
      %1367 = vmatprep.mubr.f32.mxu0 %v234
      %1368 = vmatmul.mubr.f32.gmra.mrb[0].mxu0 %v233
      %v1369 = vpop.f32.mrb[0].mxu0
      %v1370 = vadd.f32 %v966, %v1369
      %v1371 = vpop.f32.mrb[0].mxu0
      %1372 = vmatprep.mubr.f32.mxu0 %v241
      %1373 = vmatmul.mubr.f32.gmra.mrb[0].mxu0 %v240
      %v1374 = vpop.f32.mrb[0].mxu0
      %v1375 = vadd.f32 %v966, %v1374
      %v1376 = vpop.f32.mrb[0].mxu0
      %1377 = vmatprep.mubr.f32.mxu0 %v248
      %1378 = vmatmul.mubr.f32.gmra.mrb[0].mxu0 %v247
      %v1379 = vpop.f32.mrb[0].mxu0
      %v1380 = vadd.f32 %v966, %v1379
      %v1381 = vpop.f32.mrb[0].mxu0
      %1382 = vmatprep.mubr.f32.mxu0 %v255
      %1383 = vmatmul.mubr.f32.gmra.mrb[0].mxu0 %v254
      %v1384 = vpop.f32.mrb[0].mxu0
      %v1385 = vadd.f32 %v966, %v1384
      %v1386 = vpop.f32.mrb[0].mxu0
      %1387 = vmatprep.mubr.f32.mxu0 %v262
      %1388 = vmatmul.mubr.f32.gmra.mrb[0].mxu0 %v261
      %v1389 = vpop.f32.mrb[0].mxu0
      %v1390 = vadd.f32 %v966, %v1389
      %v1391 = vpop.f32.mrb[0].mxu0
      %1392 = vmatprep.mubr.f32.mxu0 %v269
      %1393 = vmatmul.mubr.f32.gmra.mrb[0].mxu0 %v268
      %v1394 = vpop.f32.mrb[0].mxu0
      %v1395 = vadd.f32 %v966, %v1394
      %v1396 = vpop.f32.mrb[0].mxu0
      %1397 = vmatprep.mubr.f32.mxu0 %v276
      %1398 = vmatmul.mubr.f32.gmra.mrb[0].mxu0 %v275
      %v1399 = vpop.f32.mrb[0].mxu0
      %v1400 = vadd.f32 %v966, %v1399
      %v1401 = vpop.f32.mrb[0].mxu0
      %1402 = vmatprep.mubr.f32.mxu0 %v283
      %1403 = vmatmul.mubr.f32.gmra.mrb[0].mxu0 %v282
      %v1404 = vpop.f32.mrb[0].mxu0
      %v1405 = vadd.f32 %v966, %v1404
      %v1406 = vpop.f32.mrb[0].mxu0
      %1407 = vmatprep.mubr.f32.mxu0 %v290
      %1408 = vmatmul.mubr.f32.gmra.mrb[0].mxu0 %v289
      %v1409 = vpop.f32.mrb[0].mxu0
      %v1410 = vadd.f32 %v966, %v1409
      %v1411 = vpop.f32.mrb[0].mxu0
      %1412 = vmatprep.mubr.f32.mxu0 %v297
      %1413 = vmatmul.mubr.f32.gmra.mrb[0].mxu0 %v296
      %v1414 = vpop.f32.mrb[0].mxu0
      %v1415 = vadd.f32 %v966, %v1414
      %v1416 = vpop.f32.mrb[0].mxu0
      %1417 = vmatprep.mubr.f32.mxu0 %v304
      %1418 = vmatmul.mubr.f32.gmra.mrb[0].mxu0 %v303
      %v1419 = vpop.f32.mrb[0].mxu0
      %v1420 = vadd.f32 %v966, %v1419
      %v1421 = vpop.f32.mrb[0].mxu0
      %1422 = vmatprep.mubr.f32.mxu0 %v311
      %1423 = vmatmul.mubr.f32.gmra.mrb[0].mxu0 %v310
      %v1424 = vpop.f32.mrb[0].mxu0
      %v1425 = vadd.f32 %v966, %v1424
      %v1426 = vpop.f32.mrb[0].mxu0
      %1427 = vmatprep.mubr.f32.mxu0 %v318
      %1428 = vmatmul.mubr.f32.gmra.mrb[0].mxu0 %v317
      %v1429 = vpop.f32.mrb[0].mxu0
      %v1430 = vadd.f32 %v966, %v1429
      %v1431 = vpop.f32.mrb[0].mxu0
      %1432 = vmatprep.mubr.f32.mxu0 %v325
      %1433 = vmatmul.mubr.f32.gmra.mrb[0].mxu0 %v324
      %v1434 = vpop.f32.mrb[0].mxu0
      %v1435 = vadd.f32 %v966, %v1434
      %v1436 = vpop.f32.mrb[0].mxu0
      %1437 = vmatprep.mubr.f32.mxu0 %v332
      %1438 = vmatmul.mubr.f32.gmra.mrb[0].mxu0 %v331
      %v1439 = vpop.f32.mrb[0].mxu0
      %v1440 = vadd.f32 %v966, %v1439
      %v1441 = vpop.f32.mrb[0].mxu0
      %1442 = vmatprep.mubr.f32.mxu0 %v339
      %1443 = vmatmul.mubr.f32.gmra.mrb[0].mxu0 %v338
      %v1444 = vpop.f32.mrb[0].mxu0
      %v1445 = vadd.f32 %v966, %v1444
      %v1446 = vpop.f32.mrb[0].mxu0
      %1447 = vmatprep.mubr.f32.mxu0 %v346
      %1448 = vmatmul.mubr.f32.gmra.mrb[0].mxu0 %v345
      %v1449 = vpop.f32.mrb[0].mxu0
      %v1450 = vadd.f32 %v966, %v1449
      %v1451 = vpop.f32.mrb[0].mxu0
      %1452 = vmatprep.mubr.f32.mxu0 %v353
      %1453 = vmatmul.mubr.f32.gmra.mrb[0].mxu0 %v352
      %v1454 = vpop.f32.mrb[0].mxu0
      %v1455 = vadd.f32 %v966, %v1454
      %v1456 = vpop.f32.mrb[0].mxu0
      %1457 = vmatprep.mubr.f32.mxu0 %v360
      %1458 = vmatmul.mubr.f32.gmra.mrb[0].mxu0 %v359
      %v1459 = vpop.f32.mrb[0].mxu0
      %v1460 = vadd.f32 %v966, %v1459
      %v1461 = vpop.f32.mrb[0].mxu0
      %1462 = vmatprep.mubr.f32.mxu0 %v367
      %1463 = vmatmul.mubr.f32.gmra.mrb[0].mxu0 %v366
      %v1464 = vpop.f32.mrb[0].mxu0
      %v1465 = vadd.f32 %v966, %v1464
      %v1466 = vpop.f32.mrb[0].mxu0
      %1467 = vmatprep.mubr.f32.mxu0 %v374
      %1468 = vmatmul.mubr.f32.gmra.mrb[0].mxu0 %v373
      %v1469 = vpop.f32.mrb[0].mxu0
      %v1470 = vadd.f32 %v966, %v1469
      %v1471 = vpop.f32.mrb[0].mxu0
      %1472 = vmatprep.mubr.f32.mxu0 %v381
      %1473 = vmatmul.mubr.f32.gmra.mrb[0].mxu0 %v380
      %v1474 = vpop.f32.mrb[0].mxu0
      %v1475 = vadd.f32 %v966, %v1474
      %v1476 = vpop.f32.mrb[0].mxu0
      %1477 = vmatprep.mubr.f32.mxu0 %v388
      %1478 = vmatmul.mubr.f32.gmra.mrb[0].mxu0 %v387
      %v1479 = vpop.f32.mrb[0].mxu0
      %v1480 = vadd.f32 %v966, %v1479
      %v1481 = vpop.f32.mrb[0].mxu0
      %1482 = vmatprep.mubr.f32.mxu0 %v395
      %1483 = vmatmul.mubr.f32.gmra.mrb[0].mxu0 %v394
      %v1484 = vpop.f32.mrb[0].mxu0
      %v1485 = vadd.f32 %v966, %v1484
      %v1486 = vpop.f32.mrb[0].mxu0
      %1487 = vmatprep.mubr.f32.mxu0 %v402
      %1488 = vmatmul.mubr.f32.gmra.mrb[0].mxu0 %v401
      %v1489 = vpop.f32.mrb[0].mxu0
      %v1490 = vadd.f32 %v966, %v1489
      %v1491 = vpop.f32.mrb[0].mxu0
      %1492 = vmatprep.mubr.f32.mxu0 %v409
      %1493 = vmatmul.mubr.f32.gmra.mrb[0].mxu0 %v408
      %v1494 = vpop.f32.mrb[0].mxu0
      %v1495 = vadd.f32 %v966, %v1494
      %v1496 = vpop.f32.mrb[0].mxu0
      %1497 = vmatprep.mubr.f32.mxu0 %v416
      %1498 = vmatmul.mubr.f32.gmra.mrb[0].mxu0 %v415
      %v1499 = vpop.f32.mrb[0].mxu0
      %v1500 = vadd.f32 %v966, %v1499
      %v1501 = vpop.f32.mrb[0].mxu0
      %1502 = vmatprep.mubr.f32.mxu0 %v423
      %1503 = vmatmul.mubr.f32.gmra.mrb[0].mxu0 %v422
      %v1504 = vpop.f32.mrb[0].mxu0
      %v1505 = vadd.f32 %v966, %v1504
      %v1506 = vpop.f32.mrb[0].mxu0
      %1507 = vmatprep.mubr.f32.mxu0 %v430
      %1508 = vmatmul.mubr.f32.gmra.mrb[0].mxu0 %v429
      %v1509 = vpop.f32.mrb[0].mxu0
      %v1510 = vadd.f32 %v966, %v1509
      %v1511 = vpop.f32.mrb[0].mxu0
      %1512 = vmatprep.mubr.f32.mxu0 %v437
      %1513 = vmatmul.mubr.f32.gmra.mrb[0].mxu0 %v436
      %v1514 = vpop.f32.mrb[0].mxu0
      %v1515 = vadd.f32 %v966, %v1514
      %v1516 = vpop.f32.mrb[0].mxu0
      %1517 = vmatprep.mubr.f32.mxu0 %v444
      %1518 = vmatmul.mubr.f32.gmra.mrb[0].mxu0 %v443
      %v1519 = vpop.f32.mrb[0].mxu0
      %v1520 = vadd.f32 %v966, %v1519
      %v1521 = vpop.f32.mrb[0].mxu0
      %1522 = vmatprep.mubr.f32.mxu0 %v451
      %1523 = vmatmul.mubr.f32.gmra.mrb[0].mxu0 %v450
      %v1524 = vpop.f32.mrb[0].mxu0
      %v1525 = vadd.f32 %v966, %v1524
      %v1526 = vpop.f32.mrb[0].mxu0
      %1527 = vmatprep.mubr.f32.mxu0 %v458
      %1528 = vmatmul.mubr.f32.gmra.mrb[0].mxu0 %v457
      %v1529 = vpop.f32.mrb[0].mxu0
      %v1530 = vadd.f32 %v966, %v1529
      %v1531 = vpop.f32.mrb[0].mxu0
      %1532 = vmatprep.mubr.f32.mxu0 %v465
      %1533 = vmatmul.mubr.f32.gmra.mrb[0].mxu0 %v464
      %v1534 = vpop.f32.mrb[0].mxu0
      %v1535 = vadd.f32 %v966, %v1534
      %v1536 = vpop.f32.mrb[0].mxu0
      %1537 = vmatprep.mubr.f32.mxu0 %v472
      %1538 = vmatmul.mubr.f32.gmra.mrb[0].mxu0 %v471
      %v1539 = vpop.f32.mrb[0].mxu0
      %v1540 = vadd.f32 %v966, %v1539
      %v1541 = vpop.f32.mrb[0].mxu0
      %1542 = vmatprep.mubr.f32.mxu0 %v479
      %1543 = vmatmul.mubr.f32.gmra.mrb[0].mxu0 %v478
      %v1544 = vpop.f32.mrb[0].mxu0
      %v1545 = vadd.f32 %v966, %v1544
      %v1546 = vpop.f32.mrb[0].mxu0
      %1547 = vmatprep.mubr.f32.mxu0 %v486
      %1548 = vmatmul.mubr.f32.gmra.mrb[0].mxu0 %v485
      %v1549 = vpop.f32.mrb[0].mxu0
      %v1550 = vadd.f32 %v966, %v1549
      %v1551 = vpop.f32.mrb[0].mxu0
      %1552 = vmatprep.mubr.f32.mxu0 %v493
      %1553 = vmatmul.mubr.f32.gmra.mrb[0].mxu0 %v492
      %v1554 = vpop.f32.mrb[0].mxu0
      %v1555 = vadd.f32 %v966, %v1554
      %v1556 = vpop.f32.mrb[0].mxu0
      %1557 = vmatprep.mubr.f32.mxu0 %v500
      %1558 = vmatmul.mubr.f32.gmra.mrb[0].mxu0 %v499
      %v1559 = vpop.f32.mrb[0].mxu0
      %v1560 = vadd.f32 %v966, %v1559
      %v1561 = vpop.f32.mrb[0].mxu0
      %1562 = vmatprep.mubr.f32.mxu0 %v507
      %1563 = vmatmul.mubr.f32.gmra.mrb[0].mxu0 %v506
      %v1564 = vpop.f32.mrb[0].mxu0
      %v1565 = vadd.f32 %v966, %v1564
      %v1566 = vpop.f32.mrb[0].mxu0
      %1567 = vmatprep.mubr.f32.mxu0 %v514
      %1568 = vmatmul.mubr.f32.gmra.mrb[0].mxu0 %v513
      %v1569 = vpop.f32.mrb[0].mxu0
      %v1570 = vadd.f32 %v966, %v1569
      %v1571 = vpop.f32.mrb[0].mxu0
      %1572 = vmatprep.mubr.f32.mxu0 %v521
      %1573 = vmatmul.mubr.f32.gmra.mrb[0].mxu0 %v520
      %v1574 = vpop.f32.mrb[0].mxu0
      %v1575 = vadd.f32 %v966, %v1574
      %v1576 = vpop.f32.mrb[0].mxu0
      %1577 = vmatprep.mubr.f32.mxu0 %v528
      %1578 = vmatmul.mubr.f32.gmra.mrb[0].mxu0 %v527
      %v1579 = vpop.f32.mrb[0].mxu0
      %v1580 = vadd.f32 %v966, %v1579
      %v1581 = vpop.f32.mrb[0].mxu0
      %1582 = vmatprep.mubr.f32.mxu0 %v535
      %1583 = vmatmul.mubr.f32.gmra.mrb[0].mxu0 %v534
      %v1584 = vpop.f32.mrb[0].mxu0
      %v1585 = vadd.f32 %v966, %v1584
      %v1586 = vpop.f32.mrb[0].mxu0
      %1587 = vmatprep.mubr.f32.mxu0 %v542
      %1588 = vmatmul.mubr.f32.gmra.mrb[0].mxu0 %v541
      %v1589 = vpop.f32.mrb[0].mxu0
      %v1590 = vadd.f32 %v966, %v1589
      %v1591 = vpop.f32.mrb[0].mxu0
      %1592 = vmatprep.mubr.f32.mxu0 %v549
      %1593 = vmatmul.mubr.f32.gmra.mrb[0].mxu0 %v548
      %v1594 = vpop.f32.mrb[0].mxu0
      %v1595 = vadd.f32 %v966, %v1594
      %v1596 = vpop.f32.mrb[0].mxu0
      %1597 = vmatprep.mubr.f32.mxu0 %v556
      %1598 = vmatmul.mubr.f32.gmra.mrb[0].mxu0 %v555
      %v1599 = vpop.f32.mrb[0].mxu0
      %v1600 = vadd.f32 %v966, %v1599
      %v1601 = vpop.f32.mrb[0].mxu0
      %1602 = vmatprep.mubr.f32.mxu0 %v563
      %1603 = vmatmul.mubr.f32.gmra.mrb[0].mxu0 %v562
      %v1604 = vpop.f32.mrb[0].mxu0
      %v1605 = vadd.f32 %v966, %v1604
      %v1606 = vpop.f32.mrb[0].mxu0
      %1607 = vmatprep.mubr.f32.mxu0 %v570
      %1608 = vmatmul.mubr.f32.gmra.mrb[0].mxu0 %v569
      %v1609 = vpop.f32.mrb[0].mxu0
      %v1610 = vadd.f32 %v966, %v1609
      %v1611 = vpop.f32.mrb[0].mxu0
      %1612 = vmatprep.mubr.f32.mxu0 %v577
      %1613 = vmatmul.mubr.f32.gmra.mrb[0].mxu0 %v576
      %v1614 = vpop.f32.mrb[0].mxu0
      %v1615 = vadd.f32 %v966, %v1614
      %v1616 = vpop.f32.mrb[0].mxu0
      %1617 = vmatprep.mubr.f32.mxu0 %v584
      %1618 = vmatmul.mubr.f32.gmra.mrb[0].mxu0 %v583
      %v1619 = vpop.f32.mrb[0].mxu0
      %v1620 = vadd.f32 %v966, %v1619
      %v1621 = vpop.f32.mrb[0].mxu0
      %1622 = vmatprep.mubr.f32.mxu0 %v591
      %1623 = vmatmul.mubr.f32.gmra.mrb[0].mxu0 %v590
      %v1624 = vpop.f32.mrb[0].mxu0
      %v1625 = vadd.f32 %v966, %v1624
      %v1626 = vpop.f32.mrb[0].mxu0
      %1627 = vmatprep.mubr.f32.mxu0 %v598
      %1628 = vmatmul.mubr.f32.gmra.mrb[0].mxu0 %v597
      %v1629 = vpop.f32.mrb[0].mxu0
      %v1630 = vadd.f32 %v966, %v1629
      %v1631 = vpop.f32.mrb[0].mxu0
      %1632 = vmatprep.mubr.f32.mxu0 %v605
      %1633 = vmatmul.mubr.f32.gmra.mrb[0].mxu0 %v604
      %v1634 = vpop.f32.mrb[0].mxu0
      %v1635 = vadd.f32 %v966, %v1634
      %v1636 = vpop.f32.mrb[0].mxu0
      %1637 = vmatprep.mubr.f32.mxu0 %v612
      %1638 = vmatmul.mubr.f32.gmra.mrb[0].mxu0 %v611
      %v1639 = vpop.f32.mrb[0].mxu0
      %v1640 = vadd.f32 %v966, %v1639
      %v1641 = vpop.f32.mrb[0].mxu0
      %1642 = vmatprep.mubr.f32.mxu0 %v619
      %1643 = vmatmul.mubr.f32.gmra.mrb[0].mxu0 %v618
      %v1644 = vpop.f32.mrb[0].mxu0
      %v1645 = vadd.f32 %v966, %v1644
      %v1646 = vpop.f32.mrb[0].mxu0
      %1647 = vmatprep.mubr.f32.mxu0 %v626
      %1648 = vmatmul.mubr.f32.gmra.mrb[0].mxu0 %v625
      %v1649 = vpop.f32.mrb[0].mxu0
      %v1650 = vadd.f32 %v966, %v1649
      %v1651 = vpop.f32.mrb[0].mxu0
      %1652 = vmatprep.mubr.f32.mxu0 %v633
      %1653 = vmatmul.mubr.f32.gmra.mrb[0].mxu0 %v632
      %v1654 = vpop.f32.mrb[0].mxu0
      %v1655 = vadd.f32 %v966, %v1654
      %v1656 = vpop.f32.mrb[0].mxu0
      %1657 = vmatprep.mubr.f32.mxu0 %v640
      %1658 = vmatmul.mubr.f32.gmra.mrb[0].mxu0 %v639
      %v1659 = vpop.f32.mrb[0].mxu0
      %v1660 = vadd.f32 %v966, %v1659
      %v1661 = vpop.f32.mrb[0].mxu0
      %1662 = vmatprep.mubr.f32.mxu0 %v647
      %1663 = vmatmul.mubr.f32.gmra.mrb[0].mxu0 %v646
      %v1664 = vpop.f32.mrb[0].mxu0
      %v1665 = vadd.f32 %v966, %v1664
      %v1666 = vpop.f32.mrb[0].mxu0
      %1667 = vmatprep.mubr.f32.mxu0 %v654
      %1668 = vmatmul.mubr.f32.gmra.mrb[0].mxu0 %v653
      %v1669 = vpop.f32.mrb[0].mxu0
      %v1670 = vadd.f32 %v966, %v1669
      %v1671 = vpop.f32.mrb[0].mxu0
      %1672 = vmatprep.mubr.f32.mxu0 %v661
      %1673 = vmatmul.mubr.f32.gmra.mrb[0].mxu0 %v660
      %v1674 = vpop.f32.mrb[0].mxu0
      %v1675 = vadd.f32 %v966, %v1674
      %v1676 = vpop.f32.mrb[0].mxu0
      %1677 = vmatprep.mubr.f32.mxu0 %v668
      %1678 = vmatmul.mubr.f32.gmra.mrb[0].mxu0 %v667
      %v1679 = vpop.f32.mrb[0].mxu0
      %v1680 = vadd.f32 %v966, %v1679
      %v1681 = vpop.f32.mrb[0].mxu0
      %1682 = vmatprep.mubr.f32.mxu0 %v675
      %1683 = vmatmul.mubr.f32.gmra.mrb[0].mxu0 %v674
      %v1684 = vpop.f32.mrb[0].mxu0
      %v1685 = vadd.f32 %v966, %v1684
      %v1686 = vpop.f32.mrb[0].mxu0
      %1687 = vmatprep.mubr.f32.mxu0 %v682
      %1688 = vmatmul.mubr.f32.gmra.mrb[0].mxu0 %v681
      %v1689 = vpop.f32.mrb[0].mxu0
      %v1690 = vadd.f32 %v966, %v1689
      %v1691 = vpop.f32.mrb[0].mxu0
      %1692 = vmatprep.mubr.f32.mxu0 %v689
      %1693 = vmatmul.mubr.f32.gmra.mrb[0].mxu0 %v688
      %v1694 = vpop.f32.mrb[0].mxu0
      %v1695 = vadd.f32 %v966, %v1694
      %v1696 = vpop.f32.mrb[0].mxu0
      %1697 = vmatprep.mubr.f32.mxu0 %v696
      %1698 = vmatmul.mubr.f32.gmra.mrb[0].mxu0 %v695
      %v1699 = vpop.f32.mrb[0].mxu0
      %v1700 = vadd.f32 %v966, %v1699
      %v1701 = vpop.f32.mrb[0].mxu0
      %1702 = vmatprep.mubr.f32.mxu0 %v703
      %1703 = vmatmul.mubr.f32.gmra.mrb[0].mxu0 %v702
      %v1704 = vpop.f32.mrb[0].mxu0
      %v1705 = vadd.f32 %v966, %v1704
      %v1706 = vpop.f32.mrb[0].mxu0
      %1707 = vmatprep.mubr.f32.mxu0 %v710
      %1708 = vmatmul.mubr.f32.gmra.mrb[0].mxu0 %v709
      %v1709 = vpop.f32.mrb[0].mxu0
      %v1710 = vadd.f32 %v966, %v1709
      %v1711 = vpop.f32.mrb[0].mxu0
      %1712 = vmatprep.mubr.f32.mxu0 %v717
      %1713 = vmatmul.mubr.f32.gmra.mrb[0].mxu0 %v716
      %v1714 = vpop.f32.mrb[0].mxu0
      %v1715 = vadd.f32 %v966, %v1714
      %v1716 = vpop.f32.mrb[0].mxu0
      %1717 = vmatprep.mubr.f32.mxu0 %v724
      %1718 = vmatmul.mubr.f32.gmra.mrb[0].mxu0 %v723
      %v1719 = vpop.f32.mrb[0].mxu0
      %v1720 = vadd.f32 %v966, %v1719
      %v1721 = vpop.f32.mrb[0].mxu0
      %1722 = vmatprep.mubr.f32.mxu0 %v731
      %1723 = vmatmul.mubr.f32.gmra.mrb[0].mxu0 %v730
      %v1724 = vpop.f32.mrb[0].mxu0
      %v1725 = vadd.f32 %v966, %v1724
      %v1726 = vpop.f32.mrb[0].mxu0
      %1727 = vmatprep.mubr.f32.mxu0 %v738
      %1728 = vmatmul.mubr.f32.gmra.mrb[0].mxu0 %v737
      %v1729 = vpop.f32.mrb[0].mxu0
      %v1730 = vadd.f32 %v966, %v1729
      %v1731 = vpop.f32.mrb[0].mxu0
      %1732 = vmatprep.mubr.f32.mxu0 %v745
      %1733 = vmatmul.mubr.f32.gmra.mrb[0].mxu0 %v744
      %v1734 = vpop.f32.mrb[0].mxu0
      %v1735 = vadd.f32 %v966, %v1734
      %v1736 = vpop.f32.mrb[0].mxu0
      %1737 = vmatprep.mubr.f32.mxu0 %v752
      %1738 = vmatmul.mubr.f32.gmra.mrb[0].mxu0 %v751
      %v1739 = vpop.f32.mrb[0].mxu0
      %v1740 = vadd.f32 %v966, %v1739
      %v1741 = vpop.f32.mrb[0].mxu0
      %1742 = vmatprep.mubr.f32.mxu0 %v759
      %1743 = vmatmul.mubr.f32.gmra.mrb[0].mxu0 %v758
      %v1744 = vpop.f32.mrb[0].mxu0
      %v1745 = vadd.f32 %v966, %v1744
      %v1746 = vpop.f32.mrb[0].mxu0
      %1747 = vmatprep.mubr.f32.mxu0 %v766
      %1748 = vmatmul.mubr.f32.gmra.mrb[0].mxu0 %v765
      %v1749 = vpop.f32.mrb[0].mxu0
      %v1750 = vadd.f32 %v966, %v1749
      %v1751 = vpop.f32.mrb[0].mxu0
      %1752 = vmatprep.mubr.f32.mxu0 %v773
      %1753 = vmatmul.mubr.f32.gmra.mrb[0].mxu0 %v772
      %v1754 = vpop.f32.mrb[0].mxu0
      %v1755 = vadd.f32 %v966, %v1754
      %v1756 = vpop.f32.mrb[0].mxu0
      %1757 = vmatprep.mubr.f32.mxu0 %v780
      %1758 = vmatmul.mubr.f32.gmra.mrb[0].mxu0 %v779
      %v1759 = vpop.f32.mrb[0].mxu0
      %v1760 = vadd.f32 %v966, %v1759
      %v1761 = vpop.f32.mrb[0].mxu0
      %1762 = vmatprep.mubr.f32.mxu0 %v787
      %1763 = vmatmul.mubr.f32.gmra.mrb[0].mxu0 %v786
      %v1764 = vpop.f32.mrb[0].mxu0
      %v1765 = vadd.f32 %v966, %v1764
      %v1766 = vpop.f32.mrb[0].mxu0
      %1767 = vmatprep.mubr.f32.mxu0 %v794
      %1768 = vmatmul.mubr.f32.gmra.mrb[0].mxu0 %v793
      %v1769 = vpop.f32.mrb[0].mxu0
      %v1770 = vadd.f32 %v966, %v1769
      %v1771 = vpop.f32.mrb[0].mxu0
      %1772 = vmatprep.mubr.f32.mxu0 %v801
      %1773 = vmatmul.mubr.f32.gmra.mrb[0].mxu0 %v800
      %v1774 = vpop.f32.mrb[0].mxu0
      %v1775 = vadd.f32 %v966, %v1774
      %v1776 = vpop.f32.mrb[0].mxu0
      %1777 = vmatprep.mubr.f32.mxu0 %v808
      %1778 = vmatmul.mubr.f32.gmra.mrb[0].mxu0 %v807
      %v1779 = vpop.f32.mrb[0].mxu0
      %v1780 = vadd.f32 %v966, %v1779
      %v1781 = vpop.f32.mrb[0].mxu0
      %1782 = vmatprep.mubr.f32.mxu0 %v815
      %1783 = vmatmul.mubr.f32.gmra.mrb[0].mxu0 %v814
      %v1784 = vpop.f32.mrb[0].mxu0
      %v1785 = vadd.f32 %v966, %v1784
      %v1786 = vpop.f32.mrb[0].mxu0
      %1787 = vmatprep.mubr.f32.mxu0 %v822
      %1788 = vmatmul.mubr.f32.gmra.mrb[0].mxu0 %v821
      %v1789 = vpop.f32.mrb[0].mxu0
      %v1790 = vadd.f32 %v966, %v1789
      %v1791 = vpop.f32.mrb[0].mxu0
      %1792 = vmatprep.mubr.f32.mxu0 %v829
      %1793 = vmatmul.mubr.f32.gmra.mrb[0].mxu0 %v828
      %v1794 = vpop.f32.mrb[0].mxu0
      %v1795 = vadd.f32 %v966, %v1794
      %v1796 = vpop.f32.mrb[0].mxu0
      %1797 = vmatprep.mubr.f32.mxu0 %v836
      %1798 = vmatmul.mubr.f32.gmra.mrb[0].mxu0 %v835
      %v1799 = vpop.f32.mrb[0].mxu0
      %v1800 = vadd.f32 %v966, %v1799
      %v1801 = vpop.f32.mrb[0].mxu0
      %1802 = vmatprep.mubr.f32.mxu0 %v843
      %1803 = vmatmul.mubr.f32.gmra.mrb[0].mxu0 %v842
      %v1804 = vpop.f32.mrb[0].mxu0
      %v1805 = vadd.f32 %v966, %v1804
      %v1806 = vpop.f32.mrb[0].mxu0
      %1807 = vmatprep.mubr.f32.mxu0 %v850
      %1808 = vmatmul.mubr.f32.gmra.mrb[0].mxu0 %v849
      %v1809 = vpop.f32.mrb[0].mxu0
      %v1810 = vadd.f32 %v966, %v1809
      %v1811 = vpop.f32.mrb[0].mxu0
      %1812 = vmatprep.mubr.f32.mxu0 %v857
      %1813 = vmatmul.mubr.f32.gmra.mrb[0].mxu0 %v856
      %v1814 = vpop.f32.mrb[0].mxu0
      %v1815 = vadd.f32 %v966, %v1814
      %v1816 = vpop.f32.mrb[0].mxu0
      %1817 = vdwg.mxu0
      %1818 = vmatprep.subr.mxu0 0.0
      %1819 = vmatpush1.msra.mxu0 %v895
      %1820 = vmatprep.subr.mxu0 0.0
      %1821 = vmatpush1.msra.mxu0 %v896
      %1822 = vmatprep.subr.mxu0 0.0
      %1823 = vmatpush1.msra.mxu0 %v897
      %1824 = vmatprep.subr.mxu0 0.0
      %1825 = vmatpush1.msra.mxu0 %v898
      %1826 = vmatprep.subr.mxu0 0.0
      %1827 = vmatpush1.msra.mxu0 %v899
      %1828 = vmatprep.subr.mxu0 0.0
      %1829 = vmatpush1.msra.mxu0 %v900
      %1830 = vmatprep.subr.mxu0 0.0
      %1831 = vmatpush1.msra.mxu0 %v901
      %1832 = vmatprep.subr.mxu0 0.0
      %1833 = vmatpush1.msra.mxu0 %v902
      %1834 = vmatprep.subr.mxu0 0.0
      %1835 = vmatpush1.msra.mxu0 %v903
      %1836 = vmatprep.subr.mxu0 0.0
      %1837 = vmatpush1.msra.mxu0 %v904
      %1838 = vmatprep.subr.mxu0 0.0
      %1839 = vmatpush1.msra.mxu0 %v905
      %1840 = vmatprep.subr.mxu0 0.0
      %1841 = vmatpush1.msra.mxu0 %v906
      %1842 = vmatprep.subr.mxu0 0.0
      %1843 = vmatpush1.msra.mxu0 %v907
      %1844 = vmatprep.subr.mxu0 0.0
      %1845 = vmatpush1.msra.mxu0 %v908
      %1846 = vmatprep.subr.mxu0 0.0
      %1847 = vmatpush1.msra.mxu0 %v909
      %1848 = vmatprep.subr.mxu0 0.0
      %1849 = vmatpush1.msra.mxu0 %v910
      %1850 = vmatprep.subr.mxu0 0.0
      %1851 = vmatpush1.msra.mxu0 %v911
      %1852 = vmatprep.subr.mxu0 0.0
      %1853 = vmatpush1.msra.mxu0 %v912
      %1854 = vmatprep.subr.mxu0 0.0
      %1855 = vmatpush1.msra.mxu0 %v913
      %1856 = vmatprep.subr.mxu0 0.0
      %1857 = vmatpush1.msra.mxu0 %v914
      %1858 = vmatprep.subr.mxu0 0.0
      %1859 = vmatpush1.msra.mxu0 %v915
      %1860 = vmatprep.subr.mxu0 0.0
      %1861 = vmatpush1.msra.mxu0 %v916
      %1862 = vmatprep.subr.mxu0 0.0
      %1863 = vmatpush1.msra.mxu0 %v917
      %1864 = vmatprep.subr.mxu0 0.0
      %1865 = vmatpush1.msra.mxu0 %v918
      %1866 = vmatprep.subr.mxu0 0.0
      %1867 = vmatpush1.msra.mxu0 %v919
      %1868 = vmatprep.subr.mxu0 0.0
      %1869 = vmatpush1.msra.mxu0 %v920
      %1870 = vmatprep.subr.mxu0 0.0
      %1871 = vmatpush1.msra.mxu0 %v921
      %1872 = vmatprep.subr.mxu0 0.0
      %1873 = vmatpush1.msra.mxu0 %v922
      %1874 = vmatprep.subr.mxu0 0.0
      %1875 = vmatpush1.msra.mxu0 %v923
      %1876 = vmatprep.subr.mxu0 0.0
      %1877 = vmatpush1.msra.mxu0 %v924
      %1878 = vmatprep.subr.mxu0 0.0
      %1879 = vmatpush1.msra.mxu0 %v925
      %1880 = vmatprep.subr.mxu0 0.0
      %1881 = vmatpush1.msra.mxu0 %v926
      %1882 = vmatprep.mubr.f32.mxu0 %v180
      %1883 = vmatmul.mubr.f32.gmra.mrb[0].mxu0 %v179
      %v1884 = vpop.f32.mrb[0].mxu0
      %v1885 = vadd.f32 %v1330, %v1884
      %v1886 = vpop.f32.mrb[0].mxu0
      %1887 = vmatprep.mubr.f32.mxu0 %v187
      %1888 = vmatmul.mubr.f32.gmra.mrb[0].mxu0 %v186
      %v1889 = vpop.f32.mrb[0].mxu0
      %v1890 = vadd.f32 %v1335, %v1889
      %v1891 = vpop.f32.mrb[0].mxu0
      %1892 = vmatprep.mubr.f32.mxu0 %v194
      %1893 = vmatmul.mubr.f32.gmra.mrb[0].mxu0 %v193
      %v1894 = vpop.f32.mrb[0].mxu0
      %v1895 = vadd.f32 %v1340, %v1894
      %v1896 = vpop.f32.mrb[0].mxu0
      %1897 = vmatprep.mubr.f32.mxu0 %v201
      %1898 = vmatmul.mubr.f32.gmra.mrb[0].mxu0 %v200
      %v1899 = vpop.f32.mrb[0].mxu0
      %v1900 = vadd.f32 %v1345, %v1899
      %v1901 = vpop.f32.mrb[0].mxu0
      %1902 = vmatprep.mubr.f32.mxu0 %v208
      %1903 = vmatmul.mubr.f32.gmra.mrb[0].mxu0 %v207
      %v1904 = vpop.f32.mrb[0].mxu0
      %v1905 = vadd.f32 %v1350, %v1904
      %v1906 = vpop.f32.mrb[0].mxu0
      %1907 = vmatprep.mubr.f32.mxu0 %v215
      %1908 = vmatmul.mubr.f32.gmra.mrb[0].mxu0 %v214
      %v1909 = vpop.f32.mrb[0].mxu0
      %v1910 = vadd.f32 %v1355, %v1909
      %v1911 = vpop.f32.mrb[0].mxu0
      %1912 = vmatprep.mubr.f32.mxu0 %v222
      %1913 = vmatmul.mubr.f32.gmra.mrb[0].mxu0 %v221
      %v1914 = vpop.f32.mrb[0].mxu0
      %v1915 = vadd.f32 %v1360, %v1914
      %v1916 = vpop.f32.mrb[0].mxu0
      %1917 = vmatprep.mubr.f32.mxu0 %v229
      %1918 = vmatmul.mubr.f32.gmra.mrb[0].mxu0 %v228
      %v1919 = vpop.f32.mrb[0].mxu0
      %v1920 = vadd.f32 %v1365, %v1919
      %v1921 = vpop.f32.mrb[0].mxu0
      %1922 = vmatprep.mubr.f32.mxu0 %v236
      %1923 = vmatmul.mubr.f32.gmra.mrb[0].mxu0 %v235
      %v1924 = vpop.f32.mrb[0].mxu0
      %v1925 = vadd.f32 %v1370, %v1924
      %v1926 = vpop.f32.mrb[0].mxu0
      %1927 = vmatprep.mubr.f32.mxu0 %v243
      %1928 = vmatmul.mubr.f32.gmra.mrb[0].mxu0 %v242
      %v1929 = vpop.f32.mrb[0].mxu0
      %v1930 = vadd.f32 %v1375, %v1929
      %v1931 = vpop.f32.mrb[0].mxu0
      %1932 = vmatprep.mubr.f32.mxu0 %v250
      %1933 = vmatmul.mubr.f32.gmra.mrb[0].mxu0 %v249
      %v1934 = vpop.f32.mrb[0].mxu0
      %v1935 = vadd.f32 %v1380, %v1934
      %v1936 = vpop.f32.mrb[0].mxu0
      %1937 = vmatprep.mubr.f32.mxu0 %v257
      %1938 = vmatmul.mubr.f32.gmra.mrb[0].mxu0 %v256
      %v1939 = vpop.f32.mrb[0].mxu0
      %v1940 = vadd.f32 %v1385, %v1939
      %v1941 = vpop.f32.mrb[0].mxu0
      %1942 = vmatprep.mubr.f32.mxu0 %v264
      %1943 = vmatmul.mubr.f32.gmra.mrb[0].mxu0 %v263
      %v1944 = vpop.f32.mrb[0].mxu0
      %v1945 = vadd.f32 %v1390, %v1944
      %v1946 = vpop.f32.mrb[0].mxu0
      %1947 = vmatprep.mubr.f32.mxu0 %v271
      %1948 = vmatmul.mubr.f32.gmra.mrb[0].mxu0 %v270
      %v1949 = vpop.f32.mrb[0].mxu0
      %v1950 = vadd.f32 %v1395, %v1949
      %v1951 = vpop.f32.mrb[0].mxu0
      %1952 = vmatprep.mubr.f32.mxu0 %v278
      %1953 = vmatmul.mubr.f32.gmra.mrb[0].mxu0 %v277
      %v1954 = vpop.f32.mrb[0].mxu0
      %v1955 = vadd.f32 %v1400, %v1954
      %v1956 = vpop.f32.mrb[0].mxu0
      %1957 = vmatprep.mubr.f32.mxu0 %v285
      %1958 = vmatmul.mubr.f32.gmra.mrb[0].mxu0 %v284
      %v1959 = vpop.f32.mrb[0].mxu0
      %v1960 = vadd.f32 %v1405, %v1959
      %v1961 = vpop.f32.mrb[0].mxu0
      %1962 = vmatprep.mubr.f32.mxu0 %v292
      %1963 = vmatmul.mubr.f32.gmra.mrb[0].mxu0 %v291
      %v1964 = vpop.f32.mrb[0].mxu0
      %v1965 = vadd.f32 %v1410, %v1964
      %v1966 = vpop.f32.mrb[0].mxu0
      %1967 = vmatprep.mubr.f32.mxu0 %v299
      %1968 = vmatmul.mubr.f32.gmra.mrb[0].mxu0 %v298
      %v1969 = vpop.f32.mrb[0].mxu0
      %v1970 = vadd.f32 %v1415, %v1969
      %v1971 = vpop.f32.mrb[0].mxu0
      %1972 = vmatprep.mubr.f32.mxu0 %v306
      %1973 = vmatmul.mubr.f32.gmra.mrb[0].mxu0 %v305
      %v1974 = vpop.f32.mrb[0].mxu0
      %v1975 = vadd.f32 %v1420, %v1974
      %v1976 = vpop.f32.mrb[0].mxu0
      %1977 = vmatprep.mubr.f32.mxu0 %v313
      %1978 = vmatmul.mubr.f32.gmra.mrb[0].mxu0 %v312
      %v1979 = vpop.f32.mrb[0].mxu0
      %v1980 = vadd.f32 %v1425, %v1979
      %v1981 = vpop.f32.mrb[0].mxu0
      %1982 = vmatprep.mubr.f32.mxu0 %v320
      %1983 = vmatmul.mubr.f32.gmra.mrb[0].mxu0 %v319
      %v1984 = vpop.f32.mrb[0].mxu0
      %v1985 = vadd.f32 %v1430, %v1984
      %v1986 = vpop.f32.mrb[0].mxu0
      %1987 = vmatprep.mubr.f32.mxu0 %v327
      %1988 = vmatmul.mubr.f32.gmra.mrb[0].mxu0 %v326
      %v1989 = vpop.f32.mrb[0].mxu0
      %v1990 = vadd.f32 %v1435, %v1989
      %v1991 = vpop.f32.mrb[0].mxu0
      %1992 = vmatprep.mubr.f32.mxu0 %v334
      %1993 = vmatmul.mubr.f32.gmra.mrb[0].mxu0 %v333
      %v1994 = vpop.f32.mrb[0].mxu0
      %v1995 = vadd.f32 %v1440, %v1994
      %v1996 = vpop.f32.mrb[0].mxu0
      %1997 = vmatprep.mubr.f32.mxu0 %v341
      %1998 = vmatmul.mubr.f32.gmra.mrb[0].mxu0 %v340
      %v1999 = vpop.f32.mrb[0].mxu0
      %v2000 = vadd.f32 %v1445, %v1999
      %v2001 = vpop.f32.mrb[0].mxu0
      %2002 = vmatprep.mubr.f32.mxu0 %v348
      %2003 = vmatmul.mubr.f32.gmra.mrb[0].mxu0 %v347
      %v2004 = vpop.f32.mrb[0].mxu0
      %v2005 = vadd.f32 %v1450, %v2004
      %v2006 = vpop.f32.mrb[0].mxu0
      %2007 = vmatprep.mubr.f32.mxu0 %v355
      %2008 = vmatmul.mubr.f32.gmra.mrb[0].mxu0 %v354
      %v2009 = vpop.f32.mrb[0].mxu0
      %v2010 = vadd.f32 %v1455, %v2009
      %v2011 = vpop.f32.mrb[0].mxu0
      %2012 = vmatprep.mubr.f32.mxu0 %v362
      %2013 = vmatmul.mubr.f32.gmra.mrb[0].mxu0 %v361
      %v2014 = vpop.f32.mrb[0].mxu0
      %v2015 = vadd.f32 %v1460, %v2014
      %v2016 = vpop.f32.mrb[0].mxu0
      %2017 = vmatprep.mubr.f32.mxu0 %v369
      %2018 = vmatmul.mubr.f32.gmra.mrb[0].mxu0 %v368
      %v2019 = vpop.f32.mrb[0].mxu0
      %v2020 = vadd.f32 %v1465, %v2019
      %v2021 = vpop.f32.mrb[0].mxu0
      %2022 = vmatprep.mubr.f32.mxu0 %v376
      %2023 = vmatmul.mubr.f32.gmra.mrb[0].mxu0 %v375
      %v2024 = vpop.f32.mrb[0].mxu0
      %v2025 = vadd.f32 %v1470, %v2024
      %v2026 = vpop.f32.mrb[0].mxu0
      %2027 = vmatprep.mubr.f32.mxu0 %v383
      %2028 = vmatmul.mubr.f32.gmra.mrb[0].mxu0 %v382
      %v2029 = vpop.f32.mrb[0].mxu0
      %v2030 = vadd.f32 %v1475, %v2029
      %v2031 = vpop.f32.mrb[0].mxu0
      %2032 = vmatprep.mubr.f32.mxu0 %v390
      %2033 = vmatmul.mubr.f32.gmra.mrb[0].mxu0 %v389
      %v2034 = vpop.f32.mrb[0].mxu0
      %v2035 = vadd.f32 %v1480, %v2034
      %v2036 = vpop.f32.mrb[0].mxu0
      %2037 = vmatprep.mubr.f32.mxu0 %v397
      %2038 = vmatmul.mubr.f32.gmra.mrb[0].mxu0 %v396
      %v2039 = vpop.f32.mrb[0].mxu0
      %v2040 = vadd.f32 %v1485, %v2039
      %v2041 = vpop.f32.mrb[0].mxu0
      %2042 = vmatprep.mubr.f32.mxu0 %v404
      %2043 = vmatmul.mubr.f32.gmra.mrb[0].mxu0 %v403
      %v2044 = vpop.f32.mrb[0].mxu0
      %v2045 = vadd.f32 %v1490, %v2044
      %v2046 = vpop.f32.mrb[0].mxu0
      %2047 = vmatprep.mubr.f32.mxu0 %v411
      %2048 = vmatmul.mubr.f32.gmra.mrb[0].mxu0 %v410
      %v2049 = vpop.f32.mrb[0].mxu0
      %v2050 = vadd.f32 %v1495, %v2049
      %v2051 = vpop.f32.mrb[0].mxu0
      %2052 = vmatprep.mubr.f32.mxu0 %v418
      %2053 = vmatmul.mubr.f32.gmra.mrb[0].mxu0 %v417
      %v2054 = vpop.f32.mrb[0].mxu0
      %v2055 = vadd.f32 %v1500, %v2054
      %v2056 = vpop.f32.mrb[0].mxu0
      %2057 = vmatprep.mubr.f32.mxu0 %v425
      %2058 = vmatmul.mubr.f32.gmra.mrb[0].mxu0 %v424
      %v2059 = vpop.f32.mrb[0].mxu0
      %v2060 = vadd.f32 %v1505, %v2059
      %v2061 = vpop.f32.mrb[0].mxu0
      %2062 = vmatprep.mubr.f32.mxu0 %v432
      %2063 = vmatmul.mubr.f32.gmra.mrb[0].mxu0 %v431
      %v2064 = vpop.f32.mrb[0].mxu0
      %v2065 = vadd.f32 %v1510, %v2064
      %v2066 = vpop.f32.mrb[0].mxu0
      %2067 = vmatprep.mubr.f32.mxu0 %v439
      %2068 = vmatmul.mubr.f32.gmra.mrb[0].mxu0 %v438
      %v2069 = vpop.f32.mrb[0].mxu0
      %v2070 = vadd.f32 %v1515, %v2069
      %v2071 = vpop.f32.mrb[0].mxu0
      %2072 = vmatprep.mubr.f32.mxu0 %v446
      %2073 = vmatmul.mubr.f32.gmra.mrb[0].mxu0 %v445
      %v2074 = vpop.f32.mrb[0].mxu0
      %v2075 = vadd.f32 %v1520, %v2074
      %v2076 = vpop.f32.mrb[0].mxu0
      %2077 = vmatprep.mubr.f32.mxu0 %v453
      %2078 = vmatmul.mubr.f32.gmra.mrb[0].mxu0 %v452
      %v2079 = vpop.f32.mrb[0].mxu0
      %v2080 = vadd.f32 %v1525, %v2079
      %v2081 = vpop.f32.mrb[0].mxu0
      %2082 = vmatprep.mubr.f32.mxu0 %v460
      %2083 = vmatmul.mubr.f32.gmra.mrb[0].mxu0 %v459
      %v2084 = vpop.f32.mrb[0].mxu0
      %v2085 = vadd.f32 %v1530, %v2084
      %v2086 = vpop.f32.mrb[0].mxu0
      %2087 = vmatprep.mubr.f32.mxu0 %v467
      %2088 = vmatmul.mubr.f32.gmra.mrb[0].mxu0 %v466
      %v2089 = vpop.f32.mrb[0].mxu0
      %v2090 = vadd.f32 %v1535, %v2089
      %v2091 = vpop.f32.mrb[0].mxu0
      %2092 = vmatprep.mubr.f32.mxu0 %v474
      %2093 = vmatmul.mubr.f32.gmra.mrb[0].mxu0 %v473
      %v2094 = vpop.f32.mrb[0].mxu0
      %v2095 = vadd.f32 %v1540, %v2094
      %v2096 = vpop.f32.mrb[0].mxu0
      %2097 = vmatprep.mubr.f32.mxu0 %v481
      %2098 = vmatmul.mubr.f32.gmra.mrb[0].mxu0 %v480
      %v2099 = vpop.f32.mrb[0].mxu0
      %v2100 = vadd.f32 %v1545, %v2099
      %v2101 = vpop.f32.mrb[0].mxu0
      %2102 = vmatprep.mubr.f32.mxu0 %v488
      %2103 = vmatmul.mubr.f32.gmra.mrb[0].mxu0 %v487
      %v2104 = vpop.f32.mrb[0].mxu0
      %v2105 = vadd.f32 %v1550, %v2104
      %v2106 = vpop.f32.mrb[0].mxu0
      %2107 = vmatprep.mubr.f32.mxu0 %v495
      %2108 = vmatmul.mubr.f32.gmra.mrb[0].mxu0 %v494
      %v2109 = vpop.f32.mrb[0].mxu0
      %v2110 = vadd.f32 %v1555, %v2109
      %v2111 = vpop.f32.mrb[0].mxu0
      %2112 = vmatprep.mubr.f32.mxu0 %v502
      %2113 = vmatmul.mubr.f32.gmra.mrb[0].mxu0 %v501
      %v2114 = vpop.f32.mrb[0].mxu0
      %v2115 = vadd.f32 %v1560, %v2114
      %v2116 = vpop.f32.mrb[0].mxu0
      %2117 = vmatprep.mubr.f32.mxu0 %v509
      %2118 = vmatmul.mubr.f32.gmra.mrb[0].mxu0 %v508
      %v2119 = vpop.f32.mrb[0].mxu0
      %v2120 = vadd.f32 %v1565, %v2119
      %v2121 = vpop.f32.mrb[0].mxu0
      %2122 = vmatprep.mubr.f32.mxu0 %v516
      %2123 = vmatmul.mubr.f32.gmra.mrb[0].mxu0 %v515
      %v2124 = vpop.f32.mrb[0].mxu0
      %v2125 = vadd.f32 %v1570, %v2124
      %v2126 = vpop.f32.mrb[0].mxu0
      %2127 = vmatprep.mubr.f32.mxu0 %v523
      %2128 = vmatmul.mubr.f32.gmra.mrb[0].mxu0 %v522
      %v2129 = vpop.f32.mrb[0].mxu0
      %v2130 = vadd.f32 %v1575, %v2129
      %v2131 = vpop.f32.mrb[0].mxu0
      %2132 = vmatprep.mubr.f32.mxu0 %v530
      %2133 = vmatmul.mubr.f32.gmra.mrb[0].mxu0 %v529
      %v2134 = vpop.f32.mrb[0].mxu0
      %v2135 = vadd.f32 %v1580, %v2134
      %v2136 = vpop.f32.mrb[0].mxu0
      %2137 = vmatprep.mubr.f32.mxu0 %v537
      %2138 = vmatmul.mubr.f32.gmra.mrb[0].mxu0 %v536
      %v2139 = vpop.f32.mrb[0].mxu0
      %v2140 = vadd.f32 %v1585, %v2139
      %v2141 = vpop.f32.mrb[0].mxu0
      %2142 = vmatprep.mubr.f32.mxu0 %v544
      %2143 = vmatmul.mubr.f32.gmra.mrb[0].mxu0 %v543
      %v2144 = vpop.f32.mrb[0].mxu0
      %v2145 = vadd.f32 %v1590, %v2144
      %v2146 = vpop.f32.mrb[0].mxu0
      %2147 = vmatprep.mubr.f32.mxu0 %v551
      %2148 = vmatmul.mubr.f32.gmra.mrb[0].mxu0 %v550
      %v2149 = vpop.f32.mrb[0].mxu0
      %v2150 = vadd.f32 %v1595, %v2149
      %v2151 = vpop.f32.mrb[0].mxu0
      %2152 = vmatprep.mubr.f32.mxu0 %v558
      %2153 = vmatmul.mubr.f32.gmra.mrb[0].mxu0 %v557
      %v2154 = vpop.f32.mrb[0].mxu0
      %v2155 = vadd.f32 %v1600, %v2154
      %v2156 = vpop.f32.mrb[0].mxu0
      %2157 = vmatprep.mubr.f32.mxu0 %v565
      %2158 = vmatmul.mubr.f32.gmra.mrb[0].mxu0 %v564
      %v2159 = vpop.f32.mrb[0].mxu0
      %v2160 = vadd.f32 %v1605, %v2159
      %v2161 = vpop.f32.mrb[0].mxu0
      %2162 = vmatprep.mubr.f32.mxu0 %v572
      %2163 = vmatmul.mubr.f32.gmra.mrb[0].mxu0 %v571
      %v2164 = vpop.f32.mrb[0].mxu0
      %v2165 = vadd.f32 %v1610, %v2164
      %v2166 = vpop.f32.mrb[0].mxu0
      %2167 = vmatprep.mubr.f32.mxu0 %v579
      %2168 = vmatmul.mubr.f32.gmra.mrb[0].mxu0 %v578
      %v2169 = vpop.f32.mrb[0].mxu0
      %v2170 = vadd.f32 %v1615, %v2169
      %v2171 = vpop.f32.mrb[0].mxu0
      %2172 = vmatprep.mubr.f32.mxu0 %v586
      %2173 = vmatmul.mubr.f32.gmra.mrb[0].mxu0 %v585
      %v2174 = vpop.f32.mrb[0].mxu0
      %v2175 = vadd.f32 %v1620, %v2174
      %v2176 = vpop.f32.mrb[0].mxu0
      %2177 = vmatprep.mubr.f32.mxu0 %v593
      %2178 = vmatmul.mubr.f32.gmra.mrb[0].mxu0 %v592
      %v2179 = vpop.f32.mrb[0].mxu0
      %v2180 = vadd.f32 %v1625, %v2179
      %v2181 = vpop.f32.mrb[0].mxu0
      %2182 = vmatprep.mubr.f32.mxu0 %v600
      %2183 = vmatmul.mubr.f32.gmra.mrb[0].mxu0 %v599
      %v2184 = vpop.f32.mrb[0].mxu0
      %v2185 = vadd.f32 %v1630, %v2184
      %v2186 = vpop.f32.mrb[0].mxu0
      %2187 = vmatprep.mubr.f32.mxu0 %v607
      %2188 = vmatmul.mubr.f32.gmra.mrb[0].mxu0 %v606
      %v2189 = vpop.f32.mrb[0].mxu0
      %v2190 = vadd.f32 %v1635, %v2189
      %v2191 = vpop.f32.mrb[0].mxu0
      %2192 = vmatprep.mubr.f32.mxu0 %v614
      %2193 = vmatmul.mubr.f32.gmra.mrb[0].mxu0 %v613
      %v2194 = vpop.f32.mrb[0].mxu0
      %v2195 = vadd.f32 %v1640, %v2194
      %v2196 = vpop.f32.mrb[0].mxu0
      %2197 = vmatprep.mubr.f32.mxu0 %v621
      %2198 = vmatmul.mubr.f32.gmra.mrb[0].mxu0 %v620
      %v2199 = vpop.f32.mrb[0].mxu0
      %v2200 = vadd.f32 %v1645, %v2199
      %v2201 = vpop.f32.mrb[0].mxu0
      %2202 = vmatprep.mubr.f32.mxu0 %v628
      %2203 = vmatmul.mubr.f32.gmra.mrb[0].mxu0 %v627
      %v2204 = vpop.f32.mrb[0].mxu0
      %v2205 = vadd.f32 %v1650, %v2204
      %v2206 = vpop.f32.mrb[0].mxu0
      %2207 = vmatprep.mubr.f32.mxu0 %v635
      %2208 = vmatmul.mubr.f32.gmra.mrb[0].mxu0 %v634
      %v2209 = vpop.f32.mrb[0].mxu0
      %v2210 = vadd.f32 %v1655, %v2209
      %v2211 = vpop.f32.mrb[0].mxu0
      %2212 = vmatprep.mubr.f32.mxu0 %v642
      %2213 = vmatmul.mubr.f32.gmra.mrb[0].mxu0 %v641
      %v2214 = vpop.f32.mrb[0].mxu0
      %v2215 = vadd.f32 %v1660, %v2214
      %v2216 = vpop.f32.mrb[0].mxu0
      %2217 = vmatprep.mubr.f32.mxu0 %v649
      %2218 = vmatmul.mubr.f32.gmra.mrb[0].mxu0 %v648
      %v2219 = vpop.f32.mrb[0].mxu0
      %v2220 = vadd.f32 %v1665, %v2219
      %v2221 = vpop.f32.mrb[0].mxu0
      %2222 = vmatprep.mubr.f32.mxu0 %v656
      %2223 = vmatmul.mubr.f32.gmra.mrb[0].mxu0 %v655
      %v2224 = vpop.f32.mrb[0].mxu0
      %v2225 = vadd.f32 %v1670, %v2224
      %v2226 = vpop.f32.mrb[0].mxu0
      %2227 = vmatprep.mubr.f32.mxu0 %v663
      %2228 = vmatmul.mubr.f32.gmra.mrb[0].mxu0 %v662
      %v2229 = vpop.f32.mrb[0].mxu0
      %v2230 = vadd.f32 %v1675, %v2229
      %v2231 = vpop.f32.mrb[0].mxu0
      %2232 = vmatprep.mubr.f32.mxu0 %v670
      %2233 = vmatmul.mubr.f32.gmra.mrb[0].mxu0 %v669
      %v2234 = vpop.f32.mrb[0].mxu0
      %v2235 = vadd.f32 %v1680, %v2234
      %v2236 = vpop.f32.mrb[0].mxu0
      %2237 = vmatprep.mubr.f32.mxu0 %v677
      %2238 = vmatmul.mubr.f32.gmra.mrb[0].mxu0 %v676
      %v2239 = vpop.f32.mrb[0].mxu0
      %v2240 = vadd.f32 %v1685, %v2239
      %v2241 = vpop.f32.mrb[0].mxu0
      %2242 = vmatprep.mubr.f32.mxu0 %v684
      %2243 = vmatmul.mubr.f32.gmra.mrb[0].mxu0 %v683
      %v2244 = vpop.f32.mrb[0].mxu0
      %v2245 = vadd.f32 %v1690, %v2244
      %v2246 = vpop.f32.mrb[0].mxu0
      %2247 = vmatprep.mubr.f32.mxu0 %v691
      %2248 = vmatmul.mubr.f32.gmra.mrb[0].mxu0 %v690
      %v2249 = vpop.f32.mrb[0].mxu0
      %v2250 = vadd.f32 %v1695, %v2249
      %v2251 = vpop.f32.mrb[0].mxu0
      %2252 = vmatprep.mubr.f32.mxu0 %v698
      %2253 = vmatmul.mubr.f32.gmra.mrb[0].mxu0 %v697
      %v2254 = vpop.f32.mrb[0].mxu0
      %v2255 = vadd.f32 %v1700, %v2254
      %v2256 = vpop.f32.mrb[0].mxu0
      %2257 = vmatprep.mubr.f32.mxu0 %v705
      %2258 = vmatmul.mubr.f32.gmra.mrb[0].mxu0 %v704
      %v2259 = vpop.f32.mrb[0].mxu0
      %v2260 = vadd.f32 %v1705, %v2259
      %v2261 = vpop.f32.mrb[0].mxu0
      %2262 = vmatprep.mubr.f32.mxu0 %v712
      %2263 = vmatmul.mubr.f32.gmra.mrb[0].mxu0 %v711
      %v2264 = vpop.f32.mrb[0].mxu0
      %v2265 = vadd.f32 %v1710, %v2264
      %v2266 = vpop.f32.mrb[0].mxu0
      %2267 = vmatprep.mubr.f32.mxu0 %v719
      %2268 = vmatmul.mubr.f32.gmra.mrb[0].mxu0 %v718
      %v2269 = vpop.f32.mrb[0].mxu0
      %v2270 = vadd.f32 %v1715, %v2269
      %v2271 = vpop.f32.mrb[0].mxu0
      %2272 = vmatprep.mubr.f32.mxu0 %v726
      %2273 = vmatmul.mubr.f32.gmra.mrb[0].mxu0 %v725
      %v2274 = vpop.f32.mrb[0].mxu0
      %v2275 = vadd.f32 %v1720, %v2274
      %v2276 = vpop.f32.mrb[0].mxu0
      %2277 = vmatprep.mubr.f32.mxu0 %v733
      %2278 = vmatmul.mubr.f32.gmra.mrb[0].mxu0 %v732
      %v2279 = vpop.f32.mrb[0].mxu0
      %v2280 = vadd.f32 %v1725, %v2279
      %v2281 = vpop.f32.mrb[0].mxu0
      %2282 = vmatprep.mubr.f32.mxu0 %v740
      %2283 = vmatmul.mubr.f32.gmra.mrb[0].mxu0 %v739
      %v2284 = vpop.f32.mrb[0].mxu0
      %v2285 = vadd.f32 %v1730, %v2284
      %v2286 = vpop.f32.mrb[0].mxu0
      %2287 = vmatprep.mubr.f32.mxu0 %v747
      %2288 = vmatmul.mubr.f32.gmra.mrb[0].mxu0 %v746
      %v2289 = vpop.f32.mrb[0].mxu0
      %v2290 = vadd.f32 %v1735, %v2289
      %v2291 = vpop.f32.mrb[0].mxu0
      %2292 = vmatprep.mubr.f32.mxu0 %v754
      %2293 = vmatmul.mubr.f32.gmra.mrb[0].mxu0 %v753
      %v2294 = vpop.f32.mrb[0].mxu0
      %v2295 = vadd.f32 %v1740, %v2294
      %v2296 = vpop.f32.mrb[0].mxu0
      %2297 = vmatprep.mubr.f32.mxu0 %v761
      %2298 = vmatmul.mubr.f32.gmra.mrb[0].mxu0 %v760
      %v2299 = vpop.f32.mrb[0].mxu0
      %v2300 = vadd.f32 %v1745, %v2299
      %v2301 = vpop.f32.mrb[0].mxu0
      %2302 = vmatprep.mubr.f32.mxu0 %v768
      %2303 = vmatmul.mubr.f32.gmra.mrb[0].mxu0 %v767
      %v2304 = vpop.f32.mrb[0].mxu0
      %v2305 = vadd.f32 %v1750, %v2304
      %v2306 = vpop.f32.mrb[0].mxu0
      %2307 = vmatprep.mubr.f32.mxu0 %v775
      %2308 = vmatmul.mubr.f32.gmra.mrb[0].mxu0 %v774
      %v2309 = vpop.f32.mrb[0].mxu0
      %v2310 = vadd.f32 %v1755, %v2309
      %v2311 = vpop.f32.mrb[0].mxu0
      %2312 = vmatprep.mubr.f32.mxu0 %v782
      %2313 = vmatmul.mubr.f32.gmra.mrb[0].mxu0 %v781
      %v2314 = vpop.f32.mrb[0].mxu0
      %v2315 = vadd.f32 %v1760, %v2314
      %v2316 = vpop.f32.mrb[0].mxu0
      %2317 = vmatprep.mubr.f32.mxu0 %v789
      %2318 = vmatmul.mubr.f32.gmra.mrb[0].mxu0 %v788
      %v2319 = vpop.f32.mrb[0].mxu0
      %v2320 = vadd.f32 %v1765, %v2319
      %v2321 = vpop.f32.mrb[0].mxu0
      %2322 = vmatprep.mubr.f32.mxu0 %v796
      %2323 = vmatmul.mubr.f32.gmra.mrb[0].mxu0 %v795
      %v2324 = vpop.f32.mrb[0].mxu0
      %v2325 = vadd.f32 %v1770, %v2324
      %v2326 = vpop.f32.mrb[0].mxu0
      %2327 = vmatprep.mubr.f32.mxu0 %v803
      %2328 = vmatmul.mubr.f32.gmra.mrb[0].mxu0 %v802
      %v2329 = vpop.f32.mrb[0].mxu0
      %v2330 = vadd.f32 %v1775, %v2329
      %v2331 = vpop.f32.mrb[0].mxu0
      %2332 = vmatprep.mubr.f32.mxu0 %v810
      %2333 = vmatmul.mubr.f32.gmra.mrb[0].mxu0 %v809
      %v2334 = vpop.f32.mrb[0].mxu0
      %v2335 = vadd.f32 %v1780, %v2334
      %v2336 = vpop.f32.mrb[0].mxu0
      %2337 = vmatprep.mubr.f32.mxu0 %v817
      %2338 = vmatmul.mubr.f32.gmra.mrb[0].mxu0 %v816
      %v2339 = vpop.f32.mrb[0].mxu0
      %v2340 = vadd.f32 %v1785, %v2339
      %v2341 = vpop.f32.mrb[0].mxu0
      %2342 = vmatprep.mubr.f32.mxu0 %v824
      %2343 = vmatmul.mubr.f32.gmra.mrb[0].mxu0 %v823
      %v2344 = vpop.f32.mrb[0].mxu0
      %v2345 = vadd.f32 %v1790, %v2344
      %v2346 = vpop.f32.mrb[0].mxu0
      %2347 = vmatprep.mubr.f32.mxu0 %v831
      %2348 = vmatmul.mubr.f32.gmra.mrb[0].mxu0 %v830
      %v2349 = vpop.f32.mrb[0].mxu0
      %v2350 = vadd.f32 %v1795, %v2349
      %v2351 = vpop.f32.mrb[0].mxu0
      %2352 = vmatprep.mubr.f32.mxu0 %v838
      %2353 = vmatmul.mubr.f32.gmra.mrb[0].mxu0 %v837
      %v2354 = vpop.f32.mrb[0].mxu0
      %v2355 = vadd.f32 %v1800, %v2354
      %v2356 = vpop.f32.mrb[0].mxu0
      %2357 = vmatprep.mubr.f32.mxu0 %v845
      %2358 = vmatmul.mubr.f32.gmra.mrb[0].mxu0 %v844
      %v2359 = vpop.f32.mrb[0].mxu0
      %v2360 = vadd.f32 %v1805, %v2359
      %v2361 = vpop.f32.mrb[0].mxu0
      %2362 = vmatprep.mubr.f32.mxu0 %v852
      %2363 = vmatmul.mubr.f32.gmra.mrb[0].mxu0 %v851
      %v2364 = vpop.f32.mrb[0].mxu0
      %v2365 = vadd.f32 %v1810, %v2364
      %v2366 = vpop.f32.mrb[0].mxu0
      %2367 = vmatprep.mubr.f32.mxu0 %v859
      %2368 = vmatmul.mubr.f32.gmra.mrb[0].mxu0 %v858
      %v2369 = vpop.f32.mrb[0].mxu0
      %v2370 = vadd.f32 %v1815, %v2369
      %v2371 = vpop.f32.mrb[0].mxu0
      %2372 = vdwg.mxu0
      %2373 = vmatprep.subr.mxu0 0.0
      %2374 = vmatpush1.msra.mxu0 %v927
      %2375 = vmatprep.subr.mxu0 0.0
      %2376 = vmatpush1.msra.mxu0 %v928
      %2377 = vmatprep.subr.mxu0 0.0
      %2378 = vmatpush1.msra.mxu0 %v929
      %2379 = vmatprep.subr.mxu0 0.0
      %2380 = vmatpush1.msra.mxu0 %v930
      %2381 = vmatprep.subr.mxu0 0.0
      %2382 = vmatpush1.msra.mxu0 %v931
      %2383 = vmatprep.subr.mxu0 0.0
      %2384 = vmatpush1.msra.mxu0 %v932
      %2385 = vmatprep.subr.mxu0 0.0
      %2386 = vmatpush1.msra.mxu0 %v933
      %2387 = vmatprep.subr.mxu0 0.0
      %2388 = vmatpush1.msra.mxu0 %v934
      %2389 = vmatprep.subr.mxu0 0.0
      %2390 = vmatpush1.msra.mxu0 %v935
      %2391 = vmatprep.subr.mxu0 0.0
      %2392 = vmatpush1.msra.mxu0 %v936
      %2393 = vmatprep.subr.mxu0 0.0
      %2394 = vmatpush1.msra.mxu0 %v937
      %2395 = vmatprep.subr.mxu0 0.0
      %2396 = vmatpush1.msra.mxu0 %v938
      %2397 = vmatprep.subr.mxu0 0.0
      %2398 = vmatpush1.msra.mxu0 %v939
      %2399 = vmatprep.subr.mxu0 0.0
      %2400 = vmatpush1.msra.mxu0 %v940
      %2401 = vmatprep.subr.mxu0 0.0
      %2402 = vmatpush1.msra.mxu0 %v941
      %2403 = vmatprep.subr.mxu0 0.0
      %2404 = vmatpush1.msra.mxu0 %v942
      %2405 = vmatprep.subr.mxu0 0.0
      %2406 = vmatpush1.msra.mxu0 %v943
      %2407 = vmatprep.subr.mxu0 0.0
      %2408 = vmatpush1.msra.mxu0 %v944
      %2409 = vmatprep.subr.mxu0 0.0
      %2410 = vmatpush1.msra.mxu0 %v945
      %2411 = vmatprep.subr.mxu0 0.0
      %2412 = vmatpush1.msra.mxu0 %v946
      %2413 = vmatprep.subr.mxu0 0.0
      %2414 = vmatpush1.msra.mxu0 %v947
      %2415 = vmatprep.subr.mxu0 0.0
      %2416 = vmatpush1.msra.mxu0 %v948
      %2417 = vmatprep.subr.mxu0 0.0
      %2418 = vmatpush1.msra.mxu0 %v949
      %2419 = vmatprep.subr.mxu0 0.0
      %2420 = vmatpush1.msra.mxu0 %v950
      %2421 = vmatprep.subr.mxu0 0.0
      %2422 = vmatpush1.msra.mxu0 %v951
      %2423 = vmatprep.subr.mxu0 0.0
      %2424 = vmatpush1.msra.mxu0 %v952
      %2425 = vmatprep.subr.mxu0 0.0
      %2426 = vmatpush1.msra.mxu0 %v953
      %2427 = vmatprep.subr.mxu0 0.0
      %2428 = vmatpush1.msra.mxu0 %v954
      %2429 = vmatprep.subr.mxu0 0.0
      %2430 = vmatpush1.msra.mxu0 %v955
      %2431 = vmatprep.subr.mxu0 0.0
      %2432 = vmatpush1.msra.mxu0 %v956
      %2433 = vmatprep.subr.mxu0 0.0
      %2434 = vmatpush1.msra.mxu0 %v957
      %2435 = vmatprep.subr.mxu0 0.0
      %2436 = vmatpush1.msra.mxu0 %v958
      %2437 = vmatprep.mubr.f32.mxu0 %v182
      %2438 = vmatmul.mubr.f32.gmra.mrb[0].mxu0 %v181
      %v2439 = vpop.f32.mrb[0].mxu0
      %v2440 = vadd.f32 %v1885, %v2439
      %v2441 = vpop.f32.mrb[0].mxu0
      %2442 = vmatprep.mubr.f32.mxu0 %v189
      %2443 = vmatmul.mubr.f32.gmra.mrb[0].mxu0 %v188
      %v2444 = vpop.f32.mrb[0].mxu0
      %v2445 = vadd.f32 %v1890, %v2444
      %v2446 = vpop.f32.mrb[0].mxu0
      %2447 = vmatprep.mubr.f32.mxu0 %v196
      %2448 = vmatmul.mubr.f32.gmra.mrb[0].mxu0 %v195
      %v2449 = vpop.f32.mrb[0].mxu0
      %v2450 = vadd.f32 %v1895, %v2449
      %v2451 = vpop.f32.mrb[0].mxu0
      %2452 = vmatprep.mubr.f32.mxu0 %v203
      %2453 = vmatmul.mubr.f32.gmra.mrb[0].mxu0 %v202
      %v2454 = vpop.f32.mrb[0].mxu0
      %v2455 = vadd.f32 %v1900, %v2454
      %v2456 = vpop.f32.mrb[0].mxu0
      %2457 = vmatprep.mubr.f32.mxu0 %v210
      %2458 = vmatmul.mubr.f32.gmra.mrb[0].mxu0 %v209
      %v2459 = vpop.f32.mrb[0].mxu0
      %v2460 = vadd.f32 %v1905, %v2459
      %v2461 = vpop.f32.mrb[0].mxu0
      %2462 = vmatprep.mubr.f32.mxu0 %v217
      %2463 = vmatmul.mubr.f32.gmra.mrb[0].mxu0 %v216
      %v2464 = vpop.f32.mrb[0].mxu0
      %v2465 = vadd.f32 %v1910, %v2464
      %v2466 = vpop.f32.mrb[0].mxu0
      %2467 = vmatprep.mubr.f32.mxu0 %v224
      %2468 = vmatmul.mubr.f32.gmra.mrb[0].mxu0 %v223
      %v2469 = vpop.f32.mrb[0].mxu0
      %v2470 = vadd.f32 %v1915, %v2469
      %v2471 = vpop.f32.mrb[0].mxu0
      %2472 = vmatprep.mubr.f32.mxu0 %v231
      %2473 = vmatmul.mubr.f32.gmra.mrb[0].mxu0 %v230
      %v2474 = vpop.f32.mrb[0].mxu0
      %v2475 = vadd.f32 %v1920, %v2474
      %v2476 = vpop.f32.mrb[0].mxu0
      %2477 = vmatprep.mubr.f32.mxu0 %v238
      %2478 = vmatmul.mubr.f32.gmra.mrb[0].mxu0 %v237
      %v2479 = vpop.f32.mrb[0].mxu0
      %v2480 = vadd.f32 %v1925, %v2479
      %v2481 = vpop.f32.mrb[0].mxu0
      %2482 = vmatprep.mubr.f32.mxu0 %v245
      %2483 = vmatmul.mubr.f32.gmra.mrb[0].mxu0 %v244
      %v2484 = vpop.f32.mrb[0].mxu0
      %v2485 = vadd.f32 %v1930, %v2484
      %v2486 = vpop.f32.mrb[0].mxu0
      %2487 = vmatprep.mubr.f32.mxu0 %v252
      %2488 = vmatmul.mubr.f32.gmra.mrb[0].mxu0 %v251
      %v2489 = vpop.f32.mrb[0].mxu0
      %v2490 = vadd.f32 %v1935, %v2489
      %v2491 = vpop.f32.mrb[0].mxu0
      %2492 = vmatprep.mubr.f32.mxu0 %v259
      %2493 = vmatmul.mubr.f32.gmra.mrb[0].mxu0 %v258
      %v2494 = vpop.f32.mrb[0].mxu0
      %v2495 = vadd.f32 %v1940, %v2494
      %v2496 = vpop.f32.mrb[0].mxu0
      %2497 = vmatprep.mubr.f32.mxu0 %v266
      %2498 = vmatmul.mubr.f32.gmra.mrb[0].mxu0 %v265
      %v2499 = vpop.f32.mrb[0].mxu0
      %v2500 = vadd.f32 %v1945, %v2499
      %v2501 = vpop.f32.mrb[0].mxu0
      %2502 = vmatprep.mubr.f32.mxu0 %v273
      %2503 = vmatmul.mubr.f32.gmra.mrb[0].mxu0 %v272
      %v2504 = vpop.f32.mrb[0].mxu0
      %v2505 = vadd.f32 %v1950, %v2504
      %v2506 = vpop.f32.mrb[0].mxu0
      %2507 = vmatprep.mubr.f32.mxu0 %v280
      %2508 = vmatmul.mubr.f32.gmra.mrb[0].mxu0 %v279
      %v2509 = vpop.f32.mrb[0].mxu0
      %v2510 = vadd.f32 %v1955, %v2509
      %v2511 = vpop.f32.mrb[0].mxu0
      %2512 = vmatprep.mubr.f32.mxu0 %v287
      %2513 = vmatmul.mubr.f32.gmra.mrb[0].mxu0 %v286
      %v2514 = vpop.f32.mrb[0].mxu0
      %v2515 = vadd.f32 %v1960, %v2514
      %v2516 = vpop.f32.mrb[0].mxu0
      %2517 = vmatprep.mubr.f32.mxu0 %v294
      %2518 = vmatmul.mubr.f32.gmra.mrb[0].mxu0 %v293
      %v2519 = vpop.f32.mrb[0].mxu0
      %v2520 = vadd.f32 %v1965, %v2519
      %v2521 = vpop.f32.mrb[0].mxu0
      %2522 = vmatprep.mubr.f32.mxu0 %v301
      %2523 = vmatmul.mubr.f32.gmra.mrb[0].mxu0 %v300
      %v2524 = vpop.f32.mrb[0].mxu0
      %v2525 = vadd.f32 %v1970, %v2524
      %v2526 = vpop.f32.mrb[0].mxu0
      %2527 = vmatprep.mubr.f32.mxu0 %v308
      %2528 = vmatmul.mubr.f32.gmra.mrb[0].mxu0 %v307
      %v2529 = vpop.f32.mrb[0].mxu0
      %v2530 = vadd.f32 %v1975, %v2529
      %v2531 = vpop.f32.mrb[0].mxu0
      %2532 = vmatprep.mubr.f32.mxu0 %v315
      %2533 = vmatmul.mubr.f32.gmra.mrb[0].mxu0 %v314
      %v2534 = vpop.f32.mrb[0].mxu0
      %v2535 = vadd.f32 %v1980, %v2534
      %v2536 = vpop.f32.mrb[0].mxu0
      %2537 = vmatprep.mubr.f32.mxu0 %v322
      %2538 = vmatmul.mubr.f32.gmra.mrb[0].mxu0 %v321
      %v2539 = vpop.f32.mrb[0].mxu0
      %v2540 = vadd.f32 %v1985, %v2539
      %v2541 = vpop.f32.mrb[0].mxu0
      %2542 = vmatprep.mubr.f32.mxu0 %v329
      %2543 = vmatmul.mubr.f32.gmra.mrb[0].mxu0 %v328
      %v2544 = vpop.f32.mrb[0].mxu0
      %v2545 = vadd.f32 %v1990, %v2544
      %v2546 = vpop.f32.mrb[0].mxu0
      %2547 = vmatprep.mubr.f32.mxu0 %v336
      %2548 = vmatmul.mubr.f32.gmra.mrb[0].mxu0 %v335
      %v2549 = vpop.f32.mrb[0].mxu0
      %v2550 = vadd.f32 %v1995, %v2549
      %v2551 = vpop.f32.mrb[0].mxu0
      %2552 = vmatprep.mubr.f32.mxu0 %v343
      %2553 = vmatmul.mubr.f32.gmra.mrb[0].mxu0 %v342
      %v2554 = vpop.f32.mrb[0].mxu0
      %v2555 = vadd.f32 %v2000, %v2554
      %v2556 = vpop.f32.mrb[0].mxu0
      %2557 = vmatprep.mubr.f32.mxu0 %v350
      %2558 = vmatmul.mubr.f32.gmra.mrb[0].mxu0 %v349
      %v2559 = vpop.f32.mrb[0].mxu0
      %v2560 = vadd.f32 %v2005, %v2559
      %v2561 = vpop.f32.mrb[0].mxu0
      %2562 = vmatprep.mubr.f32.mxu0 %v357
      %2563 = vmatmul.mubr.f32.gmra.mrb[0].mxu0 %v356
      %v2564 = vpop.f32.mrb[0].mxu0
      %v2565 = vadd.f32 %v2010, %v2564
      %v2566 = vpop.f32.mrb[0].mxu0
      %2567 = vmatprep.mubr.f32.mxu0 %v364
      %2568 = vmatmul.mubr.f32.gmra.mrb[0].mxu0 %v363
      %v2569 = vpop.f32.mrb[0].mxu0
      %v2570 = vadd.f32 %v2015, %v2569
      %v2571 = vpop.f32.mrb[0].mxu0
      %2572 = vmatprep.mubr.f32.mxu0 %v371
      %2573 = vmatmul.mubr.f32.gmra.mrb[0].mxu0 %v370
      %v2574 = vpop.f32.mrb[0].mxu0
      %v2575 = vadd.f32 %v2020, %v2574
      %v2576 = vpop.f32.mrb[0].mxu0
      %2577 = vmatprep.mubr.f32.mxu0 %v378
      %2578 = vmatmul.mubr.f32.gmra.mrb[0].mxu0 %v377
      %v2579 = vpop.f32.mrb[0].mxu0
      %v2580 = vadd.f32 %v2025, %v2579
      %v2581 = vpop.f32.mrb[0].mxu0
      %2582 = vmatprep.mubr.f32.mxu0 %v385
      %2583 = vmatmul.mubr.f32.gmra.mrb[0].mxu0 %v384
      %v2584 = vpop.f32.mrb[0].mxu0
      %v2585 = vadd.f32 %v2030, %v2584
      %v2586 = vpop.f32.mrb[0].mxu0
      %2587 = vmatprep.mubr.f32.mxu0 %v392
      %2588 = vmatmul.mubr.f32.gmra.mrb[0].mxu0 %v391
      %v2589 = vpop.f32.mrb[0].mxu0
      %v2590 = vadd.f32 %v2035, %v2589
      %v2591 = vpop.f32.mrb[0].mxu0
      %2592 = vmatprep.mubr.f32.mxu0 %v399
      %2593 = vmatmul.mubr.f32.gmra.mrb[0].mxu0 %v398
      %v2594 = vpop.f32.mrb[0].mxu0
      %v2595 = vadd.f32 %v2040, %v2594
      %v2596 = vpop.f32.mrb[0].mxu0
      %2597 = vmatprep.mubr.f32.mxu0 %v406
      %2598 = vmatmul.mubr.f32.gmra.mrb[0].mxu0 %v405
      %v2599 = vpop.f32.mrb[0].mxu0
      %v2600 = vadd.f32 %v2045, %v2599
      %v2601 = vpop.f32.mrb[0].mxu0
      %2602 = vmatprep.mubr.f32.mxu0 %v413
      %2603 = vmatmul.mubr.f32.gmra.mrb[0].mxu0 %v412
      %v2604 = vpop.f32.mrb[0].mxu0
      %v2605 = vadd.f32 %v2050, %v2604
      %v2606 = vpop.f32.mrb[0].mxu0
      %2607 = vmatprep.mubr.f32.mxu0 %v420
      %2608 = vmatmul.mubr.f32.gmra.mrb[0].mxu0 %v419
      %v2609 = vpop.f32.mrb[0].mxu0
      %v2610 = vadd.f32 %v2055, %v2609
      %v2611 = vpop.f32.mrb[0].mxu0
      %2612 = vmatprep.mubr.f32.mxu0 %v427
      %2613 = vmatmul.mubr.f32.gmra.mrb[0].mxu0 %v426
      %v2614 = vpop.f32.mrb[0].mxu0
      %v2615 = vadd.f32 %v2060, %v2614
      %v2616 = vpop.f32.mrb[0].mxu0
      %2617 = vmatprep.mubr.f32.mxu0 %v434
      %2618 = vmatmul.mubr.f32.gmra.mrb[0].mxu0 %v433
      %v2619 = vpop.f32.mrb[0].mxu0
      %v2620 = vadd.f32 %v2065, %v2619
      %v2621 = vpop.f32.mrb[0].mxu0
      %2622 = vmatprep.mubr.f32.mxu0 %v441
      %2623 = vmatmul.mubr.f32.gmra.mrb[0].mxu0 %v440
      %v2624 = vpop.f32.mrb[0].mxu0
      %v2625 = vadd.f32 %v2070, %v2624
      %v2626 = vpop.f32.mrb[0].mxu0
      %2627 = vmatprep.mubr.f32.mxu0 %v448
      %2628 = vmatmul.mubr.f32.gmra.mrb[0].mxu0 %v447
      %v2629 = vpop.f32.mrb[0].mxu0
      %v2630 = vadd.f32 %v2075, %v2629
      %v2631 = vpop.f32.mrb[0].mxu0
      %2632 = vmatprep.mubr.f32.mxu0 %v455
      %2633 = vmatmul.mubr.f32.gmra.mrb[0].mxu0 %v454
      %v2634 = vpop.f32.mrb[0].mxu0
      %v2635 = vadd.f32 %v2080, %v2634
      %v2636 = vpop.f32.mrb[0].mxu0
      %2637 = vmatprep.mubr.f32.mxu0 %v462
      %2638 = vmatmul.mubr.f32.gmra.mrb[0].mxu0 %v461
      %v2639 = vpop.f32.mrb[0].mxu0
      %v2640 = vadd.f32 %v2085, %v2639
      %v2641 = vpop.f32.mrb[0].mxu0
      %2642 = vmatprep.mubr.f32.mxu0 %v469
      %2643 = vmatmul.mubr.f32.gmra.mrb[0].mxu0 %v468
      %v2644 = vpop.f32.mrb[0].mxu0
      %v2645 = vadd.f32 %v2090, %v2644
      %v2646 = vpop.f32.mrb[0].mxu0
      %2647 = vmatprep.mubr.f32.mxu0 %v476
      %2648 = vmatmul.mubr.f32.gmra.mrb[0].mxu0 %v475
      %v2649 = vpop.f32.mrb[0].mxu0
      %v2650 = vadd.f32 %v2095, %v2649
      %v2651 = vpop.f32.mrb[0].mxu0
      %2652 = vmatprep.mubr.f32.mxu0 %v483
      %2653 = vmatmul.mubr.f32.gmra.mrb[0].mxu0 %v482
      %v2654 = vpop.f32.mrb[0].mxu0
      %v2655 = vadd.f32 %v2100, %v2654
      %v2656 = vpop.f32.mrb[0].mxu0
      %2657 = vmatprep.mubr.f32.mxu0 %v490
      %2658 = vmatmul.mubr.f32.gmra.mrb[0].mxu0 %v489
      %v2659 = vpop.f32.mrb[0].mxu0
      %v2660 = vadd.f32 %v2105, %v2659
      %v2661 = vpop.f32.mrb[0].mxu0
      %2662 = vmatprep.mubr.f32.mxu0 %v497
      %2663 = vmatmul.mubr.f32.gmra.mrb[0].mxu0 %v496
      %v2664 = vpop.f32.mrb[0].mxu0
      %v2665 = vadd.f32 %v2110, %v2664
      %v2666 = vpop.f32.mrb[0].mxu0
      %2667 = vmatprep.mubr.f32.mxu0 %v504
      %2668 = vmatmul.mubr.f32.gmra.mrb[0].mxu0 %v503
      %v2669 = vpop.f32.mrb[0].mxu0
      %v2670 = vadd.f32 %v2115, %v2669
      %v2671 = vpop.f32.mrb[0].mxu0
      %2672 = vmatprep.mubr.f32.mxu0 %v511
      %2673 = vmatmul.mubr.f32.gmra.mrb[0].mxu0 %v510
      %v2674 = vpop.f32.mrb[0].mxu0
      %v2675 = vadd.f32 %v2120, %v2674
      %v2676 = vpop.f32.mrb[0].mxu0
      %2677 = vmatprep.mubr.f32.mxu0 %v518
      %2678 = vmatmul.mubr.f32.gmra.mrb[0].mxu0 %v517
      %v2679 = vpop.f32.mrb[0].mxu0
      %v2680 = vadd.f32 %v2125, %v2679
      %v2681 = vpop.f32.mrb[0].mxu0
      %2682 = vmatprep.mubr.f32.mxu0 %v525
      %2683 = vmatmul.mubr.f32.gmra.mrb[0].mxu0 %v524
      %v2684 = vpop.f32.mrb[0].mxu0
      %v2685 = vadd.f32 %v2130, %v2684
      %v2686 = vpop.f32.mrb[0].mxu0
      %2687 = vmatprep.mubr.f32.mxu0 %v532
      %2688 = vmatmul.mubr.f32.gmra.mrb[0].mxu0 %v531
      %v2689 = vpop.f32.mrb[0].mxu0
      %v2690 = vadd.f32 %v2135, %v2689
      %v2691 = vpop.f32.mrb[0].mxu0
      %2692 = vmatprep.mubr.f32.mxu0 %v539
      %2693 = vmatmul.mubr.f32.gmra.mrb[0].mxu0 %v538
      %v2694 = vpop.f32.mrb[0].mxu0
      %v2695 = vadd.f32 %v2140, %v2694
      %v2696 = vpop.f32.mrb[0].mxu0
      %2697 = vmatprep.mubr.f32.mxu0 %v546
      %2698 = vmatmul.mubr.f32.gmra.mrb[0].mxu0 %v545
      %v2699 = vpop.f32.mrb[0].mxu0
      %v2700 = vadd.f32 %v2145, %v2699
      %v2701 = vpop.f32.mrb[0].mxu0
      %2702 = vmatprep.mubr.f32.mxu0 %v553
      %2703 = vmatmul.mubr.f32.gmra.mrb[0].mxu0 %v552
      %v2704 = vpop.f32.mrb[0].mxu0
      %v2705 = vadd.f32 %v2150, %v2704
      %v2706 = vpop.f32.mrb[0].mxu0
      %2707 = vmatprep.mubr.f32.mxu0 %v560
      %2708 = vmatmul.mubr.f32.gmra.mrb[0].mxu0 %v559
      %v2709 = vpop.f32.mrb[0].mxu0
      %v2710 = vadd.f32 %v2155, %v2709
      %v2711 = vpop.f32.mrb[0].mxu0
      %2712 = vmatprep.mubr.f32.mxu0 %v567
      %2713 = vmatmul.mubr.f32.gmra.mrb[0].mxu0 %v566
      %v2714 = vpop.f32.mrb[0].mxu0
      %v2715 = vadd.f32 %v2160, %v2714
      %v2716 = vpop.f32.mrb[0].mxu0
      %2717 = vmatprep.mubr.f32.mxu0 %v574
      %2718 = vmatmul.mubr.f32.gmra.mrb[0].mxu0 %v573
      %v2719 = vpop.f32.mrb[0].mxu0
      %v2720 = vadd.f32 %v2165, %v2719
      %v2721 = vpop.f32.mrb[0].mxu0
      %2722 = vmatprep.mubr.f32.mxu0 %v581
      %2723 = vmatmul.mubr.f32.gmra.mrb[0].mxu0 %v580
      %v2724 = vpop.f32.mrb[0].mxu0
      %v2725 = vadd.f32 %v2170, %v2724
      %v2726 = vpop.f32.mrb[0].mxu0
      %2727 = vmatprep.mubr.f32.mxu0 %v588
      %2728 = vmatmul.mubr.f32.gmra.mrb[0].mxu0 %v587
      %v2729 = vpop.f32.mrb[0].mxu0
      %v2730 = vadd.f32 %v2175, %v2729
      %v2731 = vpop.f32.mrb[0].mxu0
      %2732 = vmatprep.mubr.f32.mxu0 %v595
      %2733 = vmatmul.mubr.f32.gmra.mrb[0].mxu0 %v594
      %v2734 = vpop.f32.mrb[0].mxu0
      %v2735 = vadd.f32 %v2180, %v2734
      %v2736 = vpop.f32.mrb[0].mxu0
      %2737 = vmatprep.mubr.f32.mxu0 %v602
      %2738 = vmatmul.mubr.f32.gmra.mrb[0].mxu0 %v601
      %v2739 = vpop.f32.mrb[0].mxu0
      %v2740 = vadd.f32 %v2185, %v2739
      %v2741 = vpop.f32.mrb[0].mxu0
      %2742 = vmatprep.mubr.f32.mxu0 %v609
      %2743 = vmatmul.mubr.f32.gmra.mrb[0].mxu0 %v608
      %v2744 = vpop.f32.mrb[0].mxu0
      %v2745 = vadd.f32 %v2190, %v2744
      %v2746 = vpop.f32.mrb[0].mxu0
      %2747 = vmatprep.mubr.f32.mxu0 %v616
      %2748 = vmatmul.mubr.f32.gmra.mrb[0].mxu0 %v615
      %v2749 = vpop.f32.mrb[0].mxu0
      %v2750 = vadd.f32 %v2195, %v2749
      %v2751 = vpop.f32.mrb[0].mxu0
      %2752 = vmatprep.mubr.f32.mxu0 %v623
      %2753 = vmatmul.mubr.f32.gmra.mrb[0].mxu0 %v622
      %v2754 = vpop.f32.mrb[0].mxu0
      %v2755 = vadd.f32 %v2200, %v2754
      %v2756 = vpop.f32.mrb[0].mxu0
      %2757 = vmatprep.mubr.f32.mxu0 %v630
      %2758 = vmatmul.mubr.f32.gmra.mrb[0].mxu0 %v629
      %v2759 = vpop.f32.mrb[0].mxu0
      %v2760 = vadd.f32 %v2205, %v2759
      %v2761 = vpop.f32.mrb[0].mxu0
      %2762 = vmatprep.mubr.f32.mxu0 %v637
      %2763 = vmatmul.mubr.f32.gmra.mrb[0].mxu0 %v636
      %v2764 = vpop.f32.mrb[0].mxu0
      %v2765 = vadd.f32 %v2210, %v2764
      %v2766 = vpop.f32.mrb[0].mxu0
      %2767 = vmatprep.mubr.f32.mxu0 %v644
      %2768 = vmatmul.mubr.f32.gmra.mrb[0].mxu0 %v643
      %v2769 = vpop.f32.mrb[0].mxu0
      %v2770 = vadd.f32 %v2215, %v2769
      %v2771 = vpop.f32.mrb[0].mxu0
      %2772 = vmatprep.mubr.f32.mxu0 %v651
      %2773 = vmatmul.mubr.f32.gmra.mrb[0].mxu0 %v650
      %v2774 = vpop.f32.mrb[0].mxu0
      %v2775 = vadd.f32 %v2220, %v2774
      %v2776 = vpop.f32.mrb[0].mxu0
      %2777 = vmatprep.mubr.f32.mxu0 %v658
      %2778 = vmatmul.mubr.f32.gmra.mrb[0].mxu0 %v657
      %v2779 = vpop.f32.mrb[0].mxu0
      %v2780 = vadd.f32 %v2225, %v2779
      %v2781 = vpop.f32.mrb[0].mxu0
      %2782 = vmatprep.mubr.f32.mxu0 %v665
      %2783 = vmatmul.mubr.f32.gmra.mrb[0].mxu0 %v664
      %v2784 = vpop.f32.mrb[0].mxu0
      %v2785 = vadd.f32 %v2230, %v2784
      %v2786 = vpop.f32.mrb[0].mxu0
      %2787 = vmatprep.mubr.f32.mxu0 %v672
      %2788 = vmatmul.mubr.f32.gmra.mrb[0].mxu0 %v671
      %v2789 = vpop.f32.mrb[0].mxu0
      %v2790 = vadd.f32 %v2235, %v2789
      %v2791 = vpop.f32.mrb[0].mxu0
      %2792 = vmatprep.mubr.f32.mxu0 %v679
      %2793 = vmatmul.mubr.f32.gmra.mrb[0].mxu0 %v678
      %v2794 = vpop.f32.mrb[0].mxu0
      %v2795 = vadd.f32 %v2240, %v2794
      %v2796 = vpop.f32.mrb[0].mxu0
      %2797 = vmatprep.mubr.f32.mxu0 %v686
      %2798 = vmatmul.mubr.f32.gmra.mrb[0].mxu0 %v685
      %v2799 = vpop.f32.mrb[0].mxu0
      %v2800 = vadd.f32 %v2245, %v2799
      %v2801 = vpop.f32.mrb[0].mxu0
      %2802 = vmatprep.mubr.f32.mxu0 %v693
      %2803 = vmatmul.mubr.f32.gmra.mrb[0].mxu0 %v692
      %v2804 = vpop.f32.mrb[0].mxu0
      %v2805 = vadd.f32 %v2250, %v2804
      %v2806 = vpop.f32.mrb[0].mxu0
      %2807 = vmatprep.mubr.f32.mxu0 %v700
      %2808 = vmatmul.mubr.f32.gmra.mrb[0].mxu0 %v699
      %v2809 = vpop.f32.mrb[0].mxu0
      %v2810 = vadd.f32 %v2255, %v2809
      %v2811 = vpop.f32.mrb[0].mxu0
      %2812 = vmatprep.mubr.f32.mxu0 %v707
      %2813 = vmatmul.mubr.f32.gmra.mrb[0].mxu0 %v706
      %v2814 = vpop.f32.mrb[0].mxu0
      %v2815 = vadd.f32 %v2260, %v2814
      %v2816 = vpop.f32.mrb[0].mxu0
      %2817 = vmatprep.mubr.f32.mxu0 %v714
      %2818 = vmatmul.mubr.f32.gmra.mrb[0].mxu0 %v713
      %v2819 = vpop.f32.mrb[0].mxu0
      %v2820 = vadd.f32 %v2265, %v2819
      %v2821 = vpop.f32.mrb[0].mxu0
      %2822 = vmatprep.mubr.f32.mxu0 %v721
      %2823 = vmatmul.mubr.f32.gmra.mrb[0].mxu0 %v720
      %v2824 = vpop.f32.mrb[0].mxu0
      %v2825 = vadd.f32 %v2270, %v2824
      %v2826 = vpop.f32.mrb[0].mxu0
      %2827 = vmatprep.mubr.f32.mxu0 %v728
      %2828 = vmatmul.mubr.f32.gmra.mrb[0].mxu0 %v727
      %v2829 = vpop.f32.mrb[0].mxu0
      %v2830 = vadd.f32 %v2275, %v2829
      %v2831 = vpop.f32.mrb[0].mxu0
      %2832 = vmatprep.mubr.f32.mxu0 %v735
      %2833 = vmatmul.mubr.f32.gmra.mrb[0].mxu0 %v734
      %v2834 = vpop.f32.mrb[0].mxu0
      %v2835 = vadd.f32 %v2280, %v2834
      %v2836 = vpop.f32.mrb[0].mxu0
      %2837 = vmatprep.mubr.f32.mxu0 %v742
      %2838 = vmatmul.mubr.f32.gmra.mrb[0].mxu0 %v741
      %v2839 = vpop.f32.mrb[0].mxu0
      %v2840 = vadd.f32 %v2285, %v2839
      %v2841 = vpop.f32.mrb[0].mxu0
      %2842 = vmatprep.mubr.f32.mxu0 %v749
      %2843 = vmatmul.mubr.f32.gmra.mrb[0].mxu0 %v748
      %v2844 = vpop.f32.mrb[0].mxu0
      %v2845 = vadd.f32 %v2290, %v2844
      %v2846 = vpop.f32.mrb[0].mxu0
      %2847 = vmatprep.mubr.f32.mxu0 %v756
      %2848 = vmatmul.mubr.f32.gmra.mrb[0].mxu0 %v755
      %v2849 = vpop.f32.mrb[0].mxu0
      %v2850 = vadd.f32 %v2295, %v2849
      %v2851 = vpop.f32.mrb[0].mxu0
      %2852 = vmatprep.mubr.f32.mxu0 %v763
      %2853 = vmatmul.mubr.f32.gmra.mrb[0].mxu0 %v762
      %v2854 = vpop.f32.mrb[0].mxu0
      %v2855 = vadd.f32 %v2300, %v2854
      %v2856 = vpop.f32.mrb[0].mxu0
      %2857 = vmatprep.mubr.f32.mxu0 %v770
      %2858 = vmatmul.mubr.f32.gmra.mrb[0].mxu0 %v769
      %v2859 = vpop.f32.mrb[0].mxu0
      %v2860 = vadd.f32 %v2305, %v2859
      %v2861 = vpop.f32.mrb[0].mxu0
      %2862 = vmatprep.mubr.f32.mxu0 %v777
      %2863 = vmatmul.mubr.f32.gmra.mrb[0].mxu0 %v776
      %v2864 = vpop.f32.mrb[0].mxu0
      %v2865 = vadd.f32 %v2310, %v2864
      %v2866 = vpop.f32.mrb[0].mxu0
      %2867 = vmatprep.mubr.f32.mxu0 %v784
      %2868 = vmatmul.mubr.f32.gmra.mrb[0].mxu0 %v783
      %v2869 = vpop.f32.mrb[0].mxu0
      %v2870 = vadd.f32 %v2315, %v2869
      %v2871 = vpop.f32.mrb[0].mxu0
      %2872 = vmatprep.mubr.f32.mxu0 %v791
      %2873 = vmatmul.mubr.f32.gmra.mrb[0].mxu0 %v790
      %v2874 = vpop.f32.mrb[0].mxu0
      %v2875 = vadd.f32 %v2320, %v2874
      %v2876 = vpop.f32.mrb[0].mxu0
      %2877 = vmatprep.mubr.f32.mxu0 %v798
      %2878 = vmatmul.mubr.f32.gmra.mrb[0].mxu0 %v797
      %v2879 = vpop.f32.mrb[0].mxu0
      %v2880 = vadd.f32 %v2325, %v2879
      %v2881 = vpop.f32.mrb[0].mxu0
      %2882 = vmatprep.mubr.f32.mxu0 %v805
      %2883 = vmatmul.mubr.f32.gmra.mrb[0].mxu0 %v804
      %v2884 = vpop.f32.mrb[0].mxu0
      %v2885 = vadd.f32 %v2330, %v2884
      %v2886 = vpop.f32.mrb[0].mxu0
      %2887 = vmatprep.mubr.f32.mxu0 %v812
      %2888 = vmatmul.mubr.f32.gmra.mrb[0].mxu0 %v811
      %v2889 = vpop.f32.mrb[0].mxu0
      %v2890 = vadd.f32 %v2335, %v2889
      %v2891 = vpop.f32.mrb[0].mxu0
      %2892 = vmatprep.mubr.f32.mxu0 %v819
      %2893 = vmatmul.mubr.f32.gmra.mrb[0].mxu0 %v818
      %v2894 = vpop.f32.mrb[0].mxu0
      %v2895 = vadd.f32 %v2340, %v2894
      %v2896 = vpop.f32.mrb[0].mxu0
      %2897 = vmatprep.mubr.f32.mxu0 %v826
      %2898 = vmatmul.mubr.f32.gmra.mrb[0].mxu0 %v825
      %v2899 = vpop.f32.mrb[0].mxu0
      %v2900 = vadd.f32 %v2345, %v2899
      %v2901 = vpop.f32.mrb[0].mxu0
      %2902 = vmatprep.mubr.f32.mxu0 %v833
      %2903 = vmatmul.mubr.f32.gmra.mrb[0].mxu0 %v832
      %v2904 = vpop.f32.mrb[0].mxu0
      %v2905 = vadd.f32 %v2350, %v2904
      %v2906 = vpop.f32.mrb[0].mxu0
      %2907 = vmatprep.mubr.f32.mxu0 %v840
      %2908 = vmatmul.mubr.f32.gmra.mrb[0].mxu0 %v839
      %v2909 = vpop.f32.mrb[0].mxu0
      %v2910 = vadd.f32 %v2355, %v2909
      %v2911 = vpop.f32.mrb[0].mxu0
      %2912 = vmatprep.mubr.f32.mxu0 %v847
      %2913 = vmatmul.mubr.f32.gmra.mrb[0].mxu0 %v846
      %v2914 = vpop.f32.mrb[0].mxu0
      %v2915 = vadd.f32 %v2360, %v2914
      %v2916 = vpop.f32.mrb[0].mxu0
      %2917 = vmatprep.mubr.f32.mxu0 %v854
      %2918 = vmatmul.mubr.f32.gmra.mrb[0].mxu0 %v853
      %v2919 = vpop.f32.mrb[0].mxu0
      %v2920 = vadd.f32 %v2365, %v2919
      %v2921 = vpop.f32.mrb[0].mxu0
      %2922 = vmatprep.mubr.f32.mxu0 %v861
      %2923 = vmatmul.mubr.f32.gmra.mrb[0].mxu0 %v860
      %v2924 = vpop.f32.mrb[0].mxu0
      %v2925 = vadd.f32 %v2370, %v2924
      %v2926 = vpop.f32.mrb[0].mxu0
      %2927 = vdwg.mxu0
      %2928 = vmatprep.subr.mxu0 0.0
      %2929 = vmatpush1.msra.mxu0 %v959
      %2930 = vmatprep.subr.mxu0 0.0
      %2931 = vmatpush1.msra.mxu0 %v960
      %2932 = vmatprep.subr.mxu0 0.0
      %2933 = vmatpush1.msra.mxu0 0.0
      %2934 = vmatprep.subr.mxu0 0.0
      %2935 = vmatpush1.msra.mxu0 0.0
      %2936 = vmatprep.subr.mxu0 0.0
      %2937 = vmatpush1.msra.mxu0 0.0
      %2938 = vmatprep.subr.mxu0 0.0
      %2939 = vmatpush1.msra.mxu0 0.0
      %2940 = vmatprep.subr.mxu0 0.0
      %2941 = vmatpush1.msra.mxu0 0.0
      %2942 = vmatprep.subr.mxu0 0.0
      %2943 = vmatpush1.msra.mxu0 0.0
      %2944 = vmatprep.subr.mxu0 0.0
      %2945 = vmatpush1.msra.mxu0 0.0
      %2946 = vmatprep.subr.mxu0 0.0
      %2947 = vmatpush1.msra.mxu0 0.0
      %2948 = vmatprep.subr.mxu0 0.0
      %2949 = vmatpush1.msra.mxu0 0.0
      %2950 = vmatprep.subr.mxu0 0.0
      %2951 = vmatpush1.msra.mxu0 0.0
      %2952 = vmatprep.subr.mxu0 0.0
      %2953 = vmatpush1.msra.mxu0 0.0
      %2954 = vmatprep.subr.mxu0 0.0
      %2955 = vmatpush1.msra.mxu0 0.0
      %2956 = vmatprep.subr.mxu0 0.0
      %2957 = vmatpush1.msra.mxu0 0.0
      %2958 = vmatprep.subr.mxu0 0.0
      %2959 = vmatpush1.msra.mxu0 0.0
      %2960 = vmatprep.subr.mxu0 0.0
      %2961 = vmatpush1.msra.mxu0 0.0
      %2962 = vmatprep.subr.mxu0 0.0
      %2963 = vmatpush1.msra.mxu0 0.0
      %2964 = vmatprep.subr.mxu0 0.0
      %2965 = vmatpush1.msra.mxu0 0.0
      %2966 = vmatprep.subr.mxu0 0.0
      %2967 = vmatpush1.msra.mxu0 0.0
      %2968 = vmatprep.subr.mxu0 0.0
      %2969 = vmatpush1.msra.mxu0 0.0
      %2970 = vmatprep.subr.mxu0 0.0
      %2971 = vmatpush1.msra.mxu0 0.0
      %2972 = vmatprep.subr.mxu0 0.0
      %2973 = vmatpush1.msra.mxu0 0.0
      %2974 = vmatprep.subr.mxu0 0.0
      %2975 = vmatpush1.msra.mxu0 0.0
      %2976 = vmatprep.subr.mxu0 0.0
      %2977 = vmatpush1.msra.mxu0 0.0
      %2978 = vmatprep.subr.mxu0 0.0
      %2979 = vmatpush1.msra.mxu0 0.0
      %2980 = vmatprep.subr.mxu0 0.0
      %2981 = vmatpush1.msra.mxu0 0.0
      %2982 = vmatprep.subr.mxu0 0.0
      %2983 = vmatpush1.msra.mxu0 0.0
      %2984 = vmatprep.subr.mxu0 0.0
      %2985 = vmatpush1.msra.mxu0 0.0
      %2986 = vmatprep.subr.mxu0 0.0
      %2987 = vmatpush1.msra.mxu0 0.0
      %2988 = vmatprep.subr.mxu0 0.0
      %2989 = vmatpush1.msra.mxu0 0.0
      %2990 = vmatprep.subr.mxu0 0.0
      %2991 = vmatpush1.msra.mxu0 0.0
      %2992 = vmatprep.mubr.f32.mxu0 0.0
      %2993 = vmatmul.mubr.f32.gmra.mrb[0].mxu0 %v970
      %v2994 = vpop.f32.mrb[0].mxu0
      %v2995 = vadd.f32 %v2440, %v2994
      %v2996 = vpop.f32.mrb[0].mxu0
      %2997 = vmatprep.mubr.f32.mxu0 0.0
      %2998 = vmatmul.mubr.f32.gmra.mrb[0].mxu0 %v973
      %v2999 = vpop.f32.mrb[0].mxu0
      %v3000 = vadd.f32 %v2445, %v2999
      %v3001 = vpop.f32.mrb[0].mxu0
      %3002 = vmatprep.mubr.f32.mxu0 0.0
      %3003 = vmatmul.mubr.f32.gmra.mrb[0].mxu0 %v976
      %v3004 = vpop.f32.mrb[0].mxu0
      %v3005 = vadd.f32 %v2450, %v3004
      %v3006 = vpop.f32.mrb[0].mxu0
      %3007 = vmatprep.mubr.f32.mxu0 0.0
      %3008 = vmatmul.mubr.f32.gmra.mrb[0].mxu0 %v979
      %v3009 = vpop.f32.mrb[0].mxu0
      %v3010 = vadd.f32 %v2455, %v3009
      %v3011 = vpop.f32.mrb[0].mxu0
      %3012 = vmatprep.mubr.f32.mxu0 0.0
      %3013 = vmatmul.mubr.f32.gmra.mrb[0].mxu0 %v982
      %v3014 = vpop.f32.mrb[0].mxu0
      %v3015 = vadd.f32 %v2460, %v3014
      %v3016 = vpop.f32.mrb[0].mxu0
      %3017 = vmatprep.mubr.f32.mxu0 0.0
      %3018 = vmatmul.mubr.f32.gmra.mrb[0].mxu0 %v985
      %v3019 = vpop.f32.mrb[0].mxu0
      %v3020 = vadd.f32 %v2465, %v3019
      %v3021 = vpop.f32.mrb[0].mxu0
      %3022 = vmatprep.mubr.f32.mxu0 0.0
      %3023 = vmatmul.mubr.f32.gmra.mrb[0].mxu0 %v988
      %v3024 = vpop.f32.mrb[0].mxu0
      %v3025 = vadd.f32 %v2470, %v3024
      %v3026 = vpop.f32.mrb[0].mxu0
      %3027 = vmatprep.mubr.f32.mxu0 0.0
      %3028 = vmatmul.mubr.f32.gmra.mrb[0].mxu0 %v991
      %v3029 = vpop.f32.mrb[0].mxu0
      %v3030 = vadd.f32 %v2475, %v3029
      %v3031 = vpop.f32.mrb[0].mxu0
      %3032 = vmatprep.mubr.f32.mxu0 0.0
      %3033 = vmatmul.mubr.f32.gmra.mrb[0].mxu0 %v994
      %v3034 = vpop.f32.mrb[0].mxu0
      %v3035 = vadd.f32 %v2480, %v3034
      %v3036 = vpop.f32.mrb[0].mxu0
      %3037 = vmatprep.mubr.f32.mxu0 0.0
      %3038 = vmatmul.mubr.f32.gmra.mrb[0].mxu0 %v997
      %v3039 = vpop.f32.mrb[0].mxu0
      %v3040 = vadd.f32 %v2485, %v3039
      %v3041 = vpop.f32.mrb[0].mxu0
      %3042 = vmatprep.mubr.f32.mxu0 0.0
      %3043 = vmatmul.mubr.f32.gmra.mrb[0].mxu0 %v1000
      %v3044 = vpop.f32.mrb[0].mxu0
      %v3045 = vadd.f32 %v2490, %v3044
      %v3046 = vpop.f32.mrb[0].mxu0
      %3047 = vmatprep.mubr.f32.mxu0 0.0
      %3048 = vmatmul.mubr.f32.gmra.mrb[0].mxu0 %v1003
      %v3049 = vpop.f32.mrb[0].mxu0
      %v3050 = vadd.f32 %v2495, %v3049
      %v3051 = vpop.f32.mrb[0].mxu0
      %3052 = vmatprep.mubr.f32.mxu0 0.0
      %3053 = vmatmul.mubr.f32.gmra.mrb[0].mxu0 %v1006
      %v3054 = vpop.f32.mrb[0].mxu0
      %v3055 = vadd.f32 %v2500, %v3054
      %v3056 = vpop.f32.mrb[0].mxu0
      %3057 = vmatprep.mubr.f32.mxu0 0.0
      %3058 = vmatmul.mubr.f32.gmra.mrb[0].mxu0 %v1009
      %v3059 = vpop.f32.mrb[0].mxu0
      %v3060 = vadd.f32 %v2505, %v3059
      %v3061 = vpop.f32.mrb[0].mxu0
      %3062 = vmatprep.mubr.f32.mxu0 0.0
      %3063 = vmatmul.mubr.f32.gmra.mrb[0].mxu0 %v1012
      %v3064 = vpop.f32.mrb[0].mxu0
      %v3065 = vadd.f32 %v2510, %v3064
      %v3066 = vpop.f32.mrb[0].mxu0
      %3067 = vmatprep.mubr.f32.mxu0 0.0
      %3068 = vmatmul.mubr.f32.gmra.mrb[0].mxu0 %v1015
      %v3069 = vpop.f32.mrb[0].mxu0
      %v3070 = vadd.f32 %v2515, %v3069
      %v3071 = vpop.f32.mrb[0].mxu0
      %3072 = vmatprep.mubr.f32.mxu0 0.0
      %3073 = vmatmul.mubr.f32.gmra.mrb[0].mxu0 %v1018
      %v3074 = vpop.f32.mrb[0].mxu0
      %v3075 = vadd.f32 %v2520, %v3074
      %v3076 = vpop.f32.mrb[0].mxu0
      %3077 = vmatprep.mubr.f32.mxu0 0.0
      %3078 = vmatmul.mubr.f32.gmra.mrb[0].mxu0 %v1021
      %v3079 = vpop.f32.mrb[0].mxu0
      %v3080 = vadd.f32 %v2525, %v3079
      %v3081 = vpop.f32.mrb[0].mxu0
      %3082 = vmatprep.mubr.f32.mxu0 0.0
      %3083 = vmatmul.mubr.f32.gmra.mrb[0].mxu0 %v1024
      %v3084 = vpop.f32.mrb[0].mxu0
      %v3085 = vadd.f32 %v2530, %v3084
      %v3086 = vpop.f32.mrb[0].mxu0
      %3087 = vmatprep.mubr.f32.mxu0 0.0
      %3088 = vmatmul.mubr.f32.gmra.mrb[0].mxu0 %v1027
      %v3089 = vpop.f32.mrb[0].mxu0
      %v3090 = vadd.f32 %v2535, %v3089
      %v3091 = vpop.f32.mrb[0].mxu0
      %3092 = vmatprep.mubr.f32.mxu0 0.0
      %3093 = vmatmul.mubr.f32.gmra.mrb[0].mxu0 %v1030
      %v3094 = vpop.f32.mrb[0].mxu0
      %v3095 = vadd.f32 %v2540, %v3094
      %v3096 = vpop.f32.mrb[0].mxu0
      %3097 = vmatprep.mubr.f32.mxu0 0.0
      %3098 = vmatmul.mubr.f32.gmra.mrb[0].mxu0 %v1033
      %v3099 = vpop.f32.mrb[0].mxu0
      %v3100 = vadd.f32 %v2545, %v3099
      %v3101 = vpop.f32.mrb[0].mxu0
      %3102 = vmatprep.mubr.f32.mxu0 0.0
      %3103 = vmatmul.mubr.f32.gmra.mrb[0].mxu0 %v1036
      %v3104 = vpop.f32.mrb[0].mxu0
      %v3105 = vadd.f32 %v2550, %v3104
      %v3106 = vpop.f32.mrb[0].mxu0
      %3107 = vmatprep.mubr.f32.mxu0 0.0
      %3108 = vmatmul.mubr.f32.gmra.mrb[0].mxu0 %v1039
      %v3109 = vpop.f32.mrb[0].mxu0
      %v3110 = vadd.f32 %v2555, %v3109
      %v3111 = vpop.f32.mrb[0].mxu0
      %3112 = vmatprep.mubr.f32.mxu0 0.0
      %3113 = vmatmul.mubr.f32.gmra.mrb[0].mxu0 %v1042
      %v3114 = vpop.f32.mrb[0].mxu0
      %v3115 = vadd.f32 %v2560, %v3114
      %v3116 = vpop.f32.mrb[0].mxu0
      %3117 = vmatprep.mubr.f32.mxu0 0.0
      %3118 = vmatmul.mubr.f32.gmra.mrb[0].mxu0 %v1045
      %v3119 = vpop.f32.mrb[0].mxu0
      %v3120 = vadd.f32 %v2565, %v3119
      %v3121 = vpop.f32.mrb[0].mxu0
      %3122 = vmatprep.mubr.f32.mxu0 0.0
      %3123 = vmatmul.mubr.f32.gmra.mrb[0].mxu0 %v1048
      %v3124 = vpop.f32.mrb[0].mxu0
      %v3125 = vadd.f32 %v2570, %v3124
      %v3126 = vpop.f32.mrb[0].mxu0
      %3127 = vmatprep.mubr.f32.mxu0 0.0
      %3128 = vmatmul.mubr.f32.gmra.mrb[0].mxu0 %v1051
      %v3129 = vpop.f32.mrb[0].mxu0
      %v3130 = vadd.f32 %v2575, %v3129
      %v3131 = vpop.f32.mrb[0].mxu0
      %3132 = vmatprep.mubr.f32.mxu0 0.0
      %3133 = vmatmul.mubr.f32.gmra.mrb[0].mxu0 %v1054
      %v3134 = vpop.f32.mrb[0].mxu0
      %v3135 = vadd.f32 %v2580, %v3134
      %v3136 = vpop.f32.mrb[0].mxu0
      %3137 = vmatprep.mubr.f32.mxu0 0.0
      %3138 = vmatmul.mubr.f32.gmra.mrb[0].mxu0 %v1057
      %v3139 = vpop.f32.mrb[0].mxu0
      %v3140 = vadd.f32 %v2585, %v3139
      %v3141 = vpop.f32.mrb[0].mxu0
      %3142 = vmatprep.mubr.f32.mxu0 0.0
      %3143 = vmatmul.mubr.f32.gmra.mrb[0].mxu0 %v1060
      %v3144 = vpop.f32.mrb[0].mxu0
      %v3145 = vadd.f32 %v2590, %v3144
      %v3146 = vpop.f32.mrb[0].mxu0
      %3147 = vmatprep.mubr.f32.mxu0 0.0
      %3148 = vmatmul.mubr.f32.gmra.mrb[0].mxu0 %v1063
      %v3149 = vpop.f32.mrb[0].mxu0
      %v3150 = vadd.f32 %v2595, %v3149
      %v3151 = vpop.f32.mrb[0].mxu0
      %3152 = vmatprep.mubr.f32.mxu0 0.0
      %3153 = vmatmul.mubr.f32.gmra.mrb[0].mxu0 %v1066
      %v3154 = vpop.f32.mrb[0].mxu0
      %v3155 = vadd.f32 %v2600, %v3154
      %v3156 = vpop.f32.mrb[0].mxu0
      %3157 = vmatprep.mubr.f32.mxu0 0.0
      %3158 = vmatmul.mubr.f32.gmra.mrb[0].mxu0 %v1069
      %v3159 = vpop.f32.mrb[0].mxu0
      %v3160 = vadd.f32 %v2605, %v3159
      %v3161 = vpop.f32.mrb[0].mxu0
      %3162 = vmatprep.mubr.f32.mxu0 0.0
      %3163 = vmatmul.mubr.f32.gmra.mrb[0].mxu0 %v1072
      %v3164 = vpop.f32.mrb[0].mxu0
      %v3165 = vadd.f32 %v2610, %v3164
      %v3166 = vpop.f32.mrb[0].mxu0
      %3167 = vmatprep.mubr.f32.mxu0 0.0
      %3168 = vmatmul.mubr.f32.gmra.mrb[0].mxu0 %v1075
      %v3169 = vpop.f32.mrb[0].mxu0
      %v3170 = vadd.f32 %v2615, %v3169
      %v3171 = vpop.f32.mrb[0].mxu0
      %3172 = vmatprep.mubr.f32.mxu0 0.0
      %3173 = vmatmul.mubr.f32.gmra.mrb[0].mxu0 %v1078
      %v3174 = vpop.f32.mrb[0].mxu0
      %v3175 = vadd.f32 %v2620, %v3174
      %v3176 = vpop.f32.mrb[0].mxu0
      %3177 = vmatprep.mubr.f32.mxu0 0.0
      %3178 = vmatmul.mubr.f32.gmra.mrb[0].mxu0 %v1081
      %v3179 = vpop.f32.mrb[0].mxu0
      %v3180 = vadd.f32 %v2625, %v3179
      %v3181 = vpop.f32.mrb[0].mxu0
      %3182 = vmatprep.mubr.f32.mxu0 0.0
      %3183 = vmatmul.mubr.f32.gmra.mrb[0].mxu0 %v1084
      %v3184 = vpop.f32.mrb[0].mxu0
      %v3185 = vadd.f32 %v2630, %v3184
      %v3186 = vpop.f32.mrb[0].mxu0
      %3187 = vmatprep.mubr.f32.mxu0 0.0
      %3188 = vmatmul.mubr.f32.gmra.mrb[0].mxu0 %v1087
      %v3189 = vpop.f32.mrb[0].mxu0
      %v3190 = vadd.f32 %v2635, %v3189
      %v3191 = vpop.f32.mrb[0].mxu0
      %3192 = vmatprep.mubr.f32.mxu0 0.0
      %3193 = vmatmul.mubr.f32.gmra.mrb[0].mxu0 %v1090
      %v3194 = vpop.f32.mrb[0].mxu0
      %v3195 = vadd.f32 %v2640, %v3194
      %v3196 = vpop.f32.mrb[0].mxu0
      %3197 = vmatprep.mubr.f32.mxu0 0.0
      %3198 = vmatmul.mubr.f32.gmra.mrb[0].mxu0 %v1093
      %v3199 = vpop.f32.mrb[0].mxu0
      %v3200 = vadd.f32 %v2645, %v3199
      %v3201 = vpop.f32.mrb[0].mxu0
      %3202 = vmatprep.mubr.f32.mxu0 0.0
      %3203 = vmatmul.mubr.f32.gmra.mrb[0].mxu0 %v1096
      %v3204 = vpop.f32.mrb[0].mxu0
      %v3205 = vadd.f32 %v2650, %v3204
      %v3206 = vpop.f32.mrb[0].mxu0
      %3207 = vmatprep.mubr.f32.mxu0 0.0
      %3208 = vmatmul.mubr.f32.gmra.mrb[0].mxu0 %v1099
      %v3209 = vpop.f32.mrb[0].mxu0
      %v3210 = vadd.f32 %v2655, %v3209
      %v3211 = vpop.f32.mrb[0].mxu0
      %3212 = vmatprep.mubr.f32.mxu0 0.0
      %3213 = vmatmul.mubr.f32.gmra.mrb[0].mxu0 %v1102
      %v3214 = vpop.f32.mrb[0].mxu0
      %v3215 = vadd.f32 %v2660, %v3214
      %v3216 = vpop.f32.mrb[0].mxu0
      %3217 = vmatprep.mubr.f32.mxu0 0.0
      %3218 = vmatmul.mubr.f32.gmra.mrb[0].mxu0 %v1105
      %v3219 = vpop.f32.mrb[0].mxu0
      %v3220 = vadd.f32 %v2665, %v3219
      %v3221 = vpop.f32.mrb[0].mxu0
      %3222 = vmatprep.mubr.f32.mxu0 0.0
      %3223 = vmatmul.mubr.f32.gmra.mrb[0].mxu0 %v1108
      %v3224 = vpop.f32.mrb[0].mxu0
      %v3225 = vadd.f32 %v2670, %v3224
      %v3226 = vpop.f32.mrb[0].mxu0
      %3227 = vmatprep.mubr.f32.mxu0 0.0
      %3228 = vmatmul.mubr.f32.gmra.mrb[0].mxu0 %v1111
      %v3229 = vpop.f32.mrb[0].mxu0
      %v3230 = vadd.f32 %v2675, %v3229
      %v3231 = vpop.f32.mrb[0].mxu0
      %3232 = vmatprep.mubr.f32.mxu0 0.0
      %3233 = vmatmul.mubr.f32.gmra.mrb[0].mxu0 %v1114
      %v3234 = vpop.f32.mrb[0].mxu0
      %v3235 = vadd.f32 %v2680, %v3234
      %v3236 = vpop.f32.mrb[0].mxu0
      %3237 = vmatprep.mubr.f32.mxu0 0.0
      %3238 = vmatmul.mubr.f32.gmra.mrb[0].mxu0 %v1117
      %v3239 = vpop.f32.mrb[0].mxu0
      %v3240 = vadd.f32 %v2685, %v3239
      %v3241 = vpop.f32.mrb[0].mxu0
      %3242 = vmatprep.mubr.f32.mxu0 0.0
      %3243 = vmatmul.mubr.f32.gmra.mrb[0].mxu0 %v1120
      %v3244 = vpop.f32.mrb[0].mxu0
      %v3245 = vadd.f32 %v2690, %v3244
      %v3246 = vpop.f32.mrb[0].mxu0
      %3247 = vmatprep.mubr.f32.mxu0 0.0
      %3248 = vmatmul.mubr.f32.gmra.mrb[0].mxu0 %v1123
      %v3249 = vpop.f32.mrb[0].mxu0
      %v3250 = vadd.f32 %v2695, %v3249
      %v3251 = vpop.f32.mrb[0].mxu0
      %3252 = vmatprep.mubr.f32.mxu0 0.0
      %3253 = vmatmul.mubr.f32.gmra.mrb[0].mxu0 %v1126
      %v3254 = vpop.f32.mrb[0].mxu0
      %v3255 = vadd.f32 %v2700, %v3254
      %v3256 = vpop.f32.mrb[0].mxu0
      %3257 = vmatprep.mubr.f32.mxu0 0.0
      %3258 = vmatmul.mubr.f32.gmra.mrb[0].mxu0 %v1129
      %v3259 = vpop.f32.mrb[0].mxu0
      %v3260 = vadd.f32 %v2705, %v3259
      %v3261 = vpop.f32.mrb[0].mxu0
      %3262 = vmatprep.mubr.f32.mxu0 0.0
      %3263 = vmatmul.mubr.f32.gmra.mrb[0].mxu0 %v1132
      %v3264 = vpop.f32.mrb[0].mxu0
      %v3265 = vadd.f32 %v2710, %v3264
      %v3266 = vpop.f32.mrb[0].mxu0
      %3267 = vmatprep.mubr.f32.mxu0 0.0
      %3268 = vmatmul.mubr.f32.gmra.mrb[0].mxu0 %v1135
      %v3269 = vpop.f32.mrb[0].mxu0
      %v3270 = vadd.f32 %v2715, %v3269
      %v3271 = vpop.f32.mrb[0].mxu0
      %3272 = vmatprep.mubr.f32.mxu0 0.0
      %3273 = vmatmul.mubr.f32.gmra.mrb[0].mxu0 %v1138
      %v3274 = vpop.f32.mrb[0].mxu0
      %v3275 = vadd.f32 %v2720, %v3274
      %v3276 = vpop.f32.mrb[0].mxu0
      %3277 = vmatprep.mubr.f32.mxu0 0.0
      %3278 = vmatmul.mubr.f32.gmra.mrb[0].mxu0 %v1141
      %v3279 = vpop.f32.mrb[0].mxu0
      %v3280 = vadd.f32 %v2725, %v3279
      %v3281 = vpop.f32.mrb[0].mxu0
      %3282 = vmatprep.mubr.f32.mxu0 0.0
      %3283 = vmatmul.mubr.f32.gmra.mrb[0].mxu0 %v1144
      %v3284 = vpop.f32.mrb[0].mxu0
      %v3285 = vadd.f32 %v2730, %v3284
      %v3286 = vpop.f32.mrb[0].mxu0
      %3287 = vmatprep.mubr.f32.mxu0 0.0
      %3288 = vmatmul.mubr.f32.gmra.mrb[0].mxu0 %v1147
      %v3289 = vpop.f32.mrb[0].mxu0
      %v3290 = vadd.f32 %v2735, %v3289
      %v3291 = vpop.f32.mrb[0].mxu0
      %3292 = vmatprep.mubr.f32.mxu0 0.0
      %3293 = vmatmul.mubr.f32.gmra.mrb[0].mxu0 %v1150
      %v3294 = vpop.f32.mrb[0].mxu0
      %v3295 = vadd.f32 %v2740, %v3294
      %v3296 = vpop.f32.mrb[0].mxu0
      %3297 = vmatprep.mubr.f32.mxu0 0.0
      %3298 = vmatmul.mubr.f32.gmra.mrb[0].mxu0 %v1153
      %v3299 = vpop.f32.mrb[0].mxu0
      %v3300 = vadd.f32 %v2745, %v3299
      %v3301 = vpop.f32.mrb[0].mxu0
      %3302 = vmatprep.mubr.f32.mxu0 0.0
      %3303 = vmatmul.mubr.f32.gmra.mrb[0].mxu0 %v1156
      %v3304 = vpop.f32.mrb[0].mxu0
      %v3305 = vadd.f32 %v2750, %v3304
      %v3306 = vpop.f32.mrb[0].mxu0
      %3307 = vmatprep.mubr.f32.mxu0 0.0
      %3308 = vmatmul.mubr.f32.gmra.mrb[0].mxu0 %v1159
      %v3309 = vpop.f32.mrb[0].mxu0
      %v3310 = vadd.f32 %v2755, %v3309
      %v3311 = vpop.f32.mrb[0].mxu0
      %3312 = vmatprep.mubr.f32.mxu0 0.0
      %3313 = vmatmul.mubr.f32.gmra.mrb[0].mxu0 %v1162
      %v3314 = vpop.f32.mrb[0].mxu0
      %v3315 = vadd.f32 %v2760, %v3314
      %v3316 = vpop.f32.mrb[0].mxu0
      %3317 = vmatprep.mubr.f32.mxu0 0.0
      %3318 = vmatmul.mubr.f32.gmra.mrb[0].mxu0 %v1165
      %v3319 = vpop.f32.mrb[0].mxu0
      %v3320 = vadd.f32 %v2765, %v3319
      %v3321 = vpop.f32.mrb[0].mxu0
      %3322 = vmatprep.mubr.f32.mxu0 0.0
      %3323 = vmatmul.mubr.f32.gmra.mrb[0].mxu0 %v1168
      %v3324 = vpop.f32.mrb[0].mxu0
      %v3325 = vadd.f32 %v2770, %v3324
      %v3326 = vpop.f32.mrb[0].mxu0
      %3327 = vmatprep.mubr.f32.mxu0 0.0
      %3328 = vmatmul.mubr.f32.gmra.mrb[0].mxu0 %v1171
      %v3329 = vpop.f32.mrb[0].mxu0
      %v3330 = vadd.f32 %v2775, %v3329
      %v3331 = vpop.f32.mrb[0].mxu0
      %3332 = vmatprep.mubr.f32.mxu0 0.0
      %3333 = vmatmul.mubr.f32.gmra.mrb[0].mxu0 %v1174
      %v3334 = vpop.f32.mrb[0].mxu0
      %v3335 = vadd.f32 %v2780, %v3334
      %v3336 = vpop.f32.mrb[0].mxu0
      %3337 = vmatprep.mubr.f32.mxu0 0.0
      %3338 = vmatmul.mubr.f32.gmra.mrb[0].mxu0 %v1177
      %v3339 = vpop.f32.mrb[0].mxu0
      %v3340 = vadd.f32 %v2785, %v3339
      %v3341 = vpop.f32.mrb[0].mxu0
      %3342 = vmatprep.mubr.f32.mxu0 0.0
      %3343 = vmatmul.mubr.f32.gmra.mrb[0].mxu0 %v1180
      %v3344 = vpop.f32.mrb[0].mxu0
      %v3345 = vadd.f32 %v2790, %v3344
      %v3346 = vpop.f32.mrb[0].mxu0
      %3347 = vmatprep.mubr.f32.mxu0 0.0
      %3348 = vmatmul.mubr.f32.gmra.mrb[0].mxu0 %v1183
      %v3349 = vpop.f32.mrb[0].mxu0
      %v3350 = vadd.f32 %v2795, %v3349
      %v3351 = vpop.f32.mrb[0].mxu0
      %3352 = vmatprep.mubr.f32.mxu0 0.0
      %3353 = vmatmul.mubr.f32.gmra.mrb[0].mxu0 %v1186
      %v3354 = vpop.f32.mrb[0].mxu0
      %v3355 = vadd.f32 %v2800, %v3354
      %v3356 = vpop.f32.mrb[0].mxu0
      %3357 = vmatprep.mubr.f32.mxu0 0.0
      %3358 = vmatmul.mubr.f32.gmra.mrb[0].mxu0 %v1189
      %v3359 = vpop.f32.mrb[0].mxu0
      %v3360 = vadd.f32 %v2805, %v3359
      %v3361 = vpop.f32.mrb[0].mxu0
      %3362 = vmatprep.mubr.f32.mxu0 0.0
      %3363 = vmatmul.mubr.f32.gmra.mrb[0].mxu0 %v1192
      %v3364 = vpop.f32.mrb[0].mxu0
      %v3365 = vadd.f32 %v2810, %v3364
      %v3366 = vpop.f32.mrb[0].mxu0
      %3367 = vmatprep.mubr.f32.mxu0 0.0
      %3368 = vmatmul.mubr.f32.gmra.mrb[0].mxu0 %v1195
      %v3369 = vpop.f32.mrb[0].mxu0
      %v3370 = vadd.f32 %v2815, %v3369
      %v3371 = vpop.f32.mrb[0].mxu0
      %3372 = vmatprep.mubr.f32.mxu0 0.0
      %3373 = vmatmul.mubr.f32.gmra.mrb[0].mxu0 %v1198
      %v3374 = vpop.f32.mrb[0].mxu0
      %v3375 = vadd.f32 %v2820, %v3374
      %v3376 = vpop.f32.mrb[0].mxu0
      %3377 = vmatprep.mubr.f32.mxu0 0.0
      %3378 = vmatmul.mubr.f32.gmra.mrb[0].mxu0 %v1201
      %v3379 = vpop.f32.mrb[0].mxu0
      %v3380 = vadd.f32 %v2825, %v3379
      %v3381 = vpop.f32.mrb[0].mxu0
      %3382 = vmatprep.mubr.f32.mxu0 0.0
      %3383 = vmatmul.mubr.f32.gmra.mrb[0].mxu0 %v1204
      %v3384 = vpop.f32.mrb[0].mxu0
      %v3385 = vadd.f32 %v2830, %v3384
      %v3386 = vpop.f32.mrb[0].mxu0
      %3387 = vmatprep.mubr.f32.mxu0 0.0
      %3388 = vmatmul.mubr.f32.gmra.mrb[0].mxu0 %v1207
      %v3389 = vpop.f32.mrb[0].mxu0
      %v3390 = vadd.f32 %v2835, %v3389
      %v3391 = vpop.f32.mrb[0].mxu0
      %3392 = vmatprep.mubr.f32.mxu0 0.0
      %3393 = vmatmul.mubr.f32.gmra.mrb[0].mxu0 %v1210
      %v3394 = vpop.f32.mrb[0].mxu0
      %v3395 = vadd.f32 %v2840, %v3394
      %v3396 = vpop.f32.mrb[0].mxu0
      %3397 = vmatprep.mubr.f32.mxu0 0.0
      %3398 = vmatmul.mubr.f32.gmra.mrb[0].mxu0 %v1213
      %v3399 = vpop.f32.mrb[0].mxu0
      %v3400 = vadd.f32 %v2845, %v3399
      %v3401 = vpop.f32.mrb[0].mxu0
      %3402 = vmatprep.mubr.f32.mxu0 0.0
      %3403 = vmatmul.mubr.f32.gmra.mrb[0].mxu0 %v1216
      %v3404 = vpop.f32.mrb[0].mxu0
      %v3405 = vadd.f32 %v2850, %v3404
      %v3406 = vpop.f32.mrb[0].mxu0
      %3407 = vmatprep.mubr.f32.mxu0 0.0
      %3408 = vmatmul.mubr.f32.gmra.mrb[0].mxu0 %v1219
      %v3409 = vpop.f32.mrb[0].mxu0
      %v3410 = vadd.f32 %v2855, %v3409
      %v3411 = vpop.f32.mrb[0].mxu0
      %3412 = vmatprep.mubr.f32.mxu0 0.0
      %3413 = vmatmul.mubr.f32.gmra.mrb[0].mxu0 %v1222
      %v3414 = vpop.f32.mrb[0].mxu0
      %v3415 = vadd.f32 %v2860, %v3414
      %v3416 = vpop.f32.mrb[0].mxu0
      %3417 = vmatprep.mubr.f32.mxu0 0.0
      %3418 = vmatmul.mubr.f32.gmra.mrb[0].mxu0 %v1225
      %v3419 = vpop.f32.mrb[0].mxu0
      %v3420 = vadd.f32 %v2865, %v3419
      %v3421 = vpop.f32.mrb[0].mxu0
      %3422 = vmatprep.mubr.f32.mxu0 0.0
      %3423 = vmatmul.mubr.f32.gmra.mrb[0].mxu0 %v1228
      %v3424 = vpop.f32.mrb[0].mxu0
      %v3425 = vadd.f32 %v2870, %v3424
      %v3426 = vpop.f32.mrb[0].mxu0
      %3427 = vmatprep.mubr.f32.mxu0 0.0
      %3428 = vmatmul.mubr.f32.gmra.mrb[0].mxu0 %v1231
      %v3429 = vpop.f32.mrb[0].mxu0
      %v3430 = vadd.f32 %v2875, %v3429
      %v3431 = vpop.f32.mrb[0].mxu0
      %3432 = vmatprep.mubr.f32.mxu0 0.0
      %3433 = vmatmul.mubr.f32.gmra.mrb[0].mxu0 %v1234
      %v3434 = vpop.f32.mrb[0].mxu0
      %v3435 = vadd.f32 %v2880, %v3434
      %v3436 = vpop.f32.mrb[0].mxu0
      %3437 = vmatprep.mubr.f32.mxu0 0.0
      %3438 = vmatmul.mubr.f32.gmra.mrb[0].mxu0 %v1237
      %v3439 = vpop.f32.mrb[0].mxu0
      %v3440 = vadd.f32 %v2885, %v3439
      %v3441 = vpop.f32.mrb[0].mxu0
      %3442 = vmatprep.mubr.f32.mxu0 0.0
      %3443 = vmatmul.mubr.f32.gmra.mrb[0].mxu0 %v1240
      %v3444 = vpop.f32.mrb[0].mxu0
      %v3445 = vadd.f32 %v2890, %v3444
      %v3446 = vpop.f32.mrb[0].mxu0
      %3447 = vmatprep.mubr.f32.mxu0 0.0
      %3448 = vmatmul.mubr.f32.gmra.mrb[0].mxu0 %v1243
      %v3449 = vpop.f32.mrb[0].mxu0
      %v3450 = vadd.f32 %v2895, %v3449
      %v3451 = vpop.f32.mrb[0].mxu0
      %3452 = vmatprep.mubr.f32.mxu0 0.0
      %3453 = vmatmul.mubr.f32.gmra.mrb[0].mxu0 %v1246
      %v3454 = vpop.f32.mrb[0].mxu0
      %v3455 = vadd.f32 %v2900, %v3454
      %v3456 = vpop.f32.mrb[0].mxu0
      %3457 = vmatprep.mubr.f32.mxu0 0.0
      %3458 = vmatmul.mubr.f32.gmra.mrb[0].mxu0 %v1249
      %v3459 = vpop.f32.mrb[0].mxu0
      %v3460 = vadd.f32 %v2905, %v3459
      %v3461 = vpop.f32.mrb[0].mxu0
      %3462 = vmatprep.mubr.f32.mxu0 0.0
      %3463 = vmatmul.mubr.f32.gmra.mrb[0].mxu0 %v1252
      %v3464 = vpop.f32.mrb[0].mxu0
      %v3465 = vadd.f32 %v2910, %v3464
      %v3466 = vpop.f32.mrb[0].mxu0
      %3467 = vmatprep.mubr.f32.mxu0 0.0
      %3468 = vmatmul.mubr.f32.gmra.mrb[0].mxu0 %v1255
      %v3469 = vpop.f32.mrb[0].mxu0
      %v3470 = vadd.f32 %v2915, %v3469
      %v3471 = vpop.f32.mrb[0].mxu0
      %3472 = vmatprep.mubr.f32.mxu0 0.0
      %3473 = vmatmul.mubr.f32.gmra.mrb[0].mxu0 %v1258
      %v3474 = vpop.f32.mrb[0].mxu0
      %v3475 = vadd.f32 %v2920, %v3474
      %v3476 = vpop.f32.mrb[0].mxu0
      %3477 = vmatprep.mubr.f32.mxu0 0.0
      %3478 = vmatmul.mubr.f32.gmra.mrb[0].mxu0 %v1261
      %v3479 = vpop.f32.mrb[0].mxu0
      %v3480 = vadd.f32 %v2925, %v3479
      %v3481 = vpop.f32.mrb[0].mxu0
      %3482 = vdwg.mxu0
      %v3483 = vtanh.pop %v2995
      %v3484 = vtanh.pop %v3000
      %v3485 = vtanh.pop %v3005
      %v3486 = vtanh.pop %v3010
      %v3487 = vtanh.pop %v3015
      %v3488 = vtanh.pop %v3020
      %v3489 = vtanh.pop %v3025
      %v3490 = vtanh.pop %v3030
      %v3491 = vtanh.pop %v3035
      %v3492 = vtanh.pop %v3040
      %v3493 = vtanh.pop %v3045
      %v3494 = vtanh.pop %v3050
      %v3495 = vtanh.pop %v3055
      %v3496 = vtanh.pop %v3060
      %v3497 = vtanh.pop %v3065
      %v3498 = vtanh.pop %v3070
      %v3499 = vtanh.pop %v3075
      %v3500 = vtanh.pop %v3080
      %v3501 = vtanh.pop %v3085
      %v3502 = vtanh.pop %v3090
      %v3503 = vtanh.pop %v3095
      %v3504 = vtanh.pop %v3100
      %v3505 = vtanh.pop %v3105
      %v3506 = vtanh.pop %v3110
      %v3507 = vtanh.pop %v3115
      %v3508 = vtanh.pop %v3120
      %v3509 = vtanh.pop %v3125
      %v3510 = vtanh.pop %v3130
      %v3511 = vtanh.pop %v3135
      %v3512 = vtanh.pop %v3140
      %v3513 = vtanh.pop %v3145
      %v3514 = vtanh.pop %v3150
      %v3515 = vtanh.pop %v3155
      %v3516 = vtanh.pop %v3160
      %v3517 = vtanh.pop %v3165
      %v3518 = vtanh.pop %v3170
      %v3519 = vtanh.pop %v3175
      %v3520 = vtanh.pop %v3180
      %v3521 = vtanh.pop %v3185
      %v3522 = vtanh.pop %v3190
      %v3523 = vtanh.pop %v3195
      %v3524 = vtanh.pop %v3200
      %v3525 = vtanh.pop %v3205
      %v3526 = vtanh.pop %v3210
      %v3527 = vtanh.pop %v3215
      %v3528 = vtanh.pop %v3220
      %v3529 = vtanh.pop %v3225
      %v3530 = vtanh.pop %v3230
      %v3531 = vtanh.pop %v3235
      %v3532 = vtanh.pop %v3240
      %v3533 = vtanh.pop %v3245
      %v3534 = vtanh.pop %v3250
      %v3535 = vtanh.pop %v3255
      %v3536 = vtanh.pop %v3260
      %v3537 = vtanh.pop %v3265
      %v3538 = vtanh.pop %v3270
      %v3539 = vtanh.pop %v3275
      %v3540 = vtanh.pop %v3280
      %v3541 = vtanh.pop %v3285
      %v3542 = vtanh.pop %v3290
      %v3543 = vtanh.pop %v3295
      %v3544 = vtanh.pop %v3300
      %v3545 = vtanh.pop %v3305
      %v3546 = vtanh.pop %v3310
      %v3547 = vtanh.pop %v3315
      %v3548 = vtanh.pop %v3320
      %v3549 = vtanh.pop %v3325
      %v3550 = vtanh.pop %v3330
      %v3551 = vtanh.pop %v3335
      %v3552 = vtanh.pop %v3340
      %v3553 = vtanh.pop %v3345
      %v3554 = vtanh.pop %v3350
      %v3555 = vtanh.pop %v3355
      %v3556 = vtanh.pop %v3360
      %v3557 = vtanh.pop %v3365
      %v3558 = vtanh.pop %v3370
      %v3559 = vtanh.pop %v3375
      %v3560 = vtanh.pop %v3380
      %v3561 = vtanh.pop %v3385
      %v3562 = vtanh.pop %v3390
      %v3563 = vtanh.pop %v3395
      %v3564 = vtanh.pop %v3400
      %v3565 = vtanh.pop %v3405
      %v3566 = vtanh.pop %v3410
      %v3567 = vtanh.pop %v3415
      %v3568 = vtanh.pop %v3420
      %v3569 = vtanh.pop %v3425
      %v3570 = vtanh.pop %v3430
      %v3571 = vtanh.pop %v3435
      %v3572 = vtanh.pop %v3440
      %v3573 = vtanh.pop %v3445
      %v3574 = vtanh.pop %v3450
      %v3575 = vtanh.pop %v3455
      %v3576 = vtanh.pop %v3460
      %v3577 = vtanh.pop %v3465
      %v3578 = vtanh.pop %v3470
      %v3579 = vtanh.pop %v3475
      %v3580 = vtanh.pop %v3480
      %3581 = vst [vmem:[%s175] sm:$0xff] %v3483
      %3582 = vst [vmem:[%s175 + $0x8] sm:$0xff] %v3484
      %3583 = vst [vmem:[%s175 + $0x10] sm:$0xff] %v3485
      %3584 = vst [vmem:[%s175 + $0x18] sm:$0xff] %v3486
      %3585 = vst [vmem:[%s175 + $0x20] sm:$0xff] %v3487
      %3586 = vst [vmem:[%s175 + $0x28] sm:$0xff] %v3488
      %3587 = vst [vmem:[%s175 + $0x30] sm:$0xff] %v3489
      %3588 = vst [vmem:[%s175 + $0x38] sm:$0xff] %v3490
      %3589 = vst [vmem:[%s175 + $0x40] sm:$0xff] %v3491
      %3590 = vst [vmem:[%s175 + $0x48] sm:$0xff] %v3492
      %3591 = vst [vmem:[%s175 + $0x50] sm:$0xff] %v3493
      %3592 = vst [vmem:[%s175 + $0x58] sm:$0xff] %v3494
      %3593 = vst [vmem:[%s175 + $0x60] sm:$0xff] %v3495
      %3594 = vst [vmem:[%s175 + $0x68] sm:$0xff] %v3496
      %3595 = vst [vmem:[%s175 + $0x70] sm:$0xff] %v3497
      %3596 = vst [vmem:[%s175 + $0x78] sm:$0xff] %v3498
      %3597 = vst [vmem:[%s175 + $0x80] sm:$0xff] %v3499
      %3598 = vst [vmem:[%s175 + $0x88] sm:$0xff] %v3500
      %3599 = vst [vmem:[%s175 + $0x90] sm:$0xff] %v3501
      %3600 = vst [vmem:[%s175 + $0x98] sm:$0xff] %v3502
      %3601 = vst [vmem:[%s175 + $0xa0] sm:$0xff] %v3503
      %3602 = vst [vmem:[%s175 + $0xa8] sm:$0xff] %v3504
      %3603 = vst [vmem:[%s175 + $0xb0] sm:$0xff] %v3505
      %3604 = vst [vmem:[%s175 + $0xb8] sm:$0xff] %v3506
      %3605 = vst [vmem:[%s175 + $0xc0] sm:$0xff] %v3507
      %3606 = vst [vmem:[%s175 + $0xc8] sm:$0xff] %v3508
      %3607 = vst [vmem:[%s175 + $0xd0] sm:$0xff] %v3509
      %3608 = vst [vmem:[%s175 + $0xd8] sm:$0xff] %v3510
      %3609 = vst [vmem:[%s175 + $0xe0] sm:$0xff] %v3511
      %3610 = vst [vmem:[%s175 + $0xe8] sm:$0xff] %v3512
      %3611 = vst [vmem:[%s175 + $0xf0] sm:$0xff] %v3513
      %3612 = vst [vmem:[%s175 + $0xf8] sm:$0xff] %v3514
      %3613 = vst [vmem:[%s175 + $0x100] sm:$0xff] %v3515
      %3614 = vst [vmem:[%s175 + $0x108] sm:$0xff] %v3516
      %3615 = vst [vmem:[%s175 + $0x110] sm:$0xff] %v3517
      %3616 = vst [vmem:[%s175 + $0x118] sm:$0xff] %v3518
      %3617 = vst [vmem:[%s175 + $0x120] sm:$0xff] %v3519
      %3618 = vst [vmem:[%s175 + $0x128] sm:$0xff] %v3520
      %3619 = vst [vmem:[%s175 + $0x130] sm:$0xff] %v3521
      %3620 = vst [vmem:[%s175 + $0x138] sm:$0xff] %v3522
      %3621 = vst [vmem:[%s175 + $0x140] sm:$0xff] %v3523
      %3622 = vst [vmem:[%s175 + $0x148] sm:$0xff] %v3524
      %3623 = vst [vmem:[%s175 + $0x150] sm:$0xff] %v3525
      %3624 = vst [vmem:[%s175 + $0x158] sm:$0xff] %v3526
      %3625 = vst [vmem:[%s175 + $0x160] sm:$0xff] %v3527
      %3626 = vst [vmem:[%s175 + $0x168] sm:$0xff] %v3528
      %3627 = vst [vmem:[%s175 + $0x170] sm:$0xff] %v3529
      %3628 = vst [vmem:[%s175 + $0x178] sm:$0xff] %v3530
      %3629 = vst [vmem:[%s175 + $0x180] sm:$0xff] %v3531
      %3630 = vst [vmem:[%s175 + $0x188] sm:$0xff] %v3532
      %3631 = vst [vmem:[%s175 + $0x190] sm:$0xff] %v3533
      %3632 = vst [vmem:[%s175 + $0x198] sm:$0xff] %v3534
      %3633 = vst [vmem:[%s175 + $0x1a0] sm:$0xff] %v3535
      %3634 = vst [vmem:[%s175 + $0x1a8] sm:$0xff] %v3536
      %3635 = vst [vmem:[%s175 + $0x1b0] sm:$0xff] %v3537
      %3636 = vst [vmem:[%s175 + $0x1b8] sm:$0xff] %v3538
      %3637 = vst [vmem:[%s175 + $0x1c0] sm:$0xff] %v3539
      %3638 = vst [vmem:[%s175 + $0x1c8] sm:$0xff] %v3540
      %3639 = vst [vmem:[%s175 + $0x1d0] sm:$0xff] %v3541
      %3640 = vst [vmem:[%s175 + $0x1d8] sm:$0xff] %v3542
      %3641 = vst [vmem:[%s175 + $0x1e0] sm:$0xff] %v3543
      %3642 = vst [vmem:[%s175 + $0x1e8] sm:$0xff] %v3544
      %3643 = vst [vmem:[%s175 + $0x1f0] sm:$0xff] %v3545
      %3644 = vst [vmem:[%s175 + $0x1f8] sm:$0xff] %v3546
      %3645 = vst [vmem:[%s175 + $0x200] sm:$0xff] %v3547
      %3646 = vst [vmem:[%s175 + $0x208] sm:$0xff] %v3548
      %3647 = vst [vmem:[%s175 + $0x210] sm:$0xff] %v3549
      %3648 = vst [vmem:[%s175 + $0x218] sm:$0xff] %v3550
      %3649 = vst [vmem:[%s175 + $0x220] sm:$0xff] %v3551
      %3650 = vst [vmem:[%s175 + $0x228] sm:$0xff] %v3552
      %3651 = vst [vmem:[%s175 + $0x230] sm:$0xff] %v3553
      %3652 = vst [vmem:[%s175 + $0x238] sm:$0xff] %v3554
      %3653 = vst [vmem:[%s175 + $0x240] sm:$0xff] %v3555
      %3654 = vst [vmem:[%s175 + $0x248] sm:$0xff] %v3556
      %3655 = vst [vmem:[%s175 + $0x250] sm:$0xff] %v3557
      %3656 = vst [vmem:[%s175 + $0x258] sm:$0xff] %v3558
      %3657 = vst [vmem:[%s175 + $0x260] sm:$0xff] %v3559
      %3658 = vst [vmem:[%s175 + $0x268] sm:$0xff] %v3560
      %3659 = vst [vmem:[%s175 + $0x270] sm:$0xff] %v3561
      %3660 = vst [vmem:[%s175 + $0x278] sm:$0xff] %v3562
      %3661 = vst [vmem:[%s175 + $0x280] sm:$0xff] %v3563
      %3662 = vst [vmem:[%s175 + $0x288] sm:$0xff] %v3564
      %3663 = vst [vmem:[%s175 + $0x290] sm:$0xff] %v3565
      %3664 = vst [vmem:[%s175 + $0x298] sm:$0xff] %v3566
      %3665 = vst [vmem:[%s175 + $0x2a0] sm:$0xff] %v3567
      %3666 = vst [vmem:[%s175 + $0x2a8] sm:$0xff] %v3568
      %3667 = vst [vmem:[%s175 + $0x2b0] sm:$0xff] %v3569
      %3668 = vst [vmem:[%s175 + $0x2b8] sm:$0xff] %v3570
      %3669 = vst [vmem:[%s175 + $0x2c0] sm:$0xff] %v3571
      %3670 = vst [vmem:[%s175 + $0x2c8] sm:$0xff] %v3572
      %3671 = vst [vmem:[%s175 + $0x2d0] sm:$0xff] %v3573
      %3672 = vst [vmem:[%s175 + $0x2d8] sm:$0xff] %v3574
      %3673 = vst [vmem:[%s175 + $0x2e0] sm:$0xff] %v3575
      %3674 = vst [vmem:[%s175 + $0x2e8] sm:$0xff] %v3576
      %3675 = vst [vmem:[%s175 + $0x2f0] sm:$0xff] %v3577
      %3676 = vst [vmem:[%s175 + $0x2f8] sm:$0xff] %v3578
      %3677 = vst [vmem:[%s175 + $0x300] sm:$0xff] %v3579
      %3678 = vst [vmem:[%s175 + $0x308] sm:$0xff] %v3580
      %s3679 = smul.u32 98, %s14
      %p3680 = scmp.lt.s32.totalorder %s3679, 195
      %s3681 = scalar_select %p3680, %s3679, 195
      %s3682 = smul.addr %s3681, 8
      %s3683 = scalar_lea.vmem %s3, %s3682
      // Predicated region
      $region33: #{generator_forward.7} parent=31 // pred_check
        %p3684 = pneg %p100
      $region34: #{generator_forward.7} parent=31 // pred_check_branch
        %3686 = sbr.rel (%p3684) target = $region36
      $region35: #{generator_forward.7} parent=31 // pred_region
        %s3687 = smul.u32 98, %s14
      $region36: #{generator_forward.7} parent=31 // pred_fallthru
        _
    $region32: #{generator_forward.7} parent=5 // pred_fallthru
      _
    %p3688 = scmp.le.s32.totalorder 2, %s9
    // Predicated region
    $region37: #{generator_forward.7} parent=5 // pred_check
      %p3689 = pneg %p3688
    $region38: #{generator_forward.7} parent=5 // pred_check_branch
      %3691 = sbr.rel (%p3689) target = $region40
    $region39: #{generator_forward.7} parent=5 // pred_region
      %s3692 = ssub.s32 %s9, 2
      // Predicated region
      $region41: #{generator_forward.7} parent=39 // pred_check
        %p3693 = pneg %p106
      $region42: #{generator_forward.7} parent=39 // pred_check_branch
        %3695 = sbr.rel (%p3693) target = $region44
      $region43: #{generator_forward.7} parent=39 // pred_region
        %s3696 = smul.u32 98, %s15
        %p3697 = scmp.lt.s32.totalorder %s3696, 195
        %s3698 = scalar_select %p3697, %s3696, 195
        %s3699 = smul.addr %s3698, 8
        %s3700 = scalar_lea.vmem %s3, %s3699
      $region44: #{generator_forward.7} parent=39 // pred_fallthru
        _
    $region40: #{generator_forward.7} parent=5 // pred_fallthru
      _
  $region6: #{generator_forward.7} parent=0 // loop_footer
    %s13 = sadd.s32 1, %s9
  $region7: #{generator_forward.7} parent=0 // loop_footer_branch
    %8 = sbr.rel target = $region3
  $region8: #{generator_forward.7} parent=0 // loop_exit
    _

</llo_original>
